<compile_context>
chip_gen: v6e
topology: v6e:2x2x1
jax: 0.10.0
libtpu: 0.0.40
codegen_flags: <defaults>
</compile_context>

<pallas_src>
import jax
import jax.numpy as jnp
from jax.experimental import pallas as pl
from jax.experimental.pallas import tpu as pltpu


# --------------------------------------------------------------------------
# Fused kernel: t equilibrium steps, each = Potential forward + analytic VJP
# --------------------------------------------------------------------------
def _make_kernel(t_steps, alpha, reg_weight, ln_eps):
    def kernel(x_ref, st_ref, s_ref,
               w1xT_ref, w1yT_ref, w1y_ref, b1_ref,
               w2T_ref, w2_ref, b2_ref,
               w3T_ref, w3_ref, b3_ref,
               g1_ref, be1_ref, g2_ref, be2_ref,
               y_ref, grads_ref):
        x = x_ref[...]                       # (N, in_dim)
        st = st_ref[...]                     # (N, bsize)   node <- graph broadcast
        s = s_ref[...]                       # (bsize, N)   graph <- node reduction
        w1yT = w1yT_ref[...]
        w1y = w1y_ref[...]
        w2T = w2T_ref[...]
        w2 = w2_ref[...]
        w3T = w3T_ref[...]
        w3 = w3_ref[...]
        g1 = g1_ref[...]
        be1 = be1_ref[...]
        g2 = g2_ref[...]
        be2 = be2_ref[...]
        b2 = b2_ref[...]
        b3 = b3_ref[...]

        in_dim = y_ref.shape[1]
        n_out = b3.shape[1]

        # Loop-invariant x part of fc1, hoisted out of the t-loop.
        a1x = jnp.dot(x, w1xT_ref[...],
                      preferred_element_type=jnp.float32) + b1_ref[...]

        y = jnp.zeros(y_ref.shape, jnp.float32)

        for i in range(t_steps):
            # ---------------- Potential forward ----------------
            yn = jnp.dot(st, y, preferred_element_type=jnp.float32)    # (N, in_dim)
            a1 = a1x + jnp.dot(yn, w1yT, preferred_element_type=jnp.float32)
            t1 = jnp.tanh(a1)
            mu1 = jnp.mean(t1, axis=-1, keepdims=True)
            c1 = t1 - mu1
            v1 = jnp.mean(c1 * c1, axis=-1, keepdims=True)
            inv1 = jax.lax.rsqrt(v1 + ln_eps)
            xh1 = c1 * inv1
            h1 = xh1 * g1 + be1

            a2 = jnp.dot(h1, w2T, preferred_element_type=jnp.float32) + b2
            t2 = jnp.tanh(a2)
            mu2 = jnp.mean(t2, axis=-1, keepdims=True)
            c2 = t2 - mu2
            v2 = jnp.mean(c2 * c2, axis=-1, keepdims=True)
            inv2 = jax.lax.rsqrt(v2 + ln_eps)
            xh2 = c2 * inv2
            h2 = xh2 * g2 + be2

            p = jnp.dot(h2, w3T, preferred_element_type=jnp.float32) + b3  # (N, 10)

            # ---------------- analytic backward (d u / d y) ----------------
            dp = p * (2.0 / n_out)                                  # d mean(p^2)/dp
            dh2 = jnp.dot(dp, w3, preferred_element_type=jnp.float32)
            dxh2 = dh2 * g2
            m2a = jnp.mean(dxh2, axis=-1, keepdims=True)
            m2b = jnp.mean(dxh2 * xh2, axis=-1, keepdims=True)
            dt2 = inv2 * (dxh2 - m2a - xh2 * m2b)
            da2 = dt2 * (1.0 - t2 * t2)

            dh1 = jnp.dot(da2, w2, preferred_element_type=jnp.float32)
            dxh1 = dh1 * g1
            m1a = jnp.mean(dxh1, axis=-1, keepdims=True)
            m1b = jnp.mean(dxh1 * xh1, axis=-1, keepdims=True)
            dt1 = inv1 * (dxh1 - m1a - xh1 * m1b)
            da1 = dt1 * (1.0 - t1 * t1)

            dyn = jnp.dot(da1, w1y, preferred_element_type=jnp.float32)   # (N, in_dim)
            dy = jnp.dot(s, dyn, preferred_element_type=jnp.float32) \
                + (2.0 * reg_weight / in_dim) * y                          # (bsize, in_dim)

            grads_ref[i] = dy
            y = y - alpha * dy

        y_ref[...] = y

    return kernel


# --------------------------------------------------------------------------
# Wrapper
# --------------------------------------------------------------------------
def equilibrium_agg_forward(x, batch_ids, params, *, t=10, alpha=0.1,
                            reg_weight=0.001, ln_eps=1e-5):
    n_total, in_dim = x.shape
    h2 = params["w2"].shape[0]
    n_out = params["w3"].shape[0]

    # bsize = batch.max().item() + 1  (host read, mirrors the torch code)
    bsize = int(jax.device_get(jnp.max(batch_ids))) + 1

    # Segment-indicator matrix: s[b, n] = 1 iff node n belongs to graph b.
    s = (batch_ids[None, :] ==
         jnp.arange(bsize, dtype=batch_ids.dtype)[:, None]).astype(jnp.float32)
    st = s.T

    # fc1 split into x-columns and y-columns (parameter glue).
    w1 = params["w1"]
    w1xT = jnp.transpose(w1[:, :in_dim])
    w1y = w1[:, in_dim:]
    w1yT = jnp.transpose(w1y)
    w2 = params["w2"]
    w3 = params["w3"]
    b1 = params["b1"][None, :]
    b2 = params["b2"][None, :]
    b3 = params["b3"][None, :]
    g1 = params["g1"][None, :]
    be1 = params["be1"][None, :]
    g2 = params["g2"][None, :]
    be2 = params["be2"][None, :]

    def full(shape):
        nd = len(shape)
        return pl.BlockSpec(shape, lambda i, _nd=nd: (0,) * _nd)

    kernel = _make_kernel(t, alpha, reg_weight, ln_eps)

    y_out, grads_out = pl.pallas_call(
        kernel,
        out_shape=(jax.ShapeDtypeStruct((bsize, in_dim), jnp.float32),
                   jax.ShapeDtypeStruct((t, bsize, in_dim), jnp.float32)),
        grid=(1,),
        in_specs=[
            full((n_total, in_dim)),     # x
            full((n_total, bsize)),      # S^T
            full((bsize, n_total)),      # S
            full((in_dim, in_dim)),      # W1x^T
            full((in_dim, in_dim)),      # W1y^T
            full((in_dim, in_dim)),      # W1y
            full((1, in_dim)),           # b1
            full((in_dim, h2)),          # W2^T
            full((h2, in_dim)),          # W2
            full((1, h2)),               # b2
            full((h2, n_out)),           # W3^T
            full((n_out, h2)),           # W3
            full((1, n_out)),            # b3
            full((1, in_dim)),           # ln1 gamma
            full((1, in_dim)),           # ln1 beta
            full((1, h2)),               # ln2 gamma
            full((1, h2)),               # ln2 beta
        ],
        out_specs=(full((bsize, in_dim)),
                   full((t, bsize, in_dim))),
        compiler_params=pltpu.CompilerParams(
            dimension_semantics=("arbitrary",)),
    )(x, st, s, w1xT, w1yT, w1y, b1, w2.T, w2, b2, w3.T, w3, b3,
      g1, be1, g2, be2)
    return y_out, grads_out


# --------------------------------------------------------------------------
# Deterministic synthetic parameters
# --------------------------------------------------------------------------
def init_params(key, in_dim, n_out=10):
    h2 = in_dim // 2
    ks = jax.random.split(key, 10)
    w1 = 0.2 * jax.random.normal(ks[0], (in_dim, 2 * in_dim), jnp.float32)
    b1 = 0.05 * jax.random.normal(ks[1], (in_dim,), jnp.float32)
    g1 = 1.0 + 0.1 * jax.random.normal(ks[2], (in_dim,), jnp.float32)
    be1 = 0.1 * jax.random.normal(ks[3], (in_dim,), jnp.float32)
    w2 = 0.2 * jax.random.normal(ks[4], (h2, in_dim), jnp.float32)
    b2 = 0.05 * jax.random.normal(ks[5], (h2,), jnp.float32)
    g2 = 1.0 + 0.1 * jax.random.normal(ks[6], (h2,), jnp.float32)
    be2 = 0.1 * jax.random.normal(ks[7], (h2,), jnp.float32)
    w3 = 0.2 * jax.random.normal(ks[8], (n_out, h2), jnp.float32)
    b3 = 0.05 * jax.random.normal(ks[9], (n_out,), jnp.float32)
    return dict(w1=w1, b1=b1, g1=g1, be1=be1,
                w2=w2, b2=b2, g2=g2, be2=be2,
                w3=w3, b3=b3)


# --------------------------------------------------------------------------
# Pure-JAX reference (uses jax.grad — independent check of the analytic VJP)
# --------------------------------------------------------------------------
def _layer_norm(x, g, b, eps):
    mu = jnp.mean(x, axis=-1, keepdims=True)
    v = jnp.mean((x - mu) ** 2, axis=-1, keepdims=True)
    return g * (x - mu) * jax.lax.rsqrt(v + eps) + b


def reference_forward(x, batch_ids, params, *, bsize, t, alpha, reg_weight,
                      ln_eps):
    n_total, in_dim = x.shape
    n_nodes = n_total // bsize
    xg = x.reshape(bsize, n_nodes, in_dim)

    def potential(inp):
        h = _layer_norm(jnp.tanh(inp @ params["w1"].T + params["b1"]),
                        params["g1"], params["be1"], ln_eps)
        h = _layer_norm(jnp.tanh(h @ params["w2"].T + params["b2"]),
                        params["g2"], params["be2"], ln_eps)
        return h @ params["w3"].T + params["b3"]

    def energy_sum(y):
        yb = jnp.broadcast_to(y[:, None, :], (bsize, n_nodes, in_dim))
        inp = jnp.concatenate([xg, yb], axis=-1)
        p = potential(inp)
        u = jnp.mean(p * p, axis=-1).sum(-1) + reg_weight * jnp.mean(y * y, -1)
        return u.sum()

    grad_fn = jax.grad(energy_sum)
    y = jnp.zeros((bsize, in_dim), jnp.float32)
    grads = []
    for _ in range(t):
        g = grad_fn(y)
        grads.append(g)
        y = y - alpha * g
    return y, jnp.stack(grads)


if __name__ == "__main__":
    IN_DIM = 32
    N_NODES = 8
    BSIZE = 2
    T_STEPS = 10
    ALPHA = 0.1
    REG_WEIGHT = 0.001
    LN_EPS = 1e-5

    key = jax.random.PRNGKey(0)
    k_param, k_x = jax.random.split(key)
    params = init_params(k_param, IN_DIM)

    x = jax.random.normal(k_x, (BSIZE * N_NODES, IN_DIM), jnp.float32)
    batch_ids = jnp.repeat(jnp.arange(BSIZE, dtype=jnp.int32), N_NODES)

    y_out, grads_out = equilibrium_agg_forward(
        x, batch_ids, params, t=T_STEPS, alpha=ALPHA,
        reg_weight=REG_WEIGHT, ln_eps=LN_EPS)
    jax.block_until_ready((y_out, grads_out))

    y_ref, grads_ref = reference_forward(
        x, batch_ids, params, bsize=BSIZE, t=T_STEPS, alpha=ALPHA,
        reg_weight=REG_WEIGHT, ln_eps=LN_EPS)

    if y_out.shape != (BSIZE, IN_DIM) or grads_out.shape != (T_STEPS, BSIZE, IN_DIM):
        raise AssertionError(f"bad output shapes {y_out.shape} {grads_out.shape}")
    ok_y = bool(jnp.allclose(y_out, y_ref, atol=1e-4, rtol=1e-4))
    ok_g = bool(jnp.allclose(grads_out, grads_ref, atol=1e-4, rtol=1e-4))
    if not (ok_y and ok_g):
        raise AssertionError(
            f"kernel/reference mismatch:\ny:\n{y_out}\n{y_ref}\n"
            f"grads max err: {jnp.max(jnp.abs(grads_out - grads_ref))}")
    print("KERNEL_OK")
</pallas_src>

<mosaic_0001>
module attributes {stable_mosaic.version = 11 : i64} {
  func.func @kernel(%arg0: i32, %arg1: memref<16x32xf32, #tpu.memory_space<vmem>>, %arg2: memref<16x2xf32, #tpu.memory_space<vmem>>, %arg3: memref<2x16xf32, #tpu.memory_space<vmem>>, %arg4: memref<32x32xf32, #tpu.memory_space<vmem>>, %arg5: memref<32x32xf32, #tpu.memory_space<vmem>>, %arg6: memref<32x32xf32, #tpu.memory_space<vmem>>, %arg7: memref<1x32xf32, #tpu.memory_space<vmem>>, %arg8: memref<32x16xf32, #tpu.memory_space<vmem>>, %arg9: memref<16x32xf32, #tpu.memory_space<vmem>>, %arg10: memref<1x16xf32, #tpu.memory_space<vmem>>, %arg11: memref<16x10xf32, #tpu.memory_space<vmem>>, %arg12: memref<10x16xf32, #tpu.memory_space<vmem>>, %arg13: memref<1x10xf32, #tpu.memory_space<vmem>>, %arg14: memref<1x32xf32, #tpu.memory_space<vmem>>, %arg15: memref<1x32xf32, #tpu.memory_space<vmem>>, %arg16: memref<1x16xf32, #tpu.memory_space<vmem>>, %arg17: memref<1x16xf32, #tpu.memory_space<vmem>>, %arg18: memref<2x32xf32, #tpu.memory_space<vmem>>, %arg19: memref<10x2x32xf32, #tpu.memory_space<vmem>>) attributes {dimension_semantics = [#tpu.dimension_semantics<arbitrary>], iteration_bounds = array<i64: 1>, scalar_prefetch = 0 : i64, scratch_operands = 0 : i64, tpu.core_type = #tpu.core_type<tc>, window_params = [{pipeline_mode = #tpu.pipeline_mode<synchronous>, transform_indices = @transform_0, window_bounds = array<i64: 16, 32>}, {pipeline_mode = #tpu.pipeline_mode<synchronous>, transform_indices = @transform_1, window_bounds = array<i64: 16, 2>}, {pipeline_mode = #tpu.pipeline_mode<synchronous>, transform_indices = @transform_2, window_bounds = array<i64: 2, 16>}, {pipeline_mode = #tpu.pipeline_mode<synchronous>, transform_indices = @transform_3, window_bounds = array<i64: 32, 32>}, {pipeline_mode = #tpu.pipeline_mode<synchronous>, transform_indices = @transform_4, window_bounds = array<i64: 32, 32>}, {pipeline_mode = #tpu.pipeline_mode<synchronous>, transform_indices = @transform_5, window_bounds = array<i64: 32, 32>}, {pipeline_mode = #tpu.pipeline_mode<synchronous>, transform_indices = @transform_6, window_bounds = array<i64: 1, 32>}, {pipeline_mode = #tpu.pipeline_mode<synchronous>, transform_indices = @transform_7, window_bounds = array<i64: 32, 16>}, {pipeline_mode = #tpu.pipeline_mode<synchronous>, transform_indices = @transform_8, window_bounds = array<i64: 16, 32>}, {pipeline_mode = #tpu.pipeline_mode<synchronous>, transform_indices = @transform_9, window_bounds = array<i64: 1, 16>}, {pipeline_mode = #tpu.pipeline_mode<synchronous>, transform_indices = @transform_10, window_bounds = array<i64: 16, 10>}, {pipeline_mode = #tpu.pipeline_mode<synchronous>, transform_indices = @transform_11, window_bounds = array<i64: 10, 16>}, {pipeline_mode = #tpu.pipeline_mode<synchronous>, transform_indices = @transform_12, window_bounds = array<i64: 1, 10>}, {pipeline_mode = #tpu.pipeline_mode<synchronous>, transform_indices = @transform_13, window_bounds = array<i64: 1, 32>}, {pipeline_mode = #tpu.pipeline_mode<synchronous>, transform_indices = @transform_14, window_bounds = array<i64: 1, 32>}, {pipeline_mode = #tpu.pipeline_mode<synchronous>, transform_indices = @transform_15, window_bounds = array<i64: 1, 16>}, {pipeline_mode = #tpu.pipeline_mode<synchronous>, transform_indices = @transform_16, window_bounds = array<i64: 1, 16>}, {pipeline_mode = #tpu.pipeline_mode<synchronous>, transform_indices = @transform_17, window_bounds = array<i64: 2, 32>}, {pipeline_mode = #tpu.pipeline_mode<synchronous>, transform_indices = @transform_18, window_bounds = array<i64: 10, 2, 32>}]} {
    %c0 = arith.constant 0 : index
    %c0_0 = arith.constant 0 : index
    %0 = vector.load %arg1[%c0, %c0_0] : memref<16x32xf32, #tpu.memory_space<vmem>>, vector<16x32xf32>
    %c0_1 = arith.constant 0 : index
    %c0_2 = arith.constant 0 : index
    %1 = vector.load %arg2[%c0_1, %c0_2] : memref<16x2xf32, #tpu.memory_space<vmem>>, vector<16x2xf32>
    %c0_3 = arith.constant 0 : index
    %c0_4 = arith.constant 0 : index
    %2 = vector.load %arg3[%c0_3, %c0_4] : memref<2x16xf32, #tpu.memory_space<vmem>>, vector<2x16xf32>
    %c0_5 = arith.constant 0 : index
    %c0_6 = arith.constant 0 : index
    %3 = vector.load %arg5[%c0_5, %c0_6] : memref<32x32xf32, #tpu.memory_space<vmem>>, vector<32x32xf32>
    %c0_7 = arith.constant 0 : index
    %c0_8 = arith.constant 0 : index
    %4 = vector.load %arg6[%c0_7, %c0_8] : memref<32x32xf32, #tpu.memory_space<vmem>>, vector<32x32xf32>
    %c0_9 = arith.constant 0 : index
    %c0_10 = arith.constant 0 : index
    %5 = vector.load %arg8[%c0_9, %c0_10] : memref<32x16xf32, #tpu.memory_space<vmem>>, vector<32x16xf32>
    %c0_11 = arith.constant 0 : index
    %c0_12 = arith.constant 0 : index
    %6 = vector.load %arg9[%c0_11, %c0_12] : memref<16x32xf32, #tpu.memory_space<vmem>>, vector<16x32xf32>
    %c0_13 = arith.constant 0 : index
    %c0_14 = arith.constant 0 : index
    %7 = vector.load %arg11[%c0_13, %c0_14] : memref<16x10xf32, #tpu.memory_space<vmem>>, vector<16x10xf32>
    %c0_15 = arith.constant 0 : index
    %c0_16 = arith.constant 0 : index
    %8 = vector.load %arg12[%c0_15, %c0_16] : memref<10x16xf32, #tpu.memory_space<vmem>>, vector<10x16xf32>
    %c0_17 = arith.constant 0 : index
    %c0_18 = arith.constant 0 : index
    %9 = vector.load %arg14[%c0_17, %c0_18] : memref<1x32xf32, #tpu.memory_space<vmem>>, vector<1x32xf32>
    %c0_19 = arith.constant 0 : index
    %c0_20 = arith.constant 0 : index
    %10 = vector.load %arg15[%c0_19, %c0_20] : memref<1x32xf32, #tpu.memory_space<vmem>>, vector<1x32xf32>
    %c0_21 = arith.constant 0 : index
    %c0_22 = arith.constant 0 : index
    %11 = vector.load %arg16[%c0_21, %c0_22] : memref<1x16xf32, #tpu.memory_space<vmem>>, vector<1x16xf32>
    %c0_23 = arith.constant 0 : index
    %c0_24 = arith.constant 0 : index
    %12 = vector.load %arg17[%c0_23, %c0_24] : memref<1x16xf32, #tpu.memory_space<vmem>>, vector<1x16xf32>
    %c0_25 = arith.constant 0 : index
    %c0_26 = arith.constant 0 : index
    %13 = vector.load %arg10[%c0_25, %c0_26] : memref<1x16xf32, #tpu.memory_space<vmem>>, vector<1x16xf32>
    %c0_27 = arith.constant 0 : index
    %c0_28 = arith.constant 0 : index
    %14 = vector.load %arg13[%c0_27, %c0_28] : memref<1x10xf32, #tpu.memory_space<vmem>>, vector<1x10xf32>
    %c0_29 = arith.constant 0 : index
    %c0_30 = arith.constant 0 : index
    %15 = vector.load %arg4[%c0_29, %c0_30] : memref<32x32xf32, #tpu.memory_space<vmem>>, vector<32x32xf32>
    %cst = arith.constant dense<0.000000e+00> : vector<16x32xf32>
    %16 = tpu.matmul %0, %15, %cst {dimension_numbers = #tpu.dot_dimension_numbers<[1], [0], [0], [1], [0, 0, 1, 1], [], []>} : vector<16x32xf32>, vector<32x32xf32>, vector<16x32xf32> -> vector<16x32xf32>
    %c0_31 = arith.constant 0 : index
    %c0_32 = arith.constant 0 : index
    %17 = vector.load %arg7[%c0_31, %c0_32] : memref<1x32xf32, #tpu.memory_space<vmem>>, vector<1x32xf32>
    %18 = vector.broadcast %17 : vector<1x32xf32> to vector<16x32xf32>
    %19 = arith.addf %16, %18 : vector<16x32xf32>
    %cst_33 = arith.constant 0.000000e+00 : f32
    %20 = vector.broadcast %cst_33 : f32 to vector<2x32xf32>
    %cst_34 = arith.constant dense<0.000000e+00> : vector<16x32xf32>
    %21 = tpu.matmul %1, %20, %cst_34 {dimension_numbers = #tpu.dot_dimension_numbers<[1], [0], [0], [1], [0, 0, 1, 1], [], []>} : vector<16x2xf32>, vector<2x32xf32>, vector<16x32xf32> -> vector<16x32xf32>
    %cst_35 = arith.constant dense<0.000000e+00> : vector<16x32xf32>
    %22 = tpu.matmul %21, %3, %cst_35 {dimension_numbers = #tpu.dot_dimension_numbers<[1], [0], [0], [1], [0, 0, 1, 1], [], []>} : vector<16x32xf32>, vector<32x32xf32>, vector<16x32xf32> -> vector<16x32xf32>
    %23 = arith.addf %19, %22 : vector<16x32xf32>
    %24 = math.tanh %23 : vector<16x32xf32>
    %cst_36 = arith.constant dense<0.000000e+00> : vector<16xf32>
    %25 = vector.multi_reduction <add>, %24, %cst_36 [1] : vector<16x32xf32> to vector<16xf32>
    %26 = vector.shape_cast %25 : vector<16xf32> to vector<16x1xf32>
    %cst_37 = arith.constant 3.200000e+01 : f32
    %27 = vector.broadcast %cst_37 : f32 to vector<16x1xf32>
    %28 = arith.divf %26, %27 : vector<16x1xf32>
    %29 = vector.broadcast %28 : vector<16x1xf32> to vector<16x32xf32>
    %30 = arith.subf %24, %29 : vector<16x32xf32>
    %31 = arith.mulf %30, %30 : vector<16x32xf32>
    %cst_38 = arith.constant dense<0.000000e+00> : vector<16xf32>
    %32 = vector.multi_reduction <add>, %31, %cst_38 [1] : vector<16x32xf32> to vector<16xf32>
    %33 = vector.shape_cast %32 : vector<16xf32> to vector<16x1xf32>
    %cst_39 = arith.constant 3.200000e+01 : f32
    %34 = vector.broadcast %cst_39 : f32 to vector<16x1xf32>
    %35 = arith.divf %33, %34 : vector<16x1xf32>
    %cst_40 = arith.constant 9.99999974E-6 : f32
    %36 = vector.broadcast %cst_40 : f32 to vector<16x1xf32>
    %37 = arith.addf %35, %36 : vector<16x1xf32>
    %38 = math.rsqrt %37 : vector<16x1xf32>
    %39 = vector.broadcast %38 : vector<16x1xf32> to vector<16x32xf32>
    %40 = arith.mulf %30, %39 : vector<16x32xf32>
    %41 = vector.broadcast %9 : vector<1x32xf32> to vector<16x32xf32>
    %42 = arith.mulf %40, %41 : vector<16x32xf32>
    %43 = vector.broadcast %10 : vector<1x32xf32> to vector<16x32xf32>
    %44 = arith.addf %42, %43 : vector<16x32xf32>
    %cst_41 = arith.constant dense<0.000000e+00> : vector<16x16xf32>
    %45 = tpu.matmul %44, %5, %cst_41 {dimension_numbers = #tpu.dot_dimension_numbers<[1], [0], [0], [1], [0, 0, 1, 1], [], []>} : vector<16x32xf32>, vector<32x16xf32>, vector<16x16xf32> -> vector<16x16xf32>
    %46 = vector.broadcast %13 : vector<1x16xf32> to vector<16x16xf32>
    %47 = arith.addf %45, %46 : vector<16x16xf32>
    %48 = math.tanh %47 : vector<16x16xf32>
    %cst_42 = arith.constant dense<0.000000e+00> : vector<16xf32>
    %49 = vector.multi_reduction <add>, %48, %cst_42 [1] : vector<16x16xf32> to vector<16xf32>
    %50 = vector.shape_cast %49 : vector<16xf32> to vector<16x1xf32>
    %cst_43 = arith.constant 1.600000e+01 : f32
    %51 = vector.broadcast %cst_43 : f32 to vector<16x1xf32>
    %52 = arith.divf %50, %51 : vector<16x1xf32>
    %53 = vector.broadcast %52 : vector<16x1xf32> to vector<16x16xf32>
    %54 = arith.subf %48, %53 : vector<16x16xf32>
    %55 = arith.mulf %54, %54 : vector<16x16xf32>
    %cst_44 = arith.constant dense<0.000000e+00> : vector<16xf32>
    %56 = vector.multi_reduction <add>, %55, %cst_44 [1] : vector<16x16xf32> to vector<16xf32>
    %57 = vector.shape_cast %56 : vector<16xf32> to vector<16x1xf32>
    %cst_45 = arith.constant 1.600000e+01 : f32
    %58 = vector.broadcast %cst_45 : f32 to vector<16x1xf32>
    %59 = arith.divf %57, %58 : vector<16x1xf32>
    %cst_46 = arith.constant 9.99999974E-6 : f32
    %60 = vector.broadcast %cst_46 : f32 to vector<16x1xf32>
    %61 = arith.addf %59, %60 : vector<16x1xf32>
    %62 = math.rsqrt %61 : vector<16x1xf32>
    %63 = vector.broadcast %62 : vector<16x1xf32> to vector<16x16xf32>
    %64 = arith.mulf %54, %63 : vector<16x16xf32>
    %65 = vector.broadcast %11 : vector<1x16xf32> to vector<16x16xf32>
    %66 = arith.mulf %64, %65 : vector<16x16xf32>
    %67 = vector.broadcast %12 : vector<1x16xf32> to vector<16x16xf32>
    %68 = arith.addf %66, %67 : vector<16x16xf32>
    %cst_47 = arith.constant dense<0.000000e+00> : vector<16x10xf32>
    %69 = tpu.matmul %68, %7, %cst_47 {dimension_numbers = #tpu.dot_dimension_numbers<[1], [0], [0], [1], [0, 0, 1, 1], [], []>} : vector<16x16xf32>, vector<16x10xf32>, vector<16x10xf32> -> vector<16x10xf32>
    %70 = vector.broadcast %14 : vector<1x10xf32> to vector<16x10xf32>
    %71 = arith.addf %69, %70 : vector<16x10xf32>
    %cst_48 = arith.constant 2.000000e-01 : f32
    %72 = vector.broadcast %cst_48 : f32 to vector<16x10xf32>
    %73 = arith.mulf %71, %72 : vector<16x10xf32>
    %cst_49 = arith.constant dense<0.000000e+00> : vector<16x16xf32>
    %74 = tpu.matmul %73, %8, %cst_49 {dimension_numbers = #tpu.dot_dimension_numbers<[1], [0], [0], [1], [0, 0, 1, 1], [], []>} : vector<16x10xf32>, vector<10x16xf32>, vector<16x16xf32> -> vector<16x16xf32>
    %75 = vector.broadcast %11 : vector<1x16xf32> to vector<16x16xf32>
    %76 = arith.mulf %74, %75 : vector<16x16xf32>
    %cst_50 = arith.constant dense<0.000000e+00> : vector<16xf32>
    %77 = vector.multi_reduction <add>, %76, %cst_50 [1] : vector<16x16xf32> to vector<16xf32>
    %78 = vector.shape_cast %77 : vector<16xf32> to vector<16x1xf32>
    %cst_51 = arith.constant 1.600000e+01 : f32
    %79 = vector.broadcast %cst_51 : f32 to vector<16x1xf32>
    %80 = arith.divf %78, %79 : vector<16x1xf32>
    %81 = arith.mulf %76, %64 : vector<16x16xf32>
    %cst_52 = arith.constant dense<0.000000e+00> : vector<16xf32>
    %82 = vector.multi_reduction <add>, %81, %cst_52 [1] : vector<16x16xf32> to vector<16xf32>
    %83 = vector.shape_cast %82 : vector<16xf32> to vector<16x1xf32>
    %cst_53 = arith.constant 1.600000e+01 : f32
    %84 = vector.broadcast %cst_53 : f32 to vector<16x1xf32>
    %85 = arith.divf %83, %84 : vector<16x1xf32>
    %86 = vector.broadcast %80 : vector<16x1xf32> to vector<16x16xf32>
    %87 = arith.subf %76, %86 : vector<16x16xf32>
    %88 = vector.broadcast %85 : vector<16x1xf32> to vector<16x16xf32>
    %89 = arith.mulf %64, %88 : vector<16x16xf32>
    %90 = arith.subf %87, %89 : vector<16x16xf32>
    %91 = vector.broadcast %62 : vector<16x1xf32> to vector<16x16xf32>
    %92 = arith.mulf %91, %90 : vector<16x16xf32>
    %93 = arith.mulf %48, %48 : vector<16x16xf32>
    %cst_54 = arith.constant 1.000000e+00 : f32
    %94 = vector.broadcast %cst_54 : f32 to vector<16x16xf32>
    %95 = arith.subf %94, %93 : vector<16x16xf32>
    %96 = arith.mulf %92, %95 : vector<16x16xf32>
    %cst_55 = arith.constant dense<0.000000e+00> : vector<16x32xf32>
    %97 = tpu.matmul %96, %6, %cst_55 {dimension_numbers = #tpu.dot_dimension_numbers<[1], [0], [0], [1], [0, 0, 1, 1], [], []>} : vector<16x16xf32>, vector<16x32xf32>, vector<16x32xf32> -> vector<16x32xf32>
    %98 = vector.broadcast %9 : vector<1x32xf32> to vector<16x32xf32>
    %99 = arith.mulf %97, %98 : vector<16x32xf32>
    %cst_56 = arith.constant dense<0.000000e+00> : vector<16xf32>
    %100 = vector.multi_reduction <add>, %99, %cst_56 [1] : vector<16x32xf32> to vector<16xf32>
    %101 = vector.shape_cast %100 : vector<16xf32> to vector<16x1xf32>
    %cst_57 = arith.constant 3.200000e+01 : f32
    %102 = vector.broadcast %cst_57 : f32 to vector<16x1xf32>
    %103 = arith.divf %101, %102 : vector<16x1xf32>
    %104 = arith.mulf %99, %40 : vector<16x32xf32>
    %cst_58 = arith.constant dense<0.000000e+00> : vector<16xf32>
    %105 = vector.multi_reduction <add>, %104, %cst_58 [1] : vector<16x32xf32> to vector<16xf32>
    %106 = vector.shape_cast %105 : vector<16xf32> to vector<16x1xf32>
    %cst_59 = arith.constant 3.200000e+01 : f32
    %107 = vector.broadcast %cst_59 : f32 to vector<16x1xf32>
    %108 = arith.divf %106, %107 : vector<16x1xf32>
    %109 = vector.broadcast %103 : vector<16x1xf32> to vector<16x32xf32>
    %110 = arith.subf %99, %109 : vector<16x32xf32>
    %111 = vector.broadcast %108 : vector<16x1xf32> to vector<16x32xf32>
    %112 = arith.mulf %40, %111 : vector<16x32xf32>
    %113 = arith.subf %110, %112 : vector<16x32xf32>
    %114 = vector.broadcast %38 : vector<16x1xf32> to vector<16x32xf32>
    %115 = arith.mulf %114, %113 : vector<16x32xf32>
    %116 = arith.mulf %24, %24 : vector<16x32xf32>
    %cst_60 = arith.constant 1.000000e+00 : f32
    %117 = vector.broadcast %cst_60 : f32 to vector<16x32xf32>
    %118 = arith.subf %117, %116 : vector<16x32xf32>
    %119 = arith.mulf %115, %118 : vector<16x32xf32>
    %cst_61 = arith.constant dense<0.000000e+00> : vector<16x32xf32>
    %120 = tpu.matmul %119, %4, %cst_61 {dimension_numbers = #tpu.dot_dimension_numbers<[1], [0], [0], [1], [0, 0, 1, 1], [], []>} : vector<16x32xf32>, vector<32x32xf32>, vector<16x32xf32> -> vector<16x32xf32>
    %cst_62 = arith.constant dense<0.000000e+00> : vector<2x32xf32>
    %121 = tpu.matmul %2, %120, %cst_62 {dimension_numbers = #tpu.dot_dimension_numbers<[1], [0], [0], [1], [0, 0, 1, 1], [], []>} : vector<2x16xf32>, vector<16x32xf32>, vector<2x32xf32> -> vector<2x32xf32>
    %cst_63 = arith.constant 6.250000e-05 : f32
    %122 = vector.broadcast %cst_63 : f32 to vector<2x32xf32>
    %123 = arith.mulf %122, %20 : vector<2x32xf32>
    %124 = arith.addf %121, %123 : vector<2x32xf32>
    %c0_64 = arith.constant 0 : index
    %c0_65 = arith.constant 0 : index
    %c0_66 = arith.constant 0 : index
    %125 = vector.load %arg19[%c0_64, %c0_65, %c0_66] : memref<10x2x32xf32, #tpu.memory_space<vmem>>, vector<1x2x32xf32>
    %126 = vector.shape_cast %125 : vector<1x2x32xf32> to vector<2x32xf32>
    %127 = vector.shape_cast %124 : vector<2x32xf32> to vector<1x2x32xf32>
    tpu.vector_store %arg19[%c0_64, %c0_65, %c0_66], %127 {strides = array<i32>} : memref<10x2x32xf32, #tpu.memory_space<vmem>>, vector<1x2x32xf32>,
    %cst_67 = arith.constant 1.000000e-01 : f32
    %128 = vector.broadcast %cst_67 : f32 to vector<2x32xf32>
    %129 = arith.mulf %128, %124 : vector<2x32xf32>
    %130 = arith.subf %20, %129 : vector<2x32xf32>
    %cst_68 = arith.constant dense<0.000000e+00> : vector<16x32xf32>
    %131 = tpu.matmul %1, %130, %cst_68 {dimension_numbers = #tpu.dot_dimension_numbers<[1], [0], [0], [1], [0, 0, 1, 1], [], []>} : vector<16x2xf32>, vector<2x32xf32>, vector<16x32xf32> -> vector<16x32xf32>
    %cst_69 = arith.constant dense<0.000000e+00> : vector<16x32xf32>
    %132 = tpu.matmul %131, %3, %cst_69 {dimension_numbers = #tpu.dot_dimension_numbers<[1], [0], [0], [1], [0, 0, 1, 1], [], []>} : vector<16x32xf32>, vector<32x32xf32>, vector<16x32xf32> -> vector<16x32xf32>
    %133 = arith.addf %19, %132 : vector<16x32xf32>
    %134 = math.tanh %133 : vector<16x32xf32>
    %cst_70 = arith.constant dense<0.000000e+00> : vector<16xf32>
    %135 = vector.multi_reduction <add>, %134, %cst_70 [1] : vector<16x32xf32> to vector<16xf32>
    %136 = vector.shape_cast %135 : vector<16xf32> to vector<16x1xf32>
    %cst_71 = arith.constant 3.200000e+01 : f32
    %137 = vector.broadcast %cst_71 : f32 to vector<16x1xf32>
    %138 = arith.divf %136, %137 : vector<16x1xf32>
    %139 = vector.broadcast %138 : vector<16x1xf32> to vector<16x32xf32>
    %140 = arith.subf %134, %139 : vector<16x32xf32>
    %141 = arith.mulf %140, %140 : vector<16x32xf32>
    %cst_72 = arith.constant dense<0.000000e+00> : vector<16xf32>
    %142 = vector.multi_reduction <add>, %141, %cst_72 [1] : vector<16x32xf32> to vector<16xf32>
    %143 = vector.shape_cast %142 : vector<16xf32> to vector<16x1xf32>
    %cst_73 = arith.constant 3.200000e+01 : f32
    %144 = vector.broadcast %cst_73 : f32 to vector<16x1xf32>
    %145 = arith.divf %143, %144 : vector<16x1xf32>
    %cst_74 = arith.constant 9.99999974E-6 : f32
    %146 = vector.broadcast %cst_74 : f32 to vector<16x1xf32>
    %147 = arith.addf %145, %146 : vector<16x1xf32>
    %148 = math.rsqrt %147 : vector<16x1xf32>
    %149 = vector.broadcast %148 : vector<16x1xf32> to vector<16x32xf32>
    %150 = arith.mulf %140, %149 : vector<16x32xf32>
    %151 = vector.broadcast %9 : vector<1x32xf32> to vector<16x32xf32>
    %152 = arith.mulf %150, %151 : vector<16x32xf32>
    %153 = vector.broadcast %10 : vector<1x32xf32> to vector<16x32xf32>
    %154 = arith.addf %152, %153 : vector<16x32xf32>
    %cst_75 = arith.constant dense<0.000000e+00> : vector<16x16xf32>
    %155 = tpu.matmul %154, %5, %cst_75 {dimension_numbers = #tpu.dot_dimension_numbers<[1], [0], [0], [1], [0, 0, 1, 1], [], []>} : vector<16x32xf32>, vector<32x16xf32>, vector<16x16xf32> -> vector<16x16xf32>
    %156 = vector.broadcast %13 : vector<1x16xf32> to vector<16x16xf32>
    %157 = arith.addf %155, %156 : vector<16x16xf32>
    %158 = math.tanh %157 : vector<16x16xf32>
    %cst_76 = arith.constant dense<0.000000e+00> : vector<16xf32>
    %159 = vector.multi_reduction <add>, %158, %cst_76 [1] : vector<16x16xf32> to vector<16xf32>
    %160 = vector.shape_cast %159 : vector<16xf32> to vector<16x1xf32>
    %cst_77 = arith.constant 1.600000e+01 : f32
    %161 = vector.broadcast %cst_77 : f32 to vector<16x1xf32>
    %162 = arith.divf %160, %161 : vector<16x1xf32>
    %163 = vector.broadcast %162 : vector<16x1xf32> to vector<16x16xf32>
    %164 = arith.subf %158, %163 : vector<16x16xf32>
    %165 = arith.mulf %164, %164 : vector<16x16xf32>
    %cst_78 = arith.constant dense<0.000000e+00> : vector<16xf32>
    %166 = vector.multi_reduction <add>, %165, %cst_78 [1] : vector<16x16xf32> to vector<16xf32>
    %167 = vector.shape_cast %166 : vector<16xf32> to vector<16x1xf32>
    %cst_79 = arith.constant 1.600000e+01 : f32
    %168 = vector.broadcast %cst_79 : f32 to vector<16x1xf32>
    %169 = arith.divf %167, %168 : vector<16x1xf32>
    %cst_80 = arith.constant 9.99999974E-6 : f32
    %170 = vector.broadcast %cst_80 : f32 to vector<16x1xf32>
    %171 = arith.addf %169, %170 : vector<16x1xf32>
    %172 = math.rsqrt %171 : vector<16x1xf32>
    %173 = vector.broadcast %172 : vector<16x1xf32> to vector<16x16xf32>
    %174 = arith.mulf %164, %173 : vector<16x16xf32>
    %175 = vector.broadcast %11 : vector<1x16xf32> to vector<16x16xf32>
    %176 = arith.mulf %174, %175 : vector<16x16xf32>
    %177 = vector.broadcast %12 : vector<1x16xf32> to vector<16x16xf32>
    %178 = arith.addf %176, %177 : vector<16x16xf32>
    %cst_81 = arith.constant dense<0.000000e+00> : vector<16x10xf32>
    %179 = tpu.matmul %178, %7, %cst_81 {dimension_numbers = #tpu.dot_dimension_numbers<[1], [0], [0], [1], [0, 0, 1, 1], [], []>} : vector<16x16xf32>, vector<16x10xf32>, vector<16x10xf32> -> vector<16x10xf32>
    %180 = vector.broadcast %14 : vector<1x10xf32> to vector<16x10xf32>
    %181 = arith.addf %179, %180 : vector<16x10xf32>
    %cst_82 = arith.constant 2.000000e-01 : f32
    %182 = vector.broadcast %cst_82 : f32 to vector<16x10xf32>
    %183 = arith.mulf %181, %182 : vector<16x10xf32>
    %cst_83 = arith.constant dense<0.000000e+00> : vector<16x16xf32>
    %184 = tpu.matmul %183, %8, %cst_83 {dimension_numbers = #tpu.dot_dimension_numbers<[1], [0], [0], [1], [0, 0, 1, 1], [], []>} : vector<16x10xf32>, vector<10x16xf32>, vector<16x16xf32> -> vector<16x16xf32>
    %185 = vector.broadcast %11 : vector<1x16xf32> to vector<16x16xf32>
    %186 = arith.mulf %184, %185 : vector<16x16xf32>
    %cst_84 = arith.constant dense<0.000000e+00> : vector<16xf32>
    %187 = vector.multi_reduction <add>, %186, %cst_84 [1] : vector<16x16xf32> to vector<16xf32>
    %188 = vector.shape_cast %187 : vector<16xf32> to vector<16x1xf32>
    %cst_85 = arith.constant 1.600000e+01 : f32
    %189 = vector.broadcast %cst_85 : f32 to vector<16x1xf32>
    %190 = arith.divf %188, %189 : vector<16x1xf32>
    %191 = arith.mulf %186, %174 : vector<16x16xf32>
    %cst_86 = arith.constant dense<0.000000e+00> : vector<16xf32>
    %192 = vector.multi_reduction <add>, %191, %cst_86 [1] : vector<16x16xf32> to vector<16xf32>
    %193 = vector.shape_cast %192 : vector<16xf32> to vector<16x1xf32>
    %cst_87 = arith.constant 1.600000e+01 : f32
    %194 = vector.broadcast %cst_87 : f32 to vector<16x1xf32>
    %195 = arith.divf %193, %194 : vector<16x1xf32>
    %196 = vector.broadcast %190 : vector<16x1xf32> to vector<16x16xf32>
    %197 = arith.subf %186, %196 : vector<16x16xf32>
    %198 = vector.broadcast %195 : vector<16x1xf32> to vector<16x16xf32>
    %199 = arith.mulf %174, %198 : vector<16x16xf32>
    %200 = arith.subf %197, %199 : vector<16x16xf32>
    %201 = vector.broadcast %172 : vector<16x1xf32> to vector<16x16xf32>
    %202 = arith.mulf %201, %200 : vector<16x16xf32>
    %203 = arith.mulf %158, %158 : vector<16x16xf32>
    %cst_88 = arith.constant 1.000000e+00 : f32
    %204 = vector.broadcast %cst_88 : f32 to vector<16x16xf32>
    %205 = arith.subf %204, %203 : vector<16x16xf32>
    %206 = arith.mulf %202, %205 : vector<16x16xf32>
    %cst_89 = arith.constant dense<0.000000e+00> : vector<16x32xf32>
    %207 = tpu.matmul %206, %6, %cst_89 {dimension_numbers = #tpu.dot_dimension_numbers<[1], [0], [0], [1], [0, 0, 1, 1], [], []>} : vector<16x16xf32>, vector<16x32xf32>, vector<16x32xf32> -> vector<16x32xf32>
    %208 = vector.broadcast %9 : vector<1x32xf32> to vector<16x32xf32>
    %209 = arith.mulf %207, %208 : vector<16x32xf32>
    %cst_90 = arith.constant dense<0.000000e+00> : vector<16xf32>
    %210 = vector.multi_reduction <add>, %209, %cst_90 [1] : vector<16x32xf32> to vector<16xf32>
    %211 = vector.shape_cast %210 : vector<16xf32> to vector<16x1xf32>
    %cst_91 = arith.constant 3.200000e+01 : f32
    %212 = vector.broadcast %cst_91 : f32 to vector<16x1xf32>
    %213 = arith.divf %211, %212 : vector<16x1xf32>
    %214 = arith.mulf %209, %150 : vector<16x32xf32>
    %cst_92 = arith.constant dense<0.000000e+00> : vector<16xf32>
    %215 = vector.multi_reduction <add>, %214, %cst_92 [1] : vector<16x32xf32> to vector<16xf32>
    %216 = vector.shape_cast %215 : vector<16xf32> to vector<16x1xf32>
    %cst_93 = arith.constant 3.200000e+01 : f32
    %217 = vector.broadcast %cst_93 : f32 to vector<16x1xf32>
    %218 = arith.divf %216, %217 : vector<16x1xf32>
    %219 = vector.broadcast %213 : vector<16x1xf32> to vector<16x32xf32>
    %220 = arith.subf %209, %219 : vector<16x32xf32>
    %221 = vector.broadcast %218 : vector<16x1xf32> to vector<16x32xf32>
    %222 = arith.mulf %150, %221 : vector<16x32xf32>
    %223 = arith.subf %220, %222 : vector<16x32xf32>
    %224 = vector.broadcast %148 : vector<16x1xf32> to vector<16x32xf32>
    %225 = arith.mulf %224, %223 : vector<16x32xf32>
    %226 = arith.mulf %134, %134 : vector<16x32xf32>
    %cst_94 = arith.constant 1.000000e+00 : f32
    %227 = vector.broadcast %cst_94 : f32 to vector<16x32xf32>
    %228 = arith.subf %227, %226 : vector<16x32xf32>
    %229 = arith.mulf %225, %228 : vector<16x32xf32>
    %cst_95 = arith.constant dense<0.000000e+00> : vector<16x32xf32>
    %230 = tpu.matmul %229, %4, %cst_95 {dimension_numbers = #tpu.dot_dimension_numbers<[1], [0], [0], [1], [0, 0, 1, 1], [], []>} : vector<16x32xf32>, vector<32x32xf32>, vector<16x32xf32> -> vector<16x32xf32>
    %cst_96 = arith.constant dense<0.000000e+00> : vector<2x32xf32>
    %231 = tpu.matmul %2, %230, %cst_96 {dimension_numbers = #tpu.dot_dimension_numbers<[1], [0], [0], [1], [0, 0, 1, 1], [], []>} : vector<2x16xf32>, vector<16x32xf32>, vector<2x32xf32> -> vector<2x32xf32>
    %cst_97 = arith.constant 6.250000e-05 : f32
    %232 = vector.broadcast %cst_97 : f32 to vector<2x32xf32>
    %233 = arith.mulf %232, %130 : vector<2x32xf32>
    %234 = arith.addf %231, %233 : vector<2x32xf32>
    %c1 = arith.constant 1 : index
    %c0_98 = arith.constant 0 : index
    %c0_99 = arith.constant 0 : index
    %235 = vector.load %arg19[%c1, %c0_98, %c0_99] : memref<10x2x32xf32, #tpu.memory_space<vmem>>, vector<1x2x32xf32>
    %236 = vector.shape_cast %235 : vector<1x2x32xf32> to vector<2x32xf32>
    %237 = vector.shape_cast %234 : vector<2x32xf32> to vector<1x2x32xf32>
    tpu.vector_store %arg19[%c1, %c0_98, %c0_99], %237 {strides = array<i32>} : memref<10x2x32xf32, #tpu.memory_space<vmem>>, vector<1x2x32xf32>,
    %cst_100 = arith.constant 1.000000e-01 : f32
    %238 = vector.broadcast %cst_100 : f32 to vector<2x32xf32>
    %239 = arith.mulf %238, %234 : vector<2x32xf32>
    %240 = arith.subf %130, %239 : vector<2x32xf32>
    %cst_101 = arith.constant dense<0.000000e+00> : vector<16x32xf32>
    %241 = tpu.matmul %1, %240, %cst_101 {dimension_numbers = #tpu.dot_dimension_numbers<[1], [0], [0], [1], [0, 0, 1, 1], [], []>} : vector<16x2xf32>, vector<2x32xf32>, vector<16x32xf32> -> vector<16x32xf32>
    %cst_102 = arith.constant dense<0.000000e+00> : vector<16x32xf32>
    %242 = tpu.matmul %241, %3, %cst_102 {dimension_numbers = #tpu.dot_dimension_numbers<[1], [0], [0], [1], [0, 0, 1, 1], [], []>} : vector<16x32xf32>, vector<32x32xf32>, vector<16x32xf32> -> vector<16x32xf32>
    %243 = arith.addf %19, %242 : vector<16x32xf32>
    %244 = math.tanh %243 : vector<16x32xf32>
    %cst_103 = arith.constant dense<0.000000e+00> : vector<16xf32>
    %245 = vector.multi_reduction <add>, %244, %cst_103 [1] : vector<16x32xf32> to vector<16xf32>
    %246 = vector.shape_cast %245 : vector<16xf32> to vector<16x1xf32>
    %cst_104 = arith.constant 3.200000e+01 : f32
    %247 = vector.broadcast %cst_104 : f32 to vector<16x1xf32>
    %248 = arith.divf %246, %247 : vector<16x1xf32>
    %249 = vector.broadcast %248 : vector<16x1xf32> to vector<16x32xf32>
    %250 = arith.subf %244, %249 : vector<16x32xf32>
    %251 = arith.mulf %250, %250 : vector<16x32xf32>
    %cst_105 = arith.constant dense<0.000000e+00> : vector<16xf32>
    %252 = vector.multi_reduction <add>, %251, %cst_105 [1] : vector<16x32xf32> to vector<16xf32>
    %253 = vector.shape_cast %252 : vector<16xf32> to vector<16x1xf32>
    %cst_106 = arith.constant 3.200000e+01 : f32
    %254 = vector.broadcast %cst_106 : f32 to vector<16x1xf32>
    %255 = arith.divf %253, %254 : vector<16x1xf32>
    %cst_107 = arith.constant 9.99999974E-6 : f32
    %256 = vector.broadcast %cst_107 : f32 to vector<16x1xf32>
    %257 = arith.addf %255, %256 : vector<16x1xf32>
    %258 = math.rsqrt %257 : vector<16x1xf32>
    %259 = vector.broadcast %258 : vector<16x1xf32> to vector<16x32xf32>
    %260 = arith.mulf %250, %259 : vector<16x32xf32>
    %261 = vector.broadcast %9 : vector<1x32xf32> to vector<16x32xf32>
    %262 = arith.mulf %260, %261 : vector<16x32xf32>
    %263 = vector.broadcast %10 : vector<1x32xf32> to vector<16x32xf32>
    %264 = arith.addf %262, %263 : vector<16x32xf32>
    %cst_108 = arith.constant dense<0.000000e+00> : vector<16x16xf32>
    %265 = tpu.matmul %264, %5, %cst_108 {dimension_numbers = #tpu.dot_dimension_numbers<[1], [0], [0], [1], [0, 0, 1, 1], [], []>} : vector<16x32xf32>, vector<32x16xf32>, vector<16x16xf32> -> vector<16x16xf32>
    %266 = vector.broadcast %13 : vector<1x16xf32> to vector<16x16xf32>
    %267 = arith.addf %265, %266 : vector<16x16xf32>
    %268 = math.tanh %267 : vector<16x16xf32>
    %cst_109 = arith.constant dense<0.000000e+00> : vector<16xf32>
    %269 = vector.multi_reduction <add>, %268, %cst_109 [1] : vector<16x16xf32> to vector<16xf32>
    %270 = vector.shape_cast %269 : vector<16xf32> to vector<16x1xf32>
    %cst_110 = arith.constant 1.600000e+01 : f32
    %271 = vector.broadcast %cst_110 : f32 to vector<16x1xf32>
    %272 = arith.divf %270, %271 : vector<16x1xf32>
    %273 = vector.broadcast %272 : vector<16x1xf32> to vector<16x16xf32>
    %274 = arith.subf %268, %273 : vector<16x16xf32>
    %275 = arith.mulf %274, %274 : vector<16x16xf32>
    %cst_111 = arith.constant dense<0.000000e+00> : vector<16xf32>
    %276 = vector.multi_reduction <add>, %275, %cst_111 [1] : vector<16x16xf32> to vector<16xf32>
    %277 = vector.shape_cast %276 : vector<16xf32> to vector<16x1xf32>
    %cst_112 = arith.constant 1.600000e+01 : f32
    %278 = vector.broadcast %cst_112 : f32 to vector<16x1xf32>
    %279 = arith.divf %277, %278 : vector<16x1xf32>
    %cst_113 = arith.constant 9.99999974E-6 : f32
    %280 = vector.broadcast %cst_113 : f32 to vector<16x1xf32>
    %281 = arith.addf %279, %280 : vector<16x1xf32>
    %282 = math.rsqrt %281 : vector<16x1xf32>
    %283 = vector.broadcast %282 : vector<16x1xf32> to vector<16x16xf32>
    %284 = arith.mulf %274, %283 : vector<16x16xf32>
    %285 = vector.broadcast %11 : vector<1x16xf32> to vector<16x16xf32>
    %286 = arith.mulf %284, %285 : vector<16x16xf32>
    %287 = vector.broadcast %12 : vector<1x16xf32> to vector<16x16xf32>
    %288 = arith.addf %286, %287 : vector<16x16xf32>
    %cst_114 = arith.constant dense<0.000000e+00> : vector<16x10xf32>
    %289 = tpu.matmul %288, %7, %cst_114 {dimension_numbers = #tpu.dot_dimension_numbers<[1], [0], [0], [1], [0, 0, 1, 1], [], []>} : vector<16x16xf32>, vector<16x10xf32>, vector<16x10xf32> -> vector<16x10xf32>
    %290 = vector.broadcast %14 : vector<1x10xf32> to vector<16x10xf32>
    %291 = arith.addf %289, %290 : vector<16x10xf32>
    %cst_115 = arith.constant 2.000000e-01 : f32
    %292 = vector.broadcast %cst_115 : f32 to vector<16x10xf32>
    %293 = arith.mulf %291, %292 : vector<16x10xf32>
    %cst_116 = arith.constant dense<0.000000e+00> : vector<16x16xf32>
    %294 = tpu.matmul %293, %8, %cst_116 {dimension_numbers = #tpu.dot_dimension_numbers<[1], [0], [0], [1], [0, 0, 1, 1], [], []>} : vector<16x10xf32>, vector<10x16xf32>, vector<16x16xf32> -> vector<16x16xf32>
    %295 = vector.broadcast %11 : vector<1x16xf32> to vector<16x16xf32>
    %296 = arith.mulf %294, %295 : vector<16x16xf32>
    %cst_117 = arith.constant dense<0.000000e+00> : vector<16xf32>
    %297 = vector.multi_reduction <add>, %296, %cst_117 [1] : vector<16x16xf32> to vector<16xf32>
    %298 = vector.shape_cast %297 : vector<16xf32> to vector<16x1xf32>
    %cst_118 = arith.constant 1.600000e+01 : f32
    %299 = vector.broadcast %cst_118 : f32 to vector<16x1xf32>
    %300 = arith.divf %298, %299 : vector<16x1xf32>
    %301 = arith.mulf %296, %284 : vector<16x16xf32>
    %cst_119 = arith.constant dense<0.000000e+00> : vector<16xf32>
    %302 = vector.multi_reduction <add>, %301, %cst_119 [1] : vector<16x16xf32> to vector<16xf32>
    %303 = vector.shape_cast %302 : vector<16xf32> to vector<16x1xf32>
    %cst_120 = arith.constant 1.600000e+01 : f32
    %304 = vector.broadcast %cst_120 : f32 to vector<16x1xf32>
    %305 = arith.divf %303, %304 : vector<16x1xf32>
    %306 = vector.broadcast %300 : vector<16x1xf32> to vector<16x16xf32>
    %307 = arith.subf %296, %306 : vector<16x16xf32>
    %308 = vector.broadcast %305 : vector<16x1xf32> to vector<16x16xf32>
    %309 = arith.mulf %284, %308 : vector<16x16xf32>
    %310 = arith.subf %307, %309 : vector<16x16xf32>
    %311 = vector.broadcast %282 : vector<16x1xf32> to vector<16x16xf32>
    %312 = arith.mulf %311, %310 : vector<16x16xf32>
    %313 = arith.mulf %268, %268 : vector<16x16xf32>
    %cst_121 = arith.constant 1.000000e+00 : f32
    %314 = vector.broadcast %cst_121 : f32 to vector<16x16xf32>
    %315 = arith.subf %314, %313 : vector<16x16xf32>
    %316 = arith.mulf %312, %315 : vector<16x16xf32>
    %cst_122 = arith.constant dense<0.000000e+00> : vector<16x32xf32>
    %317 = tpu.matmul %316, %6, %cst_122 {dimension_numbers = #tpu.dot_dimension_numbers<[1], [0], [0], [1], [0, 0, 1, 1], [], []>} : vector<16x16xf32>, vector<16x32xf32>, vector<16x32xf32> -> vector<16x32xf32>
    %318 = vector.broadcast %9 : vector<1x32xf32> to vector<16x32xf32>
    %319 = arith.mulf %317, %318 : vector<16x32xf32>
    %cst_123 = arith.constant dense<0.000000e+00> : vector<16xf32>
    %320 = vector.multi_reduction <add>, %319, %cst_123 [1] : vector<16x32xf32> to vector<16xf32>
    %321 = vector.shape_cast %320 : vector<16xf32> to vector<16x1xf32>
    %cst_124 = arith.constant 3.200000e+01 : f32
    %322 = vector.broadcast %cst_124 : f32 to vector<16x1xf32>
    %323 = arith.divf %321, %322 : vector<16x1xf32>
    %324 = arith.mulf %319, %260 : vector<16x32xf32>
    %cst_125 = arith.constant dense<0.000000e+00> : vector<16xf32>
    %325 = vector.multi_reduction <add>, %324, %cst_125 [1] : vector<16x32xf32> to vector<16xf32>
    %326 = vector.shape_cast %325 : vector<16xf32> to vector<16x1xf32>
    %cst_126 = arith.constant 3.200000e+01 : f32
    %327 = vector.broadcast %cst_126 : f32 to vector<16x1xf32>
    %328 = arith.divf %326, %327 : vector<16x1xf32>
    %329 = vector.broadcast %323 : vector<16x1xf32> to vector<16x32xf32>
    %330 = arith.subf %319, %329 : vector<16x32xf32>
    %331 = vector.broadcast %328 : vector<16x1xf32> to vector<16x32xf32>
    %332 = arith.mulf %260, %331 : vector<16x32xf32>
    %333 = arith.subf %330, %332 : vector<16x32xf32>
    %334 = vector.broadcast %258 : vector<16x1xf32> to vector<16x32xf32>
    %335 = arith.mulf %334, %333 : vector<16x32xf32>
    %336 = arith.mulf %244, %244 : vector<16x32xf32>
    %cst_127 = arith.constant 1.000000e+00 : f32
    %337 = vector.broadcast %cst_127 : f32 to vector<16x32xf32>
    %338 = arith.subf %337, %336 : vector<16x32xf32>
    %339 = arith.mulf %335, %338 : vector<16x32xf32>
    %cst_128 = arith.constant dense<0.000000e+00> : vector<16x32xf32>
    %340 = tpu.matmul %339, %4, %cst_128 {dimension_numbers = #tpu.dot_dimension_numbers<[1], [0], [0], [1], [0, 0, 1, 1], [], []>} : vector<16x32xf32>, vector<32x32xf32>, vector<16x32xf32> -> vector<16x32xf32>
    %cst_129 = arith.constant dense<0.000000e+00> : vector<2x32xf32>
    %341 = tpu.matmul %2, %340, %cst_129 {dimension_numbers = #tpu.dot_dimension_numbers<[1], [0], [0], [1], [0, 0, 1, 1], [], []>} : vector<2x16xf32>, vector<16x32xf32>, vector<2x32xf32> -> vector<2x32xf32>
    %cst_130 = arith.constant 6.250000e-05 : f32
    %342 = vector.broadcast %cst_130 : f32 to vector<2x32xf32>
    %343 = arith.mulf %342, %240 : vector<2x32xf32>
    %344 = arith.addf %341, %343 : vector<2x32xf32>
    %c2 = arith.constant 2 : index
    %c0_131 = arith.constant 0 : index
    %c0_132 = arith.constant 0 : index
    %345 = vector.load %arg19[%c2, %c0_131, %c0_132] : memref<10x2x32xf32, #tpu.memory_space<vmem>>, vector<1x2x32xf32>
    %346 = vector.shape_cast %345 : vector<1x2x32xf32> to vector<2x32xf32>
    %347 = vector.shape_cast %344 : vector<2x32xf32> to vector<1x2x32xf32>
    tpu.vector_store %arg19[%c2, %c0_131, %c0_132], %347 {strides = array<i32>} : memref<10x2x32xf32, #tpu.memory_space<vmem>>, vector<1x2x32xf32>,
    %cst_133 = arith.constant 1.000000e-01 : f32
    %348 = vector.broadcast %cst_133 : f32 to vector<2x32xf32>
    %349 = arith.mulf %348, %344 : vector<2x32xf32>
    %350 = arith.subf %240, %349 : vector<2x32xf32>
    %cst_134 = arith.constant dense<0.000000e+00> : vector<16x32xf32>
    %351 = tpu.matmul %1, %350, %cst_134 {dimension_numbers = #tpu.dot_dimension_numbers<[1], [0], [0], [1], [0, 0, 1, 1], [], []>} : vector<16x2xf32>, vector<2x32xf32>, vector<16x32xf32> -> vector<16x32xf32>
    %cst_135 = arith.constant dense<0.000000e+00> : vector<16x32xf32>
    %352 = tpu.matmul %351, %3, %cst_135 {dimension_numbers = #tpu.dot_dimension_numbers<[1], [0], [0], [1], [0, 0, 1, 1], [], []>} : vector<16x32xf32>, vector<32x32xf32>, vector<16x32xf32> -> vector<16x32xf32>
    %353 = arith.addf %19, %352 : vector<16x32xf32>
    %354 = math.tanh %353 : vector<16x32xf32>
    %cst_136 = arith.constant dense<0.000000e+00> : vector<16xf32>
    %355 = vector.multi_reduction <add>, %354, %cst_136 [1] : vector<16x32xf32> to vector<16xf32>
    %356 = vector.shape_cast %355 : vector<16xf32> to vector<16x1xf32>
    %cst_137 = arith.constant 3.200000e+01 : f32
    %357 = vector.broadcast %cst_137 : f32 to vector<16x1xf32>
    %358 = arith.divf %356, %357 : vector<16x1xf32>
    %359 = vector.broadcast %358 : vector<16x1xf32> to vector<16x32xf32>
    %360 = arith.subf %354, %359 : vector<16x32xf32>
    %361 = arith.mulf %360, %360 : vector<16x32xf32>
    %cst_138 = arith.constant dense<0.000000e+00> : vector<16xf32>
    %362 = vector.multi_reduction <add>, %361, %cst_138 [1] : vector<16x32xf32> to vector<16xf32>
    %363 = vector.shape_cast %362 : vector<16xf32> to vector<16x1xf32>
    %cst_139 = arith.constant 3.200000e+01 : f32
    %364 = vector.broadcast %cst_139 : f32 to vector<16x1xf32>
    %365 = arith.divf %363, %364 : vector<16x1xf32>
    %cst_140 = arith.constant 9.99999974E-6 : f32
    %366 = vector.broadcast %cst_140 : f32 to vector<16x1xf32>
    %367 = arith.addf %365, %366 : vector<16x1xf32>
    %368 = math.rsqrt %367 : vector<16x1xf32>
    %369 = vector.broadcast %368 : vector<16x1xf32> to vector<16x32xf32>
    %370 = arith.mulf %360, %369 : vector<16x32xf32>
    %371 = vector.broadcast %9 : vector<1x32xf32> to vector<16x32xf32>
    %372 = arith.mulf %370, %371 : vector<16x32xf32>
    %373 = vector.broadcast %10 : vector<1x32xf32> to vector<16x32xf32>
    %374 = arith.addf %372, %373 : vector<16x32xf32>
    %cst_141 = arith.constant dense<0.000000e+00> : vector<16x16xf32>
    %375 = tpu.matmul %374, %5, %cst_141 {dimension_numbers = #tpu.dot_dimension_numbers<[1], [0], [0], [1], [0, 0, 1, 1], [], []>} : vector<16x32xf32>, vector<32x16xf32>, vector<16x16xf32> -> vector<16x16xf32>
    %376 = vector.broadcast %13 : vector<1x16xf32> to vector<16x16xf32>
    %377 = arith.addf %375, %376 : vector<16x16xf32>
    %378 = math.tanh %377 : vector<16x16xf32>
    %cst_142 = arith.constant dense<0.000000e+00> : vector<16xf32>
    %379 = vector.multi_reduction <add>, %378, %cst_142 [1] : vector<16x16xf32> to vector<16xf32>
    %380 = vector.shape_cast %379 : vector<16xf32> to vector<16x1xf32>
    %cst_143 = arith.constant 1.600000e+01 : f32
    %381 = vector.broadcast %cst_143 : f32 to vector<16x1xf32>
    %382 = arith.divf %380, %381 : vector<16x1xf32>
    %383 = vector.broadcast %382 : vector<16x1xf32> to vector<16x16xf32>
    %384 = arith.subf %378, %383 : vector<16x16xf32>
    %385 = arith.mulf %384, %384 : vector<16x16xf32>
    %cst_144 = arith.constant dense<0.000000e+00> : vector<16xf32>
    %386 = vector.multi_reduction <add>, %385, %cst_144 [1] : vector<16x16xf32> to vector<16xf32>
    %387 = vector.shape_cast %386 : vector<16xf32> to vector<16x1xf32>
    %cst_145 = arith.constant 1.600000e+01 : f32
    %388 = vector.broadcast %cst_145 : f32 to vector<16x1xf32>
    %389 = arith.divf %387, %388 : vector<16x1xf32>
    %cst_146 = arith.constant 9.99999974E-6 : f32
    %390 = vector.broadcast %cst_146 : f32 to vector<16x1xf32>
    %391 = arith.addf %389, %390 : vector<16x1xf32>
    %392 = math.rsqrt %391 : vector<16x1xf32>
    %393 = vector.broadcast %392 : vector<16x1xf32> to vector<16x16xf32>
    %394 = arith.mulf %384, %393 : vector<16x16xf32>
    %395 = vector.broadcast %11 : vector<1x16xf32> to vector<16x16xf32>
    %396 = arith.mulf %394, %395 : vector<16x16xf32>
    %397 = vector.broadcast %12 : vector<1x16xf32> to vector<16x16xf32>
    %398 = arith.addf %396, %397 : vector<16x16xf32>
    %cst_147 = arith.constant dense<0.000000e+00> : vector<16x10xf32>
    %399 = tpu.matmul %398, %7, %cst_147 {dimension_numbers = #tpu.dot_dimension_numbers<[1], [0], [0], [1], [0, 0, 1, 1], [], []>} : vector<16x16xf32>, vector<16x10xf32>, vector<16x10xf32> -> vector<16x10xf32>
    %400 = vector.broadcast %14 : vector<1x10xf32> to vector<16x10xf32>
    %401 = arith.addf %399, %400 : vector<16x10xf32>
    %cst_148 = arith.constant 2.000000e-01 : f32
    %402 = vector.broadcast %cst_148 : f32 to vector<16x10xf32>
    %403 = arith.mulf %401, %402 : vector<16x10xf32>
    %cst_149 = arith.constant dense<0.000000e+00> : vector<16x16xf32>
    %404 = tpu.matmul %403, %8, %cst_149 {dimension_numbers = #tpu.dot_dimension_numbers<[1], [0], [0], [1], [0, 0, 1, 1], [], []>} : vector<16x10xf32>, vector<10x16xf32>, vector<16x16xf32> -> vector<16x16xf32>
    %405 = vector.broadcast %11 : vector<1x16xf32> to vector<16x16xf32>
    %406 = arith.mulf %404, %405 : vector<16x16xf32>
    %cst_150 = arith.constant dense<0.000000e+00> : vector<16xf32>
    %407 = vector.multi_reduction <add>, %406, %cst_150 [1] : vector<16x16xf32> to vector<16xf32>
    %408 = vector.shape_cast %407 : vector<16xf32> to vector<16x1xf32>
    %cst_151 = arith.constant 1.600000e+01 : f32
    %409 = vector.broadcast %cst_151 : f32 to vector<16x1xf32>
    %410 = arith.divf %408, %409 : vector<16x1xf32>
    %411 = arith.mulf %406, %394 : vector<16x16xf32>
    %cst_152 = arith.constant dense<0.000000e+00> : vector<16xf32>
    %412 = vector.multi_reduction <add>, %411, %cst_152 [1] : vector<16x16xf32> to vector<16xf32>
    %413 = vector.shape_cast %412 : vector<16xf32> to vector<16x1xf32>
    %cst_153 = arith.constant 1.600000e+01 : f32
    %414 = vector.broadcast %cst_153 : f32 to vector<16x1xf32>
    %415 = arith.divf %413, %414 : vector<16x1xf32>
    %416 = vector.broadcast %410 : vector<16x1xf32> to vector<16x16xf32>
    %417 = arith.subf %406, %416 : vector<16x16xf32>
    %418 = vector.broadcast %415 : vector<16x1xf32> to vector<16x16xf32>
    %419 = arith.mulf %394, %418 : vector<16x16xf32>
    %420 = arith.subf %417, %419 : vector<16x16xf32>
    %421 = vector.broadcast %392 : vector<16x1xf32> to vector<16x16xf32>
    %422 = arith.mulf %421, %420 : vector<16x16xf32>
    %423 = arith.mulf %378, %378 : vector<16x16xf32>
    %cst_154 = arith.constant 1.000000e+00 : f32
    %424 = vector.broadcast %cst_154 : f32 to vector<16x16xf32>
    %425 = arith.subf %424, %423 : vector<16x16xf32>
    %426 = arith.mulf %422, %425 : vector<16x16xf32>
    %cst_155 = arith.constant dense<0.000000e+00> : vector<16x32xf32>
    %427 = tpu.matmul %426, %6, %cst_155 {dimension_numbers = #tpu.dot_dimension_numbers<[1], [0], [0], [1], [0, 0, 1, 1], [], []>} : vector<16x16xf32>, vector<16x32xf32>, vector<16x32xf32> -> vector<16x32xf32>
    %428 = vector.broadcast %9 : vector<1x32xf32> to vector<16x32xf32>
    %429 = arith.mulf %427, %428 : vector<16x32xf32>
    %cst_156 = arith.constant dense<0.000000e+00> : vector<16xf32>
    %430 = vector.multi_reduction <add>, %429, %cst_156 [1] : vector<16x32xf32> to vector<16xf32>
    %431 = vector.shape_cast %430 : vector<16xf32> to vector<16x1xf32>
    %cst_157 = arith.constant 3.200000e+01 : f32
    %432 = vector.broadcast %cst_157 : f32 to vector<16x1xf32>
    %433 = arith.divf %431, %432 : vector<16x1xf32>
    %434 = arith.mulf %429, %370 : vector<16x32xf32>
    %cst_158 = arith.constant dense<0.000000e+00> : vector<16xf32>
    %435 = vector.multi_reduction <add>, %434, %cst_158 [1] : vector<16x32xf32> to vector<16xf32>
    %436 = vector.shape_cast %435 : vector<16xf32> to vector<16x1xf32>
    %cst_159 = arith.constant 3.200000e+01 : f32
    %437 = vector.broadcast %cst_159 : f32 to vector<16x1xf32>
    %438 = arith.divf %436, %437 : vector<16x1xf32>
    %439 = vector.broadcast %433 : vector<16x1xf32> to vector<16x32xf32>
    %440 = arith.subf %429, %439 : vector<16x32xf32>
    %441 = vector.broadcast %438 : vector<16x1xf32> to vector<16x32xf32>
    %442 = arith.mulf %370, %441 : vector<16x32xf32>
    %443 = arith.subf %440, %442 : vector<16x32xf32>
    %444 = vector.broadcast %368 : vector<16x1xf32> to vector<16x32xf32>
    %445 = arith.mulf %444, %443 : vector<16x32xf32>
    %446 = arith.mulf %354, %354 : vector<16x32xf32>
    %cst_160 = arith.constant 1.000000e+00 : f32
    %447 = vector.broadcast %cst_160 : f32 to vector<16x32xf32>
    %448 = arith.subf %447, %446 : vector<16x32xf32>
    %449 = arith.mulf %445, %448 : vector<16x32xf32>
    %cst_161 = arith.constant dense<0.000000e+00> : vector<16x32xf32>
    %450 = tpu.matmul %449, %4, %cst_161 {dimension_numbers = #tpu.dot_dimension_numbers<[1], [0], [0], [1], [0, 0, 1, 1], [], []>} : vector<16x32xf32>, vector<32x32xf32>, vector<16x32xf32> -> vector<16x32xf32>
    %cst_162 = arith.constant dense<0.000000e+00> : vector<2x32xf32>
    %451 = tpu.matmul %2, %450, %cst_162 {dimension_numbers = #tpu.dot_dimension_numbers<[1], [0], [0], [1], [0, 0, 1, 1], [], []>} : vector<2x16xf32>, vector<16x32xf32>, vector<2x32xf32> -> vector<2x32xf32>
    %cst_163 = arith.constant 6.250000e-05 : f32
    %452 = vector.broadcast %cst_163 : f32 to vector<2x32xf32>
    %453 = arith.mulf %452, %350 : vector<2x32xf32>
    %454 = arith.addf %451, %453 : vector<2x32xf32>
    %c3 = arith.constant 3 : index
    %c0_164 = arith.constant 0 : index
    %c0_165 = arith.constant 0 : index
    %455 = vector.load %arg19[%c3, %c0_164, %c0_165] : memref<10x2x32xf32, #tpu.memory_space<vmem>>, vector<1x2x32xf32>
    %456 = vector.shape_cast %455 : vector<1x2x32xf32> to vector<2x32xf32>
    %457 = vector.shape_cast %454 : vector<2x32xf32> to vector<1x2x32xf32>
    tpu.vector_store %arg19[%c3, %c0_164, %c0_165], %457 {strides = array<i32>} : memref<10x2x32xf32, #tpu.memory_space<vmem>>, vector<1x2x32xf32>,
    %cst_166 = arith.constant 1.000000e-01 : f32
    %458 = vector.broadcast %cst_166 : f32 to vector<2x32xf32>
    %459 = arith.mulf %458, %454 : vector<2x32xf32>
    %460 = arith.subf %350, %459 : vector<2x32xf32>
    %cst_167 = arith.constant dense<0.000000e+00> : vector<16x32xf32>
    %461 = tpu.matmul %1, %460, %cst_167 {dimension_numbers = #tpu.dot_dimension_numbers<[1], [0], [0], [1], [0, 0, 1, 1], [], []>} : vector<16x2xf32>, vector<2x32xf32>, vector<16x32xf32> -> vector<16x32xf32>
    %cst_168 = arith.constant dense<0.000000e+00> : vector<16x32xf32>
    %462 = tpu.matmul %461, %3, %cst_168 {dimension_numbers = #tpu.dot_dimension_numbers<[1], [0], [0], [1], [0, 0, 1, 1], [], []>} : vector<16x32xf32>, vector<32x32xf32>, vector<16x32xf32> -> vector<16x32xf32>
    %463 = arith.addf %19, %462 : vector<16x32xf32>
    %464 = math.tanh %463 : vector<16x32xf32>
    %cst_169 = arith.constant dense<0.000000e+00> : vector<16xf32>
    %465 = vector.multi_reduction <add>, %464, %cst_169 [1] : vector<16x32xf32> to vector<16xf32>
    %466 = vector.shape_cast %465 : vector<16xf32> to vector<16x1xf32>
    %cst_170 = arith.constant 3.200000e+01 : f32
    %467 = vector.broadcast %cst_170 : f32 to vector<16x1xf32>
    %468 = arith.divf %466, %467 : vector<16x1xf32>
    %469 = vector.broadcast %468 : vector<16x1xf32> to vector<16x32xf32>
    %470 = arith.subf %464, %469 : vector<16x32xf32>
    %471 = arith.mulf %470, %470 : vector<16x32xf32>
    %cst_171 = arith.constant dense<0.000000e+00> : vector<16xf32>
    %472 = vector.multi_reduction <add>, %471, %cst_171 [1] : vector<16x32xf32> to vector<16xf32>
    %473 = vector.shape_cast %472 : vector<16xf32> to vector<16x1xf32>
    %cst_172 = arith.constant 3.200000e+01 : f32
    %474 = vector.broadcast %cst_172 : f32 to vector<16x1xf32>
    %475 = arith.divf %473, %474 : vector<16x1xf32>
    %cst_173 = arith.constant 9.99999974E-6 : f32
    %476 = vector.broadcast %cst_173 : f32 to vector<16x1xf32>
    %477 = arith.addf %475, %476 : vector<16x1xf32>
    %478 = math.rsqrt %477 : vector<16x1xf32>
    %479 = vector.broadcast %478 : vector<16x1xf32> to vector<16x32xf32>
    %480 = arith.mulf %470, %479 : vector<16x32xf32>
    %481 = vector.broadcast %9 : vector<1x32xf32> to vector<16x32xf32>
    %482 = arith.mulf %480, %481 : vector<16x32xf32>
    %483 = vector.broadcast %10 : vector<1x32xf32> to vector<16x32xf32>
    %484 = arith.addf %482, %483 : vector<16x32xf32>
    %cst_174 = arith.constant dense<0.000000e+00> : vector<16x16xf32>
    %485 = tpu.matmul %484, %5, %cst_174 {dimension_numbers = #tpu.dot_dimension_numbers<[1], [0], [0], [1], [0, 0, 1, 1], [], []>} : vector<16x32xf32>, vector<32x16xf32>, vector<16x16xf32> -> vector<16x16xf32>
    %486 = vector.broadcast %13 : vector<1x16xf32> to vector<16x16xf32>
    %487 = arith.addf %485, %486 : vector<16x16xf32>
    %488 = math.tanh %487 : vector<16x16xf32>
    %cst_175 = arith.constant dense<0.000000e+00> : vector<16xf32>
    %489 = vector.multi_reduction <add>, %488, %cst_175 [1] : vector<16x16xf32> to vector<16xf32>
    %490 = vector.shape_cast %489 : vector<16xf32> to vector<16x1xf32>
    %cst_176 = arith.constant 1.600000e+01 : f32
    %491 = vector.broadcast %cst_176 : f32 to vector<16x1xf32>
    %492 = arith.divf %490, %491 : vector<16x1xf32>
    %493 = vector.broadcast %492 : vector<16x1xf32> to vector<16x16xf32>
    %494 = arith.subf %488, %493 : vector<16x16xf32>
    %495 = arith.mulf %494, %494 : vector<16x16xf32>
    %cst_177 = arith.constant dense<0.000000e+00> : vector<16xf32>
    %496 = vector.multi_reduction <add>, %495, %cst_177 [1] : vector<16x16xf32> to vector<16xf32>
    %497 = vector.shape_cast %496 : vector<16xf32> to vector<16x1xf32>
    %cst_178 = arith.constant 1.600000e+01 : f32
    %498 = vector.broadcast %cst_178 : f32 to vector<16x1xf32>
    %499 = arith.divf %497, %498 : vector<16x1xf32>
    %cst_179 = arith.constant 9.99999974E-6 : f32
    %500 = vector.broadcast %cst_179 : f32 to vector<16x1xf32>
    %501 = arith.addf %499, %500 : vector<16x1xf32>
    %502 = math.rsqrt %501 : vector<16x1xf32>
    %503 = vector.broadcast %502 : vector<16x1xf32> to vector<16x16xf32>
    %504 = arith.mulf %494, %503 : vector<16x16xf32>
    %505 = vector.broadcast %11 : vector<1x16xf32> to vector<16x16xf32>
    %506 = arith.mulf %504, %505 : vector<16x16xf32>
    %507 = vector.broadcast %12 : vector<1x16xf32> to vector<16x16xf32>
    %508 = arith.addf %506, %507 : vector<16x16xf32>
    %cst_180 = arith.constant dense<0.000000e+00> : vector<16x10xf32>
    %509 = tpu.matmul %508, %7, %cst_180 {dimension_numbers = #tpu.dot_dimension_numbers<[1], [0], [0], [1], [0, 0, 1, 1], [], []>} : vector<16x16xf32>, vector<16x10xf32>, vector<16x10xf32> -> vector<16x10xf32>
    %510 = vector.broadcast %14 : vector<1x10xf32> to vector<16x10xf32>
    %511 = arith.addf %509, %510 : vector<16x10xf32>
    %cst_181 = arith.constant 2.000000e-01 : f32
    %512 = vector.broadcast %cst_181 : f32 to vector<16x10xf32>
    %513 = arith.mulf %511, %512 : vector<16x10xf32>
    %cst_182 = arith.constant dense<0.000000e+00> : vector<16x16xf32>
    %514 = tpu.matmul %513, %8, %cst_182 {dimension_numbers = #tpu.dot_dimension_numbers<[1], [0], [0], [1], [0, 0, 1, 1], [], []>} : vector<16x10xf32>, vector<10x16xf32>, vector<16x16xf32> -> vector<16x16xf32>
    %515 = vector.broadcast %11 : vector<1x16xf32> to vector<16x16xf32>
    %516 = arith.mulf %514, %515 : vector<16x16xf32>
    %cst_183 = arith.constant dense<0.000000e+00> : vector<16xf32>
    %517 = vector.multi_reduction <add>, %516, %cst_183 [1] : vector<16x16xf32> to vector<16xf32>
    %518 = vector.shape_cast %517 : vector<16xf32> to vector<16x1xf32>
    %cst_184 = arith.constant 1.600000e+01 : f32
    %519 = vector.broadcast %cst_184 : f32 to vector<16x1xf32>
    %520 = arith.divf %518, %519 : vector<16x1xf32>
    %521 = arith.mulf %516, %504 : vector<16x16xf32>
    %cst_185 = arith.constant dense<0.000000e+00> : vector<16xf32>
    %522 = vector.multi_reduction <add>, %521, %cst_185 [1] : vector<16x16xf32> to vector<16xf32>
    %523 = vector.shape_cast %522 : vector<16xf32> to vector<16x1xf32>
    %cst_186 = arith.constant 1.600000e+01 : f32
    %524 = vector.broadcast %cst_186 : f32 to vector<16x1xf32>
    %525 = arith.divf %523, %524 : vector<16x1xf32>
    %526 = vector.broadcast %520 : vector<16x1xf32> to vector<16x16xf32>
    %527 = arith.subf %516, %526 : vector<16x16xf32>
    %528 = vector.broadcast %525 : vector<16x1xf32> to vector<16x16xf32>
    %529 = arith.mulf %504, %528 : vector<16x16xf32>
    %530 = arith.subf %527, %529 : vector<16x16xf32>
    %531 = vector.broadcast %502 : vector<16x1xf32> to vector<16x16xf32>
    %532 = arith.mulf %531, %530 : vector<16x16xf32>
    %533 = arith.mulf %488, %488 : vector<16x16xf32>
    %cst_187 = arith.constant 1.000000e+00 : f32
    %534 = vector.broadcast %cst_187 : f32 to vector<16x16xf32>
    %535 = arith.subf %534, %533 : vector<16x16xf32>
    %536 = arith.mulf %532, %535 : vector<16x16xf32>
    %cst_188 = arith.constant dense<0.000000e+00> : vector<16x32xf32>
    %537 = tpu.matmul %536, %6, %cst_188 {dimension_numbers = #tpu.dot_dimension_numbers<[1], [0], [0], [1], [0, 0, 1, 1], [], []>} : vector<16x16xf32>, vector<16x32xf32>, vector<16x32xf32> -> vector<16x32xf32>
    %538 = vector.broadcast %9 : vector<1x32xf32> to vector<16x32xf32>
    %539 = arith.mulf %537, %538 : vector<16x32xf32>
    %cst_189 = arith.constant dense<0.000000e+00> : vector<16xf32>
    %540 = vector.multi_reduction <add>, %539, %cst_189 [1] : vector<16x32xf32> to vector<16xf32>
    %541 = vector.shape_cast %540 : vector<16xf32> to vector<16x1xf32>
    %cst_190 = arith.constant 3.200000e+01 : f32
    %542 = vector.broadcast %cst_190 : f32 to vector<16x1xf32>
    %543 = arith.divf %541, %542 : vector<16x1xf32>
    %544 = arith.mulf %539, %480 : vector<16x32xf32>
    %cst_191 = arith.constant dense<0.000000e+00> : vector<16xf32>
    %545 = vector.multi_reduction <add>, %544, %cst_191 [1] : vector<16x32xf32> to vector<16xf32>
    %546 = vector.shape_cast %545 : vector<16xf32> to vector<16x1xf32>
    %cst_192 = arith.constant 3.200000e+01 : f32
    %547 = vector.broadcast %cst_192 : f32 to vector<16x1xf32>
    %548 = arith.divf %546, %547 : vector<16x1xf32>
    %549 = vector.broadcast %543 : vector<16x1xf32> to vector<16x32xf32>
    %550 = arith.subf %539, %549 : vector<16x32xf32>
    %551 = vector.broadcast %548 : vector<16x1xf32> to vector<16x32xf32>
    %552 = arith.mulf %480, %551 : vector<16x32xf32>
    %553 = arith.subf %550, %552 : vector<16x32xf32>
    %554 = vector.broadcast %478 : vector<16x1xf32> to vector<16x32xf32>
    %555 = arith.mulf %554, %553 : vector<16x32xf32>
    %556 = arith.mulf %464, %464 : vector<16x32xf32>
    %cst_193 = arith.constant 1.000000e+00 : f32
    %557 = vector.broadcast %cst_193 : f32 to vector<16x32xf32>
    %558 = arith.subf %557, %556 : vector<16x32xf32>
    %559 = arith.mulf %555, %558 : vector<16x32xf32>
    %cst_194 = arith.constant dense<0.000000e+00> : vector<16x32xf32>
    %560 = tpu.matmul %559, %4, %cst_194 {dimension_numbers = #tpu.dot_dimension_numbers<[1], [0], [0], [1], [0, 0, 1, 1], [], []>} : vector<16x32xf32>, vector<32x32xf32>, vector<16x32xf32> -> vector<16x32xf32>
    %cst_195 = arith.constant dense<0.000000e+00> : vector<2x32xf32>
    %561 = tpu.matmul %2, %560, %cst_195 {dimension_numbers = #tpu.dot_dimension_numbers<[1], [0], [0], [1], [0, 0, 1, 1], [], []>} : vector<2x16xf32>, vector<16x32xf32>, vector<2x32xf32> -> vector<2x32xf32>
    %cst_196 = arith.constant 6.250000e-05 : f32
    %562 = vector.broadcast %cst_196 : f32 to vector<2x32xf32>
    %563 = arith.mulf %562, %460 : vector<2x32xf32>
    %564 = arith.addf %561, %563 : vector<2x32xf32>
    %c4 = arith.constant 4 : index
    %c0_197 = arith.constant 0 : index
    %c0_198 = arith.constant 0 : index
    %565 = vector.load %arg19[%c4, %c0_197, %c0_198] : memref<10x2x32xf32, #tpu.memory_space<vmem>>, vector<1x2x32xf32>
    %566 = vector.shape_cast %565 : vector<1x2x32xf32> to vector<2x32xf32>
    %567 = vector.shape_cast %564 : vector<2x32xf32> to vector<1x2x32xf32>
    tpu.vector_store %arg19[%c4, %c0_197, %c0_198], %567 {strides = array<i32>} : memref<10x2x32xf32, #tpu.memory_space<vmem>>, vector<1x2x32xf32>,
    %cst_199 = arith.constant 1.000000e-01 : f32
    %568 = vector.broadcast %cst_199 : f32 to vector<2x32xf32>
    %569 = arith.mulf %568, %564 : vector<2x32xf32>
    %570 = arith.subf %460, %569 : vector<2x32xf32>
    %cst_200 = arith.constant dense<0.000000e+00> : vector<16x32xf32>
    %571 = tpu.matmul %1, %570, %cst_200 {dimension_numbers = #tpu.dot_dimension_numbers<[1], [0], [0], [1], [0, 0, 1, 1], [], []>} : vector<16x2xf32>, vector<2x32xf32>, vector<16x32xf32> -> vector<16x32xf32>
    %cst_201 = arith.constant dense<0.000000e+00> : vector<16x32xf32>
    %572 = tpu.matmul %571, %3, %cst_201 {dimension_numbers = #tpu.dot_dimension_numbers<[1], [0], [0], [1], [0, 0, 1, 1], [], []>} : vector<16x32xf32>, vector<32x32xf32>, vector<16x32xf32> -> vector<16x32xf32>
    %573 = arith.addf %19, %572 : vector<16x32xf32>
    %574 = math.tanh %573 : vector<16x32xf32>
    %cst_202 = arith.constant dense<0.000000e+00> : vector<16xf32>
    %575 = vector.multi_reduction <add>, %574, %cst_202 [1] : vector<16x32xf32> to vector<16xf32>
    %576 = vector.shape_cast %575 : vector<16xf32> to vector<16x1xf32>
    %cst_203 = arith.constant 3.200000e+01 : f32
    %577 = vector.broadcast %cst_203 : f32 to vector<16x1xf32>
    %578 = arith.divf %576, %577 : vector<16x1xf32>
    %579 = vector.broadcast %578 : vector<16x1xf32> to vector<16x32xf32>
    %580 = arith.subf %574, %579 : vector<16x32xf32>
    %581 = arith.mulf %580, %580 : vector<16x32xf32>
    %cst_204 = arith.constant dense<0.000000e+00> : vector<16xf32>
    %582 = vector.multi_reduction <add>, %581, %cst_204 [1] : vector<16x32xf32> to vector<16xf32>
    %583 = vector.shape_cast %582 : vector<16xf32> to vector<16x1xf32>
    %cst_205 = arith.constant 3.200000e+01 : f32
    %584 = vector.broadcast %cst_205 : f32 to vector<16x1xf32>
    %585 = arith.divf %583, %584 : vector<16x1xf32>
    %cst_206 = arith.constant 9.99999974E-6 : f32
    %586 = vector.broadcast %cst_206 : f32 to vector<16x1xf32>
    %587 = arith.addf %585, %586 : vector<16x1xf32>
    %588 = math.rsqrt %587 : vector<16x1xf32>
    %589 = vector.broadcast %588 : vector<16x1xf32> to vector<16x32xf32>
    %590 = arith.mulf %580, %589 : vector<16x32xf32>
    %591 = vector.broadcast %9 : vector<1x32xf32> to vector<16x32xf32>
    %592 = arith.mulf %590, %591 : vector<16x32xf32>
    %593 = vector.broadcast %10 : vector<1x32xf32> to vector<16x32xf32>
    %594 = arith.addf %592, %593 : vector<16x32xf32>
    %cst_207 = arith.constant dense<0.000000e+00> : vector<16x16xf32>
    %595 = tpu.matmul %594, %5, %cst_207 {dimension_numbers = #tpu.dot_dimension_numbers<[1], [0], [0], [1], [0, 0, 1, 1], [], []>} : vector<16x32xf32>, vector<32x16xf32>, vector<16x16xf32> -> vector<16x16xf32>
    %596 = vector.broadcast %13 : vector<1x16xf32> to vector<16x16xf32>
    %597 = arith.addf %595, %596 : vector<16x16xf32>
    %598 = math.tanh %597 : vector<16x16xf32>
    %cst_208 = arith.constant dense<0.000000e+00> : vector<16xf32>
    %599 = vector.multi_reduction <add>, %598, %cst_208 [1] : vector<16x16xf32> to vector<16xf32>
    %600 = vector.shape_cast %599 : vector<16xf32> to vector<16x1xf32>
    %cst_209 = arith.constant 1.600000e+01 : f32
    %601 = vector.broadcast %cst_209 : f32 to vector<16x1xf32>
    %602 = arith.divf %600, %601 : vector<16x1xf32>
    %603 = vector.broadcast %602 : vector<16x1xf32> to vector<16x16xf32>
    %604 = arith.subf %598, %603 : vector<16x16xf32>
    %605 = arith.mulf %604, %604 : vector<16x16xf32>
    %cst_210 = arith.constant dense<0.000000e+00> : vector<16xf32>
    %606 = vector.multi_reduction <add>, %605, %cst_210 [1] : vector<16x16xf32> to vector<16xf32>
    %607 = vector.shape_cast %606 : vector<16xf32> to vector<16x1xf32>
    %cst_211 = arith.constant 1.600000e+01 : f32
    %608 = vector.broadcast %cst_211 : f32 to vector<16x1xf32>
    %609 = arith.divf %607, %608 : vector<16x1xf32>
    %cst_212 = arith.constant 9.99999974E-6 : f32
    %610 = vector.broadcast %cst_212 : f32 to vector<16x1xf32>
    %611 = arith.addf %609, %610 : vector<16x1xf32>
    %612 = math.rsqrt %611 : vector<16x1xf32>
    %613 = vector.broadcast %612 : vector<16x1xf32> to vector<16x16xf32>
    %614 = arith.mulf %604, %613 : vector<16x16xf32>
    %615 = vector.broadcast %11 : vector<1x16xf32> to vector<16x16xf32>
    %616 = arith.mulf %614, %615 : vector<16x16xf32>
    %617 = vector.broadcast %12 : vector<1x16xf32> to vector<16x16xf32>
    %618 = arith.addf %616, %617 : vector<16x16xf32>
    %cst_213 = arith.constant dense<0.000000e+00> : vector<16x10xf32>
    %619 = tpu.matmul %618, %7, %cst_213 {dimension_numbers = #tpu.dot_dimension_numbers<[1], [0], [0], [1], [0, 0, 1, 1], [], []>} : vector<16x16xf32>, vector<16x10xf32>, vector<16x10xf32> -> vector<16x10xf32>
    %620 = vector.broadcast %14 : vector<1x10xf32> to vector<16x10xf32>
    %621 = arith.addf %619, %620 : vector<16x10xf32>
    %cst_214 = arith.constant 2.000000e-01 : f32
    %622 = vector.broadcast %cst_214 : f32 to vector<16x10xf32>
    %623 = arith.mulf %621, %622 : vector<16x10xf32>
    %cst_215 = arith.constant dense<0.000000e+00> : vector<16x16xf32>
    %624 = tpu.matmul %623, %8, %cst_215 {dimension_numbers = #tpu.dot_dimension_numbers<[1], [0], [0], [1], [0, 0, 1, 1], [], []>} : vector<16x10xf32>, vector<10x16xf32>, vector<16x16xf32> -> vector<16x16xf32>
    %625 = vector.broadcast %11 : vector<1x16xf32> to vector<16x16xf32>
    %626 = arith.mulf %624, %625 : vector<16x16xf32>
    %cst_216 = arith.constant dense<0.000000e+00> : vector<16xf32>
    %627 = vector.multi_reduction <add>, %626, %cst_216 [1] : vector<16x16xf32> to vector<16xf32>
    %628 = vector.shape_cast %627 : vector<16xf32> to vector<16x1xf32>
    %cst_217 = arith.constant 1.600000e+01 : f32
    %629 = vector.broadcast %cst_217 : f32 to vector<16x1xf32>
    %630 = arith.divf %628, %629 : vector<16x1xf32>
    %631 = arith.mulf %626, %614 : vector<16x16xf32>
    %cst_218 = arith.constant dense<0.000000e+00> : vector<16xf32>
    %632 = vector.multi_reduction <add>, %631, %cst_218 [1] : vector<16x16xf32> to vector<16xf32>
    %633 = vector.shape_cast %632 : vector<16xf32> to vector<16x1xf32>
    %cst_219 = arith.constant 1.600000e+01 : f32
    %634 = vector.broadcast %cst_219 : f32 to vector<16x1xf32>
    %635 = arith.divf %633, %634 : vector<16x1xf32>
    %636 = vector.broadcast %630 : vector<16x1xf32> to vector<16x16xf32>
    %637 = arith.subf %626, %636 : vector<16x16xf32>
    %638 = vector.broadcast %635 : vector<16x1xf32> to vector<16x16xf32>
    %639 = arith.mulf %614, %638 : vector<16x16xf32>
    %640 = arith.subf %637, %639 : vector<16x16xf32>
    %641 = vector.broadcast %612 : vector<16x1xf32> to vector<16x16xf32>
    %642 = arith.mulf %641, %640 : vector<16x16xf32>
    %643 = arith.mulf %598, %598 : vector<16x16xf32>
    %cst_220 = arith.constant 1.000000e+00 : f32
    %644 = vector.broadcast %cst_220 : f32 to vector<16x16xf32>
    %645 = arith.subf %644, %643 : vector<16x16xf32>
    %646 = arith.mulf %642, %645 : vector<16x16xf32>
    %cst_221 = arith.constant dense<0.000000e+00> : vector<16x32xf32>
    %647 = tpu.matmul %646, %6, %cst_221 {dimension_numbers = #tpu.dot_dimension_numbers<[1], [0], [0], [1], [0, 0, 1, 1], [], []>} : vector<16x16xf32>, vector<16x32xf32>, vector<16x32xf32> -> vector<16x32xf32>
    %648 = vector.broadcast %9 : vector<1x32xf32> to vector<16x32xf32>
    %649 = arith.mulf %647, %648 : vector<16x32xf32>
    %cst_222 = arith.constant dense<0.000000e+00> : vector<16xf32>
    %650 = vector.multi_reduction <add>, %649, %cst_222 [1] : vector<16x32xf32> to vector<16xf32>
    %651 = vector.shape_cast %650 : vector<16xf32> to vector<16x1xf32>
    %cst_223 = arith.constant 3.200000e+01 : f32
    %652 = vector.broadcast %cst_223 : f32 to vector<16x1xf32>
    %653 = arith.divf %651, %652 : vector<16x1xf32>
    %654 = arith.mulf %649, %590 : vector<16x32xf32>
    %cst_224 = arith.constant dense<0.000000e+00> : vector<16xf32>
    %655 = vector.multi_reduction <add>, %654, %cst_224 [1] : vector<16x32xf32> to vector<16xf32>
    %656 = vector.shape_cast %655 : vector<16xf32> to vector<16x1xf32>
    %cst_225 = arith.constant 3.200000e+01 : f32
    %657 = vector.broadcast %cst_225 : f32 to vector<16x1xf32>
    %658 = arith.divf %656, %657 : vector<16x1xf32>
    %659 = vector.broadcast %653 : vector<16x1xf32> to vector<16x32xf32>
    %660 = arith.subf %649, %659 : vector<16x32xf32>
    %661 = vector.broadcast %658 : vector<16x1xf32> to vector<16x32xf32>
    %662 = arith.mulf %590, %661 : vector<16x32xf32>
    %663 = arith.subf %660, %662 : vector<16x32xf32>
    %664 = vector.broadcast %588 : vector<16x1xf32> to vector<16x32xf32>
    %665 = arith.mulf %664, %663 : vector<16x32xf32>
    %666 = arith.mulf %574, %574 : vector<16x32xf32>
    %cst_226 = arith.constant 1.000000e+00 : f32
    %667 = vector.broadcast %cst_226 : f32 to vector<16x32xf32>
    %668 = arith.subf %667, %666 : vector<16x32xf32>
    %669 = arith.mulf %665, %668 : vector<16x32xf32>
    %cst_227 = arith.constant dense<0.000000e+00> : vector<16x32xf32>
    %670 = tpu.matmul %669, %4, %cst_227 {dimension_numbers = #tpu.dot_dimension_numbers<[1], [0], [0], [1], [0, 0, 1, 1], [], []>} : vector<16x32xf32>, vector<32x32xf32>, vector<16x32xf32> -> vector<16x32xf32>
    %cst_228 = arith.constant dense<0.000000e+00> : vector<2x32xf32>
    %671 = tpu.matmul %2, %670, %cst_228 {dimension_numbers = #tpu.dot_dimension_numbers<[1], [0], [0], [1], [0, 0, 1, 1], [], []>} : vector<2x16xf32>, vector<16x32xf32>, vector<2x32xf32> -> vector<2x32xf32>
    %cst_229 = arith.constant 6.250000e-05 : f32
    %672 = vector.broadcast %cst_229 : f32 to vector<2x32xf32>
    %673 = arith.mulf %672, %570 : vector<2x32xf32>
    %674 = arith.addf %671, %673 : vector<2x32xf32>
    %c5 = arith.constant 5 : index
    %c0_230 = arith.constant 0 : index
    %c0_231 = arith.constant 0 : index
    %675 = vector.load %arg19[%c5, %c0_230, %c0_231] : memref<10x2x32xf32, #tpu.memory_space<vmem>>, vector<1x2x32xf32>
    %676 = vector.shape_cast %675 : vector<1x2x32xf32> to vector<2x32xf32>
    %677 = vector.shape_cast %674 : vector<2x32xf32> to vector<1x2x32xf32>
    tpu.vector_store %arg19[%c5, %c0_230, %c0_231], %677 {strides = array<i32>} : memref<10x2x32xf32, #tpu.memory_space<vmem>>, vector<1x2x32xf32>,
    %cst_232 = arith.constant 1.000000e-01 : f32
    %678 = vector.broadcast %cst_232 : f32 to vector<2x32xf32>
    %679 = arith.mulf %678, %674 : vector<2x32xf32>
    %680 = arith.subf %570, %679 : vector<2x32xf32>
    %cst_233 = arith.constant dense<0.000000e+00> : vector<16x32xf32>
    %681 = tpu.matmul %1, %680, %cst_233 {dimension_numbers = #tpu.dot_dimension_numbers<[1], [0], [0], [1], [0, 0, 1, 1], [], []>} : vector<16x2xf32>, vector<2x32xf32>, vector<16x32xf32> -> vector<16x32xf32>
    %cst_234 = arith.constant dense<0.000000e+00> : vector<16x32xf32>
    %682 = tpu.matmul %681, %3, %cst_234 {dimension_numbers = #tpu.dot_dimension_numbers<[1], [0], [0], [1], [0, 0, 1, 1], [], []>} : vector<16x32xf32>, vector<32x32xf32>, vector<16x32xf32> -> vector<16x32xf32>
    %683 = arith.addf %19, %682 : vector<16x32xf32>
    %684 = math.tanh %683 : vector<16x32xf32>
    %cst_235 = arith.constant dense<0.000000e+00> : vector<16xf32>
    %685 = vector.multi_reduction <add>, %684, %cst_235 [1] : vector<16x32xf32> to vector<16xf32>
    %686 = vector.shape_cast %685 : vector<16xf32> to vector<16x1xf32>
    %cst_236 = arith.constant 3.200000e+01 : f32
    %687 = vector.broadcast %cst_236 : f32 to vector<16x1xf32>
    %688 = arith.divf %686, %687 : vector<16x1xf32>
    %689 = vector.broadcast %688 : vector<16x1xf32> to vector<16x32xf32>
    %690 = arith.subf %684, %689 : vector<16x32xf32>
    %691 = arith.mulf %690, %690 : vector<16x32xf32>
    %cst_237 = arith.constant dense<0.000000e+00> : vector<16xf32>
    %692 = vector.multi_reduction <add>, %691, %cst_237 [1] : vector<16x32xf32> to vector<16xf32>
    %693 = vector.shape_cast %692 : vector<16xf32> to vector<16x1xf32>
    %cst_238 = arith.constant 3.200000e+01 : f32
    %694 = vector.broadcast %cst_238 : f32 to vector<16x1xf32>
    %695 = arith.divf %693, %694 : vector<16x1xf32>
    %cst_239 = arith.constant 9.99999974E-6 : f32
    %696 = vector.broadcast %cst_239 : f32 to vector<16x1xf32>
    %697 = arith.addf %695, %696 : vector<16x1xf32>
    %698 = math.rsqrt %697 : vector<16x1xf32>
    %699 = vector.broadcast %698 : vector<16x1xf32> to vector<16x32xf32>
    %700 = arith.mulf %690, %699 : vector<16x32xf32>
    %701 = vector.broadcast %9 : vector<1x32xf32> to vector<16x32xf32>
    %702 = arith.mulf %700, %701 : vector<16x32xf32>
    %703 = vector.broadcast %10 : vector<1x32xf32> to vector<16x32xf32>
    %704 = arith.addf %702, %703 : vector<16x32xf32>
    %cst_240 = arith.constant dense<0.000000e+00> : vector<16x16xf32>
    %705 = tpu.matmul %704, %5, %cst_240 {dimension_numbers = #tpu.dot_dimension_numbers<[1], [0], [0], [1], [0, 0, 1, 1], [], []>} : vector<16x32xf32>, vector<32x16xf32>, vector<16x16xf32> -> vector<16x16xf32>
    %706 = vector.broadcast %13 : vector<1x16xf32> to vector<16x16xf32>
    %707 = arith.addf %705, %706 : vector<16x16xf32>
    %708 = math.tanh %707 : vector<16x16xf32>
    %cst_241 = arith.constant dense<0.000000e+00> : vector<16xf32>
    %709 = vector.multi_reduction <add>, %708, %cst_241 [1] : vector<16x16xf32> to vector<16xf32>
    %710 = vector.shape_cast %709 : vector<16xf32> to vector<16x1xf32>
    %cst_242 = arith.constant 1.600000e+01 : f32
    %711 = vector.broadcast %cst_242 : f32 to vector<16x1xf32>
    %712 = arith.divf %710, %711 : vector<16x1xf32>
    %713 = vector.broadcast %712 : vector<16x1xf32> to vector<16x16xf32>
    %714 = arith.subf %708, %713 : vector<16x16xf32>
    %715 = arith.mulf %714, %714 : vector<16x16xf32>
    %cst_243 = arith.constant dense<0.000000e+00> : vector<16xf32>
    %716 = vector.multi_reduction <add>, %715, %cst_243 [1] : vector<16x16xf32> to vector<16xf32>
    %717 = vector.shape_cast %716 : vector<16xf32> to vector<16x1xf32>
    %cst_244 = arith.constant 1.600000e+01 : f32
    %718 = vector.broadcast %cst_244 : f32 to vector<16x1xf32>
    %719 = arith.divf %717, %718 : vector<16x1xf32>
    %cst_245 = arith.constant 9.99999974E-6 : f32
    %720 = vector.broadcast %cst_245 : f32 to vector<16x1xf32>
    %721 = arith.addf %719, %720 : vector<16x1xf32>
    %722 = math.rsqrt %721 : vector<16x1xf32>
    %723 = vector.broadcast %722 : vector<16x1xf32> to vector<16x16xf32>
    %724 = arith.mulf %714, %723 : vector<16x16xf32>
    %725 = vector.broadcast %11 : vector<1x16xf32> to vector<16x16xf32>
    %726 = arith.mulf %724, %725 : vector<16x16xf32>
    %727 = vector.broadcast %12 : vector<1x16xf32> to vector<16x16xf32>
    %728 = arith.addf %726, %727 : vector<16x16xf32>
    %cst_246 = arith.constant dense<0.000000e+00> : vector<16x10xf32>
    %729 = tpu.matmul %728, %7, %cst_246 {dimension_numbers = #tpu.dot_dimension_numbers<[1], [0], [0], [1], [0, 0, 1, 1], [], []>} : vector<16x16xf32>, vector<16x10xf32>, vector<16x10xf32> -> vector<16x10xf32>
    %730 = vector.broadcast %14 : vector<1x10xf32> to vector<16x10xf32>
    %731 = arith.addf %729, %730 : vector<16x10xf32>
    %cst_247 = arith.constant 2.000000e-01 : f32
    %732 = vector.broadcast %cst_247 : f32 to vector<16x10xf32>
    %733 = arith.mulf %731, %732 : vector<16x10xf32>
    %cst_248 = arith.constant dense<0.000000e+00> : vector<16x16xf32>
    %734 = tpu.matmul %733, %8, %cst_248 {dimension_numbers = #tpu.dot_dimension_numbers<[1], [0], [0], [1], [0, 0, 1, 1], [], []>} : vector<16x10xf32>, vector<10x16xf32>, vector<16x16xf32> -> vector<16x16xf32>
    %735 = vector.broadcast %11 : vector<1x16xf32> to vector<16x16xf32>
    %736 = arith.mulf %734, %735 : vector<16x16xf32>
    %cst_249 = arith.constant dense<0.000000e+00> : vector<16xf32>
    %737 = vector.multi_reduction <add>, %736, %cst_249 [1] : vector<16x16xf32> to vector<16xf32>
    %738 = vector.shape_cast %737 : vector<16xf32> to vector<16x1xf32>
    %cst_250 = arith.constant 1.600000e+01 : f32
    %739 = vector.broadcast %cst_250 : f32 to vector<16x1xf32>
    %740 = arith.divf %738, %739 : vector<16x1xf32>
    %741 = arith.mulf %736, %724 : vector<16x16xf32>
    %cst_251 = arith.constant dense<0.000000e+00> : vector<16xf32>
    %742 = vector.multi_reduction <add>, %741, %cst_251 [1] : vector<16x16xf32> to vector<16xf32>
    %743 = vector.shape_cast %742 : vector<16xf32> to vector<16x1xf32>
    %cst_252 = arith.constant 1.600000e+01 : f32
    %744 = vector.broadcast %cst_252 : f32 to vector<16x1xf32>
    %745 = arith.divf %743, %744 : vector<16x1xf32>
    %746 = vector.broadcast %740 : vector<16x1xf32> to vector<16x16xf32>
    %747 = arith.subf %736, %746 : vector<16x16xf32>
    %748 = vector.broadcast %745 : vector<16x1xf32> to vector<16x16xf32>
    %749 = arith.mulf %724, %748 : vector<16x16xf32>
    %750 = arith.subf %747, %749 : vector<16x16xf32>
    %751 = vector.broadcast %722 : vector<16x1xf32> to vector<16x16xf32>
    %752 = arith.mulf %751, %750 : vector<16x16xf32>
    %753 = arith.mulf %708, %708 : vector<16x16xf32>
    %cst_253 = arith.constant 1.000000e+00 : f32
    %754 = vector.broadcast %cst_253 : f32 to vector<16x16xf32>
    %755 = arith.subf %754, %753 : vector<16x16xf32>
    %756 = arith.mulf %752, %755 : vector<16x16xf32>
    %cst_254 = arith.constant dense<0.000000e+00> : vector<16x32xf32>
    %757 = tpu.matmul %756, %6, %cst_254 {dimension_numbers = #tpu.dot_dimension_numbers<[1], [0], [0], [1], [0, 0, 1, 1], [], []>} : vector<16x16xf32>, vector<16x32xf32>, vector<16x32xf32> -> vector<16x32xf32>
    %758 = vector.broadcast %9 : vector<1x32xf32> to vector<16x32xf32>
    %759 = arith.mulf %757, %758 : vector<16x32xf32>
    %cst_255 = arith.constant dense<0.000000e+00> : vector<16xf32>
    %760 = vector.multi_reduction <add>, %759, %cst_255 [1] : vector<16x32xf32> to vector<16xf32>
    %761 = vector.shape_cast %760 : vector<16xf32> to vector<16x1xf32>
    %cst_256 = arith.constant 3.200000e+01 : f32
    %762 = vector.broadcast %cst_256 : f32 to vector<16x1xf32>
    %763 = arith.divf %761, %762 : vector<16x1xf32>
    %764 = arith.mulf %759, %700 : vector<16x32xf32>
    %cst_257 = arith.constant dense<0.000000e+00> : vector<16xf32>
    %765 = vector.multi_reduction <add>, %764, %cst_257 [1] : vector<16x32xf32> to vector<16xf32>
    %766 = vector.shape_cast %765 : vector<16xf32> to vector<16x1xf32>
    %cst_258 = arith.constant 3.200000e+01 : f32
    %767 = vector.broadcast %cst_258 : f32 to vector<16x1xf32>
    %768 = arith.divf %766, %767 : vector<16x1xf32>
    %769 = vector.broadcast %763 : vector<16x1xf32> to vector<16x32xf32>
    %770 = arith.subf %759, %769 : vector<16x32xf32>
    %771 = vector.broadcast %768 : vector<16x1xf32> to vector<16x32xf32>
    %772 = arith.mulf %700, %771 : vector<16x32xf32>
    %773 = arith.subf %770, %772 : vector<16x32xf32>
    %774 = vector.broadcast %698 : vector<16x1xf32> to vector<16x32xf32>
    %775 = arith.mulf %774, %773 : vector<16x32xf32>
    %776 = arith.mulf %684, %684 : vector<16x32xf32>
    %cst_259 = arith.constant 1.000000e+00 : f32
    %777 = vector.broadcast %cst_259 : f32 to vector<16x32xf32>
    %778 = arith.subf %777, %776 : vector<16x32xf32>
    %779 = arith.mulf %775, %778 : vector<16x32xf32>
    %cst_260 = arith.constant dense<0.000000e+00> : vector<16x32xf32>
    %780 = tpu.matmul %779, %4, %cst_260 {dimension_numbers = #tpu.dot_dimension_numbers<[1], [0], [0], [1], [0, 0, 1, 1], [], []>} : vector<16x32xf32>, vector<32x32xf32>, vector<16x32xf32> -> vector<16x32xf32>
    %cst_261 = arith.constant dense<0.000000e+00> : vector<2x32xf32>
    %781 = tpu.matmul %2, %780, %cst_261 {dimension_numbers = #tpu.dot_dimension_numbers<[1], [0], [0], [1], [0, 0, 1, 1], [], []>} : vector<2x16xf32>, vector<16x32xf32>, vector<2x32xf32> -> vector<2x32xf32>
    %cst_262 = arith.constant 6.250000e-05 : f32
    %782 = vector.broadcast %cst_262 : f32 to vector<2x32xf32>
    %783 = arith.mulf %782, %680 : vector<2x32xf32>
    %784 = arith.addf %781, %783 : vector<2x32xf32>
    %c6 = arith.constant 6 : index
    %c0_263 = arith.constant 0 : index
    %c0_264 = arith.constant 0 : index
    %785 = vector.load %arg19[%c6, %c0_263, %c0_264] : memref<10x2x32xf32, #tpu.memory_space<vmem>>, vector<1x2x32xf32>
    %786 = vector.shape_cast %785 : vector<1x2x32xf32> to vector<2x32xf32>
    %787 = vector.shape_cast %784 : vector<2x32xf32> to vector<1x2x32xf32>
    tpu.vector_store %arg19[%c6, %c0_263, %c0_264], %787 {strides = array<i32>} : memref<10x2x32xf32, #tpu.memory_space<vmem>>, vector<1x2x32xf32>,
    %cst_265 = arith.constant 1.000000e-01 : f32
    %788 = vector.broadcast %cst_265 : f32 to vector<2x32xf32>
    %789 = arith.mulf %788, %784 : vector<2x32xf32>
    %790 = arith.subf %680, %789 : vector<2x32xf32>
    %cst_266 = arith.constant dense<0.000000e+00> : vector<16x32xf32>
    %791 = tpu.matmul %1, %790, %cst_266 {dimension_numbers = #tpu.dot_dimension_numbers<[1], [0], [0], [1], [0, 0, 1, 1], [], []>} : vector<16x2xf32>, vector<2x32xf32>, vector<16x32xf32> -> vector<16x32xf32>
    %cst_267 = arith.constant dense<0.000000e+00> : vector<16x32xf32>
    %792 = tpu.matmul %791, %3, %cst_267 {dimension_numbers = #tpu.dot_dimension_numbers<[1], [0], [0], [1], [0, 0, 1, 1], [], []>} : vector<16x32xf32>, vector<32x32xf32>, vector<16x32xf32> -> vector<16x32xf32>
    %793 = arith.addf %19, %792 : vector<16x32xf32>
    %794 = math.tanh %793 : vector<16x32xf32>
    %cst_268 = arith.constant dense<0.000000e+00> : vector<16xf32>
    %795 = vector.multi_reduction <add>, %794, %cst_268 [1] : vector<16x32xf32> to vector<16xf32>
    %796 = vector.shape_cast %795 : vector<16xf32> to vector<16x1xf32>
    %cst_269 = arith.constant 3.200000e+01 : f32
    %797 = vector.broadcast %cst_269 : f32 to vector<16x1xf32>
    %798 = arith.divf %796, %797 : vector<16x1xf32>
    %799 = vector.broadcast %798 : vector<16x1xf32> to vector<16x32xf32>
    %800 = arith.subf %794, %799 : vector<16x32xf32>
    %801 = arith.mulf %800, %800 : vector<16x32xf32>
    %cst_270 = arith.constant dense<0.000000e+00> : vector<16xf32>
    %802 = vector.multi_reduction <add>, %801, %cst_270 [1] : vector<16x32xf32> to vector<16xf32>
    %803 = vector.shape_cast %802 : vector<16xf32> to vector<16x1xf32>
    %cst_271 = arith.constant 3.200000e+01 : f32
    %804 = vector.broadcast %cst_271 : f32 to vector<16x1xf32>
    %805 = arith.divf %803, %804 : vector<16x1xf32>
    %cst_272 = arith.constant 9.99999974E-6 : f32
    %806 = vector.broadcast %cst_272 : f32 to vector<16x1xf32>
    %807 = arith.addf %805, %806 : vector<16x1xf32>
    %808 = math.rsqrt %807 : vector<16x1xf32>
    %809 = vector.broadcast %808 : vector<16x1xf32> to vector<16x32xf32>
    %810 = arith.mulf %800, %809 : vector<16x32xf32>
    %811 = vector.broadcast %9 : vector<1x32xf32> to vector<16x32xf32>
    %812 = arith.mulf %810, %811 : vector<16x32xf32>
    %813 = vector.broadcast %10 : vector<1x32xf32> to vector<16x32xf32>
    %814 = arith.addf %812, %813 : vector<16x32xf32>
    %cst_273 = arith.constant dense<0.000000e+00> : vector<16x16xf32>
    %815 = tpu.matmul %814, %5, %cst_273 {dimension_numbers = #tpu.dot_dimension_numbers<[1], [0], [0], [1], [0, 0, 1, 1], [], []>} : vector<16x32xf32>, vector<32x16xf32>, vector<16x16xf32> -> vector<16x16xf32>
    %816 = vector.broadcast %13 : vector<1x16xf32> to vector<16x16xf32>
    %817 = arith.addf %815, %816 : vector<16x16xf32>
    %818 = math.tanh %817 : vector<16x16xf32>
    %cst_274 = arith.constant dense<0.000000e+00> : vector<16xf32>
    %819 = vector.multi_reduction <add>, %818, %cst_274 [1] : vector<16x16xf32> to vector<16xf32>
    %820 = vector.shape_cast %819 : vector<16xf32> to vector<16x1xf32>
    %cst_275 = arith.constant 1.600000e+01 : f32
    %821 = vector.broadcast %cst_275 : f32 to vector<16x1xf32>
    %822 = arith.divf %820, %821 : vector<16x1xf32>
    %823 = vector.broadcast %822 : vector<16x1xf32> to vector<16x16xf32>
    %824 = arith.subf %818, %823 : vector<16x16xf32>
    %825 = arith.mulf %824, %824 : vector<16x16xf32>
    %cst_276 = arith.constant dense<0.000000e+00> : vector<16xf32>
    %826 = vector.multi_reduction <add>, %825, %cst_276 [1] : vector<16x16xf32> to vector<16xf32>
    %827 = vector.shape_cast %826 : vector<16xf32> to vector<16x1xf32>
    %cst_277 = arith.constant 1.600000e+01 : f32
    %828 = vector.broadcast %cst_277 : f32 to vector<16x1xf32>
    %829 = arith.divf %827, %828 : vector<16x1xf32>
    %cst_278 = arith.constant 9.99999974E-6 : f32
    %830 = vector.broadcast %cst_278 : f32 to vector<16x1xf32>
    %831 = arith.addf %829, %830 : vector<16x1xf32>
    %832 = math.rsqrt %831 : vector<16x1xf32>
    %833 = vector.broadcast %832 : vector<16x1xf32> to vector<16x16xf32>
    %834 = arith.mulf %824, %833 : vector<16x16xf32>
    %835 = vector.broadcast %11 : vector<1x16xf32> to vector<16x16xf32>
    %836 = arith.mulf %834, %835 : vector<16x16xf32>
    %837 = vector.broadcast %12 : vector<1x16xf32> to vector<16x16xf32>
    %838 = arith.addf %836, %837 : vector<16x16xf32>
    %cst_279 = arith.constant dense<0.000000e+00> : vector<16x10xf32>
    %839 = tpu.matmul %838, %7, %cst_279 {dimension_numbers = #tpu.dot_dimension_numbers<[1], [0], [0], [1], [0, 0, 1, 1], [], []>} : vector<16x16xf32>, vector<16x10xf32>, vector<16x10xf32> -> vector<16x10xf32>
    %840 = vector.broadcast %14 : vector<1x10xf32> to vector<16x10xf32>
    %841 = arith.addf %839, %840 : vector<16x10xf32>
    %cst_280 = arith.constant 2.000000e-01 : f32
    %842 = vector.broadcast %cst_280 : f32 to vector<16x10xf32>
    %843 = arith.mulf %841, %842 : vector<16x10xf32>
    %cst_281 = arith.constant dense<0.000000e+00> : vector<16x16xf32>
    %844 = tpu.matmul %843, %8, %cst_281 {dimension_numbers = #tpu.dot_dimension_numbers<[1], [0], [0], [1], [0, 0, 1, 1], [], []>} : vector<16x10xf32>, vector<10x16xf32>, vector<16x16xf32> -> vector<16x16xf32>
    %845 = vector.broadcast %11 : vector<1x16xf32> to vector<16x16xf32>
    %846 = arith.mulf %844, %845 : vector<16x16xf32>
    %cst_282 = arith.constant dense<0.000000e+00> : vector<16xf32>
    %847 = vector.multi_reduction <add>, %846, %cst_282 [1] : vector<16x16xf32> to vector<16xf32>
    %848 = vector.shape_cast %847 : vector<16xf32> to vector<16x1xf32>
    %cst_283 = arith.constant 1.600000e+01 : f32
    %849 = vector.broadcast %cst_283 : f32 to vector<16x1xf32>
    %850 = arith.divf %848, %849 : vector<16x1xf32>
    %851 = arith.mulf %846, %834 : vector<16x16xf32>
    %cst_284 = arith.constant dense<0.000000e+00> : vector<16xf32>
    %852 = vector.multi_reduction <add>, %851, %cst_284 [1] : vector<16x16xf32> to vector<16xf32>
    %853 = vector.shape_cast %852 : vector<16xf32> to vector<16x1xf32>
    %cst_285 = arith.constant 1.600000e+01 : f32
    %854 = vector.broadcast %cst_285 : f32 to vector<16x1xf32>
    %855 = arith.divf %853, %854 : vector<16x1xf32>
    %856 = vector.broadcast %850 : vector<16x1xf32> to vector<16x16xf32>
    %857 = arith.subf %846, %856 : vector<16x16xf32>
    %858 = vector.broadcast %855 : vector<16x1xf32> to vector<16x16xf32>
    %859 = arith.mulf %834, %858 : vector<16x16xf32>
    %860 = arith.subf %857, %859 : vector<16x16xf32>
    %861 = vector.broadcast %832 : vector<16x1xf32> to vector<16x16xf32>
    %862 = arith.mulf %861, %860 : vector<16x16xf32>
    %863 = arith.mulf %818, %818 : vector<16x16xf32>
    %cst_286 = arith.constant 1.000000e+00 : f32
    %864 = vector.broadcast %cst_286 : f32 to vector<16x16xf32>
    %865 = arith.subf %864, %863 : vector<16x16xf32>
    %866 = arith.mulf %862, %865 : vector<16x16xf32>
    %cst_287 = arith.constant dense<0.000000e+00> : vector<16x32xf32>
    %867 = tpu.matmul %866, %6, %cst_287 {dimension_numbers = #tpu.dot_dimension_numbers<[1], [0], [0], [1], [0, 0, 1, 1], [], []>} : vector<16x16xf32>, vector<16x32xf32>, vector<16x32xf32> -> vector<16x32xf32>
    %868 = vector.broadcast %9 : vector<1x32xf32> to vector<16x32xf32>
    %869 = arith.mulf %867, %868 : vector<16x32xf32>
    %cst_288 = arith.constant dense<0.000000e+00> : vector<16xf32>
    %870 = vector.multi_reduction <add>, %869, %cst_288 [1] : vector<16x32xf32> to vector<16xf32>
    %871 = vector.shape_cast %870 : vector<16xf32> to vector<16x1xf32>
    %cst_289 = arith.constant 3.200000e+01 : f32
    %872 = vector.broadcast %cst_289 : f32 to vector<16x1xf32>
    %873 = arith.divf %871, %872 : vector<16x1xf32>
    %874 = arith.mulf %869, %810 : vector<16x32xf32>
    %cst_290 = arith.constant dense<0.000000e+00> : vector<16xf32>
    %875 = vector.multi_reduction <add>, %874, %cst_290 [1] : vector<16x32xf32> to vector<16xf32>
    %876 = vector.shape_cast %875 : vector<16xf32> to vector<16x1xf32>
    %cst_291 = arith.constant 3.200000e+01 : f32
    %877 = vector.broadcast %cst_291 : f32 to vector<16x1xf32>
    %878 = arith.divf %876, %877 : vector<16x1xf32>
    %879 = vector.broadcast %873 : vector<16x1xf32> to vector<16x32xf32>
    %880 = arith.subf %869, %879 : vector<16x32xf32>
    %881 = vector.broadcast %878 : vector<16x1xf32> to vector<16x32xf32>
    %882 = arith.mulf %810, %881 : vector<16x32xf32>
    %883 = arith.subf %880, %882 : vector<16x32xf32>
    %884 = vector.broadcast %808 : vector<16x1xf32> to vector<16x32xf32>
    %885 = arith.mulf %884, %883 : vector<16x32xf32>
    %886 = arith.mulf %794, %794 : vector<16x32xf32>
    %cst_292 = arith.constant 1.000000e+00 : f32
    %887 = vector.broadcast %cst_292 : f32 to vector<16x32xf32>
    %888 = arith.subf %887, %886 : vector<16x32xf32>
    %889 = arith.mulf %885, %888 : vector<16x32xf32>
    %cst_293 = arith.constant dense<0.000000e+00> : vector<16x32xf32>
    %890 = tpu.matmul %889, %4, %cst_293 {dimension_numbers = #tpu.dot_dimension_numbers<[1], [0], [0], [1], [0, 0, 1, 1], [], []>} : vector<16x32xf32>, vector<32x32xf32>, vector<16x32xf32> -> vector<16x32xf32>
    %cst_294 = arith.constant dense<0.000000e+00> : vector<2x32xf32>
    %891 = tpu.matmul %2, %890, %cst_294 {dimension_numbers = #tpu.dot_dimension_numbers<[1], [0], [0], [1], [0, 0, 1, 1], [], []>} : vector<2x16xf32>, vector<16x32xf32>, vector<2x32xf32> -> vector<2x32xf32>
    %cst_295 = arith.constant 6.250000e-05 : f32
    %892 = vector.broadcast %cst_295 : f32 to vector<2x32xf32>
    %893 = arith.mulf %892, %790 : vector<2x32xf32>
    %894 = arith.addf %891, %893 : vector<2x32xf32>
    %c7 = arith.constant 7 : index
    %c0_296 = arith.constant 0 : index
    %c0_297 = arith.constant 0 : index
    %895 = vector.load %arg19[%c7, %c0_296, %c0_297] : memref<10x2x32xf32, #tpu.memory_space<vmem>>, vector<1x2x32xf32>
    %896 = vector.shape_cast %895 : vector<1x2x32xf32> to vector<2x32xf32>
    %897 = vector.shape_cast %894 : vector<2x32xf32> to vector<1x2x32xf32>
    tpu.vector_store %arg19[%c7, %c0_296, %c0_297], %897 {strides = array<i32>} : memref<10x2x32xf32, #tpu.memory_space<vmem>>, vector<1x2x32xf32>,
    %cst_298 = arith.constant 1.000000e-01 : f32
    %898 = vector.broadcast %cst_298 : f32 to vector<2x32xf32>
    %899 = arith.mulf %898, %894 : vector<2x32xf32>
    %900 = arith.subf %790, %899 : vector<2x32xf32>
    %cst_299 = arith.constant dense<0.000000e+00> : vector<16x32xf32>
    %901 = tpu.matmul %1, %900, %cst_299 {dimension_numbers = #tpu.dot_dimension_numbers<[1], [0], [0], [1], [0, 0, 1, 1], [], []>} : vector<16x2xf32>, vector<2x32xf32>, vector<16x32xf32> -> vector<16x32xf32>
    %cst_300 = arith.constant dense<0.000000e+00> : vector<16x32xf32>
    %902 = tpu.matmul %901, %3, %cst_300 {dimension_numbers = #tpu.dot_dimension_numbers<[1], [0], [0], [1], [0, 0, 1, 1], [], []>} : vector<16x32xf32>, vector<32x32xf32>, vector<16x32xf32> -> vector<16x32xf32>
    %903 = arith.addf %19, %902 : vector<16x32xf32>
    %904 = math.tanh %903 : vector<16x32xf32>
    %cst_301 = arith.constant dense<0.000000e+00> : vector<16xf32>
    %905 = vector.multi_reduction <add>, %904, %cst_301 [1] : vector<16x32xf32> to vector<16xf32>
    %906 = vector.shape_cast %905 : vector<16xf32> to vector<16x1xf32>
    %cst_302 = arith.constant 3.200000e+01 : f32
    %907 = vector.broadcast %cst_302 : f32 to vector<16x1xf32>
    %908 = arith.divf %906, %907 : vector<16x1xf32>
    %909 = vector.broadcast %908 : vector<16x1xf32> to vector<16x32xf32>
    %910 = arith.subf %904, %909 : vector<16x32xf32>
    %911 = arith.mulf %910, %910 : vector<16x32xf32>
    %cst_303 = arith.constant dense<0.000000e+00> : vector<16xf32>
    %912 = vector.multi_reduction <add>, %911, %cst_303 [1] : vector<16x32xf32> to vector<16xf32>
    %913 = vector.shape_cast %912 : vector<16xf32> to vector<16x1xf32>
    %cst_304 = arith.constant 3.200000e+01 : f32
    %914 = vector.broadcast %cst_304 : f32 to vector<16x1xf32>
    %915 = arith.divf %913, %914 : vector<16x1xf32>
    %cst_305 = arith.constant 9.99999974E-6 : f32
    %916 = vector.broadcast %cst_305 : f32 to vector<16x1xf32>
    %917 = arith.addf %915, %916 : vector<16x1xf32>
    %918 = math.rsqrt %917 : vector<16x1xf32>
    %919 = vector.broadcast %918 : vector<16x1xf32> to vector<16x32xf32>
    %920 = arith.mulf %910, %919 : vector<16x32xf32>
    %921 = vector.broadcast %9 : vector<1x32xf32> to vector<16x32xf32>
    %922 = arith.mulf %920, %921 : vector<16x32xf32>
    %923 = vector.broadcast %10 : vector<1x32xf32> to vector<16x32xf32>
    %924 = arith.addf %922, %923 : vector<16x32xf32>
    %cst_306 = arith.constant dense<0.000000e+00> : vector<16x16xf32>
    %925 = tpu.matmul %924, %5, %cst_306 {dimension_numbers = #tpu.dot_dimension_numbers<[1], [0], [0], [1], [0, 0, 1, 1], [], []>} : vector<16x32xf32>, vector<32x16xf32>, vector<16x16xf32> -> vector<16x16xf32>
    %926 = vector.broadcast %13 : vector<1x16xf32> to vector<16x16xf32>
    %927 = arith.addf %925, %926 : vector<16x16xf32>
    %928 = math.tanh %927 : vector<16x16xf32>
    %cst_307 = arith.constant dense<0.000000e+00> : vector<16xf32>
    %929 = vector.multi_reduction <add>, %928, %cst_307 [1] : vector<16x16xf32> to vector<16xf32>
    %930 = vector.shape_cast %929 : vector<16xf32> to vector<16x1xf32>
    %cst_308 = arith.constant 1.600000e+01 : f32
    %931 = vector.broadcast %cst_308 : f32 to vector<16x1xf32>
    %932 = arith.divf %930, %931 : vector<16x1xf32>
    %933 = vector.broadcast %932 : vector<16x1xf32> to vector<16x16xf32>
    %934 = arith.subf %928, %933 : vector<16x16xf32>
    %935 = arith.mulf %934, %934 : vector<16x16xf32>
    %cst_309 = arith.constant dense<0.000000e+00> : vector<16xf32>
    %936 = vector.multi_reduction <add>, %935, %cst_309 [1] : vector<16x16xf32> to vector<16xf32>
    %937 = vector.shape_cast %936 : vector<16xf32> to vector<16x1xf32>
    %cst_310 = arith.constant 1.600000e+01 : f32
    %938 = vector.broadcast %cst_310 : f32 to vector<16x1xf32>
    %939 = arith.divf %937, %938 : vector<16x1xf32>
    %cst_311 = arith.constant 9.99999974E-6 : f32
    %940 = vector.broadcast %cst_311 : f32 to vector<16x1xf32>
    %941 = arith.addf %939, %940 : vector<16x1xf32>
    %942 = math.rsqrt %941 : vector<16x1xf32>
    %943 = vector.broadcast %942 : vector<16x1xf32> to vector<16x16xf32>
    %944 = arith.mulf %934, %943 : vector<16x16xf32>
    %945 = vector.broadcast %11 : vector<1x16xf32> to vector<16x16xf32>
    %946 = arith.mulf %944, %945 : vector<16x16xf32>
    %947 = vector.broadcast %12 : vector<1x16xf32> to vector<16x16xf32>
    %948 = arith.addf %946, %947 : vector<16x16xf32>
    %cst_312 = arith.constant dense<0.000000e+00> : vector<16x10xf32>
    %949 = tpu.matmul %948, %7, %cst_312 {dimension_numbers = #tpu.dot_dimension_numbers<[1], [0], [0], [1], [0, 0, 1, 1], [], []>} : vector<16x16xf32>, vector<16x10xf32>, vector<16x10xf32> -> vector<16x10xf32>
    %950 = vector.broadcast %14 : vector<1x10xf32> to vector<16x10xf32>
    %951 = arith.addf %949, %950 : vector<16x10xf32>
    %cst_313 = arith.constant 2.000000e-01 : f32
    %952 = vector.broadcast %cst_313 : f32 to vector<16x10xf32>
    %953 = arith.mulf %951, %952 : vector<16x10xf32>
    %cst_314 = arith.constant dense<0.000000e+00> : vector<16x16xf32>
    %954 = tpu.matmul %953, %8, %cst_314 {dimension_numbers = #tpu.dot_dimension_numbers<[1], [0], [0], [1], [0, 0, 1, 1], [], []>} : vector<16x10xf32>, vector<10x16xf32>, vector<16x16xf32> -> vector<16x16xf32>
    %955 = vector.broadcast %11 : vector<1x16xf32> to vector<16x16xf32>
    %956 = arith.mulf %954, %955 : vector<16x16xf32>
    %cst_315 = arith.constant dense<0.000000e+00> : vector<16xf32>
    %957 = vector.multi_reduction <add>, %956, %cst_315 [1] : vector<16x16xf32> to vector<16xf32>
    %958 = vector.shape_cast %957 : vector<16xf32> to vector<16x1xf32>
    %cst_316 = arith.constant 1.600000e+01 : f32
    %959 = vector.broadcast %cst_316 : f32 to vector<16x1xf32>
    %960 = arith.divf %958, %959 : vector<16x1xf32>
    %961 = arith.mulf %956, %944 : vector<16x16xf32>
    %cst_317 = arith.constant dense<0.000000e+00> : vector<16xf32>
    %962 = vector.multi_reduction <add>, %961, %cst_317 [1] : vector<16x16xf32> to vector<16xf32>
    %963 = vector.shape_cast %962 : vector<16xf32> to vector<16x1xf32>
    %cst_318 = arith.constant 1.600000e+01 : f32
    %964 = vector.broadcast %cst_318 : f32 to vector<16x1xf32>
    %965 = arith.divf %963, %964 : vector<16x1xf32>
    %966 = vector.broadcast %960 : vector<16x1xf32> to vector<16x16xf32>
    %967 = arith.subf %956, %966 : vector<16x16xf32>
    %968 = vector.broadcast %965 : vector<16x1xf32> to vector<16x16xf32>
    %969 = arith.mulf %944, %968 : vector<16x16xf32>
    %970 = arith.subf %967, %969 : vector<16x16xf32>
    %971 = vector.broadcast %942 : vector<16x1xf32> to vector<16x16xf32>
    %972 = arith.mulf %971, %970 : vector<16x16xf32>
    %973 = arith.mulf %928, %928 : vector<16x16xf32>
    %cst_319 = arith.constant 1.000000e+00 : f32
    %974 = vector.broadcast %cst_319 : f32 to vector<16x16xf32>
    %975 = arith.subf %974, %973 : vector<16x16xf32>
    %976 = arith.mulf %972, %975 : vector<16x16xf32>
    %cst_320 = arith.constant dense<0.000000e+00> : vector<16x32xf32>
    %977 = tpu.matmul %976, %6, %cst_320 {dimension_numbers = #tpu.dot_dimension_numbers<[1], [0], [0], [1], [0, 0, 1, 1], [], []>} : vector<16x16xf32>, vector<16x32xf32>, vector<16x32xf32> -> vector<16x32xf32>
    %978 = vector.broadcast %9 : vector<1x32xf32> to vector<16x32xf32>
    %979 = arith.mulf %977, %978 : vector<16x32xf32>
    %cst_321 = arith.constant dense<0.000000e+00> : vector<16xf32>
    %980 = vector.multi_reduction <add>, %979, %cst_321 [1] : vector<16x32xf32> to vector<16xf32>
    %981 = vector.shape_cast %980 : vector<16xf32> to vector<16x1xf32>
    %cst_322 = arith.constant 3.200000e+01 : f32
    %982 = vector.broadcast %cst_322 : f32 to vector<16x1xf32>
    %983 = arith.divf %981, %982 : vector<16x1xf32>
    %984 = arith.mulf %979, %920 : vector<16x32xf32>
    %cst_323 = arith.constant dense<0.000000e+00> : vector<16xf32>
    %985 = vector.multi_reduction <add>, %984, %cst_323 [1] : vector<16x32xf32> to vector<16xf32>
    %986 = vector.shape_cast %985 : vector<16xf32> to vector<16x1xf32>
    %cst_324 = arith.constant 3.200000e+01 : f32
    %987 = vector.broadcast %cst_324 : f32 to vector<16x1xf32>
    %988 = arith.divf %986, %987 : vector<16x1xf32>
    %989 = vector.broadcast %983 : vector<16x1xf32> to vector<16x32xf32>
    %990 = arith.subf %979, %989 : vector<16x32xf32>
    %991 = vector.broadcast %988 : vector<16x1xf32> to vector<16x32xf32>
    %992 = arith.mulf %920, %991 : vector<16x32xf32>
    %993 = arith.subf %990, %992 : vector<16x32xf32>
    %994 = vector.broadcast %918 : vector<16x1xf32> to vector<16x32xf32>
    %995 = arith.mulf %994, %993 : vector<16x32xf32>
    %996 = arith.mulf %904, %904 : vector<16x32xf32>
    %cst_325 = arith.constant 1.000000e+00 : f32
    %997 = vector.broadcast %cst_325 : f32 to vector<16x32xf32>
    %998 = arith.subf %997, %996 : vector<16x32xf32>
    %999 = arith.mulf %995, %998 : vector<16x32xf32>
    %cst_326 = arith.constant dense<0.000000e+00> : vector<16x32xf32>
    %1000 = tpu.matmul %999, %4, %cst_326 {dimension_numbers = #tpu.dot_dimension_numbers<[1], [0], [0], [1], [0, 0, 1, 1], [], []>} : vector<16x32xf32>, vector<32x32xf32>, vector<16x32xf32> -> vector<16x32xf32>
    %cst_327 = arith.constant dense<0.000000e+00> : vector<2x32xf32>
    %1001 = tpu.matmul %2, %1000, %cst_327 {dimension_numbers = #tpu.dot_dimension_numbers<[1], [0], [0], [1], [0, 0, 1, 1], [], []>} : vector<2x16xf32>, vector<16x32xf32>, vector<2x32xf32> -> vector<2x32xf32>
    %cst_328 = arith.constant 6.250000e-05 : f32
    %1002 = vector.broadcast %cst_328 : f32 to vector<2x32xf32>
    %1003 = arith.mulf %1002, %900 : vector<2x32xf32>
    %1004 = arith.addf %1001, %1003 : vector<2x32xf32>
    %c8 = arith.constant 8 : index
    %c0_329 = arith.constant 0 : index
    %c0_330 = arith.constant 0 : index
    %1005 = vector.load %arg19[%c8, %c0_329, %c0_330] : memref<10x2x32xf32, #tpu.memory_space<vmem>>, vector<1x2x32xf32>
    %1006 = vector.shape_cast %1005 : vector<1x2x32xf32> to vector<2x32xf32>
    %1007 = vector.shape_cast %1004 : vector<2x32xf32> to vector<1x2x32xf32>
    tpu.vector_store %arg19[%c8, %c0_329, %c0_330], %1007 {strides = array<i32>} : memref<10x2x32xf32, #tpu.memory_space<vmem>>, vector<1x2x32xf32>,
    %cst_331 = arith.constant 1.000000e-01 : f32
    %1008 = vector.broadcast %cst_331 : f32 to vector<2x32xf32>
    %1009 = arith.mulf %1008, %1004 : vector<2x32xf32>
    %1010 = arith.subf %900, %1009 : vector<2x32xf32>
    %cst_332 = arith.constant dense<0.000000e+00> : vector<16x32xf32>
    %1011 = tpu.matmul %1, %1010, %cst_332 {dimension_numbers = #tpu.dot_dimension_numbers<[1], [0], [0], [1], [0, 0, 1, 1], [], []>} : vector<16x2xf32>, vector<2x32xf32>, vector<16x32xf32> -> vector<16x32xf32>
    %cst_333 = arith.constant dense<0.000000e+00> : vector<16x32xf32>
    %1012 = tpu.matmul %1011, %3, %cst_333 {dimension_numbers = #tpu.dot_dimension_numbers<[1], [0], [0], [1], [0, 0, 1, 1], [], []>} : vector<16x32xf32>, vector<32x32xf32>, vector<16x32xf32> -> vector<16x32xf32>
    %1013 = arith.addf %19, %1012 : vector<16x32xf32>
    %1014 = math.tanh %1013 : vector<16x32xf32>
    %cst_334 = arith.constant dense<0.000000e+00> : vector<16xf32>
    %1015 = vector.multi_reduction <add>, %1014, %cst_334 [1] : vector<16x32xf32> to vector<16xf32>
    %1016 = vector.shape_cast %1015 : vector<16xf32> to vector<16x1xf32>
    %cst_335 = arith.constant 3.200000e+01 : f32
    %1017 = vector.broadcast %cst_335 : f32 to vector<16x1xf32>
    %1018 = arith.divf %1016, %1017 : vector<16x1xf32>
    %1019 = vector.broadcast %1018 : vector<16x1xf32> to vector<16x32xf32>
    %1020 = arith.subf %1014, %1019 : vector<16x32xf32>
    %1021 = arith.mulf %1020, %1020 : vector<16x32xf32>
    %cst_336 = arith.constant dense<0.000000e+00> : vector<16xf32>
    %1022 = vector.multi_reduction <add>, %1021, %cst_336 [1] : vector<16x32xf32> to vector<16xf32>
    %1023 = vector.shape_cast %1022 : vector<16xf32> to vector<16x1xf32>
    %cst_337 = arith.constant 3.200000e+01 : f32
    %1024 = vector.broadcast %cst_337 : f32 to vector<16x1xf32>
    %1025 = arith.divf %1023, %1024 : vector<16x1xf32>
    %cst_338 = arith.constant 9.99999974E-6 : f32
    %1026 = vector.broadcast %cst_338 : f32 to vector<16x1xf32>
    %1027 = arith.addf %1025, %1026 : vector<16x1xf32>
    %1028 = math.rsqrt %1027 : vector<16x1xf32>
    %1029 = vector.broadcast %1028 : vector<16x1xf32> to vector<16x32xf32>
    %1030 = arith.mulf %1020, %1029 : vector<16x32xf32>
    %1031 = vector.broadcast %9 : vector<1x32xf32> to vector<16x32xf32>
    %1032 = arith.mulf %1030, %1031 : vector<16x32xf32>
    %1033 = vector.broadcast %10 : vector<1x32xf32> to vector<16x32xf32>
    %1034 = arith.addf %1032, %1033 : vector<16x32xf32>
    %cst_339 = arith.constant dense<0.000000e+00> : vector<16x16xf32>
    %1035 = tpu.matmul %1034, %5, %cst_339 {dimension_numbers = #tpu.dot_dimension_numbers<[1], [0], [0], [1], [0, 0, 1, 1], [], []>} : vector<16x32xf32>, vector<32x16xf32>, vector<16x16xf32> -> vector<16x16xf32>
    %1036 = vector.broadcast %13 : vector<1x16xf32> to vector<16x16xf32>
    %1037 = arith.addf %1035, %1036 : vector<16x16xf32>
    %1038 = math.tanh %1037 : vector<16x16xf32>
    %cst_340 = arith.constant dense<0.000000e+00> : vector<16xf32>
    %1039 = vector.multi_reduction <add>, %1038, %cst_340 [1] : vector<16x16xf32> to vector<16xf32>
    %1040 = vector.shape_cast %1039 : vector<16xf32> to vector<16x1xf32>
    %cst_341 = arith.constant 1.600000e+01 : f32
    %1041 = vector.broadcast %cst_341 : f32 to vector<16x1xf32>
    %1042 = arith.divf %1040, %1041 : vector<16x1xf32>
    %1043 = vector.broadcast %1042 : vector<16x1xf32> to vector<16x16xf32>
    %1044 = arith.subf %1038, %1043 : vector<16x16xf32>
    %1045 = arith.mulf %1044, %1044 : vector<16x16xf32>
    %cst_342 = arith.constant dense<0.000000e+00> : vector<16xf32>
    %1046 = vector.multi_reduction <add>, %1045, %cst_342 [1] : vector<16x16xf32> to vector<16xf32>
    %1047 = vector.shape_cast %1046 : vector<16xf32> to vector<16x1xf32>
    %cst_343 = arith.constant 1.600000e+01 : f32
    %1048 = vector.broadcast %cst_343 : f32 to vector<16x1xf32>
    %1049 = arith.divf %1047, %1048 : vector<16x1xf32>
    %cst_344 = arith.constant 9.99999974E-6 : f32
    %1050 = vector.broadcast %cst_344 : f32 to vector<16x1xf32>
    %1051 = arith.addf %1049, %1050 : vector<16x1xf32>
    %1052 = math.rsqrt %1051 : vector<16x1xf32>
    %1053 = vector.broadcast %1052 : vector<16x1xf32> to vector<16x16xf32>
    %1054 = arith.mulf %1044, %1053 : vector<16x16xf32>
    %1055 = vector.broadcast %11 : vector<1x16xf32> to vector<16x16xf32>
    %1056 = arith.mulf %1054, %1055 : vector<16x16xf32>
    %1057 = vector.broadcast %12 : vector<1x16xf32> to vector<16x16xf32>
    %1058 = arith.addf %1056, %1057 : vector<16x16xf32>
    %cst_345 = arith.constant dense<0.000000e+00> : vector<16x10xf32>
    %1059 = tpu.matmul %1058, %7, %cst_345 {dimension_numbers = #tpu.dot_dimension_numbers<[1], [0], [0], [1], [0, 0, 1, 1], [], []>} : vector<16x16xf32>, vector<16x10xf32>, vector<16x10xf32> -> vector<16x10xf32>
    %1060 = vector.broadcast %14 : vector<1x10xf32> to vector<16x10xf32>
    %1061 = arith.addf %1059, %1060 : vector<16x10xf32>
    %cst_346 = arith.constant 2.000000e-01 : f32
    %1062 = vector.broadcast %cst_346 : f32 to vector<16x10xf32>
    %1063 = arith.mulf %1061, %1062 : vector<16x10xf32>
    %cst_347 = arith.constant dense<0.000000e+00> : vector<16x16xf32>
    %1064 = tpu.matmul %1063, %8, %cst_347 {dimension_numbers = #tpu.dot_dimension_numbers<[1], [0], [0], [1], [0, 0, 1, 1], [], []>} : vector<16x10xf32>, vector<10x16xf32>, vector<16x16xf32> -> vector<16x16xf32>
    %1065 = vector.broadcast %11 : vector<1x16xf32> to vector<16x16xf32>
    %1066 = arith.mulf %1064, %1065 : vector<16x16xf32>
    %cst_348 = arith.constant dense<0.000000e+00> : vector<16xf32>
    %1067 = vector.multi_reduction <add>, %1066, %cst_348 [1] : vector<16x16xf32> to vector<16xf32>
    %1068 = vector.shape_cast %1067 : vector<16xf32> to vector<16x1xf32>
    %cst_349 = arith.constant 1.600000e+01 : f32
    %1069 = vector.broadcast %cst_349 : f32 to vector<16x1xf32>
    %1070 = arith.divf %1068, %1069 : vector<16x1xf32>
    %1071 = arith.mulf %1066, %1054 : vector<16x16xf32>
    %cst_350 = arith.constant dense<0.000000e+00> : vector<16xf32>
    %1072 = vector.multi_reduction <add>, %1071, %cst_350 [1] : vector<16x16xf32> to vector<16xf32>
    %1073 = vector.shape_cast %1072 : vector<16xf32> to vector<16x1xf32>
    %cst_351 = arith.constant 1.600000e+01 : f32
    %1074 = vector.broadcast %cst_351 : f32 to vector<16x1xf32>
    %1075 = arith.divf %1073, %1074 : vector<16x1xf32>
    %1076 = vector.broadcast %1070 : vector<16x1xf32> to vector<16x16xf32>
    %1077 = arith.subf %1066, %1076 : vector<16x16xf32>
    %1078 = vector.broadcast %1075 : vector<16x1xf32> to vector<16x16xf32>
    %1079 = arith.mulf %1054, %1078 : vector<16x16xf32>
    %1080 = arith.subf %1077, %1079 : vector<16x16xf32>
    %1081 = vector.broadcast %1052 : vector<16x1xf32> to vector<16x16xf32>
    %1082 = arith.mulf %1081, %1080 : vector<16x16xf32>
    %1083 = arith.mulf %1038, %1038 : vector<16x16xf32>
    %cst_352 = arith.constant 1.000000e+00 : f32
    %1084 = vector.broadcast %cst_352 : f32 to vector<16x16xf32>
    %1085 = arith.subf %1084, %1083 : vector<16x16xf32>
    %1086 = arith.mulf %1082, %1085 : vector<16x16xf32>
    %cst_353 = arith.constant dense<0.000000e+00> : vector<16x32xf32>
    %1087 = tpu.matmul %1086, %6, %cst_353 {dimension_numbers = #tpu.dot_dimension_numbers<[1], [0], [0], [1], [0, 0, 1, 1], [], []>} : vector<16x16xf32>, vector<16x32xf32>, vector<16x32xf32> -> vector<16x32xf32>
    %1088 = vector.broadcast %9 : vector<1x32xf32> to vector<16x32xf32>
    %1089 = arith.mulf %1087, %1088 : vector<16x32xf32>
    %cst_354 = arith.constant dense<0.000000e+00> : vector<16xf32>
    %1090 = vector.multi_reduction <add>, %1089, %cst_354 [1] : vector<16x32xf32> to vector<16xf32>
    %1091 = vector.shape_cast %1090 : vector<16xf32> to vector<16x1xf32>
    %cst_355 = arith.constant 3.200000e+01 : f32
    %1092 = vector.broadcast %cst_355 : f32 to vector<16x1xf32>
    %1093 = arith.divf %1091, %1092 : vector<16x1xf32>
    %1094 = arith.mulf %1089, %1030 : vector<16x32xf32>
    %cst_356 = arith.constant dense<0.000000e+00> : vector<16xf32>
    %1095 = vector.multi_reduction <add>, %1094, %cst_356 [1] : vector<16x32xf32> to vector<16xf32>
    %1096 = vector.shape_cast %1095 : vector<16xf32> to vector<16x1xf32>
    %cst_357 = arith.constant 3.200000e+01 : f32
    %1097 = vector.broadcast %cst_357 : f32 to vector<16x1xf32>
    %1098 = arith.divf %1096, %1097 : vector<16x1xf32>
    %1099 = vector.broadcast %1093 : vector<16x1xf32> to vector<16x32xf32>
    %1100 = arith.subf %1089, %1099 : vector<16x32xf32>
    %1101 = vector.broadcast %1098 : vector<16x1xf32> to vector<16x32xf32>
    %1102 = arith.mulf %1030, %1101 : vector<16x32xf32>
    %1103 = arith.subf %1100, %1102 : vector<16x32xf32>
    %1104 = vector.broadcast %1028 : vector<16x1xf32> to vector<16x32xf32>
    %1105 = arith.mulf %1104, %1103 : vector<16x32xf32>
    %1106 = arith.mulf %1014, %1014 : vector<16x32xf32>
    %cst_358 = arith.constant 1.000000e+00 : f32
    %1107 = vector.broadcast %cst_358 : f32 to vector<16x32xf32>
    %1108 = arith.subf %1107, %1106 : vector<16x32xf32>
    %1109 = arith.mulf %1105, %1108 : vector<16x32xf32>
    %cst_359 = arith.constant dense<0.000000e+00> : vector<16x32xf32>
    %1110 = tpu.matmul %1109, %4, %cst_359 {dimension_numbers = #tpu.dot_dimension_numbers<[1], [0], [0], [1], [0, 0, 1, 1], [], []>} : vector<16x32xf32>, vector<32x32xf32>, vector<16x32xf32> -> vector<16x32xf32>
    %cst_360 = arith.constant dense<0.000000e+00> : vector<2x32xf32>
    %1111 = tpu.matmul %2, %1110, %cst_360 {dimension_numbers = #tpu.dot_dimension_numbers<[1], [0], [0], [1], [0, 0, 1, 1], [], []>} : vector<2x16xf32>, vector<16x32xf32>, vector<2x32xf32> -> vector<2x32xf32>
    %cst_361 = arith.constant 6.250000e-05 : f32
    %1112 = vector.broadcast %cst_361 : f32 to vector<2x32xf32>
    %1113 = arith.mulf %1112, %1010 : vector<2x32xf32>
    %1114 = arith.addf %1111, %1113 : vector<2x32xf32>
    %c9 = arith.constant 9 : index
    %c0_362 = arith.constant 0 : index
    %c0_363 = arith.constant 0 : index
    %1115 = vector.load %arg19[%c9, %c0_362, %c0_363] : memref<10x2x32xf32, #tpu.memory_space<vmem>>, vector<1x2x32xf32>
    %1116 = vector.shape_cast %1115 : vector<1x2x32xf32> to vector<2x32xf32>
    %1117 = vector.shape_cast %1114 : vector<2x32xf32> to vector<1x2x32xf32>
    tpu.vector_store %arg19[%c9, %c0_362, %c0_363], %1117 {strides = array<i32>} : memref<10x2x32xf32, #tpu.memory_space<vmem>>, vector<1x2x32xf32>,
    %cst_364 = arith.constant 1.000000e-01 : f32
    %1118 = vector.broadcast %cst_364 : f32 to vector<2x32xf32>
    %1119 = arith.mulf %1118, %1114 : vector<2x32xf32>
    %1120 = arith.subf %1010, %1119 : vector<2x32xf32>
    %c0_365 = arith.constant 0 : index
    %c0_366 = arith.constant 0 : index
    %1121 = vector.load %arg18[%c0_365, %c0_366] : memref<2x32xf32, #tpu.memory_space<vmem>>, vector<2x32xf32>
    tpu.vector_store %arg18[%c0_365, %c0_366], %1120 {strides = array<i32>} : memref<2x32xf32, #tpu.memory_space<vmem>>, vector<2x32xf32>,
    return
  }
  func.func @transform_0(%arg0: i32) -> (i32, i32) {
    %c0_i32 = arith.constant 0 : i32
    %c0_i32_0 = arith.constant 0 : i32
    %c0_i32_1 = arith.constant 0 : i32
    return %c0_i32, %c0_i32_0 : i32, i32
  }
  func.func @transform_1(%arg0: i32) -> (i32, i32) {
    %c0_i32 = arith.constant 0 : i32
    %c0_i32_0 = arith.constant 0 : i32
    %c0_i32_1 = arith.constant 0 : i32
    return %c0_i32, %c0_i32_0 : i32, i32
  }
  func.func @transform_2(%arg0: i32) -> (i32, i32) {
    %c0_i32 = arith.constant 0 : i32
    %c0_i32_0 = arith.constant 0 : i32
    %c0_i32_1 = arith.constant 0 : i32
    return %c0_i32, %c0_i32_0 : i32, i32
  }
  func.func @transform_3(%arg0: i32) -> (i32, i32) {
    %c0_i32 = arith.constant 0 : i32
    %c0_i32_0 = arith.constant 0 : i32
    %c0_i32_1 = arith.constant 0 : i32
    return %c0_i32, %c0_i32_0 : i32, i32
  }
  func.func @transform_4(%arg0: i32) -> (i32, i32) {
    %c0_i32 = arith.constant 0 : i32
    %c0_i32_0 = arith.constant 0 : i32
    %c0_i32_1 = arith.constant 0 : i32
    return %c0_i32, %c0_i32_0 : i32, i32
  }
  func.func @transform_5(%arg0: i32) -> (i32, i32) {
    %c0_i32 = arith.constant 0 : i32
    %c0_i32_0 = arith.constant 0 : i32
    %c0_i32_1 = arith.constant 0 : i32
    return %c0_i32, %c0_i32_0 : i32, i32
  }
  func.func @transform_6(%arg0: i32) -> (i32, i32) {
    %c0_i32 = arith.constant 0 : i32
    %c0_i32_0 = arith.constant 0 : i32
    %c0_i32_1 = arith.constant 0 : i32
    return %c0_i32, %c0_i32_0 : i32, i32
  }
  func.func @transform_7(%arg0: i32) -> (i32, i32) {
    %c0_i32 = arith.constant 0 : i32
    %c0_i32_0 = arith.constant 0 : i32
    %c0_i32_1 = arith.constant 0 : i32
    return %c0_i32, %c0_i32_0 : i32, i32
  }
  func.func @transform_8(%arg0: i32) -> (i32, i32) {
    %c0_i32 = arith.constant 0 : i32
    %c0_i32_0 = arith.constant 0 : i32
    %c0_i32_1 = arith.constant 0 : i32
    return %c0_i32, %c0_i32_0 : i32, i32
  }
  func.func @transform_9(%arg0: i32) -> (i32, i32) {
    %c0_i32 = arith.constant 0 : i32
    %c0_i32_0 = arith.constant 0 : i32
    %c0_i32_1 = arith.constant 0 : i32
    return %c0_i32, %c0_i32_0 : i32, i32
  }
  func.func @transform_10(%arg0: i32) -> (i32, i32) {
    %c0_i32 = arith.constant 0 : i32
    %c0_i32_0 = arith.constant 0 : i32
    %c0_i32_1 = arith.constant 0 : i32
    return %c0_i32, %c0_i32_0 : i32, i32
  }
  func.func @transform_11(%arg0: i32) -> (i32, i32) {
    %c0_i32 = arith.constant 0 : i32
    %c0_i32_0 = arith.constant 0 : i32
    %c0_i32_1 = arith.constant 0 : i32
    return %c0_i32, %c0_i32_0 : i32, i32
  }
  func.func @transform_12(%arg0: i32) -> (i32, i32) {
    %c0_i32 = arith.constant 0 : i32
    %c0_i32_0 = arith.constant 0 : i32
    %c0_i32_1 = arith.constant 0 : i32
    return %c0_i32, %c0_i32_0 : i32, i32
  }
  func.func @transform_13(%arg0: i32) -> (i32, i32) {
    %c0_i32 = arith.constant 0 : i32
    %c0_i32_0 = arith.constant 0 : i32
    %c0_i32_1 = arith.constant 0 : i32
    return %c0_i32, %c0_i32_0 : i32, i32
  }
  func.func @transform_14(%arg0: i32) -> (i32, i32) {
    %c0_i32 = arith.constant 0 : i32
    %c0_i32_0 = arith.constant 0 : i32
    %c0_i32_1 = arith.constant 0 : i32
    return %c0_i32, %c0_i32_0 : i32, i32
  }
  func.func @transform_15(%arg0: i32) -> (i32, i32) {
    %c0_i32 = arith.constant 0 : i32
    %c0_i32_0 = arith.constant 0 : i32
    %c0_i32_1 = arith.constant 0 : i32
    return %c0_i32, %c0_i32_0 : i32, i32
  }
  func.func @transform_16(%arg0: i32) -> (i32, i32) {
    %c0_i32 = arith.constant 0 : i32
    %c0_i32_0 = arith.constant 0 : i32
    %c0_i32_1 = arith.constant 0 : i32
    return %c0_i32, %c0_i32_0 : i32, i32
  }
  func.func @transform_17(%arg0: i32) -> (i32, i32) {
    %c0_i32 = arith.constant 0 : i32
    %c0_i32_0 = arith.constant 0 : i32
    %c0_i32_1 = arith.constant 0 : i32
    return %c0_i32, %c0_i32_0 : i32, i32
  }
  func.func @transform_18(%arg0: i32) -> (i32, i32, i32) {
    %c0_i32 = arith.constant 0 : i32
    %c0_i32_0 = arith.constant 0 : i32
    %c0_i32_1 = arith.constant 0 : i32
    %c0_i32_2 = arith.constant 0 : i32
    return %c0_i32, %c0_i32_0, %c0_i32_1 : i32, i32, i32
  }
}

</mosaic_0001>

<llo_original>
// kernel: tpu_custom_call.1
$region0: #{tpu_custom_call.1}
  #allocation0 [shape = 'u32[]', space=smem, size = 0x4, offset = 0x4, fixed_abs, tag = 'smem constant byte address 0x4 - core index']
  #allocation1 [shape = 'u32[144,128]{1,0:T(1,128)}', space=vmem, size = 0x12000, scoped, tag = 'internal scratch']
  %s0 = inlined_call_operand.hbm [shape: f32[16,32], index: 0, kind: input, shape index: {}]
  %s1 = inlined_call_operand.vmem [shape: f32[16,2], index: 1, kind: input, shape index: {}]
  %s2 = inlined_call_operand.hbm [shape: f32[2,16], index: 2, kind: input, shape index: {}]
  %s3 = inlined_call_operand.vmem [shape: f32[32,32], index: 3, kind: input, shape index: {}]
  %s4 = inlined_call_operand.vmem [shape: f32[32,32], index: 4, kind: input, shape index: {}]
  %s5 = inlined_call_operand.hbm [shape: f32[32,32], index: 5, kind: input, shape index: {}]
  %s6 = inlined_call_operand.hbm [shape: f32[1,32], index: 6, kind: input, shape index: {}]
  %s7 = inlined_call_operand.vmem [shape: f32[32,16], index: 7, kind: input, shape index: {}]
  %s8 = inlined_call_operand.vmem [shape: f32[16,32], index: 8, kind: input, shape index: {}]
  %s9 = inlined_call_operand.vmem [shape: f32[1,16], index: 9, kind: input, shape index: {}]
  %s10 = inlined_call_operand.hbm [shape: f32[16,10], index: 10, kind: input, shape index: {}]
  %s11 = inlined_call_operand.hbm [shape: f32[10,16], index: 11, kind: input, shape index: {}]
  %s12 = inlined_call_operand.vmem [shape: f32[1,10], index: 12, kind: input, shape index: {}]
  %s13 = inlined_call_operand.vmem [shape: f32[1,32], index: 13, kind: input, shape index: {}]
  %s14 = inlined_call_operand.vmem [shape: f32[1,32], index: 14, kind: input, shape index: {}]
  %s15 = inlined_call_operand.vmem [shape: f32[1,16], index: 15, kind: input, shape index: {}]
  %s16 = inlined_call_operand.vmem [shape: f32[1,16], index: 16, kind: input, shape index: {}]
  %s17 = inlined_call_operand.hbm [shape: f32[2,32], index: 17, kind: output, shape index: {0}]
  %s18 = inlined_call_operand.hbm [shape: f32[10,2,32], index: 18, kind: output, shape index: {1}]
  %19 = xla_tuple %s17, %s18
  %s20 = sld [smem:[#allocation0]]
  $region110: #{tpu_custom_call.1} parent=0
    _
  %s22 = ssub.s32 1, %s20
  %s23 = scalar_select 0, %s22, %s20
  $region1: #{tpu_custom_call.1} parent=0
    #allocation2 [shape = 'u8[8192]{0}', space=vmem, size = 0x2000, scoped, tag = 'input window, operand 0, single buffered']
    #allocation3 [shape = 's32[1]{0}', space=sflag, size = 0x4, scoped, tag = 'scoped memory for tpu_custom_call.1']
    #allocation4 [shape = 's32[1]{0}', space=sflag, size = 0x4, scoped, tag = 'scoped memory for tpu_custom_call.1']
    #allocation5 [shape = 'u8[1024]{0}', space=vmem, size = 0x400, scoped, tag = 'input window, operand 2, single buffered']
    #allocation6 [shape = 's32[1]{0}', space=sflag, size = 0x4, scoped, tag = 'scoped memory for tpu_custom_call.1']
    #allocation7 [shape = 'u8[16384]{0}', space=vmem, size = 0x4000, scoped, tag = 'input window, operand 5, single buffered']
    #allocation8 [shape = 'u8[512]{0}', space=vmem, size = 0x400, scoped, tag = 'input window, operand 6, single buffered']
    #allocation9 [shape = 's32[1]{0}', space=sflag, size = 0x4, scoped, tag = 'scoped memory for tpu_custom_call.1']
    #allocation10 [shape = 'u8[8192]{0}', space=vmem, size = 0x2000, scoped, tag = 'input window, operand 10, single buffered']
    #allocation11 [shape = 'u8[8192]{0}', space=vmem, size = 0x2000, scoped, tag = 'input window, operand 11, single buffered']
    #allocation12 [shape = 's32[1]{0}', space=sflag, size = 0x4, scoped, tag = 'scoped memory for tpu_custom_call.1']
    #allocation13 [shape = 'u8[1024]{0}', space=vmem, size = 0x400, scoped, tag = 'output window, operand 0, single buffered']
    #allocation14 [shape = 'u8[10240]{0}', space=vmem, size = 0x2800, scoped, tag = 'output window, operand 1, single buffered']
    #allocation15 [shape = 's32[1]{0}', space=sflag, size = 0x4, scoped, tag = 'scoped memory for tpu_custom_call.1']
    %24 = vsyncpa [#allocation3], 0
    %25 = vsyncpa [#allocation6], 0
    %26 = vsyncpa [#allocation9], 0
    %27 = vsyncpa [#allocation12], 0
    %28 = vsyncpa [#allocation4], 0
    %29 = vsyncpa [#allocation15], 0
    // Predicated region
    $region2: #{tpu_custom_call.1} parent=1 // pred_check
      _
    $region3: #{tpu_custom_call.1} parent=1 // pred_check_branch
      %31 = sbr.rel (0) target = $region5
    $region4: #{tpu_custom_call.1} parent=1 // pred_region
      %s33 = ssub.s32 256, 256
      %34 = vsyncadd [#allocation3], %s33
      %s35 = sshll.u32 [#allocation2], 4
      %s36 = int_to_ptr.vmem [resolvable:$true] %s35
      %41 = dma.hbm_to_vmem [thread:$0]  %s0, 256, %s36, [#allocation3], 128, 128, 8
    $region5: #{tpu_custom_call.1} parent=1 // pred_fallthru
      _
    // Predicated region
    $region6: #{tpu_custom_call.1} parent=1 // pred_check
      _
    $region7: #{tpu_custom_call.1} parent=1 // pred_check_branch
      %43 = sbr.rel (0) target = $region9
    $region8: #{tpu_custom_call.1} parent=1 // pred_region
      _
    $region9: #{tpu_custom_call.1} parent=1 // pred_fallthru
      _
    // Predicated region
    $region10: #{tpu_custom_call.1} parent=1 // pred_check
      _
    $region11: #{tpu_custom_call.1} parent=1 // pred_check_branch
      %45 = sbr.rel (0) target = $region13
    $region12: #{tpu_custom_call.1} parent=1 // pred_region
      %s47 = ssub.s32 32, 32
      %48 = vsyncadd [#allocation6], %s47
      %s50 = sshll.u32 [#allocation5], 4
      %s51 = int_to_ptr.vmem [resolvable:$true] %s50
      %53 = dma.hbm_to_vmem [thread:$0]  %s2, 32, %s51, [#allocation6]
    $region13: #{tpu_custom_call.1} parent=1 // pred_fallthru
      _
    // Predicated region
    $region14: #{tpu_custom_call.1} parent=1 // pred_check
      _
    $region15: #{tpu_custom_call.1} parent=1 // pred_check_branch
      %55 = sbr.rel (0) target = $region17
    $region16: #{tpu_custom_call.1} parent=1 // pred_region
      _
    $region17: #{tpu_custom_call.1} parent=1 // pred_fallthru
      _
    // Predicated region
    $region18: #{tpu_custom_call.1} parent=1 // pred_check
      _
    $region19: #{tpu_custom_call.1} parent=1 // pred_check_branch
      %57 = sbr.rel (0) target = $region21
    $region20: #{tpu_custom_call.1} parent=1 // pred_region
      _
    $region21: #{tpu_custom_call.1} parent=1 // pred_fallthru
      _
    // Predicated region
    $region22: #{tpu_custom_call.1} parent=1 // pred_check
      _
    $region23: #{tpu_custom_call.1} parent=1 // pred_check_branch
      %59 = sbr.rel (0) target = $region25
    $region24: #{tpu_custom_call.1} parent=1 // pred_region
      %s61 = ssub.s32 512, 512
      %62 = vsyncadd [#allocation6], %s61
      %s63 = sshll.u32 [#allocation7], 4
      %s64 = int_to_ptr.vmem [resolvable:$true] %s63
      %69 = dma.hbm_to_vmem [thread:$0]  %s5, 512, %s64, [#allocation6], 128, 128, 8
    $region25: #{tpu_custom_call.1} parent=1 // pred_fallthru
      _
    // Predicated region
    $region26: #{tpu_custom_call.1} parent=1 // pred_check
      _
    $region27: #{tpu_custom_call.1} parent=1 // pred_check_branch
      %71 = sbr.rel (0) target = $region29
    $region28: #{tpu_custom_call.1} parent=1 // pred_region
      %s73 = ssub.s32 16, 16
      %74 = vsyncadd [#allocation9], %s73
      %s76 = sshll.u32 [#allocation8], 4
      %s77 = int_to_ptr.vmem [resolvable:$true] %s76
      %79 = dma.hbm_to_vmem [thread:$0]  %s6, 16, %s77, [#allocation9]
    $region29: #{tpu_custom_call.1} parent=1 // pred_fallthru
      _
    // Predicated region
    $region30: #{tpu_custom_call.1} parent=1 // pred_check
      _
    $region31: #{tpu_custom_call.1} parent=1 // pred_check_branch
      %81 = sbr.rel (0) target = $region33
    $region32: #{tpu_custom_call.1} parent=1 // pred_region
      _
    $region33: #{tpu_custom_call.1} parent=1 // pred_fallthru
      _
    // Predicated region
    $region34: #{tpu_custom_call.1} parent=1 // pred_check
      _
    $region35: #{tpu_custom_call.1} parent=1 // pred_check_branch
      %83 = sbr.rel (0) target = $region37
    $region36: #{tpu_custom_call.1} parent=1 // pred_region
      _
    $region37: #{tpu_custom_call.1} parent=1 // pred_fallthru
      _
    // Predicated region
    $region38: #{tpu_custom_call.1} parent=1 // pred_check
      _
    $region39: #{tpu_custom_call.1} parent=1 // pred_check_branch
      %85 = sbr.rel (0) target = $region41
    $region40: #{tpu_custom_call.1} parent=1 // pred_region
      _
    $region41: #{tpu_custom_call.1} parent=1 // pred_fallthru
      _
    // Predicated region
    $region42: #{tpu_custom_call.1} parent=1 // pred_check
      _
    $region43: #{tpu_custom_call.1} parent=1 // pred_check_branch
      %87 = sbr.rel (0) target = $region45
    $region44: #{tpu_custom_call.1} parent=1 // pred_region
      %s89 = ssub.s32 256, 256
      %90 = vsyncadd [#allocation9], %s89
      %s91 = sshll.u32 [#allocation10], 4
      %s92 = int_to_ptr.vmem [resolvable:$true] %s91
      %97 = dma.hbm_to_vmem [thread:$0]  %s10, 256, %s92, [#allocation9], 128, 128, 8
    $region45: #{tpu_custom_call.1} parent=1 // pred_fallthru
      _
    // Predicated region
    $region46: #{tpu_custom_call.1} parent=1 // pred_check
      _
    $region47: #{tpu_custom_call.1} parent=1 // pred_check_branch
      %99 = sbr.rel (0) target = $region49
    $region48: #{tpu_custom_call.1} parent=1 // pred_region
      %s101 = ssub.s32 256, 256
      %102 = vsyncadd [#allocation12], %s101
      %s103 = sshll.u32 [#allocation11], 4
      %s104 = int_to_ptr.vmem [resolvable:$true] %s103
      %109 = dma.hbm_to_vmem [thread:$0]  %s11, 256, %s104, [#allocation12], 128, 128, 8
    $region49: #{tpu_custom_call.1} parent=1 // pred_fallthru
      _
    // Predicated region
    $region50: #{tpu_custom_call.1} parent=1 // pred_check
      _
    $region51: #{tpu_custom_call.1} parent=1 // pred_check_branch
      %111 = sbr.rel (0) target = $region53
    $region52: #{tpu_custom_call.1} parent=1 // pred_region
      _
    $region53: #{tpu_custom_call.1} parent=1 // pred_fallthru
      _
    // Predicated region
    $region54: #{tpu_custom_call.1} parent=1 // pred_check
      _
    $region55: #{tpu_custom_call.1} parent=1 // pred_check_branch
      %113 = sbr.rel (0) target = $region57
    $region56: #{tpu_custom_call.1} parent=1 // pred_region
      _
    $region57: #{tpu_custom_call.1} parent=1 // pred_fallthru
      _
    // Predicated region
    $region58: #{tpu_custom_call.1} parent=1 // pred_check
      _
    $region59: #{tpu_custom_call.1} parent=1 // pred_check_branch
      %115 = sbr.rel (0) target = $region61
    $region60: #{tpu_custom_call.1} parent=1 // pred_region
      _
    $region61: #{tpu_custom_call.1} parent=1 // pred_fallthru
      _
    // Predicated region
    $region62: #{tpu_custom_call.1} parent=1 // pred_check
      _
    $region63: #{tpu_custom_call.1} parent=1 // pred_check_branch
      %117 = sbr.rel (0) target = $region65
    $region64: #{tpu_custom_call.1} parent=1 // pred_region
      _
    $region65: #{tpu_custom_call.1} parent=1 // pred_fallthru
      _
    // Predicated region
    $region66: #{tpu_custom_call.1} parent=1 // pred_check
      _
    $region67: #{tpu_custom_call.1} parent=1 // pred_check_branch
      %119 = sbr.rel (0) target = $region69
    $region68: #{tpu_custom_call.1} parent=1 // pred_region
      _
    $region69: #{tpu_custom_call.1} parent=1 // pred_fallthru
      _
    // Predicated region
    $region70: #{tpu_custom_call.1} parent=1 // pred_check
      _
    $region71: #{tpu_custom_call.1} parent=1 // pred_check_branch
      %121 = sbr.rel (0) target = $region73
    $region72: #{tpu_custom_call.1} parent=1 // pred_region
      %122 = dma.done [#allocation3], 256
    $region73: #{tpu_custom_call.1} parent=1 // pred_fallthru
      _
    // Predicated region
    $region74: #{tpu_custom_call.1} parent=1 // pred_check
      _
    $region75: #{tpu_custom_call.1} parent=1 // pred_check_branch
      %124 = sbr.rel (0) target = $region77
    $region76: #{tpu_custom_call.1} parent=1 // pred_region
      %125 = dma.done [#allocation6], 32
    $region77: #{tpu_custom_call.1} parent=1 // pred_fallthru
      _
    // Predicated region
    $region78: #{tpu_custom_call.1} parent=1 // pred_check
      _
    $region79: #{tpu_custom_call.1} parent=1 // pred_check_branch
      %127 = sbr.rel (0) target = $region81
    $region80: #{tpu_custom_call.1} parent=1 // pred_region
      %128 = dma.done [#allocation6], 512
    $region81: #{tpu_custom_call.1} parent=1 // pred_fallthru
      _
    // Predicated region
    $region82: #{tpu_custom_call.1} parent=1 // pred_check
      _
    $region83: #{tpu_custom_call.1} parent=1 // pred_check_branch
      %130 = sbr.rel (0) target = $region85
    $region84: #{tpu_custom_call.1} parent=1 // pred_region
      %131 = dma.done [#allocation9], 16
    $region85: #{tpu_custom_call.1} parent=1 // pred_fallthru
      _
    // Predicated region
    $region86: #{tpu_custom_call.1} parent=1 // pred_check
      _
    $region87: #{tpu_custom_call.1} parent=1 // pred_check_branch
      %133 = sbr.rel (0) target = $region89
    $region88: #{tpu_custom_call.1} parent=1 // pred_region
      %134 = dma.done [#allocation9], 256
    $region89: #{tpu_custom_call.1} parent=1 // pred_fallthru
      _
    // Predicated region
    $region90: #{tpu_custom_call.1} parent=1 // pred_check
      _
    $region91: #{tpu_custom_call.1} parent=1 // pred_check_branch
      %136 = sbr.rel (0) target = $region93
    $region92: #{tpu_custom_call.1} parent=1 // pred_region
      %137 = dma.done [#allocation12], 256
    $region93: #{tpu_custom_call.1} parent=1 // pred_fallthru
      _
    %v138 = vld [vmem:[#allocation2] sm:$0xff]
    %v139 = vld [vmem:[#allocation2 + $0x8] sm:$0xff]
    %v140 = vld [vmem:[%s1] sm:$0xff]
    %v141 = vld [vmem:[%s1 + $0x8] sm:$0xff]
    %v142 = vld [vmem:[#allocation5] sm:$0x3]
    %v143 = vld [vmem:[%s4] sm:$0xff]
    %v144 = vld [vmem:[%s4 + $0x8] sm:$0xff]
    %v145 = vld [vmem:[%s4 + $0x10] sm:$0xff]
    %v146 = vld [vmem:[%s4 + $0x18] sm:$0xff]
    %v147 = vld [vmem:[#allocation7] sm:$0xff]
    %v148 = vld [vmem:[#allocation7 + $0x8] sm:$0xff]
    %v149 = vld [vmem:[#allocation7 + $0x10] sm:$0xff]
    %v150 = vld [vmem:[#allocation7 + $0x18] sm:$0xff]
    %v151 = vld [vmem:[%s7] sm:$0xff]
    %v152 = vld [vmem:[%s7 + $0x8] sm:$0xff]
    %v153 = vld [vmem:[%s7 + $0x10] sm:$0xff]
    %v154 = vld [vmem:[%s7 + $0x18] sm:$0xff]
    %v155 = vld [vmem:[%s8] sm:$0xff]
    %v156 = vld [vmem:[%s8 + $0x8] sm:$0xff]
    %v157 = vld [vmem:[#allocation10] sm:$0xff]
    %v158 = vld [vmem:[#allocation10 + $0x8] sm:$0xff]
    %v159 = vld [vmem:[#allocation11] sm:$0xff]
    %v160 = vld [vmem:[#allocation11 + $0x8] sm:$0x3]
    %v161 = vld [vmem:[%s13] sm:$0x1]
    %v162 = vld [vmem:[%s14] sm:$0x1]
    %v163 = vld [vmem:[%s15] sm:$0x1]
    %v164 = vld [vmem:[%s16] sm:$0x1]
    %v165 = vld [vmem:[%s9] sm:$0x1]
    %v166 = vld [vmem:[%s12] sm:$0x1]
    %v167 = vld [vmem:[%s3] sm:$0xff]
    %v168 = vld [vmem:[%s3 + $0x8] sm:$0xff]
    %v169 = vld [vmem:[%s3 + $0x10] sm:$0xff]
    %v170 = vld [vmem:[%s3 + $0x18] sm:$0xff]
    %v171 = vld [vmem:[#allocation8] sm:$0x1]
    %v173 = vlaneseq
    %v174 = vshrl.u32 %v173, 7
    %v175 = vsub.s32 0, %v174
    %v176 = vrot.slane %v171, %v175
    %vm178 = vcmask 261120
    %v180 = vsel %vm178, %v138, 0
    %v183 = vsel %vm178, %v139, 0
    %185 = vmatprep.subr.mxu0 0.0
    %186 = vmatpush1.msra.mxu0 0.0
    %187 = vmatprep.subr.mxu0 0.0
    %188 = vmatpush1.msra.mxu0 0.0
    %189 = vmatprep.subr.mxu0 0.0
    %190 = vmatpush1.msra.mxu0 0.0
    %191 = vmatprep.subr.mxu0 0.0
    %192 = vmatpush1.msra.mxu0 0.0
    %193 = vmatprep.subr.mxu0 0.0
    %194 = vmatpush1.msra.mxu0 0.0
    %195 = vmatprep.subr.mxu0 0.0
    %196 = vmatpush1.msra.mxu0 0.0
    %197 = vmatprep.subr.mxu0 0.0
    %198 = vmatpush1.msra.mxu0 0.0
    %199 = vmatprep.subr.mxu0 0.0
    %200 = vmatpush1.msra.mxu0 0.0
    %201 = vmatprep.subr.mxu0 0.0
    %202 = vmatpush1.msra.mxu0 0.0
    %203 = vmatprep.subr.mxu0 0.0
    %204 = vmatpush1.msra.mxu0 0.0
    %205 = vmatprep.subr.mxu0 0.0
    %206 = vmatpush1.msra.mxu0 0.0
    %207 = vmatprep.subr.mxu0 0.0
    %208 = vmatpush1.msra.mxu0 0.0
    %209 = vmatprep.subr.mxu0 0.0
    %210 = vmatpush1.msra.mxu0 %v170
    %211 = vmatprep.subr.mxu0 0.0
    %212 = vmatpush1.msra.mxu0 %v169
    %213 = vmatprep.subr.mxu0 0.0
    %214 = vmatpush1.msra.mxu0 %v168
    %215 = vmatprep.subr.mxu0 0.0
    %216 = vmatpush1.msra.mxu0 %v167
    %217 = vmatprep.subr.mxu0 0.0
    %218 = vmatpush2.msra.mxu0 0.0
    %219 = vmatprep.subr.mxu0 0.0
    %220 = vmatpush2.msra.mxu0 0.0
    %221 = vmatprep.subr.mxu0 0.0
    %222 = vmatpush2.msra.mxu0 0.0
    %223 = vmatprep.subr.mxu0 0.0
    %224 = vmatpush2.msra.mxu0 0.0
    %225 = vmatprep.subr.mxu0 0.0
    %226 = vmatpush2.msra.mxu0 0.0
    %227 = vmatprep.subr.mxu0 0.0
    %228 = vmatpush2.msra.mxu0 0.0
    %229 = vmatprep.subr.mxu0 0.0
    %230 = vmatpush2.msra.mxu0 0.0
    %231 = vmatprep.subr.mxu0 0.0
    %232 = vmatpush2.msra.mxu0 0.0
    %233 = vmatprep.subr.mxu0 0.0
    %234 = vmatpush2.msra.mxu0 0.0
    %235 = vmatprep.subr.mxu0 0.0
    %236 = vmatpush2.msra.mxu0 0.0
    %237 = vmatprep.subr.mxu0 0.0
    %238 = vmatpush2.msra.mxu0 0.0
    %239 = vmatprep.subr.mxu0 0.0
    %240 = vmatpush2.msra.mxu0 0.0
    %241 = vmatprep.subr.mxu0 0.0
    %242 = vmatpush2.msra.mxu0 0.0
    %243 = vmatprep.subr.mxu0 0.0
    %244 = vmatpush2.msra.mxu0 0.0
    %245 = vmatprep.subr.mxu0 0.0
    %246 = vmatpush2.msra.mxu0 0.0
    %247 = vmatprep.subr.mxu0 0.0
    %248 = vmatpush2.msra.mxu0 0.0
    %249 = vmatprep.mubr.f32.mxu0 0.0
    %250 = vmatmul.mubr.f32.gmra.mxu0 %v180
    %v251 = vpop.f32.mrf.mxu0
    %v252 = vadd.f32 %v176, %v251
    %v253 = vpop.f32.mrf.mxu0
    %254 = vmatprep.mubr.f32.mxu0 0.0
    %255 = vmatmul.mubr.f32.gmra.mxu0 %v183
    %v256 = vpop.f32.mrf.mxu0
    %v257 = vadd.f32 %v176, %v256
    %v258 = vpop.f32.mrf.mxu0
    %259 = vdwg.mxu0
    %vm260 = vcmask 15360
    %v262 = vsel %vm260, %v140, 0
    %v265 = vsel %vm260, %v141, 0
    %vm267 = vcmask 1041408
    %v269 = vsel %vm267, 0.0, 0
    %271 = vmatprep.subr.mxu0 0.0
    %272 = vmatpush1.msra.mxu0 0.0
    %273 = vmatprep.subr.mxu0 0.0
    %274 = vmatpush1.msra.mxu0 0.0
    %275 = vmatprep.subr.mxu0 0.0
    %276 = vmatpush1.msra.mxu0 0.0
    %277 = vmatprep.subr.mxu0 0.0
    %278 = vmatpush1.msra.mxu0 0.0
    %279 = vmatprep.subr.mxu0 0.0
    %280 = vmatpush1.msra.mxu0 0.0
    %281 = vmatprep.subr.mxu0 0.0
    %282 = vmatpush1.msra.mxu0 0.0
    %283 = vmatprep.subr.mxu0 0.0
    %284 = vmatpush1.msra.mxu0 0.0
    %285 = vmatprep.subr.mxu0 0.0
    %286 = vmatpush1.msra.mxu0 0.0
    %287 = vmatprep.subr.mxu0 0.0
    %288 = vmatpush1.msra.mxu0 0.0
    %289 = vmatprep.subr.mxu0 0.0
    %290 = vmatpush1.msra.mxu0 0.0
    %291 = vmatprep.subr.mxu0 0.0
    %292 = vmatpush1.msra.mxu0 0.0
    %293 = vmatprep.subr.mxu0 0.0
    %294 = vmatpush1.msra.mxu0 0.0
    %295 = vmatprep.subr.mxu0 0.0
    %296 = vmatpush1.msra.mxu0 0.0
    %297 = vmatprep.subr.mxu0 0.0
    %298 = vmatpush1.msra.mxu0 0.0
    %299 = vmatprep.subr.mxu0 0.0
    %300 = vmatpush1.msra.mxu0 0.0
    %301 = vmatprep.subr.mxu0 0.0
    %302 = vmatpush1.msra.mxu0 %v269
    %303 = vmatprep.subr.mxu0 0.0
    %304 = vmatpush2.msra.mxu0 0.0
    %305 = vmatprep.subr.mxu0 0.0
    %306 = vmatpush2.msra.mxu0 0.0
    %307 = vmatprep.subr.mxu0 0.0
    %308 = vmatpush2.msra.mxu0 0.0
    %309 = vmatprep.subr.mxu0 0.0
    %310 = vmatpush2.msra.mxu0 0.0
    %311 = vmatprep.subr.mxu0 0.0
    %312 = vmatpush2.msra.mxu0 0.0
    %313 = vmatprep.subr.mxu0 0.0
    %314 = vmatpush2.msra.mxu0 0.0
    %315 = vmatprep.subr.mxu0 0.0
    %316 = vmatpush2.msra.mxu0 0.0
    %317 = vmatprep.subr.mxu0 0.0
    %318 = vmatpush2.msra.mxu0 0.0
    %319 = vmatprep.subr.mxu0 0.0
    %320 = vmatpush2.msra.mxu0 0.0
    %321 = vmatprep.subr.mxu0 0.0
    %322 = vmatpush2.msra.mxu0 0.0
    %323 = vmatprep.subr.mxu0 0.0
    %324 = vmatpush2.msra.mxu0 0.0
    %325 = vmatprep.subr.mxu0 0.0
    %326 = vmatpush2.msra.mxu0 0.0
    %327 = vmatprep.subr.mxu0 0.0
    %328 = vmatpush2.msra.mxu0 0.0
    %329 = vmatprep.subr.mxu0 0.0
    %330 = vmatpush2.msra.mxu0 0.0
    %331 = vmatprep.subr.mxu0 0.0
    %332 = vmatpush2.msra.mxu0 0.0
    %333 = vmatprep.subr.mxu0 0.0
    %334 = vmatpush2.msra.mxu0 0.0
    %335 = vmatprep.mubr.f32.mxu0 0.0
    %336 = vmatmul.mubr.f32.gmra.mxu0 %v262
    %v337 = vpop.f32.mrf.mxu0
    %v338 = vadd.f32 0.0, %v337
    %v339 = vpop.f32.mrf.mxu0
    %340 = vmatprep.mubr.f32.mxu0 0.0
    %341 = vmatmul.mubr.f32.gmra.mxu0 %v265
    %v342 = vpop.f32.mrf.mxu0
    %v343 = vadd.f32 0.0, %v342
    %v344 = vpop.f32.mrf.mxu0
    %345 = vdwg.mxu0
    %v347 = vsel %vm178, %v338, 0
    %v350 = vsel %vm178, %v343, 0
    %352 = vmatprep.subr.mxu0 0.0
    %353 = vmatpush1.msra.mxu0 0.0
    %354 = vmatprep.subr.mxu0 0.0
    %355 = vmatpush1.msra.mxu0 0.0
    %356 = vmatprep.subr.mxu0 0.0
    %357 = vmatpush1.msra.mxu0 0.0
    %358 = vmatprep.subr.mxu0 0.0
    %359 = vmatpush1.msra.mxu0 0.0
    %360 = vmatprep.subr.mxu0 0.0
    %361 = vmatpush1.msra.mxu0 0.0
    %362 = vmatprep.subr.mxu0 0.0
    %363 = vmatpush1.msra.mxu0 0.0
    %364 = vmatprep.subr.mxu0 0.0
    %365 = vmatpush1.msra.mxu0 0.0
    %366 = vmatprep.subr.mxu0 0.0
    %367 = vmatpush1.msra.mxu0 0.0
    %368 = vmatprep.subr.mxu0 0.0
    %369 = vmatpush1.msra.mxu0 0.0
    %370 = vmatprep.subr.mxu0 0.0
    %371 = vmatpush1.msra.mxu0 0.0
    %372 = vmatprep.subr.mxu0 0.0
    %373 = vmatpush1.msra.mxu0 0.0
    %374 = vmatprep.subr.mxu0 0.0
    %375 = vmatpush1.msra.mxu0 0.0
    %376 = vmatprep.subr.mxu0 0.0
    %377 = vmatpush1.msra.mxu0 %v146
    %378 = vmatprep.subr.mxu0 0.0
    %379 = vmatpush1.msra.mxu0 %v145
    %380 = vmatprep.subr.mxu0 0.0
    %381 = vmatpush1.msra.mxu0 %v144
    %382 = vmatprep.subr.mxu0 0.0
    %383 = vmatpush1.msra.mxu0 %v143
    %384 = vmatprep.subr.mxu0 0.0
    %385 = vmatpush2.msra.mxu0 0.0
    %386 = vmatprep.subr.mxu0 0.0
    %387 = vmatpush2.msra.mxu0 0.0
    %388 = vmatprep.subr.mxu0 0.0
    %389 = vmatpush2.msra.mxu0 0.0
    %390 = vmatprep.subr.mxu0 0.0
    %391 = vmatpush2.msra.mxu0 0.0
    %392 = vmatprep.subr.mxu0 0.0
    %393 = vmatpush2.msra.mxu0 0.0
    %394 = vmatprep.subr.mxu0 0.0
    %395 = vmatpush2.msra.mxu0 0.0
    %396 = vmatprep.subr.mxu0 0.0
    %397 = vmatpush2.msra.mxu0 0.0
    %398 = vmatprep.subr.mxu0 0.0
    %399 = vmatpush2.msra.mxu0 0.0
    %400 = vmatprep.subr.mxu0 0.0
    %401 = vmatpush2.msra.mxu0 0.0
    %402 = vmatprep.subr.mxu0 0.0
    %403 = vmatpush2.msra.mxu0 0.0
    %404 = vmatprep.subr.mxu0 0.0
    %405 = vmatpush2.msra.mxu0 0.0
    %406 = vmatprep.subr.mxu0 0.0
    %407 = vmatpush2.msra.mxu0 0.0
    %408 = vmatprep.subr.mxu0 0.0
    %409 = vmatpush2.msra.mxu0 0.0
    %410 = vmatprep.subr.mxu0 0.0
    %411 = vmatpush2.msra.mxu0 0.0
    %412 = vmatprep.subr.mxu0 0.0
    %413 = vmatpush2.msra.mxu0 0.0
    %414 = vmatprep.subr.mxu0 0.0
    %415 = vmatpush2.msra.mxu0 0.0
    %416 = vmatprep.mubr.f32.mxu0 0.0
    %417 = vmatmul.mubr.f32.gmra.mxu0 %v347
    %v418 = vpop.f32.mrf.mxu0
    %v419 = vadd.f32 0.0, %v418
    %v420 = vpop.f32.mrf.mxu0
    %421 = vmatprep.mubr.f32.mxu0 0.0
    %422 = vmatmul.mubr.f32.gmra.mxu0 %v350
    %v423 = vpop.f32.mrf.mxu0
    %v424 = vadd.f32 0.0, %v423
    %v425 = vpop.f32.mrf.mxu0
    %426 = vdwg.mxu0
    %v427 = vadd.f32 %v252, %v419
    %v428 = vadd.f32 %v257, %v424
    %v429 = vtanh.pop %v427
    %v430 = vtanh.pop %v428
    %v431 = vsel %vm178, %v429, 0.0
    %432 = vadd.xlane.f32.xlu0 %v431
    %v433 = vpop.xlane.xlu0 %432
    %v434 = vsel %vm178, %v430, 0.0
    %435 = vadd.xlane.f32.xlu0 %v434
    %v436 = vpop.xlane.xlu0 %435
    %v437 = vrcp.pop 32.0
    %v438 = vmul.f32 %v433, %v437
    %v439 = vmul.f32 %v436, %v437
    %v440 = vsub.f32 %v429, %v438
    %v441 = vsub.f32 %v430, %v439
    %v442 = vmul.f32 %v440, %v440
    %v443 = vmul.f32 %v441, %v441
    %v444 = vsel %vm178, %v442, 0.0
    %445 = vadd.xlane.f32.xlu0 %v444
    %v446 = vpop.xlane.xlu0 %445
    %v447 = vsel %vm178, %v443, 0.0
    %448 = vadd.xlane.f32.xlu0 %v447
    %v449 = vpop.xlane.xlu0 %448
    %v450 = vmul.f32 %v446, %v437
    %v451 = vmul.f32 %v449, %v437
    %v452 = vadd.f32 %v450, 1e-05
    %v453 = vadd.f32 %v451, 1e-05
    %v454 = vrsqrt.pop %v452
    %v455 = vrsqrt.pop %v453
    %v456 = vmul.f32 %v440, %v454
    %v457 = vmul.f32 %v441, %v455
    %v459 = vlaneseq
    %v460 = vshrl.u32 %v459, 7
    %v461 = vsub.s32 0, %v460
    %v462 = vrot.slane %v161, %v461
    %v464 = vmul.f32 %v456, %v462
    %v465 = vmul.f32 %v457, %v462
    %v467 = vlaneseq
    %v468 = vshrl.u32 %v467, 7
    %v469 = vsub.s32 0, %v468
    %v470 = vrot.slane %v162, %v469
    %v472 = vadd.f32 %v464, %v470
    %v473 = vadd.f32 %v465, %v470
    %v475 = vlaneseq
    %v476 = vshrl.u32 %v475, 7
    %v477 = vsub.s32 0, %v476
    %v478 = vrot.slane %v165, %v477
    %v481 = vsel %vm178, %v472, 0
    %v484 = vsel %vm178, %v473, 0
    %486 = vmatprep.subr.mxu0 0.0
    %487 = vmatpush1.msra.mxu0 0.0
    %488 = vmatprep.subr.mxu0 0.0
    %489 = vmatpush1.msra.mxu0 0.0
    %490 = vmatprep.subr.mxu0 0.0
    %491 = vmatpush1.msra.mxu0 0.0
    %492 = vmatprep.subr.mxu0 0.0
    %493 = vmatpush1.msra.mxu0 0.0
    %494 = vmatprep.subr.mxu0 0.0
    %495 = vmatpush1.msra.mxu0 0.0
    %496 = vmatprep.subr.mxu0 0.0
    %497 = vmatpush1.msra.mxu0 0.0
    %498 = vmatprep.subr.mxu0 0.0
    %499 = vmatpush1.msra.mxu0 0.0
    %500 = vmatprep.subr.mxu0 0.0
    %501 = vmatpush1.msra.mxu0 0.0
    %502 = vmatprep.subr.mxu0 0.0
    %503 = vmatpush1.msra.mxu0 0.0
    %504 = vmatprep.subr.mxu0 0.0
    %505 = vmatpush1.msra.mxu0 0.0
    %506 = vmatprep.subr.mxu0 0.0
    %507 = vmatpush1.msra.mxu0 0.0
    %508 = vmatprep.subr.mxu0 0.0
    %509 = vmatpush1.msra.mxu0 0.0
    %510 = vmatprep.subr.mxu0 0.0
    %511 = vmatpush1.msra.mxu0 %v154
    %512 = vmatprep.subr.mxu0 0.0
    %513 = vmatpush1.msra.mxu0 %v153
    %514 = vmatprep.subr.mxu0 0.0
    %515 = vmatpush1.msra.mxu0 %v152
    %516 = vmatprep.subr.mxu0 0.0
    %517 = vmatpush1.msra.mxu0 %v151
    %518 = vmatprep.subr.mxu0 0.0
    %519 = vmatpush2.msra.mxu0 0.0
    %520 = vmatprep.subr.mxu0 0.0
    %521 = vmatpush2.msra.mxu0 0.0
    %522 = vmatprep.subr.mxu0 0.0
    %523 = vmatpush2.msra.mxu0 0.0
    %524 = vmatprep.subr.mxu0 0.0
    %525 = vmatpush2.msra.mxu0 0.0
    %526 = vmatprep.subr.mxu0 0.0
    %527 = vmatpush2.msra.mxu0 0.0
    %528 = vmatprep.subr.mxu0 0.0
    %529 = vmatpush2.msra.mxu0 0.0
    %530 = vmatprep.subr.mxu0 0.0
    %531 = vmatpush2.msra.mxu0 0.0
    %532 = vmatprep.subr.mxu0 0.0
    %533 = vmatpush2.msra.mxu0 0.0
    %534 = vmatprep.subr.mxu0 0.0
    %535 = vmatpush2.msra.mxu0 0.0
    %536 = vmatprep.subr.mxu0 0.0
    %537 = vmatpush2.msra.mxu0 0.0
    %538 = vmatprep.subr.mxu0 0.0
    %539 = vmatpush2.msra.mxu0 0.0
    %540 = vmatprep.subr.mxu0 0.0
    %541 = vmatpush2.msra.mxu0 0.0
    %542 = vmatprep.subr.mxu0 0.0
    %543 = vmatpush2.msra.mxu0 0.0
    %544 = vmatprep.subr.mxu0 0.0
    %545 = vmatpush2.msra.mxu0 0.0
    %546 = vmatprep.subr.mxu0 0.0
    %547 = vmatpush2.msra.mxu0 0.0
    %548 = vmatprep.subr.mxu0 0.0
    %549 = vmatpush2.msra.mxu0 0.0
    %550 = vmatprep.mubr.f32.mxu0 0.0
    %551 = vmatmul.mubr.f32.gmra.mxu0 %v481
    %v552 = vpop.f32.mrf.mxu0
    %v553 = vadd.f32 %v478, %v552
    %v554 = vpop.f32.mrf.mxu0
    %555 = vmatprep.mubr.f32.mxu0 0.0
    %556 = vmatmul.mubr.f32.gmra.mxu0 %v484
    %v557 = vpop.f32.mrf.mxu0
    %v558 = vadd.f32 %v478, %v557
    %v559 = vpop.f32.mrf.mxu0
    %560 = vdwg.mxu0
    %v561 = vtanh.pop %v553
    %v562 = vtanh.pop %v558
    %vm563 = vcmask 130048
    %v564 = vsel %vm563, %v561, 0.0
    %565 = vadd.xlane.f32.xlu0 %v564
    %v566 = vpop.xlane.xlu0 %565
    %v567 = vsel %vm563, %v562, 0.0
    %568 = vadd.xlane.f32.xlu0 %v567
    %v569 = vpop.xlane.xlu0 %568
    %v570 = vrcp.pop 16.0
    %v571 = vmul.f32 %v566, %v570
    %v572 = vmul.f32 %v569, %v570
    %v573 = vsub.f32 %v561, %v571
    %v574 = vsub.f32 %v562, %v572
    %v575 = vmul.f32 %v573, %v573
    %v576 = vmul.f32 %v574, %v574
    %v577 = vsel %vm563, %v575, 0.0
    %578 = vadd.xlane.f32.xlu0 %v577
    %v579 = vpop.xlane.xlu0 %578
    %v580 = vsel %vm563, %v576, 0.0
    %581 = vadd.xlane.f32.xlu0 %v580
    %v582 = vpop.xlane.xlu0 %581
    %v583 = vmul.f32 %v579, %v570
    %v584 = vmul.f32 %v582, %v570
    %v585 = vadd.f32 %v583, 1e-05
    %v586 = vadd.f32 %v584, 1e-05
    %v587 = vrsqrt.pop %v585
    %v588 = vrsqrt.pop %v586
    %v589 = vmul.f32 %v573, %v587
    %v590 = vmul.f32 %v574, %v588
    %v592 = vlaneseq
    %v593 = vshrl.u32 %v592, 7
    %v594 = vsub.s32 0, %v593
    %v595 = vrot.slane %v163, %v594
    %v597 = vmul.f32 %v589, %v595
    %v598 = vmul.f32 %v590, %v595
    %v600 = vlaneseq
    %v601 = vshrl.u32 %v600, 7
    %v602 = vsub.s32 0, %v601
    %v603 = vrot.slane %v164, %v602
    %v605 = vadd.f32 %v597, %v603
    %v606 = vadd.f32 %v598, %v603
    %v608 = vlaneseq
    %v609 = vshrl.u32 %v608, 7
    %v610 = vsub.s32 0, %v609
    %v611 = vrot.slane %v166, %v610
    %v614 = vsel %vm563, %v605, 0
    %v617 = vsel %vm563, %v606, 0
    %619 = vmatprep.subr.mxu0 0.0
    %620 = vmatpush1.msra.mxu0 0.0
    %621 = vmatprep.subr.mxu0 0.0
    %622 = vmatpush1.msra.mxu0 0.0
    %623 = vmatprep.subr.mxu0 0.0
    %624 = vmatpush1.msra.mxu0 0.0
    %625 = vmatprep.subr.mxu0 0.0
    %626 = vmatpush1.msra.mxu0 0.0
    %627 = vmatprep.subr.mxu0 0.0
    %628 = vmatpush1.msra.mxu0 0.0
    %629 = vmatprep.subr.mxu0 0.0
    %630 = vmatpush1.msra.mxu0 0.0
    %631 = vmatprep.subr.mxu0 0.0
    %632 = vmatpush1.msra.mxu0 0.0
    %633 = vmatprep.subr.mxu0 0.0
    %634 = vmatpush1.msra.mxu0 0.0
    %635 = vmatprep.subr.mxu0 0.0
    %636 = vmatpush1.msra.mxu0 0.0
    %637 = vmatprep.subr.mxu0 0.0
    %638 = vmatpush1.msra.mxu0 0.0
    %639 = vmatprep.subr.mxu0 0.0
    %640 = vmatpush1.msra.mxu0 0.0
    %641 = vmatprep.subr.mxu0 0.0
    %642 = vmatpush1.msra.mxu0 0.0
    %643 = vmatprep.subr.mxu0 0.0
    %644 = vmatpush1.msra.mxu0 0.0
    %645 = vmatprep.subr.mxu0 0.0
    %646 = vmatpush1.msra.mxu0 0.0
    %647 = vmatprep.subr.mxu0 0.0
    %648 = vmatpush1.msra.mxu0 %v158
    %649 = vmatprep.subr.mxu0 0.0
    %650 = vmatpush1.msra.mxu0 %v157
    %651 = vmatprep.subr.mxu0 0.0
    %652 = vmatpush2.msra.mxu0 0.0
    %653 = vmatprep.subr.mxu0 0.0
    %654 = vmatpush2.msra.mxu0 0.0
    %655 = vmatprep.subr.mxu0 0.0
    %656 = vmatpush2.msra.mxu0 0.0
    %657 = vmatprep.subr.mxu0 0.0
    %658 = vmatpush2.msra.mxu0 0.0
    %659 = vmatprep.subr.mxu0 0.0
    %660 = vmatpush2.msra.mxu0 0.0
    %661 = vmatprep.subr.mxu0 0.0
    %662 = vmatpush2.msra.mxu0 0.0
    %663 = vmatprep.subr.mxu0 0.0
    %664 = vmatpush2.msra.mxu0 0.0
    %665 = vmatprep.subr.mxu0 0.0
    %666 = vmatpush2.msra.mxu0 0.0
    %667 = vmatprep.subr.mxu0 0.0
    %668 = vmatpush2.msra.mxu0 0.0
    %669 = vmatprep.subr.mxu0 0.0
    %670 = vmatpush2.msra.mxu0 0.0
    %671 = vmatprep.subr.mxu0 0.0
    %672 = vmatpush2.msra.mxu0 0.0
    %673 = vmatprep.subr.mxu0 0.0
    %674 = vmatpush2.msra.mxu0 0.0
    %675 = vmatprep.subr.mxu0 0.0
    %676 = vmatpush2.msra.mxu0 0.0
    %677 = vmatprep.subr.mxu0 0.0
    %678 = vmatpush2.msra.mxu0 0.0
    %679 = vmatprep.subr.mxu0 0.0
    %680 = vmatpush2.msra.mxu0 0.0
    %681 = vmatprep.subr.mxu0 0.0
    %682 = vmatpush2.msra.mxu0 0.0
    %683 = vmatprep.mubr.f32.mxu0 0.0
    %684 = vmatmul.mubr.f32.gmra.mxu0 %v614
    %v685 = vpop.f32.mrf.mxu0
    %v686 = vadd.f32 %v611, %v685
    %v687 = vpop.f32.mrf.mxu0
    %688 = vmatprep.mubr.f32.mxu0 0.0
    %689 = vmatmul.mubr.f32.gmra.mxu0 %v617
    %v690 = vpop.f32.mrf.mxu0
    %v691 = vadd.f32 %v611, %v690
    %v692 = vpop.f32.mrf.mxu0
    %693 = vdwg.mxu0
    %v694 = vmul.f32 %v686, 0.2
    %v695 = vmul.f32 %v691, 0.2
    %vm696 = vcmask 80896
    %v698 = vsel %vm696, %v694, 0
    %v701 = vsel %vm696, %v695, 0
    %v704 = vsel %vm267, %v160, 0
    %706 = vmatprep.subr.mxu0 0.0
    %707 = vmatpush1.msra.mxu0 0.0
    %708 = vmatprep.subr.mxu0 0.0
    %709 = vmatpush1.msra.mxu0 0.0
    %710 = vmatprep.subr.mxu0 0.0
    %711 = vmatpush1.msra.mxu0 0.0
    %712 = vmatprep.subr.mxu0 0.0
    %713 = vmatpush1.msra.mxu0 0.0
    %714 = vmatprep.subr.mxu0 0.0
    %715 = vmatpush1.msra.mxu0 0.0
    %716 = vmatprep.subr.mxu0 0.0
    %717 = vmatpush1.msra.mxu0 0.0
    %718 = vmatprep.subr.mxu0 0.0
    %719 = vmatpush1.msra.mxu0 0.0
    %720 = vmatprep.subr.mxu0 0.0
    %721 = vmatpush1.msra.mxu0 0.0
    %722 = vmatprep.subr.mxu0 0.0
    %723 = vmatpush1.msra.mxu0 0.0
    %724 = vmatprep.subr.mxu0 0.0
    %725 = vmatpush1.msra.mxu0 0.0
    %726 = vmatprep.subr.mxu0 0.0
    %727 = vmatpush1.msra.mxu0 0.0
    %728 = vmatprep.subr.mxu0 0.0
    %729 = vmatpush1.msra.mxu0 0.0
    %730 = vmatprep.subr.mxu0 0.0
    %731 = vmatpush1.msra.mxu0 0.0
    %732 = vmatprep.subr.mxu0 0.0
    %733 = vmatpush1.msra.mxu0 0.0
    %734 = vmatprep.subr.mxu0 0.0
    %735 = vmatpush1.msra.mxu0 %v704
    %736 = vmatprep.subr.mxu0 0.0
    %737 = vmatpush1.msra.mxu0 %v159
    %738 = vmatprep.subr.mxu0 0.0
    %739 = vmatpush2.msra.mxu0 0.0
    %740 = vmatprep.subr.mxu0 0.0
    %741 = vmatpush2.msra.mxu0 0.0
    %742 = vmatprep.subr.mxu0 0.0
    %743 = vmatpush2.msra.mxu0 0.0
    %744 = vmatprep.subr.mxu0 0.0
    %745 = vmatpush2.msra.mxu0 0.0
    %746 = vmatprep.subr.mxu0 0.0
    %747 = vmatpush2.msra.mxu0 0.0
    %748 = vmatprep.subr.mxu0 0.0
    %749 = vmatpush2.msra.mxu0 0.0
    %750 = vmatprep.subr.mxu0 0.0
    %751 = vmatpush2.msra.mxu0 0.0
    %752 = vmatprep.subr.mxu0 0.0
    %753 = vmatpush2.msra.mxu0 0.0
    %754 = vmatprep.subr.mxu0 0.0
    %755 = vmatpush2.msra.mxu0 0.0
    %756 = vmatprep.subr.mxu0 0.0
    %757 = vmatpush2.msra.mxu0 0.0
    %758 = vmatprep.subr.mxu0 0.0
    %759 = vmatpush2.msra.mxu0 0.0
    %760 = vmatprep.subr.mxu0 0.0
    %761 = vmatpush2.msra.mxu0 0.0
    %762 = vmatprep.subr.mxu0 0.0
    %763 = vmatpush2.msra.mxu0 0.0
    %764 = vmatprep.subr.mxu0 0.0
    %765 = vmatpush2.msra.mxu0 0.0
    %766 = vmatprep.subr.mxu0 0.0
    %767 = vmatpush2.msra.mxu0 0.0
    %768 = vmatprep.subr.mxu0 0.0
    %769 = vmatpush2.msra.mxu0 0.0
    %770 = vmatprep.mubr.f32.mxu0 0.0
    %771 = vmatmul.mubr.f32.gmra.mxu0 %v698
    %v772 = vpop.f32.mrf.mxu0
    %v773 = vadd.f32 0.0, %v772
    %v774 = vpop.f32.mrf.mxu0
    %775 = vmatprep.mubr.f32.mxu0 0.0
    %776 = vmatmul.mubr.f32.gmra.mxu0 %v701
    %v777 = vpop.f32.mrf.mxu0
    %v778 = vadd.f32 0.0, %v777
    %v779 = vpop.f32.mrf.mxu0
    %780 = vdwg.mxu0
    %v781 = vmul.f32 %v773, %v595
    %v782 = vmul.f32 %v778, %v595
    %v783 = vsel %vm563, %v781, 0.0
    %784 = vadd.xlane.f32.xlu0 %v783
    %v785 = vpop.xlane.xlu0 %784
    %v786 = vsel %vm563, %v782, 0.0
    %787 = vadd.xlane.f32.xlu0 %v786
    %v788 = vpop.xlane.xlu0 %787
    %v789 = vmul.f32 %v785, %v570
    %v790 = vmul.f32 %v788, %v570
    %v791 = vmul.f32 %v781, %v589
    %v792 = vmul.f32 %v782, %v590
    %v793 = vsel %vm563, %v791, 0.0
    %794 = vadd.xlane.f32.xlu0 %v793
    %v795 = vpop.xlane.xlu0 %794
    %v796 = vsel %vm563, %v792, 0.0
    %797 = vadd.xlane.f32.xlu0 %v796
    %v798 = vpop.xlane.xlu0 %797
    %v799 = vmul.f32 %v795, %v570
    %v800 = vmul.f32 %v798, %v570
    %v801 = vsub.f32 %v781, %v789
    %v802 = vsub.f32 %v782, %v790
    %v803 = vmul.f32 %v589, %v799
    %v804 = vmul.f32 %v590, %v800
    %v805 = vsub.f32 %v801, %v803
    %v806 = vsub.f32 %v802, %v804
    %v807 = vmul.f32 %v587, %v805
    %v808 = vmul.f32 %v588, %v806
    %v809 = vmul.f32 %v561, %v561
    %v810 = vmul.f32 %v562, %v562
    %v811 = vsub.f32 1.0, %v809
    %v812 = vsub.f32 1.0, %v810
    %v813 = vmul.f32 %v807, %v811
    %v814 = vmul.f32 %v808, %v812
    %v816 = vsel %vm563, %v813, 0
    %v819 = vsel %vm563, %v814, 0
    %821 = vmatprep.subr.mxu0 0.0
    %822 = vmatpush1.msra.mxu0 0.0
    %823 = vmatprep.subr.mxu0 0.0
    %824 = vmatpush1.msra.mxu0 0.0
    %825 = vmatprep.subr.mxu0 0.0
    %826 = vmatpush1.msra.mxu0 0.0
    %827 = vmatprep.subr.mxu0 0.0
    %828 = vmatpush1.msra.mxu0 0.0
    %829 = vmatprep.subr.mxu0 0.0
    %830 = vmatpush1.msra.mxu0 0.0
    %831 = vmatprep.subr.mxu0 0.0
    %832 = vmatpush1.msra.mxu0 0.0
    %833 = vmatprep.subr.mxu0 0.0
    %834 = vmatpush1.msra.mxu0 0.0
    %835 = vmatprep.subr.mxu0 0.0
    %836 = vmatpush1.msra.mxu0 0.0
    %837 = vmatprep.subr.mxu0 0.0
    %838 = vmatpush1.msra.mxu0 0.0
    %839 = vmatprep.subr.mxu0 0.0
    %840 = vmatpush1.msra.mxu0 0.0
    %841 = vmatprep.subr.mxu0 0.0
    %842 = vmatpush1.msra.mxu0 0.0
    %843 = vmatprep.subr.mxu0 0.0
    %844 = vmatpush1.msra.mxu0 0.0
    %845 = vmatprep.subr.mxu0 0.0
    %846 = vmatpush1.msra.mxu0 0.0
    %847 = vmatprep.subr.mxu0 0.0
    %848 = vmatpush1.msra.mxu0 0.0
    %849 = vmatprep.subr.mxu0 0.0
    %850 = vmatpush1.msra.mxu0 %v156
    %851 = vmatprep.subr.mxu0 0.0
    %852 = vmatpush1.msra.mxu0 %v155
    %853 = vmatprep.subr.mxu0 0.0
    %854 = vmatpush2.msra.mxu0 0.0
    %855 = vmatprep.subr.mxu0 0.0
    %856 = vmatpush2.msra.mxu0 0.0
    %857 = vmatprep.subr.mxu0 0.0
    %858 = vmatpush2.msra.mxu0 0.0
    %859 = vmatprep.subr.mxu0 0.0
    %860 = vmatpush2.msra.mxu0 0.0
    %861 = vmatprep.subr.mxu0 0.0
    %862 = vmatpush2.msra.mxu0 0.0
    %863 = vmatprep.subr.mxu0 0.0
    %864 = vmatpush2.msra.mxu0 0.0
    %865 = vmatprep.subr.mxu0 0.0
    %866 = vmatpush2.msra.mxu0 0.0
    %867 = vmatprep.subr.mxu0 0.0
    %868 = vmatpush2.msra.mxu0 0.0
    %869 = vmatprep.subr.mxu0 0.0
    %870 = vmatpush2.msra.mxu0 0.0
    %871 = vmatprep.subr.mxu0 0.0
    %872 = vmatpush2.msra.mxu0 0.0
    %873 = vmatprep.subr.mxu0 0.0
    %874 = vmatpush2.msra.mxu0 0.0
    %875 = vmatprep.subr.mxu0 0.0
    %876 = vmatpush2.msra.mxu0 0.0
    %877 = vmatprep.subr.mxu0 0.0
    %878 = vmatpush2.msra.mxu0 0.0
    %879 = vmatprep.subr.mxu0 0.0
    %880 = vmatpush2.msra.mxu0 0.0
    %881 = vmatprep.subr.mxu0 0.0
    %882 = vmatpush2.msra.mxu0 0.0
    %883 = vmatprep.subr.mxu0 0.0
    %884 = vmatpush2.msra.mxu0 0.0
    %885 = vmatprep.mubr.f32.mxu0 0.0
    %886 = vmatmul.mubr.f32.gmra.mxu0 %v816
    %v887 = vpop.f32.mrf.mxu0
    %v888 = vadd.f32 0.0, %v887
    %v889 = vpop.f32.mrf.mxu0
    %890 = vmatprep.mubr.f32.mxu0 0.0
    %891 = vmatmul.mubr.f32.gmra.mxu0 %v819
    %v892 = vpop.f32.mrf.mxu0
    %v893 = vadd.f32 0.0, %v892
    %v894 = vpop.f32.mrf.mxu0
    %895 = vdwg.mxu0
    %v896 = vmul.f32 %v888, %v462
    %v897 = vmul.f32 %v893, %v462
    %v898 = vsel %vm178, %v896, 0.0
    %899 = vadd.xlane.f32.xlu0 %v898
    %v900 = vpop.xlane.xlu0 %899
    %v901 = vsel %vm178, %v897, 0.0
    %902 = vadd.xlane.f32.xlu0 %v901
    %v903 = vpop.xlane.xlu0 %902
    %v904 = vmul.f32 %v900, %v437
    %v905 = vmul.f32 %v903, %v437
    %v906 = vmul.f32 %v896, %v456
    %v907 = vmul.f32 %v897, %v457
    %v908 = vsel %vm178, %v906, 0.0
    %909 = vadd.xlane.f32.xlu0 %v908
    %v910 = vpop.xlane.xlu0 %909
    %v911 = vsel %vm178, %v907, 0.0
    %912 = vadd.xlane.f32.xlu0 %v911
    %v913 = vpop.xlane.xlu0 %912
    %v914 = vmul.f32 %v910, %v437
    %v915 = vmul.f32 %v913, %v437
    %v916 = vsub.f32 %v896, %v904
    %v917 = vsub.f32 %v897, %v905
    %v918 = vmul.f32 %v456, %v914
    %v919 = vmul.f32 %v457, %v915
    %v920 = vsub.f32 %v916, %v918
    %v921 = vsub.f32 %v917, %v919
    %v922 = vmul.f32 %v454, %v920
    %v923 = vmul.f32 %v455, %v921
    %v924 = vmul.f32 %v429, %v429
    %v925 = vmul.f32 %v430, %v430
    %v926 = vsub.f32 1.0, %v924
    %v927 = vsub.f32 1.0, %v925
    %v928 = vmul.f32 %v922, %v926
    %v929 = vmul.f32 %v923, %v927
    %v931 = vsel %vm178, %v928, 0
    %v934 = vsel %vm178, %v929, 0
    %936 = vmatprep.subr.mxu0 0.0
    %937 = vmatpush1.msra.mxu0 0.0
    %938 = vmatprep.subr.mxu0 0.0
    %939 = vmatpush1.msra.mxu0 0.0
    %940 = vmatprep.subr.mxu0 0.0
    %941 = vmatpush1.msra.mxu0 0.0
    %942 = vmatprep.subr.mxu0 0.0
    %943 = vmatpush1.msra.mxu0 0.0
    %944 = vmatprep.subr.mxu0 0.0
    %945 = vmatpush1.msra.mxu0 0.0
    %946 = vmatprep.subr.mxu0 0.0
    %947 = vmatpush1.msra.mxu0 0.0
    %948 = vmatprep.subr.mxu0 0.0
    %949 = vmatpush1.msra.mxu0 0.0
    %950 = vmatprep.subr.mxu0 0.0
    %951 = vmatpush1.msra.mxu0 0.0
    %952 = vmatprep.subr.mxu0 0.0
    %953 = vmatpush1.msra.mxu0 0.0
    %954 = vmatprep.subr.mxu0 0.0
    %955 = vmatpush1.msra.mxu0 0.0
    %956 = vmatprep.subr.mxu0 0.0
    %957 = vmatpush1.msra.mxu0 0.0
    %958 = vmatprep.subr.mxu0 0.0
    %959 = vmatpush1.msra.mxu0 0.0
    %960 = vmatprep.subr.mxu0 0.0
    %961 = vmatpush1.msra.mxu0 %v150
    %962 = vmatprep.subr.mxu0 0.0
    %963 = vmatpush1.msra.mxu0 %v149
    %964 = vmatprep.subr.mxu0 0.0
    %965 = vmatpush1.msra.mxu0 %v148
    %966 = vmatprep.subr.mxu0 0.0
    %967 = vmatpush1.msra.mxu0 %v147
    %968 = vmatprep.subr.mxu0 0.0
    %969 = vmatpush2.msra.mxu0 0.0
    %970 = vmatprep.subr.mxu0 0.0
    %971 = vmatpush2.msra.mxu0 0.0
    %972 = vmatprep.subr.mxu0 0.0
    %973 = vmatpush2.msra.mxu0 0.0
    %974 = vmatprep.subr.mxu0 0.0
    %975 = vmatpush2.msra.mxu0 0.0
    %976 = vmatprep.subr.mxu0 0.0
    %977 = vmatpush2.msra.mxu0 0.0
    %978 = vmatprep.subr.mxu0 0.0
    %979 = vmatpush2.msra.mxu0 0.0
    %980 = vmatprep.subr.mxu0 0.0
    %981 = vmatpush2.msra.mxu0 0.0
    %982 = vmatprep.subr.mxu0 0.0
    %983 = vmatpush2.msra.mxu0 0.0
    %984 = vmatprep.subr.mxu0 0.0
    %985 = vmatpush2.msra.mxu0 0.0
    %986 = vmatprep.subr.mxu0 0.0
    %987 = vmatpush2.msra.mxu0 0.0
    %988 = vmatprep.subr.mxu0 0.0
    %989 = vmatpush2.msra.mxu0 0.0
    %990 = vmatprep.subr.mxu0 0.0
    %991 = vmatpush2.msra.mxu0 0.0
    %992 = vmatprep.subr.mxu0 0.0
    %993 = vmatpush2.msra.mxu0 0.0
    %994 = vmatprep.subr.mxu0 0.0
    %995 = vmatpush2.msra.mxu0 0.0
    %996 = vmatprep.subr.mxu0 0.0
    %997 = vmatpush2.msra.mxu0 0.0
    %998 = vmatprep.subr.mxu0 0.0
    %999 = vmatpush2.msra.mxu0 0.0
    %1000 = vmatprep.mubr.f32.mxu0 0.0
    %1001 = vmatmul.mubr.f32.gmra.mxu0 %v931
    %v1002 = vpop.f32.mrf.mxu0
    %v1003 = vadd.f32 0.0, %v1002
    %v1004 = vpop.f32.mrf.mxu0
    %1005 = vmatprep.mubr.f32.mxu0 0.0
    %1006 = vmatmul.mubr.f32.gmra.mxu0 %v934
    %v1007 = vpop.f32.mrf.mxu0
    %v1008 = vadd.f32 0.0, %v1007
    %v1009 = vpop.f32.mrf.mxu0
    %1010 = vdwg.mxu0
    %v1012 = vsel %vm563, %v142, 0
    %1014 = vmatprep.subr.mxu0 0.0
    %1015 = vmatpush1.msra.mxu0 0.0
    %1016 = vmatprep.subr.mxu0 0.0
    %1017 = vmatpush1.msra.mxu0 0.0
    %1018 = vmatprep.subr.mxu0 0.0
    %1019 = vmatpush1.msra.mxu0 0.0
    %1020 = vmatprep.subr.mxu0 0.0
    %1021 = vmatpush1.msra.mxu0 0.0
    %1022 = vmatprep.subr.mxu0 0.0
    %1023 = vmatpush1.msra.mxu0 0.0
    %1024 = vmatprep.subr.mxu0 0.0
    %1025 = vmatpush1.msra.mxu0 0.0
    %1026 = vmatprep.subr.mxu0 0.0
    %1027 = vmatpush1.msra.mxu0 0.0
    %1028 = vmatprep.subr.mxu0 0.0
    %1029 = vmatpush1.msra.mxu0 0.0
    %1030 = vmatprep.subr.mxu0 0.0
    %1031 = vmatpush1.msra.mxu0 0.0
    %1032 = vmatprep.subr.mxu0 0.0
    %1033 = vmatpush1.msra.mxu0 0.0
    %1034 = vmatprep.subr.mxu0 0.0
    %1035 = vmatpush1.msra.mxu0 0.0
    %1036 = vmatprep.subr.mxu0 0.0
    %1037 = vmatpush1.msra.mxu0 0.0
    %1038 = vmatprep.subr.mxu0 0.0
    %1039 = vmatpush1.msra.mxu0 0.0
    %1040 = vmatprep.subr.mxu0 0.0
    %1041 = vmatpush1.msra.mxu0 0.0
    %1042 = vmatprep.subr.mxu0 0.0
    %1043 = vmatpush1.msra.mxu0 %v1008
    %1044 = vmatprep.subr.mxu0 0.0
    %1045 = vmatpush1.msra.mxu0 %v1003
    %1046 = vmatprep.subr.mxu0 0.0
    %1047 = vmatpush2.msra.mxu0 0.0
    %1048 = vmatprep.subr.mxu0 0.0
    %1049 = vmatpush2.msra.mxu0 0.0
    %1050 = vmatprep.subr.mxu0 0.0
    %1051 = vmatpush2.msra.mxu0 0.0
    %1052 = vmatprep.subr.mxu0 0.0
    %1053 = vmatpush2.msra.mxu0 0.0
    %1054 = vmatprep.subr.mxu0 0.0
    %1055 = vmatpush2.msra.mxu0 0.0
    %1056 = vmatprep.subr.mxu0 0.0
    %1057 = vmatpush2.msra.mxu0 0.0
    %1058 = vmatprep.subr.mxu0 0.0
    %1059 = vmatpush2.msra.mxu0 0.0
    %1060 = vmatprep.subr.mxu0 0.0
    %1061 = vmatpush2.msra.mxu0 0.0
    %1062 = vmatprep.subr.mxu0 0.0
    %1063 = vmatpush2.msra.mxu0 0.0
    %1064 = vmatprep.subr.mxu0 0.0
    %1065 = vmatpush2.msra.mxu0 0.0
    %1066 = vmatprep.subr.mxu0 0.0
    %1067 = vmatpush2.msra.mxu0 0.0
    %1068 = vmatprep.subr.mxu0 0.0
    %1069 = vmatpush2.msra.mxu0 0.0
    %1070 = vmatprep.subr.mxu0 0.0
    %1071 = vmatpush2.msra.mxu0 0.0
    %1072 = vmatprep.subr.mxu0 0.0
    %1073 = vmatpush2.msra.mxu0 0.0
    %1074 = vmatprep.subr.mxu0 0.0
    %1075 = vmatpush2.msra.mxu0 0.0
    %1076 = vmatprep.subr.mxu0 0.0
    %1077 = vmatpush2.msra.mxu0 0.0
    %1078 = vmatprep.mubr.f32.mxu0 0.0
    %1079 = vmatmul.mubr.f32.gmra.mxu0 %v1012
    %v1080 = vpop.f32.mrf.mxu0
    %v1081 = vadd.f32 0.0, %v1080
    %v1082 = vpop.f32.mrf.mxu0
    %1083 = vdwg.mxu0
    %vm1084 = vcmask 254976
    %1085 = vst.msk [vmem:[#allocation14] sm:$0x3] %vm1084, %v1081
    %v1086 = vmul.f32 %v1081, 0.1
    %v1087 = vsub.f32 0.0, %v1086
    %v1089 = vsel %vm267, %v1087, 0
    %1091 = vmatprep.subr.mxu0 0.0
    %1092 = vmatpush1.msra.mxu0 0.0
    %1093 = vmatprep.subr.mxu0 0.0
    %1094 = vmatpush1.msra.mxu0 0.0
    %1095 = vmatprep.subr.mxu0 0.0
    %1096 = vmatpush1.msra.mxu0 0.0
    %1097 = vmatprep.subr.mxu0 0.0
    %1098 = vmatpush1.msra.mxu0 0.0
    %1099 = vmatprep.subr.mxu0 0.0
    %1100 = vmatpush1.msra.mxu0 0.0
    %1101 = vmatprep.subr.mxu0 0.0
    %1102 = vmatpush1.msra.mxu0 0.0
    %1103 = vmatprep.subr.mxu0 0.0
    %1104 = vmatpush1.msra.mxu0 0.0
    %1105 = vmatprep.subr.mxu0 0.0
    %1106 = vmatpush1.msra.mxu0 0.0
    %1107 = vmatprep.subr.mxu0 0.0
    %1108 = vmatpush1.msra.mxu0 0.0
    %1109 = vmatprep.subr.mxu0 0.0
    %1110 = vmatpush1.msra.mxu0 0.0
    %1111 = vmatprep.subr.mxu0 0.0
    %1112 = vmatpush1.msra.mxu0 0.0
    %1113 = vmatprep.subr.mxu0 0.0
    %1114 = vmatpush1.msra.mxu0 0.0
    %1115 = vmatprep.subr.mxu0 0.0
    %1116 = vmatpush1.msra.mxu0 0.0
    %1117 = vmatprep.subr.mxu0 0.0
    %1118 = vmatpush1.msra.mxu0 0.0
    %1119 = vmatprep.subr.mxu0 0.0
    %1120 = vmatpush1.msra.mxu0 0.0
    %1121 = vmatprep.subr.mxu0 0.0
    %1122 = vmatpush1.msra.mxu0 %v1089
    %1123 = vmatprep.subr.mxu0 0.0
    %1124 = vmatpush2.msra.mxu0 0.0
    %1125 = vmatprep.subr.mxu0 0.0
    %1126 = vmatpush2.msra.mxu0 0.0
    %1127 = vmatprep.subr.mxu0 0.0
    %1128 = vmatpush2.msra.mxu0 0.0
    %1129 = vmatprep.subr.mxu0 0.0
    %1130 = vmatpush2.msra.mxu0 0.0
    %1131 = vmatprep.subr.mxu0 0.0
    %1132 = vmatpush2.msra.mxu0 0.0
    %1133 = vmatprep.subr.mxu0 0.0
    %1134 = vmatpush2.msra.mxu0 0.0
    %1135 = vmatprep.subr.mxu0 0.0
    %1136 = vmatpush2.msra.mxu0 0.0
    %1137 = vmatprep.subr.mxu0 0.0
    %1138 = vmatpush2.msra.mxu0 0.0
    %1139 = vmatprep.subr.mxu0 0.0
    %1140 = vmatpush2.msra.mxu0 0.0
    %1141 = vmatprep.subr.mxu0 0.0
    %1142 = vmatpush2.msra.mxu0 0.0
    %1143 = vmatprep.subr.mxu0 0.0
    %1144 = vmatpush2.msra.mxu0 0.0
    %1145 = vmatprep.subr.mxu0 0.0
    %1146 = vmatpush2.msra.mxu0 0.0
    %1147 = vmatprep.subr.mxu0 0.0
    %1148 = vmatpush2.msra.mxu0 0.0
    %1149 = vmatprep.subr.mxu0 0.0
    %1150 = vmatpush2.msra.mxu0 0.0
    %1151 = vmatprep.subr.mxu0 0.0
    %1152 = vmatpush2.msra.mxu0 0.0
    %1153 = vmatprep.subr.mxu0 0.0
    %1154 = vmatpush2.msra.mxu0 0.0
    %1155 = vmatprep.mubr.f32.mxu0 0.0
    %1156 = vmatmul.mubr.f32.gmra.mxu0 %v262
    %v1157 = vpop.f32.mrf.mxu0
    %v1158 = vadd.f32 0.0, %v1157
    %v1159 = vpop.f32.mrf.mxu0
    %1160 = vmatprep.mubr.f32.mxu0 0.0
    %1161 = vmatmul.mubr.f32.gmra.mxu0 %v265
    %v1162 = vpop.f32.mrf.mxu0
    %v1163 = vadd.f32 0.0, %v1162
    %v1164 = vpop.f32.mrf.mxu0
    %1165 = vdwg.mxu0
    %v1167 = vsel %vm178, %v1158, 0
    %v1170 = vsel %vm178, %v1163, 0
    %1172 = vmatprep.subr.mxu0 0.0
    %1173 = vmatpush1.msra.mxu0 0.0
    %1174 = vmatprep.subr.mxu0 0.0
    %1175 = vmatpush1.msra.mxu0 0.0
    %1176 = vmatprep.subr.mxu0 0.0
    %1177 = vmatpush1.msra.mxu0 0.0
    %1178 = vmatprep.subr.mxu0 0.0
    %1179 = vmatpush1.msra.mxu0 0.0
    %1180 = vmatprep.subr.mxu0 0.0
    %1181 = vmatpush1.msra.mxu0 0.0
    %1182 = vmatprep.subr.mxu0 0.0
    %1183 = vmatpush1.msra.mxu0 0.0
    %1184 = vmatprep.subr.mxu0 0.0
    %1185 = vmatpush1.msra.mxu0 0.0
    %1186 = vmatprep.subr.mxu0 0.0
    %1187 = vmatpush1.msra.mxu0 0.0
    %1188 = vmatprep.subr.mxu0 0.0
    %1189 = vmatpush1.msra.mxu0 0.0
    %1190 = vmatprep.subr.mxu0 0.0
    %1191 = vmatpush1.msra.mxu0 0.0
    %1192 = vmatprep.subr.mxu0 0.0
    %1193 = vmatpush1.msra.mxu0 0.0
    %1194 = vmatprep.subr.mxu0 0.0
    %1195 = vmatpush1.msra.mxu0 0.0
    %1196 = vmatprep.subr.mxu0 0.0
    %1197 = vmatpush1.msra.mxu0 %v146
    %1198 = vmatprep.subr.mxu0 0.0
    %1199 = vmatpush1.msra.mxu0 %v145
    %1200 = vmatprep.subr.mxu0 0.0
    %1201 = vmatpush1.msra.mxu0 %v144
    %1202 = vmatprep.subr.mxu0 0.0
    %1203 = vmatpush1.msra.mxu0 %v143
    %1204 = vmatprep.subr.mxu0 0.0
    %1205 = vmatpush2.msra.mxu0 0.0
    %1206 = vmatprep.subr.mxu0 0.0
    %1207 = vmatpush2.msra.mxu0 0.0
    %1208 = vmatprep.subr.mxu0 0.0
    %1209 = vmatpush2.msra.mxu0 0.0
    %1210 = vmatprep.subr.mxu0 0.0
    %1211 = vmatpush2.msra.mxu0 0.0
    %1212 = vmatprep.subr.mxu0 0.0
    %1213 = vmatpush2.msra.mxu0 0.0
    %1214 = vmatprep.subr.mxu0 0.0
    %1215 = vmatpush2.msra.mxu0 0.0
    %1216 = vmatprep.subr.mxu0 0.0
    %1217 = vmatpush2.msra.mxu0 0.0
    %1218 = vmatprep.subr.mxu0 0.0
    %1219 = vmatpush2.msra.mxu0 0.0
    %1220 = vmatprep.subr.mxu0 0.0
    %1221 = vmatpush2.msra.mxu0 0.0
    %1222 = vmatprep.subr.mxu0 0.0
    %1223 = vmatpush2.msra.mxu0 0.0
    %1224 = vmatprep.subr.mxu0 0.0
    %1225 = vmatpush2.msra.mxu0 0.0
    %1226 = vmatprep.subr.mxu0 0.0
    %1227 = vmatpush2.msra.mxu0 0.0
    %1228 = vmatprep.subr.mxu0 0.0
    %1229 = vmatpush2.msra.mxu0 0.0
    %1230 = vmatprep.subr.mxu0 0.0
    %1231 = vmatpush2.msra.mxu0 0.0
    %1232 = vmatprep.subr.mxu0 0.0
    %1233 = vmatpush2.msra.mxu0 0.0
    %1234 = vmatprep.subr.mxu0 0.0
    %1235 = vmatpush2.msra.mxu0 0.0
    %1236 = vmatprep.mubr.f32.mxu0 0.0
    %1237 = vmatmul.mubr.f32.gmra.mxu0 %v1167
    %v1238 = vpop.f32.mrf.mxu0
    %v1239 = vadd.f32 0.0, %v1238
    %v1240 = vpop.f32.mrf.mxu0
    %1241 = vmatprep.mubr.f32.mxu0 0.0
    %1242 = vmatmul.mubr.f32.gmra.mxu0 %v1170
    %v1243 = vpop.f32.mrf.mxu0
    %v1244 = vadd.f32 0.0, %v1243
    %v1245 = vpop.f32.mrf.mxu0
    %1246 = vdwg.mxu0
    %v1247 = vadd.f32 %v252, %v1239
    %v1248 = vadd.f32 %v257, %v1244
    %v1249 = vtanh.pop %v1247
    %v1250 = vtanh.pop %v1248
    %v1251 = vsel %vm178, %v1249, 0.0
    %1252 = vadd.xlane.f32.xlu0 %v1251
    %v1253 = vpop.xlane.xlu0 %1252
    %v1254 = vsel %vm178, %v1250, 0.0
    %1255 = vadd.xlane.f32.xlu0 %v1254
    %v1256 = vpop.xlane.xlu0 %1255
    %v1257 = vmul.f32 %v1253, %v437
    %v1258 = vmul.f32 %v1256, %v437
    %v1259 = vsub.f32 %v1249, %v1257
    %v1260 = vsub.f32 %v1250, %v1258
    %v1261 = vmul.f32 %v1259, %v1259
    %v1262 = vmul.f32 %v1260, %v1260
    %v1263 = vsel %vm178, %v1261, 0.0
    %1264 = vadd.xlane.f32.xlu0 %v1263
    %v1265 = vpop.xlane.xlu0 %1264
    %v1266 = vsel %vm178, %v1262, 0.0
    %1267 = vadd.xlane.f32.xlu0 %v1266
    %v1268 = vpop.xlane.xlu0 %1267
    %v1269 = vmul.f32 %v1265, %v437
    %v1270 = vmul.f32 %v1268, %v437
    %v1271 = vadd.f32 %v1269, 1e-05
    %v1272 = vadd.f32 %v1270, 1e-05
    %v1273 = vrsqrt.pop %v1271
    %v1274 = vrsqrt.pop %v1272
    %v1275 = vmul.f32 %v1259, %v1273
    %v1276 = vmul.f32 %v1260, %v1274
    %v1277 = vmul.f32 %v1275, %v462
    %v1278 = vmul.f32 %v1276, %v462
    %v1279 = vadd.f32 %v1277, %v470
    %v1280 = vadd.f32 %v1278, %v470
    %v1282 = vsel %vm178, %v1279, 0
    %v1285 = vsel %vm178, %v1280, 0
    %1287 = vmatprep.subr.mxu0 0.0
    %1288 = vmatpush1.msra.mxu0 0.0
    %1289 = vmatprep.subr.mxu0 0.0
    %1290 = vmatpush1.msra.mxu0 0.0
    %1291 = vmatprep.subr.mxu0 0.0
    %1292 = vmatpush1.msra.mxu0 0.0
    %1293 = vmatprep.subr.mxu0 0.0
    %1294 = vmatpush1.msra.mxu0 0.0
    %1295 = vmatprep.subr.mxu0 0.0
    %1296 = vmatpush1.msra.mxu0 0.0
    %1297 = vmatprep.subr.mxu0 0.0
    %1298 = vmatpush1.msra.mxu0 0.0
    %1299 = vmatprep.subr.mxu0 0.0
    %1300 = vmatpush1.msra.mxu0 0.0
    %1301 = vmatprep.subr.mxu0 0.0
    %1302 = vmatpush1.msra.mxu0 0.0
    %1303 = vmatprep.subr.mxu0 0.0
    %1304 = vmatpush1.msra.mxu0 0.0
    %1305 = vmatprep.subr.mxu0 0.0
    %1306 = vmatpush1.msra.mxu0 0.0
    %1307 = vmatprep.subr.mxu0 0.0
    %1308 = vmatpush1.msra.mxu0 0.0
    %1309 = vmatprep.subr.mxu0 0.0
    %1310 = vmatpush1.msra.mxu0 0.0
    %1311 = vmatprep.subr.mxu0 0.0
    %1312 = vmatpush1.msra.mxu0 %v154
    %1313 = vmatprep.subr.mxu0 0.0
    %1314 = vmatpush1.msra.mxu0 %v153
    %1315 = vmatprep.subr.mxu0 0.0
    %1316 = vmatpush1.msra.mxu0 %v152
    %1317 = vmatprep.subr.mxu0 0.0
    %1318 = vmatpush1.msra.mxu0 %v151
    %1319 = vmatprep.subr.mxu0 0.0
    %1320 = vmatpush2.msra.mxu0 0.0
    %1321 = vmatprep.subr.mxu0 0.0
    %1322 = vmatpush2.msra.mxu0 0.0
    %1323 = vmatprep.subr.mxu0 0.0
    %1324 = vmatpush2.msra.mxu0 0.0
    %1325 = vmatprep.subr.mxu0 0.0
    %1326 = vmatpush2.msra.mxu0 0.0
    %1327 = vmatprep.subr.mxu0 0.0
    %1328 = vmatpush2.msra.mxu0 0.0
    %1329 = vmatprep.subr.mxu0 0.0
    %1330 = vmatpush2.msra.mxu0 0.0
    %1331 = vmatprep.subr.mxu0 0.0
    %1332 = vmatpush2.msra.mxu0 0.0
    %1333 = vmatprep.subr.mxu0 0.0
    %1334 = vmatpush2.msra.mxu0 0.0
    %1335 = vmatprep.subr.mxu0 0.0
    %1336 = vmatpush2.msra.mxu0 0.0
    %1337 = vmatprep.subr.mxu0 0.0
    %1338 = vmatpush2.msra.mxu0 0.0
    %1339 = vmatprep.subr.mxu0 0.0
    %1340 = vmatpush2.msra.mxu0 0.0
    %1341 = vmatprep.subr.mxu0 0.0
    %1342 = vmatpush2.msra.mxu0 0.0
    %1343 = vmatprep.subr.mxu0 0.0
    %1344 = vmatpush2.msra.mxu0 0.0
    %1345 = vmatprep.subr.mxu0 0.0
    %1346 = vmatpush2.msra.mxu0 0.0
    %1347 = vmatprep.subr.mxu0 0.0
    %1348 = vmatpush2.msra.mxu0 0.0
    %1349 = vmatprep.subr.mxu0 0.0
    %1350 = vmatpush2.msra.mxu0 0.0
    %1351 = vmatprep.mubr.f32.mxu0 0.0
    %1352 = vmatmul.mubr.f32.gmra.mxu0 %v1282
    %v1353 = vpop.f32.mrf.mxu0
    %v1354 = vadd.f32 %v478, %v1353
    %v1355 = vpop.f32.mrf.mxu0
    %1356 = vmatprep.mubr.f32.mxu0 0.0
    %1357 = vmatmul.mubr.f32.gmra.mxu0 %v1285
    %v1358 = vpop.f32.mrf.mxu0
    %v1359 = vadd.f32 %v478, %v1358
    %v1360 = vpop.f32.mrf.mxu0
    %1361 = vdwg.mxu0
    %v1362 = vtanh.pop %v1354
    %v1363 = vtanh.pop %v1359
    %v1364 = vsel %vm563, %v1362, 0.0
    %1365 = vadd.xlane.f32.xlu0 %v1364
    %v1366 = vpop.xlane.xlu0 %1365
    %v1367 = vsel %vm563, %v1363, 0.0
    %1368 = vadd.xlane.f32.xlu0 %v1367
    %v1369 = vpop.xlane.xlu0 %1368
    %v1370 = vmul.f32 %v1366, %v570
    %v1371 = vmul.f32 %v1369, %v570
    %v1372 = vsub.f32 %v1362, %v1370
    %v1373 = vsub.f32 %v1363, %v1371
    %v1374 = vmul.f32 %v1372, %v1372
    %v1375 = vmul.f32 %v1373, %v1373
    %v1376 = vsel %vm563, %v1374, 0.0
    %1377 = vadd.xlane.f32.xlu0 %v1376
    %v1378 = vpop.xlane.xlu0 %1377
    %v1379 = vsel %vm563, %v1375, 0.0
    %1380 = vadd.xlane.f32.xlu0 %v1379
    %v1381 = vpop.xlane.xlu0 %1380
    %v1382 = vmul.f32 %v1378, %v570
    %v1383 = vmul.f32 %v1381, %v570
    %v1384 = vadd.f32 %v1382, 1e-05
    %v1385 = vadd.f32 %v1383, 1e-05
    %v1386 = vrsqrt.pop %v1384
    %v1387 = vrsqrt.pop %v1385
    %v1388 = vmul.f32 %v1372, %v1386
    %v1389 = vmul.f32 %v1373, %v1387
    %v1390 = vmul.f32 %v1388, %v595
    %v1391 = vmul.f32 %v1389, %v595
    %v1392 = vadd.f32 %v1390, %v603
    %v1393 = vadd.f32 %v1391, %v603
    %v1395 = vsel %vm563, %v1392, 0
    %v1398 = vsel %vm563, %v1393, 0
    %1400 = vmatprep.subr.mxu0 0.0
    %1401 = vmatpush1.msra.mxu0 0.0
    %1402 = vmatprep.subr.mxu0 0.0
    %1403 = vmatpush1.msra.mxu0 0.0
    %1404 = vmatprep.subr.mxu0 0.0
    %1405 = vmatpush1.msra.mxu0 0.0
    %1406 = vmatprep.subr.mxu0 0.0
    %1407 = vmatpush1.msra.mxu0 0.0
    %1408 = vmatprep.subr.mxu0 0.0
    %1409 = vmatpush1.msra.mxu0 0.0
    %1410 = vmatprep.subr.mxu0 0.0
    %1411 = vmatpush1.msra.mxu0 0.0
    %1412 = vmatprep.subr.mxu0 0.0
    %1413 = vmatpush1.msra.mxu0 0.0
    %1414 = vmatprep.subr.mxu0 0.0
    %1415 = vmatpush1.msra.mxu0 0.0
    %1416 = vmatprep.subr.mxu0 0.0
    %1417 = vmatpush1.msra.mxu0 0.0
    %1418 = vmatprep.subr.mxu0 0.0
    %1419 = vmatpush1.msra.mxu0 0.0
    %1420 = vmatprep.subr.mxu0 0.0
    %1421 = vmatpush1.msra.mxu0 0.0
    %1422 = vmatprep.subr.mxu0 0.0
    %1423 = vmatpush1.msra.mxu0 0.0
    %1424 = vmatprep.subr.mxu0 0.0
    %1425 = vmatpush1.msra.mxu0 0.0
    %1426 = vmatprep.subr.mxu0 0.0
    %1427 = vmatpush1.msra.mxu0 0.0
    %1428 = vmatprep.subr.mxu0 0.0
    %1429 = vmatpush1.msra.mxu0 %v158
    %1430 = vmatprep.subr.mxu0 0.0
    %1431 = vmatpush1.msra.mxu0 %v157
    %1432 = vmatprep.subr.mxu0 0.0
    %1433 = vmatpush2.msra.mxu0 0.0
    %1434 = vmatprep.subr.mxu0 0.0
    %1435 = vmatpush2.msra.mxu0 0.0
    %1436 = vmatprep.subr.mxu0 0.0
    %1437 = vmatpush2.msra.mxu0 0.0
    %1438 = vmatprep.subr.mxu0 0.0
    %1439 = vmatpush2.msra.mxu0 0.0
    %1440 = vmatprep.subr.mxu0 0.0
    %1441 = vmatpush2.msra.mxu0 0.0
    %1442 = vmatprep.subr.mxu0 0.0
    %1443 = vmatpush2.msra.mxu0 0.0
    %1444 = vmatprep.subr.mxu0 0.0
    %1445 = vmatpush2.msra.mxu0 0.0
    %1446 = vmatprep.subr.mxu0 0.0
    %1447 = vmatpush2.msra.mxu0 0.0
    %1448 = vmatprep.subr.mxu0 0.0
    %1449 = vmatpush2.msra.mxu0 0.0
    %1450 = vmatprep.subr.mxu0 0.0
    %1451 = vmatpush2.msra.mxu0 0.0
    %1452 = vmatprep.subr.mxu0 0.0
    %1453 = vmatpush2.msra.mxu0 0.0
    %1454 = vmatprep.subr.mxu0 0.0
    %1455 = vmatpush2.msra.mxu0 0.0
    %1456 = vmatprep.subr.mxu0 0.0
    %1457 = vmatpush2.msra.mxu0 0.0
    %1458 = vmatprep.subr.mxu0 0.0
    %1459 = vmatpush2.msra.mxu0 0.0
    %1460 = vmatprep.subr.mxu0 0.0
    %1461 = vmatpush2.msra.mxu0 0.0
    %1462 = vmatprep.subr.mxu0 0.0
    %1463 = vmatpush2.msra.mxu0 0.0
    %1464 = vmatprep.mubr.f32.mxu0 0.0
    %1465 = vmatmul.mubr.f32.gmra.mxu0 %v1395
    %v1466 = vpop.f32.mrf.mxu0
    %v1467 = vadd.f32 %v611, %v1466
    %v1468 = vpop.f32.mrf.mxu0
    %1469 = vmatprep.mubr.f32.mxu0 0.0
    %1470 = vmatmul.mubr.f32.gmra.mxu0 %v1398
    %v1471 = vpop.f32.mrf.mxu0
    %v1472 = vadd.f32 %v611, %v1471
    %v1473 = vpop.f32.mrf.mxu0
    %1474 = vdwg.mxu0
    %v1475 = vmul.f32 %v1467, 0.2
    %v1476 = vmul.f32 %v1472, 0.2
    %v1478 = vsel %vm696, %v1475, 0
    %v1481 = vsel %vm696, %v1476, 0
    %1483 = vmatprep.subr.mxu0 0.0
    %1484 = vmatpush1.msra.mxu0 0.0
    %1485 = vmatprep.subr.mxu0 0.0
    %1486 = vmatpush1.msra.mxu0 0.0
    %1487 = vmatprep.subr.mxu0 0.0
    %1488 = vmatpush1.msra.mxu0 0.0
    %1489 = vmatprep.subr.mxu0 0.0
    %1490 = vmatpush1.msra.mxu0 0.0
    %1491 = vmatprep.subr.mxu0 0.0
    %1492 = vmatpush1.msra.mxu0 0.0
    %1493 = vmatprep.subr.mxu0 0.0
    %1494 = vmatpush1.msra.mxu0 0.0
    %1495 = vmatprep.subr.mxu0 0.0
    %1496 = vmatpush1.msra.mxu0 0.0
    %1497 = vmatprep.subr.mxu0 0.0
    %1498 = vmatpush1.msra.mxu0 0.0
    %1499 = vmatprep.subr.mxu0 0.0
    %1500 = vmatpush1.msra.mxu0 0.0
    %1501 = vmatprep.subr.mxu0 0.0
    %1502 = vmatpush1.msra.mxu0 0.0
    %1503 = vmatprep.subr.mxu0 0.0
    %1504 = vmatpush1.msra.mxu0 0.0
    %1505 = vmatprep.subr.mxu0 0.0
    %1506 = vmatpush1.msra.mxu0 0.0
    %1507 = vmatprep.subr.mxu0 0.0
    %1508 = vmatpush1.msra.mxu0 0.0
    %1509 = vmatprep.subr.mxu0 0.0
    %1510 = vmatpush1.msra.mxu0 0.0
    %1511 = vmatprep.subr.mxu0 0.0
    %1512 = vmatpush1.msra.mxu0 %v704
    %1513 = vmatprep.subr.mxu0 0.0
    %1514 = vmatpush1.msra.mxu0 %v159
    %1515 = vmatprep.subr.mxu0 0.0
    %1516 = vmatpush2.msra.mxu0 0.0
    %1517 = vmatprep.subr.mxu0 0.0
    %1518 = vmatpush2.msra.mxu0 0.0
    %1519 = vmatprep.subr.mxu0 0.0
    %1520 = vmatpush2.msra.mxu0 0.0
    %1521 = vmatprep.subr.mxu0 0.0
    %1522 = vmatpush2.msra.mxu0 0.0
    %1523 = vmatprep.subr.mxu0 0.0
    %1524 = vmatpush2.msra.mxu0 0.0
    %1525 = vmatprep.subr.mxu0 0.0
    %1526 = vmatpush2.msra.mxu0 0.0
    %1527 = vmatprep.subr.mxu0 0.0
    %1528 = vmatpush2.msra.mxu0 0.0
    %1529 = vmatprep.subr.mxu0 0.0
    %1530 = vmatpush2.msra.mxu0 0.0
    %1531 = vmatprep.subr.mxu0 0.0
    %1532 = vmatpush2.msra.mxu0 0.0
    %1533 = vmatprep.subr.mxu0 0.0
    %1534 = vmatpush2.msra.mxu0 0.0
    %1535 = vmatprep.subr.mxu0 0.0
    %1536 = vmatpush2.msra.mxu0 0.0
    %1537 = vmatprep.subr.mxu0 0.0
    %1538 = vmatpush2.msra.mxu0 0.0
    %1539 = vmatprep.subr.mxu0 0.0
    %1540 = vmatpush2.msra.mxu0 0.0
    %1541 = vmatprep.subr.mxu0 0.0
    %1542 = vmatpush2.msra.mxu0 0.0
    %1543 = vmatprep.subr.mxu0 0.0
    %1544 = vmatpush2.msra.mxu0 0.0
    %1545 = vmatprep.subr.mxu0 0.0
    %1546 = vmatpush2.msra.mxu0 0.0
    %1547 = vmatprep.mubr.f32.mxu0 0.0
    %1548 = vmatmul.mubr.f32.gmra.mxu0 %v1478
    %v1549 = vpop.f32.mrf.mxu0
    %v1550 = vadd.f32 0.0, %v1549
    %v1551 = vpop.f32.mrf.mxu0
    %1552 = vmatprep.mubr.f32.mxu0 0.0
    %1553 = vmatmul.mubr.f32.gmra.mxu0 %v1481
    %v1554 = vpop.f32.mrf.mxu0
    %v1555 = vadd.f32 0.0, %v1554
    %v1556 = vpop.f32.mrf.mxu0
    %1557 = vdwg.mxu0
    %v1558 = vmul.f32 %v1550, %v595
    %v1559 = vmul.f32 %v1555, %v595
    %v1560 = vsel %vm563, %v1558, 0.0
    %1561 = vadd.xlane.f32.xlu0 %v1560
    %v1562 = vpop.xlane.xlu0 %1561
    %v1563 = vsel %vm563, %v1559, 0.0
    %1564 = vadd.xlane.f32.xlu0 %v1563
    %v1565 = vpop.xlane.xlu0 %1564
    %v1566 = vmul.f32 %v1562, %v570
    %v1567 = vmul.f32 %v1565, %v570
    %v1568 = vmul.f32 %v1558, %v1388
    %v1569 = vmul.f32 %v1559, %v1389
    %v1570 = vsel %vm563, %v1568, 0.0
    %1571 = vadd.xlane.f32.xlu0 %v1570
    %v1572 = vpop.xlane.xlu0 %1571
    %v1573 = vsel %vm563, %v1569, 0.0
    %1574 = vadd.xlane.f32.xlu0 %v1573
    %v1575 = vpop.xlane.xlu0 %1574
    %v1576 = vmul.f32 %v1572, %v570
    %v1577 = vmul.f32 %v1575, %v570
    %v1578 = vsub.f32 %v1558, %v1566
    %v1579 = vsub.f32 %v1559, %v1567
    %v1580 = vmul.f32 %v1388, %v1576
    %v1581 = vmul.f32 %v1389, %v1577
    %v1582 = vsub.f32 %v1578, %v1580
    %v1583 = vsub.f32 %v1579, %v1581
    %v1584 = vmul.f32 %v1386, %v1582
    %v1585 = vmul.f32 %v1387, %v1583
    %v1586 = vmul.f32 %v1362, %v1362
    %v1587 = vmul.f32 %v1363, %v1363
    %v1588 = vsub.f32 1.0, %v1586
    %v1589 = vsub.f32 1.0, %v1587
    %v1590 = vmul.f32 %v1584, %v1588
    %v1591 = vmul.f32 %v1585, %v1589
    %v1593 = vsel %vm563, %v1590, 0
    %v1596 = vsel %vm563, %v1591, 0
    %1598 = vmatprep.subr.mxu0 0.0
    %1599 = vmatpush1.msra.mxu0 0.0
    %1600 = vmatprep.subr.mxu0 0.0
    %1601 = vmatpush1.msra.mxu0 0.0
    %1602 = vmatprep.subr.mxu0 0.0
    %1603 = vmatpush1.msra.mxu0 0.0
    %1604 = vmatprep.subr.mxu0 0.0
    %1605 = vmatpush1.msra.mxu0 0.0
    %1606 = vmatprep.subr.mxu0 0.0
    %1607 = vmatpush1.msra.mxu0 0.0
    %1608 = vmatprep.subr.mxu0 0.0
    %1609 = vmatpush1.msra.mxu0 0.0
    %1610 = vmatprep.subr.mxu0 0.0
    %1611 = vmatpush1.msra.mxu0 0.0
    %1612 = vmatprep.subr.mxu0 0.0
    %1613 = vmatpush1.msra.mxu0 0.0
    %1614 = vmatprep.subr.mxu0 0.0
    %1615 = vmatpush1.msra.mxu0 0.0
    %1616 = vmatprep.subr.mxu0 0.0
    %1617 = vmatpush1.msra.mxu0 0.0
    %1618 = vmatprep.subr.mxu0 0.0
    %1619 = vmatpush1.msra.mxu0 0.0
    %1620 = vmatprep.subr.mxu0 0.0
    %1621 = vmatpush1.msra.mxu0 0.0
    %1622 = vmatprep.subr.mxu0 0.0
    %1623 = vmatpush1.msra.mxu0 0.0
    %1624 = vmatprep.subr.mxu0 0.0
    %1625 = vmatpush1.msra.mxu0 0.0
    %1626 = vmatprep.subr.mxu0 0.0
    %1627 = vmatpush1.msra.mxu0 %v156
    %1628 = vmatprep.subr.mxu0 0.0
    %1629 = vmatpush1.msra.mxu0 %v155
    %1630 = vmatprep.subr.mxu0 0.0
    %1631 = vmatpush2.msra.mxu0 0.0
    %1632 = vmatprep.subr.mxu0 0.0
    %1633 = vmatpush2.msra.mxu0 0.0
    %1634 = vmatprep.subr.mxu0 0.0
    %1635 = vmatpush2.msra.mxu0 0.0
    %1636 = vmatprep.subr.mxu0 0.0
    %1637 = vmatpush2.msra.mxu0 0.0
    %1638 = vmatprep.subr.mxu0 0.0
    %1639 = vmatpush2.msra.mxu0 0.0
    %1640 = vmatprep.subr.mxu0 0.0
    %1641 = vmatpush2.msra.mxu0 0.0
    %1642 = vmatprep.subr.mxu0 0.0
    %1643 = vmatpush2.msra.mxu0 0.0
    %1644 = vmatprep.subr.mxu0 0.0
    %1645 = vmatpush2.msra.mxu0 0.0
    %1646 = vmatprep.subr.mxu0 0.0
    %1647 = vmatpush2.msra.mxu0 0.0
    %1648 = vmatprep.subr.mxu0 0.0
    %1649 = vmatpush2.msra.mxu0 0.0
    %1650 = vmatprep.subr.mxu0 0.0
    %1651 = vmatpush2.msra.mxu0 0.0
    %1652 = vmatprep.subr.mxu0 0.0
    %1653 = vmatpush2.msra.mxu0 0.0
    %1654 = vmatprep.subr.mxu0 0.0
    %1655 = vmatpush2.msra.mxu0 0.0
    %1656 = vmatprep.subr.mxu0 0.0
    %1657 = vmatpush2.msra.mxu0 0.0
    %1658 = vmatprep.subr.mxu0 0.0
    %1659 = vmatpush2.msra.mxu0 0.0
    %1660 = vmatprep.subr.mxu0 0.0
    %1661 = vmatpush2.msra.mxu0 0.0
    %1662 = vmatprep.mubr.f32.mxu0 0.0
    %1663 = vmatmul.mubr.f32.gmra.mxu0 %v1593
    %v1664 = vpop.f32.mrf.mxu0
    %v1665 = vadd.f32 0.0, %v1664
    %v1666 = vpop.f32.mrf.mxu0
    %1667 = vmatprep.mubr.f32.mxu0 0.0
    %1668 = vmatmul.mubr.f32.gmra.mxu0 %v1596
    %v1669 = vpop.f32.mrf.mxu0
    %v1670 = vadd.f32 0.0, %v1669
    %v1671 = vpop.f32.mrf.mxu0
    %1672 = vdwg.mxu0
    %v1673 = vmul.f32 %v1665, %v462
    %v1674 = vmul.f32 %v1670, %v462
    %v1675 = vsel %vm178, %v1673, 0.0
    %1676 = vadd.xlane.f32.xlu0 %v1675
    %v1677 = vpop.xlane.xlu0 %1676
    %v1678 = vsel %vm178, %v1674, 0.0
    %1679 = vadd.xlane.f32.xlu0 %v1678
    %v1680 = vpop.xlane.xlu0 %1679
    %v1681 = vmul.f32 %v1677, %v437
    %v1682 = vmul.f32 %v1680, %v437
    %v1683 = vmul.f32 %v1673, %v1275
    %v1684 = vmul.f32 %v1674, %v1276
    %v1685 = vsel %vm178, %v1683, 0.0
    %1686 = vadd.xlane.f32.xlu0 %v1685
    %v1687 = vpop.xlane.xlu0 %1686
    %v1688 = vsel %vm178, %v1684, 0.0
    %1689 = vadd.xlane.f32.xlu0 %v1688
    %v1690 = vpop.xlane.xlu0 %1689
    %v1691 = vmul.f32 %v1687, %v437
    %v1692 = vmul.f32 %v1690, %v437
    %v1693 = vsub.f32 %v1673, %v1681
    %v1694 = vsub.f32 %v1674, %v1682
    %v1695 = vmul.f32 %v1275, %v1691
    %v1696 = vmul.f32 %v1276, %v1692
    %v1697 = vsub.f32 %v1693, %v1695
    %v1698 = vsub.f32 %v1694, %v1696
    %v1699 = vmul.f32 %v1273, %v1697
    %v1700 = vmul.f32 %v1274, %v1698
    %v1701 = vmul.f32 %v1249, %v1249
    %v1702 = vmul.f32 %v1250, %v1250
    %v1703 = vsub.f32 1.0, %v1701
    %v1704 = vsub.f32 1.0, %v1702
    %v1705 = vmul.f32 %v1699, %v1703
    %v1706 = vmul.f32 %v1700, %v1704
    %v1708 = vsel %vm178, %v1705, 0
    %v1711 = vsel %vm178, %v1706, 0
    %1713 = vmatprep.subr.mxu0 0.0
    %1714 = vmatpush1.msra.mxu0 0.0
    %1715 = vmatprep.subr.mxu0 0.0
    %1716 = vmatpush1.msra.mxu0 0.0
    %1717 = vmatprep.subr.mxu0 0.0
    %1718 = vmatpush1.msra.mxu0 0.0
    %1719 = vmatprep.subr.mxu0 0.0
    %1720 = vmatpush1.msra.mxu0 0.0
    %1721 = vmatprep.subr.mxu0 0.0
    %1722 = vmatpush1.msra.mxu0 0.0
    %1723 = vmatprep.subr.mxu0 0.0
    %1724 = vmatpush1.msra.mxu0 0.0
    %1725 = vmatprep.subr.mxu0 0.0
    %1726 = vmatpush1.msra.mxu0 0.0
    %1727 = vmatprep.subr.mxu0 0.0
    %1728 = vmatpush1.msra.mxu0 0.0
    %1729 = vmatprep.subr.mxu0 0.0
    %1730 = vmatpush1.msra.mxu0 0.0
    %1731 = vmatprep.subr.mxu0 0.0
    %1732 = vmatpush1.msra.mxu0 0.0
    %1733 = vmatprep.subr.mxu0 0.0
    %1734 = vmatpush1.msra.mxu0 0.0
    %1735 = vmatprep.subr.mxu0 0.0
    %1736 = vmatpush1.msra.mxu0 0.0
    %1737 = vmatprep.subr.mxu0 0.0
    %1738 = vmatpush1.msra.mxu0 %v150
    %1739 = vmatprep.subr.mxu0 0.0
    %1740 = vmatpush1.msra.mxu0 %v149
    %1741 = vmatprep.subr.mxu0 0.0
    %1742 = vmatpush1.msra.mxu0 %v148
    %1743 = vmatprep.subr.mxu0 0.0
    %1744 = vmatpush1.msra.mxu0 %v147
    %1745 = vmatprep.subr.mxu0 0.0
    %1746 = vmatpush2.msra.mxu0 0.0
    %1747 = vmatprep.subr.mxu0 0.0
    %1748 = vmatpush2.msra.mxu0 0.0
    %1749 = vmatprep.subr.mxu0 0.0
    %1750 = vmatpush2.msra.mxu0 0.0
    %1751 = vmatprep.subr.mxu0 0.0
    %1752 = vmatpush2.msra.mxu0 0.0
    %1753 = vmatprep.subr.mxu0 0.0
    %1754 = vmatpush2.msra.mxu0 0.0
    %1755 = vmatprep.subr.mxu0 0.0
    %1756 = vmatpush2.msra.mxu0 0.0
    %1757 = vmatprep.subr.mxu0 0.0
    %1758 = vmatpush2.msra.mxu0 0.0
    %1759 = vmatprep.subr.mxu0 0.0
    %1760 = vmatpush2.msra.mxu0 0.0
    %1761 = vmatprep.subr.mxu0 0.0
    %1762 = vmatpush2.msra.mxu0 0.0
    %1763 = vmatprep.subr.mxu0 0.0
    %1764 = vmatpush2.msra.mxu0 0.0
    %1765 = vmatprep.subr.mxu0 0.0
    %1766 = vmatpush2.msra.mxu0 0.0
    %1767 = vmatprep.subr.mxu0 0.0
    %1768 = vmatpush2.msra.mxu0 0.0
    %1769 = vmatprep.subr.mxu0 0.0
    %1770 = vmatpush2.msra.mxu0 0.0
    %1771 = vmatprep.subr.mxu0 0.0
    %1772 = vmatpush2.msra.mxu0 0.0
    %1773 = vmatprep.subr.mxu0 0.0
    %1774 = vmatpush2.msra.mxu0 0.0
    %1775 = vmatprep.subr.mxu0 0.0
    %1776 = vmatpush2.msra.mxu0 0.0
    %1777 = vmatprep.mubr.f32.mxu0 0.0
    %1778 = vmatmul.mubr.f32.gmra.mxu0 %v1708
    %v1779 = vpop.f32.mrf.mxu0
    %v1780 = vadd.f32 0.0, %v1779
    %v1781 = vpop.f32.mrf.mxu0
    %1782 = vmatprep.mubr.f32.mxu0 0.0
    %1783 = vmatmul.mubr.f32.gmra.mxu0 %v1711
    %v1784 = vpop.f32.mrf.mxu0
    %v1785 = vadd.f32 0.0, %v1784
    %v1786 = vpop.f32.mrf.mxu0
    %1787 = vdwg.mxu0
    %v1788 = vmul.f32 %v1087, 6.25e-05
    %1789 = vmatprep.subr.mxu0 0.0
    %1790 = vmatpush1.msra.mxu0 0.0
    %1791 = vmatprep.subr.mxu0 0.0
    %1792 = vmatpush1.msra.mxu0 0.0
    %1793 = vmatprep.subr.mxu0 0.0
    %1794 = vmatpush1.msra.mxu0 0.0
    %1795 = vmatprep.subr.mxu0 0.0
    %1796 = vmatpush1.msra.mxu0 0.0
    %1797 = vmatprep.subr.mxu0 0.0
    %1798 = vmatpush1.msra.mxu0 0.0
    %1799 = vmatprep.subr.mxu0 0.0
    %1800 = vmatpush1.msra.mxu0 0.0
    %1801 = vmatprep.subr.mxu0 0.0
    %1802 = vmatpush1.msra.mxu0 0.0
    %1803 = vmatprep.subr.mxu0 0.0
    %1804 = vmatpush1.msra.mxu0 0.0
    %1805 = vmatprep.subr.mxu0 0.0
    %1806 = vmatpush1.msra.mxu0 0.0
    %1807 = vmatprep.subr.mxu0 0.0
    %1808 = vmatpush1.msra.mxu0 0.0
    %1809 = vmatprep.subr.mxu0 0.0
    %1810 = vmatpush1.msra.mxu0 0.0
    %1811 = vmatprep.subr.mxu0 0.0
    %1812 = vmatpush1.msra.mxu0 0.0
    %1813 = vmatprep.subr.mxu0 0.0
    %1814 = vmatpush1.msra.mxu0 0.0
    %1815 = vmatprep.subr.mxu0 0.0
    %1816 = vmatpush1.msra.mxu0 0.0
    %1817 = vmatprep.subr.mxu0 0.0
    %1818 = vmatpush1.msra.mxu0 %v1785
    %1819 = vmatprep.subr.mxu0 0.0
    %1820 = vmatpush1.msra.mxu0 %v1780
    %1821 = vmatprep.subr.mxu0 0.0
    %1822 = vmatpush2.msra.mxu0 0.0
    %1823 = vmatprep.subr.mxu0 0.0
    %1824 = vmatpush2.msra.mxu0 0.0
    %1825 = vmatprep.subr.mxu0 0.0
    %1826 = vmatpush2.msra.mxu0 0.0
    %1827 = vmatprep.subr.mxu0 0.0
    %1828 = vmatpush2.msra.mxu0 0.0
    %1829 = vmatprep.subr.mxu0 0.0
    %1830 = vmatpush2.msra.mxu0 0.0
    %1831 = vmatprep.subr.mxu0 0.0
    %1832 = vmatpush2.msra.mxu0 0.0
    %1833 = vmatprep.subr.mxu0 0.0
    %1834 = vmatpush2.msra.mxu0 0.0
    %1835 = vmatprep.subr.mxu0 0.0
    %1836 = vmatpush2.msra.mxu0 0.0
    %1837 = vmatprep.subr.mxu0 0.0
    %1838 = vmatpush2.msra.mxu0 0.0
    %1839 = vmatprep.subr.mxu0 0.0
    %1840 = vmatpush2.msra.mxu0 0.0
    %1841 = vmatprep.subr.mxu0 0.0
    %1842 = vmatpush2.msra.mxu0 0.0
    %1843 = vmatprep.subr.mxu0 0.0
    %1844 = vmatpush2.msra.mxu0 0.0
    %1845 = vmatprep.subr.mxu0 0.0
    %1846 = vmatpush2.msra.mxu0 0.0
    %1847 = vmatprep.subr.mxu0 0.0
    %1848 = vmatpush2.msra.mxu0 0.0
    %1849 = vmatprep.subr.mxu0 0.0
    %1850 = vmatpush2.msra.mxu0 0.0
    %1851 = vmatprep.subr.mxu0 0.0
    %1852 = vmatpush2.msra.mxu0 0.0
    %1853 = vmatprep.mubr.f32.mxu0 0.0
    %1854 = vmatmul.mubr.f32.gmra.mxu0 %v1012
    %v1855 = vpop.f32.mrf.mxu0
    %v1856 = vadd.f32 %v1788, %v1855
    %v1857 = vpop.f32.mrf.mxu0
    %1858 = vdwg.mxu0
    %s1859 = scalar_lea.vmem [#allocation14], 2
    %1860 = vst.msk [vmem:[%s1859] sm:$0x3] %vm1084, %v1856
    %v1861 = vmul.f32 %v1856, 0.1
    %v1862 = vsub.f32 %v1087, %v1861
    %v1864 = vsel %vm267, %v1862, 0
    %1866 = vmatprep.subr.mxu0 0.0
    %1867 = vmatpush1.msra.mxu0 0.0
    %1868 = vmatprep.subr.mxu0 0.0
    %1869 = vmatpush1.msra.mxu0 0.0
    %1870 = vmatprep.subr.mxu0 0.0
    %1871 = vmatpush1.msra.mxu0 0.0
    %1872 = vmatprep.subr.mxu0 0.0
    %1873 = vmatpush1.msra.mxu0 0.0
    %1874 = vmatprep.subr.mxu0 0.0
    %1875 = vmatpush1.msra.mxu0 0.0
    %1876 = vmatprep.subr.mxu0 0.0
    %1877 = vmatpush1.msra.mxu0 0.0
    %1878 = vmatprep.subr.mxu0 0.0
    %1879 = vmatpush1.msra.mxu0 0.0
    %1880 = vmatprep.subr.mxu0 0.0
    %1881 = vmatpush1.msra.mxu0 0.0
    %1882 = vmatprep.subr.mxu0 0.0
    %1883 = vmatpush1.msra.mxu0 0.0
    %1884 = vmatprep.subr.mxu0 0.0
    %1885 = vmatpush1.msra.mxu0 0.0
    %1886 = vmatprep.subr.mxu0 0.0
    %1887 = vmatpush1.msra.mxu0 0.0
    %1888 = vmatprep.subr.mxu0 0.0
    %1889 = vmatpush1.msra.mxu0 0.0
    %1890 = vmatprep.subr.mxu0 0.0
    %1891 = vmatpush1.msra.mxu0 0.0
    %1892 = vmatprep.subr.mxu0 0.0
    %1893 = vmatpush1.msra.mxu0 0.0
    %1894 = vmatprep.subr.mxu0 0.0
    %1895 = vmatpush1.msra.mxu0 0.0
    %1896 = vmatprep.subr.mxu0 0.0
    %1897 = vmatpush1.msra.mxu0 %v1864
    %1898 = vmatprep.subr.mxu0 0.0
    %1899 = vmatpush2.msra.mxu0 0.0
    %1900 = vmatprep.subr.mxu0 0.0
    %1901 = vmatpush2.msra.mxu0 0.0
    %1902 = vmatprep.subr.mxu0 0.0
    %1903 = vmatpush2.msra.mxu0 0.0
    %1904 = vmatprep.subr.mxu0 0.0
    %1905 = vmatpush2.msra.mxu0 0.0
    %1906 = vmatprep.subr.mxu0 0.0
    %1907 = vmatpush2.msra.mxu0 0.0
    %1908 = vmatprep.subr.mxu0 0.0
    %1909 = vmatpush2.msra.mxu0 0.0
    %1910 = vmatprep.subr.mxu0 0.0
    %1911 = vmatpush2.msra.mxu0 0.0
    %1912 = vmatprep.subr.mxu0 0.0
    %1913 = vmatpush2.msra.mxu0 0.0
    %1914 = vmatprep.subr.mxu0 0.0
    %1915 = vmatpush2.msra.mxu0 0.0
    %1916 = vmatprep.subr.mxu0 0.0
    %1917 = vmatpush2.msra.mxu0 0.0
    %1918 = vmatprep.subr.mxu0 0.0
    %1919 = vmatpush2.msra.mxu0 0.0
    %1920 = vmatprep.subr.mxu0 0.0
    %1921 = vmatpush2.msra.mxu0 0.0
    %1922 = vmatprep.subr.mxu0 0.0
    %1923 = vmatpush2.msra.mxu0 0.0
    %1924 = vmatprep.subr.mxu0 0.0
    %1925 = vmatpush2.msra.mxu0 0.0
    %1926 = vmatprep.subr.mxu0 0.0
    %1927 = vmatpush2.msra.mxu0 0.0
    %1928 = vmatprep.subr.mxu0 0.0
    %1929 = vmatpush2.msra.mxu0 0.0
    %1930 = vmatprep.mubr.f32.mxu0 0.0
    %1931 = vmatmul.mubr.f32.gmra.mxu0 %v262
    %v1932 = vpop.f32.mrf.mxu0
    %v1933 = vadd.f32 0.0, %v1932
    %v1934 = vpop.f32.mrf.mxu0
    %1935 = vmatprep.mubr.f32.mxu0 0.0
    %1936 = vmatmul.mubr.f32.gmra.mxu0 %v265
    %v1937 = vpop.f32.mrf.mxu0
    %v1938 = vadd.f32 0.0, %v1937
    %v1939 = vpop.f32.mrf.mxu0
    %1940 = vdwg.mxu0
    %v1942 = vsel %vm178, %v1933, 0
    %v1945 = vsel %vm178, %v1938, 0
    %1947 = vmatprep.subr.mxu0 0.0
    %1948 = vmatpush1.msra.mxu0 0.0
    %1949 = vmatprep.subr.mxu0 0.0
    %1950 = vmatpush1.msra.mxu0 0.0
    %1951 = vmatprep.subr.mxu0 0.0
    %1952 = vmatpush1.msra.mxu0 0.0
    %1953 = vmatprep.subr.mxu0 0.0
    %1954 = vmatpush1.msra.mxu0 0.0
    %1955 = vmatprep.subr.mxu0 0.0
    %1956 = vmatpush1.msra.mxu0 0.0
    %1957 = vmatprep.subr.mxu0 0.0
    %1958 = vmatpush1.msra.mxu0 0.0
    %1959 = vmatprep.subr.mxu0 0.0
    %1960 = vmatpush1.msra.mxu0 0.0
    %1961 = vmatprep.subr.mxu0 0.0
    %1962 = vmatpush1.msra.mxu0 0.0
    %1963 = vmatprep.subr.mxu0 0.0
    %1964 = vmatpush1.msra.mxu0 0.0
    %1965 = vmatprep.subr.mxu0 0.0
    %1966 = vmatpush1.msra.mxu0 0.0
    %1967 = vmatprep.subr.mxu0 0.0
    %1968 = vmatpush1.msra.mxu0 0.0
    %1969 = vmatprep.subr.mxu0 0.0
    %1970 = vmatpush1.msra.mxu0 0.0
    %1971 = vmatprep.subr.mxu0 0.0
    %1972 = vmatpush1.msra.mxu0 %v146
    %1973 = vmatprep.subr.mxu0 0.0
    %1974 = vmatpush1.msra.mxu0 %v145
    %1975 = vmatprep.subr.mxu0 0.0
    %1976 = vmatpush1.msra.mxu0 %v144
    %1977 = vmatprep.subr.mxu0 0.0
    %1978 = vmatpush1.msra.mxu0 %v143
    %1979 = vmatprep.subr.mxu0 0.0
    %1980 = vmatpush2.msra.mxu0 0.0
    %1981 = vmatprep.subr.mxu0 0.0
    %1982 = vmatpush2.msra.mxu0 0.0
    %1983 = vmatprep.subr.mxu0 0.0
    %1984 = vmatpush2.msra.mxu0 0.0
    %1985 = vmatprep.subr.mxu0 0.0
    %1986 = vmatpush2.msra.mxu0 0.0
    %1987 = vmatprep.subr.mxu0 0.0
    %1988 = vmatpush2.msra.mxu0 0.0
    %1989 = vmatprep.subr.mxu0 0.0
    %1990 = vmatpush2.msra.mxu0 0.0
    %1991 = vmatprep.subr.mxu0 0.0
    %1992 = vmatpush2.msra.mxu0 0.0
    %1993 = vmatprep.subr.mxu0 0.0
    %1994 = vmatpush2.msra.mxu0 0.0
    %1995 = vmatprep.subr.mxu0 0.0
    %1996 = vmatpush2.msra.mxu0 0.0
    %1997 = vmatprep.subr.mxu0 0.0
    %1998 = vmatpush2.msra.mxu0 0.0
    %1999 = vmatprep.subr.mxu0 0.0
    %2000 = vmatpush2.msra.mxu0 0.0
    %2001 = vmatprep.subr.mxu0 0.0
    %2002 = vmatpush2.msra.mxu0 0.0
    %2003 = vmatprep.subr.mxu0 0.0
    %2004 = vmatpush2.msra.mxu0 0.0
    %2005 = vmatprep.subr.mxu0 0.0
    %2006 = vmatpush2.msra.mxu0 0.0
    %2007 = vmatprep.subr.mxu0 0.0
    %2008 = vmatpush2.msra.mxu0 0.0
    %2009 = vmatprep.subr.mxu0 0.0
    %2010 = vmatpush2.msra.mxu0 0.0
    %2011 = vmatprep.mubr.f32.mxu0 0.0
    %2012 = vmatmul.mubr.f32.gmra.mxu0 %v1942
    %v2013 = vpop.f32.mrf.mxu0
    %v2014 = vadd.f32 0.0, %v2013
    %v2015 = vpop.f32.mrf.mxu0
    %2016 = vmatprep.mubr.f32.mxu0 0.0
    %2017 = vmatmul.mubr.f32.gmra.mxu0 %v1945
    %v2018 = vpop.f32.mrf.mxu0
    %v2019 = vadd.f32 0.0, %v2018
    %v2020 = vpop.f32.mrf.mxu0
    %2021 = vdwg.mxu0
    %v2022 = vadd.f32 %v252, %v2014
    %v2023 = vadd.f32 %v257, %v2019
    %v2024 = vtanh.pop %v2022
    %v2025 = vtanh.pop %v2023
    %v2026 = vsel %vm178, %v2024, 0.0
    %2027 = vadd.xlane.f32.xlu0 %v2026
    %v2028 = vpop.xlane.xlu0 %2027
    %v2029 = vsel %vm178, %v2025, 0.0
    %2030 = vadd.xlane.f32.xlu0 %v2029
    %v2031 = vpop.xlane.xlu0 %2030
    %v2032 = vmul.f32 %v2028, %v437
    %v2033 = vmul.f32 %v2031, %v437
    %v2034 = vsub.f32 %v2024, %v2032
    %v2035 = vsub.f32 %v2025, %v2033
    %v2036 = vmul.f32 %v2034, %v2034
    %v2037 = vmul.f32 %v2035, %v2035
    %v2038 = vsel %vm178, %v2036, 0.0
    %2039 = vadd.xlane.f32.xlu0 %v2038
    %v2040 = vpop.xlane.xlu0 %2039
    %v2041 = vsel %vm178, %v2037, 0.0
    %2042 = vadd.xlane.f32.xlu0 %v2041
    %v2043 = vpop.xlane.xlu0 %2042
    %v2044 = vmul.f32 %v2040, %v437
    %v2045 = vmul.f32 %v2043, %v437
    %v2046 = vadd.f32 %v2044, 1e-05
    %v2047 = vadd.f32 %v2045, 1e-05
    %v2048 = vrsqrt.pop %v2046
    %v2049 = vrsqrt.pop %v2047
    %v2050 = vmul.f32 %v2034, %v2048
    %v2051 = vmul.f32 %v2035, %v2049
    %v2052 = vmul.f32 %v2050, %v462
    %v2053 = vmul.f32 %v2051, %v462
    %v2054 = vadd.f32 %v2052, %v470
    %v2055 = vadd.f32 %v2053, %v470
    %v2057 = vsel %vm178, %v2054, 0
    %v2060 = vsel %vm178, %v2055, 0
    %2062 = vmatprep.subr.mxu0 0.0
    %2063 = vmatpush1.msra.mxu0 0.0
    %2064 = vmatprep.subr.mxu0 0.0
    %2065 = vmatpush1.msra.mxu0 0.0
    %2066 = vmatprep.subr.mxu0 0.0
    %2067 = vmatpush1.msra.mxu0 0.0
    %2068 = vmatprep.subr.mxu0 0.0
    %2069 = vmatpush1.msra.mxu0 0.0
    %2070 = vmatprep.subr.mxu0 0.0
    %2071 = vmatpush1.msra.mxu0 0.0
    %2072 = vmatprep.subr.mxu0 0.0
    %2073 = vmatpush1.msra.mxu0 0.0
    %2074 = vmatprep.subr.mxu0 0.0
    %2075 = vmatpush1.msra.mxu0 0.0
    %2076 = vmatprep.subr.mxu0 0.0
    %2077 = vmatpush1.msra.mxu0 0.0
    %2078 = vmatprep.subr.mxu0 0.0
    %2079 = vmatpush1.msra.mxu0 0.0
    %2080 = vmatprep.subr.mxu0 0.0
    %2081 = vmatpush1.msra.mxu0 0.0
    %2082 = vmatprep.subr.mxu0 0.0
    %2083 = vmatpush1.msra.mxu0 0.0
    %2084 = vmatprep.subr.mxu0 0.0
    %2085 = vmatpush1.msra.mxu0 0.0
    %2086 = vmatprep.subr.mxu0 0.0
    %2087 = vmatpush1.msra.mxu0 %v154
    %2088 = vmatprep.subr.mxu0 0.0
    %2089 = vmatpush1.msra.mxu0 %v153
    %2090 = vmatprep.subr.mxu0 0.0
    %2091 = vmatpush1.msra.mxu0 %v152
    %2092 = vmatprep.subr.mxu0 0.0
    %2093 = vmatpush1.msra.mxu0 %v151
    %2094 = vmatprep.subr.mxu0 0.0
    %2095 = vmatpush2.msra.mxu0 0.0
    %2096 = vmatprep.subr.mxu0 0.0
    %2097 = vmatpush2.msra.mxu0 0.0
    %2098 = vmatprep.subr.mxu0 0.0
    %2099 = vmatpush2.msra.mxu0 0.0
    %2100 = vmatprep.subr.mxu0 0.0
    %2101 = vmatpush2.msra.mxu0 0.0
    %2102 = vmatprep.subr.mxu0 0.0
    %2103 = vmatpush2.msra.mxu0 0.0
    %2104 = vmatprep.subr.mxu0 0.0
    %2105 = vmatpush2.msra.mxu0 0.0
    %2106 = vmatprep.subr.mxu0 0.0
    %2107 = vmatpush2.msra.mxu0 0.0
    %2108 = vmatprep.subr.mxu0 0.0
    %2109 = vmatpush2.msra.mxu0 0.0
    %2110 = vmatprep.subr.mxu0 0.0
    %2111 = vmatpush2.msra.mxu0 0.0
    %2112 = vmatprep.subr.mxu0 0.0
    %2113 = vmatpush2.msra.mxu0 0.0
    %2114 = vmatprep.subr.mxu0 0.0
    %2115 = vmatpush2.msra.mxu0 0.0
    %2116 = vmatprep.subr.mxu0 0.0
    %2117 = vmatpush2.msra.mxu0 0.0
    %2118 = vmatprep.subr.mxu0 0.0
    %2119 = vmatpush2.msra.mxu0 0.0
    %2120 = vmatprep.subr.mxu0 0.0
    %2121 = vmatpush2.msra.mxu0 0.0
    %2122 = vmatprep.subr.mxu0 0.0
    %2123 = vmatpush2.msra.mxu0 0.0
    %2124 = vmatprep.subr.mxu0 0.0
    %2125 = vmatpush2.msra.mxu0 0.0
    %2126 = vmatprep.mubr.f32.mxu0 0.0
    %2127 = vmatmul.mubr.f32.gmra.mxu0 %v2057
    %v2128 = vpop.f32.mrf.mxu0
    %v2129 = vadd.f32 %v478, %v2128
    %v2130 = vpop.f32.mrf.mxu0
    %2131 = vmatprep.mubr.f32.mxu0 0.0
    %2132 = vmatmul.mubr.f32.gmra.mxu0 %v2060
    %v2133 = vpop.f32.mrf.mxu0
    %v2134 = vadd.f32 %v478, %v2133
    %v2135 = vpop.f32.mrf.mxu0
    %2136 = vdwg.mxu0
    %v2137 = vtanh.pop %v2129
    %v2138 = vtanh.pop %v2134
    %v2139 = vsel %vm563, %v2137, 0.0
    %2140 = vadd.xlane.f32.xlu0 %v2139
    %v2141 = vpop.xlane.xlu0 %2140
    %v2142 = vsel %vm563, %v2138, 0.0
    %2143 = vadd.xlane.f32.xlu0 %v2142
    %v2144 = vpop.xlane.xlu0 %2143
    %v2145 = vmul.f32 %v2141, %v570
    %v2146 = vmul.f32 %v2144, %v570
    %v2147 = vsub.f32 %v2137, %v2145
    %v2148 = vsub.f32 %v2138, %v2146
    %v2149 = vmul.f32 %v2147, %v2147
    %v2150 = vmul.f32 %v2148, %v2148
    %v2151 = vsel %vm563, %v2149, 0.0
    %2152 = vadd.xlane.f32.xlu0 %v2151
    %v2153 = vpop.xlane.xlu0 %2152
    %v2154 = vsel %vm563, %v2150, 0.0
    %2155 = vadd.xlane.f32.xlu0 %v2154
    %v2156 = vpop.xlane.xlu0 %2155
    %v2157 = vmul.f32 %v2153, %v570
    %v2158 = vmul.f32 %v2156, %v570
    %v2159 = vadd.f32 %v2157, 1e-05
    %v2160 = vadd.f32 %v2158, 1e-05
    %v2161 = vrsqrt.pop %v2159
    %v2162 = vrsqrt.pop %v2160
    %v2163 = vmul.f32 %v2147, %v2161
    %v2164 = vmul.f32 %v2148, %v2162
    %v2165 = vmul.f32 %v2163, %v595
    %v2166 = vmul.f32 %v2164, %v595
    %v2167 = vadd.f32 %v2165, %v603
    %v2168 = vadd.f32 %v2166, %v603
    %v2170 = vsel %vm563, %v2167, 0
    %v2173 = vsel %vm563, %v2168, 0
    %2175 = vmatprep.subr.mxu0 0.0
    %2176 = vmatpush1.msra.mxu0 0.0
    %2177 = vmatprep.subr.mxu0 0.0
    %2178 = vmatpush1.msra.mxu0 0.0
    %2179 = vmatprep.subr.mxu0 0.0
    %2180 = vmatpush1.msra.mxu0 0.0
    %2181 = vmatprep.subr.mxu0 0.0
    %2182 = vmatpush1.msra.mxu0 0.0
    %2183 = vmatprep.subr.mxu0 0.0
    %2184 = vmatpush1.msra.mxu0 0.0
    %2185 = vmatprep.subr.mxu0 0.0
    %2186 = vmatpush1.msra.mxu0 0.0
    %2187 = vmatprep.subr.mxu0 0.0
    %2188 = vmatpush1.msra.mxu0 0.0
    %2189 = vmatprep.subr.mxu0 0.0
    %2190 = vmatpush1.msra.mxu0 0.0
    %2191 = vmatprep.subr.mxu0 0.0
    %2192 = vmatpush1.msra.mxu0 0.0
    %2193 = vmatprep.subr.mxu0 0.0
    %2194 = vmatpush1.msra.mxu0 0.0
    %2195 = vmatprep.subr.mxu0 0.0
    %2196 = vmatpush1.msra.mxu0 0.0
    %2197 = vmatprep.subr.mxu0 0.0
    %2198 = vmatpush1.msra.mxu0 0.0
    %2199 = vmatprep.subr.mxu0 0.0
    %2200 = vmatpush1.msra.mxu0 0.0
    %2201 = vmatprep.subr.mxu0 0.0
    %2202 = vmatpush1.msra.mxu0 0.0
    %2203 = vmatprep.subr.mxu0 0.0
    %2204 = vmatpush1.msra.mxu0 %v158
    %2205 = vmatprep.subr.mxu0 0.0
    %2206 = vmatpush1.msra.mxu0 %v157
    %2207 = vmatprep.subr.mxu0 0.0
    %2208 = vmatpush2.msra.mxu0 0.0
    %2209 = vmatprep.subr.mxu0 0.0
    %2210 = vmatpush2.msra.mxu0 0.0
    %2211 = vmatprep.subr.mxu0 0.0
    %2212 = vmatpush2.msra.mxu0 0.0
    %2213 = vmatprep.subr.mxu0 0.0
    %2214 = vmatpush2.msra.mxu0 0.0
    %2215 = vmatprep.subr.mxu0 0.0
    %2216 = vmatpush2.msra.mxu0 0.0
    %2217 = vmatprep.subr.mxu0 0.0
    %2218 = vmatpush2.msra.mxu0 0.0
    %2219 = vmatprep.subr.mxu0 0.0
    %2220 = vmatpush2.msra.mxu0 0.0
    %2221 = vmatprep.subr.mxu0 0.0
    %2222 = vmatpush2.msra.mxu0 0.0
    %2223 = vmatprep.subr.mxu0 0.0
    %2224 = vmatpush2.msra.mxu0 0.0
    %2225 = vmatprep.subr.mxu0 0.0
    %2226 = vmatpush2.msra.mxu0 0.0
    %2227 = vmatprep.subr.mxu0 0.0
    %2228 = vmatpush2.msra.mxu0 0.0
    %2229 = vmatprep.subr.mxu0 0.0
    %2230 = vmatpush2.msra.mxu0 0.0
    %2231 = vmatprep.subr.mxu0 0.0
    %2232 = vmatpush2.msra.mxu0 0.0
    %2233 = vmatprep.subr.mxu0 0.0
    %2234 = vmatpush2.msra.mxu0 0.0
    %2235 = vmatprep.subr.mxu0 0.0
    %2236 = vmatpush2.msra.mxu0 0.0
    %2237 = vmatprep.subr.mxu0 0.0
    %2238 = vmatpush2.msra.mxu0 0.0
    %2239 = vmatprep.mubr.f32.mxu0 0.0
    %2240 = vmatmul.mubr.f32.gmra.mxu0 %v2170
    %v2241 = vpop.f32.mrf.mxu0
    %v2242 = vadd.f32 %v611, %v2241
    %v2243 = vpop.f32.mrf.mxu0
    %2244 = vmatprep.mubr.f32.mxu0 0.0
    %2245 = vmatmul.mubr.f32.gmra.mxu0 %v2173
    %v2246 = vpop.f32.mrf.mxu0
    %v2247 = vadd.f32 %v611, %v2246
    %v2248 = vpop.f32.mrf.mxu0
    %2249 = vdwg.mxu0
    %v2250 = vmul.f32 %v2242, 0.2
    %v2251 = vmul.f32 %v2247, 0.2
    %v2253 = vsel %vm696, %v2250, 0
    %v2256 = vsel %vm696, %v2251, 0
    %2258 = vmatprep.subr.mxu0 0.0
    %2259 = vmatpush1.msra.mxu0 0.0
    %2260 = vmatprep.subr.mxu0 0.0
    %2261 = vmatpush1.msra.mxu0 0.0
    %2262 = vmatprep.subr.mxu0 0.0
    %2263 = vmatpush1.msra.mxu0 0.0
    %2264 = vmatprep.subr.mxu0 0.0
    %2265 = vmatpush1.msra.mxu0 0.0
    %2266 = vmatprep.subr.mxu0 0.0
    %2267 = vmatpush1.msra.mxu0 0.0
    %2268 = vmatprep.subr.mxu0 0.0
    %2269 = vmatpush1.msra.mxu0 0.0
    %2270 = vmatprep.subr.mxu0 0.0
    %2271 = vmatpush1.msra.mxu0 0.0
    %2272 = vmatprep.subr.mxu0 0.0
    %2273 = vmatpush1.msra.mxu0 0.0
    %2274 = vmatprep.subr.mxu0 0.0
    %2275 = vmatpush1.msra.mxu0 0.0
    %2276 = vmatprep.subr.mxu0 0.0
    %2277 = vmatpush1.msra.mxu0 0.0
    %2278 = vmatprep.subr.mxu0 0.0
    %2279 = vmatpush1.msra.mxu0 0.0
    %2280 = vmatprep.subr.mxu0 0.0
    %2281 = vmatpush1.msra.mxu0 0.0
    %2282 = vmatprep.subr.mxu0 0.0
    %2283 = vmatpush1.msra.mxu0 0.0
    %2284 = vmatprep.subr.mxu0 0.0
    %2285 = vmatpush1.msra.mxu0 0.0
    %2286 = vmatprep.subr.mxu0 0.0
    %2287 = vmatpush1.msra.mxu0 %v704
    %2288 = vmatprep.subr.mxu0 0.0
    %2289 = vmatpush1.msra.mxu0 %v159
    %2290 = vmatprep.subr.mxu0 0.0
    %2291 = vmatpush2.msra.mxu0 0.0
    %2292 = vmatprep.subr.mxu0 0.0
    %2293 = vmatpush2.msra.mxu0 0.0
    %2294 = vmatprep.subr.mxu0 0.0
    %2295 = vmatpush2.msra.mxu0 0.0
    %2296 = vmatprep.subr.mxu0 0.0
    %2297 = vmatpush2.msra.mxu0 0.0
    %2298 = vmatprep.subr.mxu0 0.0
    %2299 = vmatpush2.msra.mxu0 0.0
    %2300 = vmatprep.subr.mxu0 0.0
    %2301 = vmatpush2.msra.mxu0 0.0
    %2302 = vmatprep.subr.mxu0 0.0
    %2303 = vmatpush2.msra.mxu0 0.0
    %2304 = vmatprep.subr.mxu0 0.0
    %2305 = vmatpush2.msra.mxu0 0.0
    %2306 = vmatprep.subr.mxu0 0.0
    %2307 = vmatpush2.msra.mxu0 0.0
    %2308 = vmatprep.subr.mxu0 0.0
    %2309 = vmatpush2.msra.mxu0 0.0
    %2310 = vmatprep.subr.mxu0 0.0
    %2311 = vmatpush2.msra.mxu0 0.0
    %2312 = vmatprep.subr.mxu0 0.0
    %2313 = vmatpush2.msra.mxu0 0.0
    %2314 = vmatprep.subr.mxu0 0.0
    %2315 = vmatpush2.msra.mxu0 0.0
    %2316 = vmatprep.subr.mxu0 0.0
    %2317 = vmatpush2.msra.mxu0 0.0
    %2318 = vmatprep.subr.mxu0 0.0
    %2319 = vmatpush2.msra.mxu0 0.0
    %2320 = vmatprep.subr.mxu0 0.0
    %2321 = vmatpush2.msra.mxu0 0.0
    %2322 = vmatprep.mubr.f32.mxu0 0.0
    %2323 = vmatmul.mubr.f32.gmra.mxu0 %v2253
    %v2324 = vpop.f32.mrf.mxu0
    %v2325 = vadd.f32 0.0, %v2324
    %v2326 = vpop.f32.mrf.mxu0
    %2327 = vmatprep.mubr.f32.mxu0 0.0
    %2328 = vmatmul.mubr.f32.gmra.mxu0 %v2256
    %v2329 = vpop.f32.mrf.mxu0
    %v2330 = vadd.f32 0.0, %v2329
    %v2331 = vpop.f32.mrf.mxu0
    %2332 = vdwg.mxu0
    %v2333 = vmul.f32 %v2325, %v595
    %v2334 = vmul.f32 %v2330, %v595
    %v2335 = vsel %vm563, %v2333, 0.0
    %2336 = vadd.xlane.f32.xlu0 %v2335
    %v2337 = vpop.xlane.xlu0 %2336
    %v2338 = vsel %vm563, %v2334, 0.0
    %2339 = vadd.xlane.f32.xlu0 %v2338
    %v2340 = vpop.xlane.xlu0 %2339
    %v2341 = vmul.f32 %v2337, %v570
    %v2342 = vmul.f32 %v2340, %v570
    %v2343 = vmul.f32 %v2333, %v2163
    %v2344 = vmul.f32 %v2334, %v2164
    %v2345 = vsel %vm563, %v2343, 0.0
    %2346 = vadd.xlane.f32.xlu0 %v2345
    %v2347 = vpop.xlane.xlu0 %2346
    %v2348 = vsel %vm563, %v2344, 0.0
    %2349 = vadd.xlane.f32.xlu0 %v2348
    %v2350 = vpop.xlane.xlu0 %2349
    %v2351 = vmul.f32 %v2347, %v570
    %v2352 = vmul.f32 %v2350, %v570
    %v2353 = vsub.f32 %v2333, %v2341
    %v2354 = vsub.f32 %v2334, %v2342
    %v2355 = vmul.f32 %v2163, %v2351
    %v2356 = vmul.f32 %v2164, %v2352
    %v2357 = vsub.f32 %v2353, %v2355
    %v2358 = vsub.f32 %v2354, %v2356
    %v2359 = vmul.f32 %v2161, %v2357
    %v2360 = vmul.f32 %v2162, %v2358
    %v2361 = vmul.f32 %v2137, %v2137
    %v2362 = vmul.f32 %v2138, %v2138
    %v2363 = vsub.f32 1.0, %v2361
    %v2364 = vsub.f32 1.0, %v2362
    %v2365 = vmul.f32 %v2359, %v2363
    %v2366 = vmul.f32 %v2360, %v2364
    %v2368 = vsel %vm563, %v2365, 0
    %v2371 = vsel %vm563, %v2366, 0
    %2373 = vmatprep.subr.mxu0 0.0
    %2374 = vmatpush1.msra.mxu0 0.0
    %2375 = vmatprep.subr.mxu0 0.0
    %2376 = vmatpush1.msra.mxu0 0.0
    %2377 = vmatprep.subr.mxu0 0.0
    %2378 = vmatpush1.msra.mxu0 0.0
    %2379 = vmatprep.subr.mxu0 0.0
    %2380 = vmatpush1.msra.mxu0 0.0
    %2381 = vmatprep.subr.mxu0 0.0
    %2382 = vmatpush1.msra.mxu0 0.0
    %2383 = vmatprep.subr.mxu0 0.0
    %2384 = vmatpush1.msra.mxu0 0.0
    %2385 = vmatprep.subr.mxu0 0.0
    %2386 = vmatpush1.msra.mxu0 0.0
    %2387 = vmatprep.subr.mxu0 0.0
    %2388 = vmatpush1.msra.mxu0 0.0
    %2389 = vmatprep.subr.mxu0 0.0
    %2390 = vmatpush1.msra.mxu0 0.0
    %2391 = vmatprep.subr.mxu0 0.0
    %2392 = vmatpush1.msra.mxu0 0.0
    %2393 = vmatprep.subr.mxu0 0.0
    %2394 = vmatpush1.msra.mxu0 0.0
    %2395 = vmatprep.subr.mxu0 0.0
    %2396 = vmatpush1.msra.mxu0 0.0
    %2397 = vmatprep.subr.mxu0 0.0
    %2398 = vmatpush1.msra.mxu0 0.0
    %2399 = vmatprep.subr.mxu0 0.0
    %2400 = vmatpush1.msra.mxu0 0.0
    %2401 = vmatprep.subr.mxu0 0.0
    %2402 = vmatpush1.msra.mxu0 %v156
    %2403 = vmatprep.subr.mxu0 0.0
    %2404 = vmatpush1.msra.mxu0 %v155
    %2405 = vmatprep.subr.mxu0 0.0
    %2406 = vmatpush2.msra.mxu0 0.0
    %2407 = vmatprep.subr.mxu0 0.0
    %2408 = vmatpush2.msra.mxu0 0.0
    %2409 = vmatprep.subr.mxu0 0.0
    %2410 = vmatpush2.msra.mxu0 0.0
    %2411 = vmatprep.subr.mxu0 0.0
    %2412 = vmatpush2.msra.mxu0 0.0
    %2413 = vmatprep.subr.mxu0 0.0
    %2414 = vmatpush2.msra.mxu0 0.0
    %2415 = vmatprep.subr.mxu0 0.0
    %2416 = vmatpush2.msra.mxu0 0.0
    %2417 = vmatprep.subr.mxu0 0.0
    %2418 = vmatpush2.msra.mxu0 0.0
    %2419 = vmatprep.subr.mxu0 0.0
    %2420 = vmatpush2.msra.mxu0 0.0
    %2421 = vmatprep.subr.mxu0 0.0
    %2422 = vmatpush2.msra.mxu0 0.0
    %2423 = vmatprep.subr.mxu0 0.0
    %2424 = vmatpush2.msra.mxu0 0.0
    %2425 = vmatprep.subr.mxu0 0.0
    %2426 = vmatpush2.msra.mxu0 0.0
    %2427 = vmatprep.subr.mxu0 0.0
    %2428 = vmatpush2.msra.mxu0 0.0
    %2429 = vmatprep.subr.mxu0 0.0
    %2430 = vmatpush2.msra.mxu0 0.0
    %2431 = vmatprep.subr.mxu0 0.0
    %2432 = vmatpush2.msra.mxu0 0.0
    %2433 = vmatprep.subr.mxu0 0.0
    %2434 = vmatpush2.msra.mxu0 0.0
    %2435 = vmatprep.subr.mxu0 0.0
    %2436 = vmatpush2.msra.mxu0 0.0
    %2437 = vmatprep.mubr.f32.mxu0 0.0
    %2438 = vmatmul.mubr.f32.gmra.mxu0 %v2368
    %v2439 = vpop.f32.mrf.mxu0
    %v2440 = vadd.f32 0.0, %v2439
    %v2441 = vpop.f32.mrf.mxu0
    %2442 = vmatprep.mubr.f32.mxu0 0.0
    %2443 = vmatmul.mubr.f32.gmra.mxu0 %v2371
    %v2444 = vpop.f32.mrf.mxu0
    %v2445 = vadd.f32 0.0, %v2444
    %v2446 = vpop.f32.mrf.mxu0
    %2447 = vdwg.mxu0
    %v2448 = vmul.f32 %v2440, %v462
    %v2449 = vmul.f32 %v2445, %v462
    %v2450 = vsel %vm178, %v2448, 0.0
    %2451 = vadd.xlane.f32.xlu0 %v2450
    %v2452 = vpop.xlane.xlu0 %2451
    %v2453 = vsel %vm178, %v2449, 0.0
    %2454 = vadd.xlane.f32.xlu0 %v2453
    %v2455 = vpop.xlane.xlu0 %2454
    %v2456 = vmul.f32 %v2452, %v437
    %v2457 = vmul.f32 %v2455, %v437
    %v2458 = vmul.f32 %v2448, %v2050
    %v2459 = vmul.f32 %v2449, %v2051
    %v2460 = vsel %vm178, %v2458, 0.0
    %2461 = vadd.xlane.f32.xlu0 %v2460
    %v2462 = vpop.xlane.xlu0 %2461
    %v2463 = vsel %vm178, %v2459, 0.0
    %2464 = vadd.xlane.f32.xlu0 %v2463
    %v2465 = vpop.xlane.xlu0 %2464
    %v2466 = vmul.f32 %v2462, %v437
    %v2467 = vmul.f32 %v2465, %v437
    %v2468 = vsub.f32 %v2448, %v2456
    %v2469 = vsub.f32 %v2449, %v2457
    %v2470 = vmul.f32 %v2050, %v2466
    %v2471 = vmul.f32 %v2051, %v2467
    %v2472 = vsub.f32 %v2468, %v2470
    %v2473 = vsub.f32 %v2469, %v2471
    %v2474 = vmul.f32 %v2048, %v2472
    %v2475 = vmul.f32 %v2049, %v2473
    %v2476 = vmul.f32 %v2024, %v2024
    %v2477 = vmul.f32 %v2025, %v2025
    %v2478 = vsub.f32 1.0, %v2476
    %v2479 = vsub.f32 1.0, %v2477
    %v2480 = vmul.f32 %v2474, %v2478
    %v2481 = vmul.f32 %v2475, %v2479
    %v2483 = vsel %vm178, %v2480, 0
    %v2486 = vsel %vm178, %v2481, 0
    %2488 = vmatprep.subr.mxu0 0.0
    %2489 = vmatpush1.msra.mxu0 0.0
    %2490 = vmatprep.subr.mxu0 0.0
    %2491 = vmatpush1.msra.mxu0 0.0
    %2492 = vmatprep.subr.mxu0 0.0
    %2493 = vmatpush1.msra.mxu0 0.0
    %2494 = vmatprep.subr.mxu0 0.0
    %2495 = vmatpush1.msra.mxu0 0.0
    %2496 = vmatprep.subr.mxu0 0.0
    %2497 = vmatpush1.msra.mxu0 0.0
    %2498 = vmatprep.subr.mxu0 0.0
    %2499 = vmatpush1.msra.mxu0 0.0
    %2500 = vmatprep.subr.mxu0 0.0
    %2501 = vmatpush1.msra.mxu0 0.0
    %2502 = vmatprep.subr.mxu0 0.0
    %2503 = vmatpush1.msra.mxu0 0.0
    %2504 = vmatprep.subr.mxu0 0.0
    %2505 = vmatpush1.msra.mxu0 0.0
    %2506 = vmatprep.subr.mxu0 0.0
    %2507 = vmatpush1.msra.mxu0 0.0
    %2508 = vmatprep.subr.mxu0 0.0
    %2509 = vmatpush1.msra.mxu0 0.0
    %2510 = vmatprep.subr.mxu0 0.0
    %2511 = vmatpush1.msra.mxu0 0.0
    %2512 = vmatprep.subr.mxu0 0.0
    %2513 = vmatpush1.msra.mxu0 %v150
    %2514 = vmatprep.subr.mxu0 0.0
    %2515 = vmatpush1.msra.mxu0 %v149
    %2516 = vmatprep.subr.mxu0 0.0
    %2517 = vmatpush1.msra.mxu0 %v148
    %2518 = vmatprep.subr.mxu0 0.0
    %2519 = vmatpush1.msra.mxu0 %v147
    %2520 = vmatprep.subr.mxu0 0.0
    %2521 = vmatpush2.msra.mxu0 0.0
    %2522 = vmatprep.subr.mxu0 0.0
    %2523 = vmatpush2.msra.mxu0 0.0
    %2524 = vmatprep.subr.mxu0 0.0
    %2525 = vmatpush2.msra.mxu0 0.0
    %2526 = vmatprep.subr.mxu0 0.0
    %2527 = vmatpush2.msra.mxu0 0.0
    %2528 = vmatprep.subr.mxu0 0.0
    %2529 = vmatpush2.msra.mxu0 0.0
    %2530 = vmatprep.subr.mxu0 0.0
    %2531 = vmatpush2.msra.mxu0 0.0
    %2532 = vmatprep.subr.mxu0 0.0
    %2533 = vmatpush2.msra.mxu0 0.0
    %2534 = vmatprep.subr.mxu0 0.0
    %2535 = vmatpush2.msra.mxu0 0.0
    %2536 = vmatprep.subr.mxu0 0.0
    %2537 = vmatpush2.msra.mxu0 0.0
    %2538 = vmatprep.subr.mxu0 0.0
    %2539 = vmatpush2.msra.mxu0 0.0
    %2540 = vmatprep.subr.mxu0 0.0
    %2541 = vmatpush2.msra.mxu0 0.0
    %2542 = vmatprep.subr.mxu0 0.0
    %2543 = vmatpush2.msra.mxu0 0.0
    %2544 = vmatprep.subr.mxu0 0.0
    %2545 = vmatpush2.msra.mxu0 0.0
    %2546 = vmatprep.subr.mxu0 0.0
    %2547 = vmatpush2.msra.mxu0 0.0
    %2548 = vmatprep.subr.mxu0 0.0
    %2549 = vmatpush2.msra.mxu0 0.0
    %2550 = vmatprep.subr.mxu0 0.0
    %2551 = vmatpush2.msra.mxu0 0.0
    %2552 = vmatprep.mubr.f32.mxu0 0.0
    %2553 = vmatmul.mubr.f32.gmra.mxu0 %v2483
    %v2554 = vpop.f32.mrf.mxu0
    %v2555 = vadd.f32 0.0, %v2554
    %v2556 = vpop.f32.mrf.mxu0
    %2557 = vmatprep.mubr.f32.mxu0 0.0
    %2558 = vmatmul.mubr.f32.gmra.mxu0 %v2486
    %v2559 = vpop.f32.mrf.mxu0
    %v2560 = vadd.f32 0.0, %v2559
    %v2561 = vpop.f32.mrf.mxu0
    %2562 = vdwg.mxu0
    %v2563 = vmul.f32 %v1862, 6.25e-05
    %2564 = vmatprep.subr.mxu0 0.0
    %2565 = vmatpush1.msra.mxu0 0.0
    %2566 = vmatprep.subr.mxu0 0.0
    %2567 = vmatpush1.msra.mxu0 0.0
    %2568 = vmatprep.subr.mxu0 0.0
    %2569 = vmatpush1.msra.mxu0 0.0
    %2570 = vmatprep.subr.mxu0 0.0
    %2571 = vmatpush1.msra.mxu0 0.0
    %2572 = vmatprep.subr.mxu0 0.0
    %2573 = vmatpush1.msra.mxu0 0.0
    %2574 = vmatprep.subr.mxu0 0.0
    %2575 = vmatpush1.msra.mxu0 0.0
    %2576 = vmatprep.subr.mxu0 0.0
    %2577 = vmatpush1.msra.mxu0 0.0
    %2578 = vmatprep.subr.mxu0 0.0
    %2579 = vmatpush1.msra.mxu0 0.0
    %2580 = vmatprep.subr.mxu0 0.0
    %2581 = vmatpush1.msra.mxu0 0.0
    %2582 = vmatprep.subr.mxu0 0.0
    %2583 = vmatpush1.msra.mxu0 0.0
    %2584 = vmatprep.subr.mxu0 0.0
    %2585 = vmatpush1.msra.mxu0 0.0
    %2586 = vmatprep.subr.mxu0 0.0
    %2587 = vmatpush1.msra.mxu0 0.0
    %2588 = vmatprep.subr.mxu0 0.0
    %2589 = vmatpush1.msra.mxu0 0.0
    %2590 = vmatprep.subr.mxu0 0.0
    %2591 = vmatpush1.msra.mxu0 0.0
    %2592 = vmatprep.subr.mxu0 0.0
    %2593 = vmatpush1.msra.mxu0 %v2560
    %2594 = vmatprep.subr.mxu0 0.0
    %2595 = vmatpush1.msra.mxu0 %v2555
    %2596 = vmatprep.subr.mxu0 0.0
    %2597 = vmatpush2.msra.mxu0 0.0
    %2598 = vmatprep.subr.mxu0 0.0
    %2599 = vmatpush2.msra.mxu0 0.0
    %2600 = vmatprep.subr.mxu0 0.0
    %2601 = vmatpush2.msra.mxu0 0.0
    %2602 = vmatprep.subr.mxu0 0.0
    %2603 = vmatpush2.msra.mxu0 0.0
    %2604 = vmatprep.subr.mxu0 0.0
    %2605 = vmatpush2.msra.mxu0 0.0
    %2606 = vmatprep.subr.mxu0 0.0
    %2607 = vmatpush2.msra.mxu0 0.0
    %2608 = vmatprep.subr.mxu0 0.0
    %2609 = vmatpush2.msra.mxu0 0.0
    %2610 = vmatprep.subr.mxu0 0.0
    %2611 = vmatpush2.msra.mxu0 0.0
    %2612 = vmatprep.subr.mxu0 0.0
    %2613 = vmatpush2.msra.mxu0 0.0
    %2614 = vmatprep.subr.mxu0 0.0
    %2615 = vmatpush2.msra.mxu0 0.0
    %2616 = vmatprep.subr.mxu0 0.0
    %2617 = vmatpush2.msra.mxu0 0.0
    %2618 = vmatprep.subr.mxu0 0.0
    %2619 = vmatpush2.msra.mxu0 0.0
    %2620 = vmatprep.subr.mxu0 0.0
    %2621 = vmatpush2.msra.mxu0 0.0
    %2622 = vmatprep.subr.mxu0 0.0
    %2623 = vmatpush2.msra.mxu0 0.0
    %2624 = vmatprep.subr.mxu0 0.0
    %2625 = vmatpush2.msra.mxu0 0.0
    %2626 = vmatprep.subr.mxu0 0.0
    %2627 = vmatpush2.msra.mxu0 0.0
    %2628 = vmatprep.mubr.f32.mxu0 0.0
    %2629 = vmatmul.mubr.f32.gmra.mxu0 %v1012
    %v2630 = vpop.f32.mrf.mxu0
    %v2631 = vadd.f32 %v2563, %v2630
    %v2632 = vpop.f32.mrf.mxu0
    %2633 = vdwg.mxu0
    %s2634 = scalar_lea.vmem [#allocation14], 4
    %2635 = vst.msk [vmem:[%s2634] sm:$0x3] %vm1084, %v2631
    %v2636 = vmul.f32 %v2631, 0.1
    %v2637 = vsub.f32 %v1862, %v2636
    %v2639 = vsel %vm267, %v2637, 0
    %2641 = vmatprep.subr.mxu0 0.0
    %2642 = vmatpush1.msra.mxu0 0.0
    %2643 = vmatprep.subr.mxu0 0.0
    %2644 = vmatpush1.msra.mxu0 0.0
    %2645 = vmatprep.subr.mxu0 0.0
    %2646 = vmatpush1.msra.mxu0 0.0
    %2647 = vmatprep.subr.mxu0 0.0
    %2648 = vmatpush1.msra.mxu0 0.0
    %2649 = vmatprep.subr.mxu0 0.0
    %2650 = vmatpush1.msra.mxu0 0.0
    %2651 = vmatprep.subr.mxu0 0.0
    %2652 = vmatpush1.msra.mxu0 0.0
    %2653 = vmatprep.subr.mxu0 0.0
    %2654 = vmatpush1.msra.mxu0 0.0
    %2655 = vmatprep.subr.mxu0 0.0
    %2656 = vmatpush1.msra.mxu0 0.0
    %2657 = vmatprep.subr.mxu0 0.0
    %2658 = vmatpush1.msra.mxu0 0.0
    %2659 = vmatprep.subr.mxu0 0.0
    %2660 = vmatpush1.msra.mxu0 0.0
    %2661 = vmatprep.subr.mxu0 0.0
    %2662 = vmatpush1.msra.mxu0 0.0
    %2663 = vmatprep.subr.mxu0 0.0
    %2664 = vmatpush1.msra.mxu0 0.0
    %2665 = vmatprep.subr.mxu0 0.0
    %2666 = vmatpush1.msra.mxu0 0.0
    %2667 = vmatprep.subr.mxu0 0.0
    %2668 = vmatpush1.msra.mxu0 0.0
    %2669 = vmatprep.subr.mxu0 0.0
    %2670 = vmatpush1.msra.mxu0 0.0
    %2671 = vmatprep.subr.mxu0 0.0
    %2672 = vmatpush1.msra.mxu0 %v2639
    %2673 = vmatprep.subr.mxu0 0.0
    %2674 = vmatpush2.msra.mxu0 0.0
    %2675 = vmatprep.subr.mxu0 0.0
    %2676 = vmatpush2.msra.mxu0 0.0
    %2677 = vmatprep.subr.mxu0 0.0
    %2678 = vmatpush2.msra.mxu0 0.0
    %2679 = vmatprep.subr.mxu0 0.0
    %2680 = vmatpush2.msra.mxu0 0.0
    %2681 = vmatprep.subr.mxu0 0.0
    %2682 = vmatpush2.msra.mxu0 0.0
    %2683 = vmatprep.subr.mxu0 0.0
    %2684 = vmatpush2.msra.mxu0 0.0
    %2685 = vmatprep.subr.mxu0 0.0
    %2686 = vmatpush2.msra.mxu0 0.0
    %2687 = vmatprep.subr.mxu0 0.0
    %2688 = vmatpush2.msra.mxu0 0.0
    %2689 = vmatprep.subr.mxu0 0.0
    %2690 = vmatpush2.msra.mxu0 0.0
    %2691 = vmatprep.subr.mxu0 0.0
    %2692 = vmatpush2.msra.mxu0 0.0
    %2693 = vmatprep.subr.mxu0 0.0
    %2694 = vmatpush2.msra.mxu0 0.0
    %2695 = vmatprep.subr.mxu0 0.0
    %2696 = vmatpush2.msra.mxu0 0.0
    %2697 = vmatprep.subr.mxu0 0.0
    %2698 = vmatpush2.msra.mxu0 0.0
    %2699 = vmatprep.subr.mxu0 0.0
    %2700 = vmatpush2.msra.mxu0 0.0
    %2701 = vmatprep.subr.mxu0 0.0
    %2702 = vmatpush2.msra.mxu0 0.0
    %2703 = vmatprep.subr.mxu0 0.0
    %2704 = vmatpush2.msra.mxu0 0.0
    %2705 = vmatprep.mubr.f32.mxu0 0.0
    %2706 = vmatmul.mubr.f32.gmra.mxu0 %v262
    %v2707 = vpop.f32.mrf.mxu0
    %v2708 = vadd.f32 0.0, %v2707
    %v2709 = vpop.f32.mrf.mxu0
    %2710 = vmatprep.mubr.f32.mxu0 0.0
    %2711 = vmatmul.mubr.f32.gmra.mxu0 %v265
    %v2712 = vpop.f32.mrf.mxu0
    %v2713 = vadd.f32 0.0, %v2712
    %v2714 = vpop.f32.mrf.mxu0
    %2715 = vdwg.mxu0
    %v2717 = vsel %vm178, %v2708, 0
    %v2720 = vsel %vm178, %v2713, 0
    %2722 = vmatprep.subr.mxu0 0.0
    %2723 = vmatpush1.msra.mxu0 0.0
    %2724 = vmatprep.subr.mxu0 0.0
    %2725 = vmatpush1.msra.mxu0 0.0
    %2726 = vmatprep.subr.mxu0 0.0
    %2727 = vmatpush1.msra.mxu0 0.0
    %2728 = vmatprep.subr.mxu0 0.0
    %2729 = vmatpush1.msra.mxu0 0.0
    %2730 = vmatprep.subr.mxu0 0.0
    %2731 = vmatpush1.msra.mxu0 0.0
    %2732 = vmatprep.subr.mxu0 0.0
    %2733 = vmatpush1.msra.mxu0 0.0
    %2734 = vmatprep.subr.mxu0 0.0
    %2735 = vmatpush1.msra.mxu0 0.0
    %2736 = vmatprep.subr.mxu0 0.0
    %2737 = vmatpush1.msra.mxu0 0.0
    %2738 = vmatprep.subr.mxu0 0.0
    %2739 = vmatpush1.msra.mxu0 0.0
    %2740 = vmatprep.subr.mxu0 0.0
    %2741 = vmatpush1.msra.mxu0 0.0
    %2742 = vmatprep.subr.mxu0 0.0
    %2743 = vmatpush1.msra.mxu0 0.0
    %2744 = vmatprep.subr.mxu0 0.0
    %2745 = vmatpush1.msra.mxu0 0.0
    %2746 = vmatprep.subr.mxu0 0.0
    %2747 = vmatpush1.msra.mxu0 %v146
    %2748 = vmatprep.subr.mxu0 0.0
    %2749 = vmatpush1.msra.mxu0 %v145
    %2750 = vmatprep.subr.mxu0 0.0
    %2751 = vmatpush1.msra.mxu0 %v144
    %2752 = vmatprep.subr.mxu0 0.0
    %2753 = vmatpush1.msra.mxu0 %v143
    %2754 = vmatprep.subr.mxu0 0.0
    %2755 = vmatpush2.msra.mxu0 0.0
    %2756 = vmatprep.subr.mxu0 0.0
    %2757 = vmatpush2.msra.mxu0 0.0
    %2758 = vmatprep.subr.mxu0 0.0
    %2759 = vmatpush2.msra.mxu0 0.0
    %2760 = vmatprep.subr.mxu0 0.0
    %2761 = vmatpush2.msra.mxu0 0.0
    %2762 = vmatprep.subr.mxu0 0.0
    %2763 = vmatpush2.msra.mxu0 0.0
    %2764 = vmatprep.subr.mxu0 0.0
    %2765 = vmatpush2.msra.mxu0 0.0
    %2766 = vmatprep.subr.mxu0 0.0
    %2767 = vmatpush2.msra.mxu0 0.0
    %2768 = vmatprep.subr.mxu0 0.0
    %2769 = vmatpush2.msra.mxu0 0.0
    %2770 = vmatprep.subr.mxu0 0.0
    %2771 = vmatpush2.msra.mxu0 0.0
    %2772 = vmatprep.subr.mxu0 0.0
    %2773 = vmatpush2.msra.mxu0 0.0
    %2774 = vmatprep.subr.mxu0 0.0
    %2775 = vmatpush2.msra.mxu0 0.0
    %2776 = vmatprep.subr.mxu0 0.0
    %2777 = vmatpush2.msra.mxu0 0.0
    %2778 = vmatprep.subr.mxu0 0.0
    %2779 = vmatpush2.msra.mxu0 0.0
    %2780 = vmatprep.subr.mxu0 0.0
    %2781 = vmatpush2.msra.mxu0 0.0
    %2782 = vmatprep.subr.mxu0 0.0
    %2783 = vmatpush2.msra.mxu0 0.0
    %2784 = vmatprep.subr.mxu0 0.0
    %2785 = vmatpush2.msra.mxu0 0.0
    %2786 = vmatprep.mubr.f32.mxu0 0.0
    %2787 = vmatmul.mubr.f32.gmra.mxu0 %v2717
    %v2788 = vpop.f32.mrf.mxu0
    %v2789 = vadd.f32 0.0, %v2788
    %v2790 = vpop.f32.mrf.mxu0
    %2791 = vmatprep.mubr.f32.mxu0 0.0
    %2792 = vmatmul.mubr.f32.gmra.mxu0 %v2720
    %v2793 = vpop.f32.mrf.mxu0
    %v2794 = vadd.f32 0.0, %v2793
    %v2795 = vpop.f32.mrf.mxu0
    %2796 = vdwg.mxu0
    %v2797 = vadd.f32 %v252, %v2789
    %v2798 = vadd.f32 %v257, %v2794
    %v2799 = vtanh.pop %v2797
    %v2800 = vtanh.pop %v2798
    %v2801 = vsel %vm178, %v2799, 0.0
    %2802 = vadd.xlane.f32.xlu0 %v2801
    %v2803 = vpop.xlane.xlu0 %2802
    %v2804 = vsel %vm178, %v2800, 0.0
    %2805 = vadd.xlane.f32.xlu0 %v2804
    %v2806 = vpop.xlane.xlu0 %2805
    %v2807 = vmul.f32 %v2803, %v437
    %v2808 = vmul.f32 %v2806, %v437
    %v2809 = vsub.f32 %v2799, %v2807
    %v2810 = vsub.f32 %v2800, %v2808
    %v2811 = vmul.f32 %v2809, %v2809
    %v2812 = vmul.f32 %v2810, %v2810
    %v2813 = vsel %vm178, %v2811, 0.0
    %2814 = vadd.xlane.f32.xlu0 %v2813
    %v2815 = vpop.xlane.xlu0 %2814
    %v2816 = vsel %vm178, %v2812, 0.0
    %2817 = vadd.xlane.f32.xlu0 %v2816
    %v2818 = vpop.xlane.xlu0 %2817
    %v2819 = vmul.f32 %v2815, %v437
    %v2820 = vmul.f32 %v2818, %v437
    %v2821 = vadd.f32 %v2819, 1e-05
    %v2822 = vadd.f32 %v2820, 1e-05
    %v2823 = vrsqrt.pop %v2821
    %v2824 = vrsqrt.pop %v2822
    %v2825 = vmul.f32 %v2809, %v2823
    %v2826 = vmul.f32 %v2810, %v2824
    %v2827 = vmul.f32 %v2825, %v462
    %v2828 = vmul.f32 %v2826, %v462
    %v2829 = vadd.f32 %v2827, %v470
    %v2830 = vadd.f32 %v2828, %v470
    %v2832 = vsel %vm178, %v2829, 0
    %v2835 = vsel %vm178, %v2830, 0
    %2837 = vmatprep.subr.mxu0 0.0
    %2838 = vmatpush1.msra.mxu0 0.0
    %2839 = vmatprep.subr.mxu0 0.0
    %2840 = vmatpush1.msra.mxu0 0.0
    %2841 = vmatprep.subr.mxu0 0.0
    %2842 = vmatpush1.msra.mxu0 0.0
    %2843 = vmatprep.subr.mxu0 0.0
    %2844 = vmatpush1.msra.mxu0 0.0
    %2845 = vmatprep.subr.mxu0 0.0
    %2846 = vmatpush1.msra.mxu0 0.0
    %2847 = vmatprep.subr.mxu0 0.0
    %2848 = vmatpush1.msra.mxu0 0.0
    %2849 = vmatprep.subr.mxu0 0.0
    %2850 = vmatpush1.msra.mxu0 0.0
    %2851 = vmatprep.subr.mxu0 0.0
    %2852 = vmatpush1.msra.mxu0 0.0
    %2853 = vmatprep.subr.mxu0 0.0
    %2854 = vmatpush1.msra.mxu0 0.0
    %2855 = vmatprep.subr.mxu0 0.0
    %2856 = vmatpush1.msra.mxu0 0.0
    %2857 = vmatprep.subr.mxu0 0.0
    %2858 = vmatpush1.msra.mxu0 0.0
    %2859 = vmatprep.subr.mxu0 0.0
    %2860 = vmatpush1.msra.mxu0 0.0
    %2861 = vmatprep.subr.mxu0 0.0
    %2862 = vmatpush1.msra.mxu0 %v154
    %2863 = vmatprep.subr.mxu0 0.0
    %2864 = vmatpush1.msra.mxu0 %v153
    %2865 = vmatprep.subr.mxu0 0.0
    %2866 = vmatpush1.msra.mxu0 %v152
    %2867 = vmatprep.subr.mxu0 0.0
    %2868 = vmatpush1.msra.mxu0 %v151
    %2869 = vmatprep.subr.mxu0 0.0
    %2870 = vmatpush2.msra.mxu0 0.0
    %2871 = vmatprep.subr.mxu0 0.0
    %2872 = vmatpush2.msra.mxu0 0.0
    %2873 = vmatprep.subr.mxu0 0.0
    %2874 = vmatpush2.msra.mxu0 0.0
    %2875 = vmatprep.subr.mxu0 0.0
    %2876 = vmatpush2.msra.mxu0 0.0
    %2877 = vmatprep.subr.mxu0 0.0
    %2878 = vmatpush2.msra.mxu0 0.0
    %2879 = vmatprep.subr.mxu0 0.0
    %2880 = vmatpush2.msra.mxu0 0.0
    %2881 = vmatprep.subr.mxu0 0.0
    %2882 = vmatpush2.msra.mxu0 0.0
    %2883 = vmatprep.subr.mxu0 0.0
    %2884 = vmatpush2.msra.mxu0 0.0
    %2885 = vmatprep.subr.mxu0 0.0
    %2886 = vmatpush2.msra.mxu0 0.0
    %2887 = vmatprep.subr.mxu0 0.0
    %2888 = vmatpush2.msra.mxu0 0.0
    %2889 = vmatprep.subr.mxu0 0.0
    %2890 = vmatpush2.msra.mxu0 0.0
    %2891 = vmatprep.subr.mxu0 0.0
    %2892 = vmatpush2.msra.mxu0 0.0
    %2893 = vmatprep.subr.mxu0 0.0
    %2894 = vmatpush2.msra.mxu0 0.0
    %2895 = vmatprep.subr.mxu0 0.0
    %2896 = vmatpush2.msra.mxu0 0.0
    %2897 = vmatprep.subr.mxu0 0.0
    %2898 = vmatpush2.msra.mxu0 0.0
    %2899 = vmatprep.subr.mxu0 0.0
    %2900 = vmatpush2.msra.mxu0 0.0
    %2901 = vmatprep.mubr.f32.mxu0 0.0
    %2902 = vmatmul.mubr.f32.gmra.mxu0 %v2832
    %v2903 = vpop.f32.mrf.mxu0
    %v2904 = vadd.f32 %v478, %v2903
    %v2905 = vpop.f32.mrf.mxu0
    %2906 = vmatprep.mubr.f32.mxu0 0.0
    %2907 = vmatmul.mubr.f32.gmra.mxu0 %v2835
    %v2908 = vpop.f32.mrf.mxu0
    %v2909 = vadd.f32 %v478, %v2908
    %v2910 = vpop.f32.mrf.mxu0
    %2911 = vdwg.mxu0
    %v2912 = vtanh.pop %v2904
    %v2913 = vtanh.pop %v2909
    %v2914 = vsel %vm563, %v2912, 0.0
    %2915 = vadd.xlane.f32.xlu0 %v2914
    %v2916 = vpop.xlane.xlu0 %2915
    %v2917 = vsel %vm563, %v2913, 0.0
    %2918 = vadd.xlane.f32.xlu0 %v2917
    %v2919 = vpop.xlane.xlu0 %2918
    %v2920 = vmul.f32 %v2916, %v570
    %v2921 = vmul.f32 %v2919, %v570
    %v2922 = vsub.f32 %v2912, %v2920
    %v2923 = vsub.f32 %v2913, %v2921
    %v2924 = vmul.f32 %v2922, %v2922
    %v2925 = vmul.f32 %v2923, %v2923
    %v2926 = vsel %vm563, %v2924, 0.0
    %2927 = vadd.xlane.f32.xlu0 %v2926
    %v2928 = vpop.xlane.xlu0 %2927
    %v2929 = vsel %vm563, %v2925, 0.0
    %2930 = vadd.xlane.f32.xlu0 %v2929
    %v2931 = vpop.xlane.xlu0 %2930
    %v2932 = vmul.f32 %v2928, %v570
    %v2933 = vmul.f32 %v2931, %v570
    %v2934 = vadd.f32 %v2932, 1e-05
    %v2935 = vadd.f32 %v2933, 1e-05
    %v2936 = vrsqrt.pop %v2934
    %v2937 = vrsqrt.pop %v2935
    %v2938 = vmul.f32 %v2922, %v2936
    %v2939 = vmul.f32 %v2923, %v2937
    %v2940 = vmul.f32 %v2938, %v595
    %v2941 = vmul.f32 %v2939, %v595
    %v2942 = vadd.f32 %v2940, %v603
    %v2943 = vadd.f32 %v2941, %v603
    %v2945 = vsel %vm563, %v2942, 0
    %v2948 = vsel %vm563, %v2943, 0
    %2950 = vmatprep.subr.mxu0 0.0
    %2951 = vmatpush1.msra.mxu0 0.0
    %2952 = vmatprep.subr.mxu0 0.0
    %2953 = vmatpush1.msra.mxu0 0.0
    %2954 = vmatprep.subr.mxu0 0.0
    %2955 = vmatpush1.msra.mxu0 0.0
    %2956 = vmatprep.subr.mxu0 0.0
    %2957 = vmatpush1.msra.mxu0 0.0
    %2958 = vmatprep.subr.mxu0 0.0
    %2959 = vmatpush1.msra.mxu0 0.0
    %2960 = vmatprep.subr.mxu0 0.0
    %2961 = vmatpush1.msra.mxu0 0.0
    %2962 = vmatprep.subr.mxu0 0.0
    %2963 = vmatpush1.msra.mxu0 0.0
    %2964 = vmatprep.subr.mxu0 0.0
    %2965 = vmatpush1.msra.mxu0 0.0
    %2966 = vmatprep.subr.mxu0 0.0
    %2967 = vmatpush1.msra.mxu0 0.0
    %2968 = vmatprep.subr.mxu0 0.0
    %2969 = vmatpush1.msra.mxu0 0.0
    %2970 = vmatprep.subr.mxu0 0.0
    %2971 = vmatpush1.msra.mxu0 0.0
    %2972 = vmatprep.subr.mxu0 0.0
    %2973 = vmatpush1.msra.mxu0 0.0
    %2974 = vmatprep.subr.mxu0 0.0
    %2975 = vmatpush1.msra.mxu0 0.0
    %2976 = vmatprep.subr.mxu0 0.0
    %2977 = vmatpush1.msra.mxu0 0.0
    %2978 = vmatprep.subr.mxu0 0.0
    %2979 = vmatpush1.msra.mxu0 %v158
    %2980 = vmatprep.subr.mxu0 0.0
    %2981 = vmatpush1.msra.mxu0 %v157
    %2982 = vmatprep.subr.mxu0 0.0
    %2983 = vmatpush2.msra.mxu0 0.0
    %2984 = vmatprep.subr.mxu0 0.0
    %2985 = vmatpush2.msra.mxu0 0.0
    %2986 = vmatprep.subr.mxu0 0.0
    %2987 = vmatpush2.msra.mxu0 0.0
    %2988 = vmatprep.subr.mxu0 0.0
    %2989 = vmatpush2.msra.mxu0 0.0
    %2990 = vmatprep.subr.mxu0 0.0
    %2991 = vmatpush2.msra.mxu0 0.0
    %2992 = vmatprep.subr.mxu0 0.0
    %2993 = vmatpush2.msra.mxu0 0.0
    %2994 = vmatprep.subr.mxu0 0.0
    %2995 = vmatpush2.msra.mxu0 0.0
    %2996 = vmatprep.subr.mxu0 0.0
    %2997 = vmatpush2.msra.mxu0 0.0
    %2998 = vmatprep.subr.mxu0 0.0
    %2999 = vmatpush2.msra.mxu0 0.0
    %3000 = vmatprep.subr.mxu0 0.0
    %3001 = vmatpush2.msra.mxu0 0.0
    %3002 = vmatprep.subr.mxu0 0.0
    %3003 = vmatpush2.msra.mxu0 0.0
    %3004 = vmatprep.subr.mxu0 0.0
    %3005 = vmatpush2.msra.mxu0 0.0
    %3006 = vmatprep.subr.mxu0 0.0
    %3007 = vmatpush2.msra.mxu0 0.0
    %3008 = vmatprep.subr.mxu0 0.0
    %3009 = vmatpush2.msra.mxu0 0.0
    %3010 = vmatprep.subr.mxu0 0.0
    %3011 = vmatpush2.msra.mxu0 0.0
    %3012 = vmatprep.subr.mxu0 0.0
    %3013 = vmatpush2.msra.mxu0 0.0
    %3014 = vmatprep.mubr.f32.mxu0 0.0
    %3015 = vmatmul.mubr.f32.gmra.mxu0 %v2945
    %v3016 = vpop.f32.mrf.mxu0
    %v3017 = vadd.f32 %v611, %v3016
    %v3018 = vpop.f32.mrf.mxu0
    %3019 = vmatprep.mubr.f32.mxu0 0.0
    %3020 = vmatmul.mubr.f32.gmra.mxu0 %v2948
    %v3021 = vpop.f32.mrf.mxu0
    %v3022 = vadd.f32 %v611, %v3021
    %v3023 = vpop.f32.mrf.mxu0
    %3024 = vdwg.mxu0
    %v3025 = vmul.f32 %v3017, 0.2
    %v3026 = vmul.f32 %v3022, 0.2
    %v3028 = vsel %vm696, %v3025, 0
    %v3031 = vsel %vm696, %v3026, 0
    %3033 = vmatprep.subr.mxu0 0.0
    %3034 = vmatpush1.msra.mxu0 0.0
    %3035 = vmatprep.subr.mxu0 0.0
    %3036 = vmatpush1.msra.mxu0 0.0
    %3037 = vmatprep.subr.mxu0 0.0
    %3038 = vmatpush1.msra.mxu0 0.0
    %3039 = vmatprep.subr.mxu0 0.0
    %3040 = vmatpush1.msra.mxu0 0.0
    %3041 = vmatprep.subr.mxu0 0.0
    %3042 = vmatpush1.msra.mxu0 0.0
    %3043 = vmatprep.subr.mxu0 0.0
    %3044 = vmatpush1.msra.mxu0 0.0
    %3045 = vmatprep.subr.mxu0 0.0
    %3046 = vmatpush1.msra.mxu0 0.0
    %3047 = vmatprep.subr.mxu0 0.0
    %3048 = vmatpush1.msra.mxu0 0.0
    %3049 = vmatprep.subr.mxu0 0.0
    %3050 = vmatpush1.msra.mxu0 0.0
    %3051 = vmatprep.subr.mxu0 0.0
    %3052 = vmatpush1.msra.mxu0 0.0
    %3053 = vmatprep.subr.mxu0 0.0
    %3054 = vmatpush1.msra.mxu0 0.0
    %3055 = vmatprep.subr.mxu0 0.0
    %3056 = vmatpush1.msra.mxu0 0.0
    %3057 = vmatprep.subr.mxu0 0.0
    %3058 = vmatpush1.msra.mxu0 0.0
    %3059 = vmatprep.subr.mxu0 0.0
    %3060 = vmatpush1.msra.mxu0 0.0
    %3061 = vmatprep.subr.mxu0 0.0
    %3062 = vmatpush1.msra.mxu0 %v704
    %3063 = vmatprep.subr.mxu0 0.0
    %3064 = vmatpush1.msra.mxu0 %v159
    %3065 = vmatprep.subr.mxu0 0.0
    %3066 = vmatpush2.msra.mxu0 0.0
    %3067 = vmatprep.subr.mxu0 0.0
    %3068 = vmatpush2.msra.mxu0 0.0
    %3069 = vmatprep.subr.mxu0 0.0
    %3070 = vmatpush2.msra.mxu0 0.0
    %3071 = vmatprep.subr.mxu0 0.0
    %3072 = vmatpush2.msra.mxu0 0.0
    %3073 = vmatprep.subr.mxu0 0.0
    %3074 = vmatpush2.msra.mxu0 0.0
    %3075 = vmatprep.subr.mxu0 0.0
    %3076 = vmatpush2.msra.mxu0 0.0
    %3077 = vmatprep.subr.mxu0 0.0
    %3078 = vmatpush2.msra.mxu0 0.0
    %3079 = vmatprep.subr.mxu0 0.0
    %3080 = vmatpush2.msra.mxu0 0.0
    %3081 = vmatprep.subr.mxu0 0.0
    %3082 = vmatpush2.msra.mxu0 0.0
    %3083 = vmatprep.subr.mxu0 0.0
    %3084 = vmatpush2.msra.mxu0 0.0
    %3085 = vmatprep.subr.mxu0 0.0
    %3086 = vmatpush2.msra.mxu0 0.0
    %3087 = vmatprep.subr.mxu0 0.0
    %3088 = vmatpush2.msra.mxu0 0.0
    %3089 = vmatprep.subr.mxu0 0.0
    %3090 = vmatpush2.msra.mxu0 0.0
    %3091 = vmatprep.subr.mxu0 0.0
    %3092 = vmatpush2.msra.mxu0 0.0
    %3093 = vmatprep.subr.mxu0 0.0
    %3094 = vmatpush2.msra.mxu0 0.0
    %3095 = vmatprep.subr.mxu0 0.0
    %3096 = vmatpush2.msra.mxu0 0.0
    %3097 = vmatprep.mubr.f32.mxu0 0.0
    %3098 = vmatmul.mubr.f32.gmra.mxu0 %v3028
    %v3099 = vpop.f32.mrf.mxu0
    %v3100 = vadd.f32 0.0, %v3099
    %v3101 = vpop.f32.mrf.mxu0
    %3102 = vmatprep.mubr.f32.mxu0 0.0
    %3103 = vmatmul.mubr.f32.gmra.mxu0 %v3031
    %v3104 = vpop.f32.mrf.mxu0
    %v3105 = vadd.f32 0.0, %v3104
    %v3106 = vpop.f32.mrf.mxu0
    %3107 = vdwg.mxu0
    %v3108 = vmul.f32 %v3100, %v595
    %v3109 = vmul.f32 %v3105, %v595
    %v3110 = vsel %vm563, %v3108, 0.0
    %3111 = vadd.xlane.f32.xlu0 %v3110
    %v3112 = vpop.xlane.xlu0 %3111
    %v3113 = vsel %vm563, %v3109, 0.0
    %3114 = vadd.xlane.f32.xlu0 %v3113
    %v3115 = vpop.xlane.xlu0 %3114
    %v3116 = vmul.f32 %v3112, %v570
    %v3117 = vmul.f32 %v3115, %v570
    %v3118 = vmul.f32 %v3108, %v2938
    %v3119 = vmul.f32 %v3109, %v2939
    %v3120 = vsel %vm563, %v3118, 0.0
    %3121 = vadd.xlane.f32.xlu0 %v3120
    %v3122 = vpop.xlane.xlu0 %3121
    %v3123 = vsel %vm563, %v3119, 0.0
    %3124 = vadd.xlane.f32.xlu0 %v3123
    %v3125 = vpop.xlane.xlu0 %3124
    %v3126 = vmul.f32 %v3122, %v570
    %v3127 = vmul.f32 %v3125, %v570
    %v3128 = vsub.f32 %v3108, %v3116
    %v3129 = vsub.f32 %v3109, %v3117
    %v3130 = vmul.f32 %v2938, %v3126
    %v3131 = vmul.f32 %v2939, %v3127
    %v3132 = vsub.f32 %v3128, %v3130
    %v3133 = vsub.f32 %v3129, %v3131
    %v3134 = vmul.f32 %v2936, %v3132
    %v3135 = vmul.f32 %v2937, %v3133
    %v3136 = vmul.f32 %v2912, %v2912
    %v3137 = vmul.f32 %v2913, %v2913
    %v3138 = vsub.f32 1.0, %v3136
    %v3139 = vsub.f32 1.0, %v3137
    %v3140 = vmul.f32 %v3134, %v3138
    %v3141 = vmul.f32 %v3135, %v3139
    %v3143 = vsel %vm563, %v3140, 0
    %v3146 = vsel %vm563, %v3141, 0
    %3148 = vmatprep.subr.mxu0 0.0
    %3149 = vmatpush1.msra.mxu0 0.0
    %3150 = vmatprep.subr.mxu0 0.0
    %3151 = vmatpush1.msra.mxu0 0.0
    %3152 = vmatprep.subr.mxu0 0.0
    %3153 = vmatpush1.msra.mxu0 0.0
    %3154 = vmatprep.subr.mxu0 0.0
    %3155 = vmatpush1.msra.mxu0 0.0
    %3156 = vmatprep.subr.mxu0 0.0
    %3157 = vmatpush1.msra.mxu0 0.0
    %3158 = vmatprep.subr.mxu0 0.0
    %3159 = vmatpush1.msra.mxu0 0.0
    %3160 = vmatprep.subr.mxu0 0.0
    %3161 = vmatpush1.msra.mxu0 0.0
    %3162 = vmatprep.subr.mxu0 0.0
    %3163 = vmatpush1.msra.mxu0 0.0
    %3164 = vmatprep.subr.mxu0 0.0
    %3165 = vmatpush1.msra.mxu0 0.0
    %3166 = vmatprep.subr.mxu0 0.0
    %3167 = vmatpush1.msra.mxu0 0.0
    %3168 = vmatprep.subr.mxu0 0.0
    %3169 = vmatpush1.msra.mxu0 0.0
    %3170 = vmatprep.subr.mxu0 0.0
    %3171 = vmatpush1.msra.mxu0 0.0
    %3172 = vmatprep.subr.mxu0 0.0
    %3173 = vmatpush1.msra.mxu0 0.0
    %3174 = vmatprep.subr.mxu0 0.0
    %3175 = vmatpush1.msra.mxu0 0.0
    %3176 = vmatprep.subr.mxu0 0.0
    %3177 = vmatpush1.msra.mxu0 %v156
    %3178 = vmatprep.subr.mxu0 0.0
    %3179 = vmatpush1.msra.mxu0 %v155
    %3180 = vmatprep.subr.mxu0 0.0
    %3181 = vmatpush2.msra.mxu0 0.0
    %3182 = vmatprep.subr.mxu0 0.0
    %3183 = vmatpush2.msra.mxu0 0.0
    %3184 = vmatprep.subr.mxu0 0.0
    %3185 = vmatpush2.msra.mxu0 0.0
    %3186 = vmatprep.subr.mxu0 0.0
    %3187 = vmatpush2.msra.mxu0 0.0
    %3188 = vmatprep.subr.mxu0 0.0
    %3189 = vmatpush2.msra.mxu0 0.0
    %3190 = vmatprep.subr.mxu0 0.0
    %3191 = vmatpush2.msra.mxu0 0.0
    %3192 = vmatprep.subr.mxu0 0.0
    %3193 = vmatpush2.msra.mxu0 0.0
    %3194 = vmatprep.subr.mxu0 0.0
    %3195 = vmatpush2.msra.mxu0 0.0
    %3196 = vmatprep.subr.mxu0 0.0
    %3197 = vmatpush2.msra.mxu0 0.0
    %3198 = vmatprep.subr.mxu0 0.0
    %3199 = vmatpush2.msra.mxu0 0.0
    %3200 = vmatprep.subr.mxu0 0.0
    %3201 = vmatpush2.msra.mxu0 0.0
    %3202 = vmatprep.subr.mxu0 0.0
    %3203 = vmatpush2.msra.mxu0 0.0
    %3204 = vmatprep.subr.mxu0 0.0
    %3205 = vmatpush2.msra.mxu0 0.0
    %3206 = vmatprep.subr.mxu0 0.0
    %3207 = vmatpush2.msra.mxu0 0.0
    %3208 = vmatprep.subr.mxu0 0.0
    %3209 = vmatpush2.msra.mxu0 0.0
    %3210 = vmatprep.subr.mxu0 0.0
    %3211 = vmatpush2.msra.mxu0 0.0
    %3212 = vmatprep.mubr.f32.mxu0 0.0
    %3213 = vmatmul.mubr.f32.gmra.mxu0 %v3143
    %v3214 = vpop.f32.mrf.mxu0
    %v3215 = vadd.f32 0.0, %v3214
    %v3216 = vpop.f32.mrf.mxu0
    %3217 = vmatprep.mubr.f32.mxu0 0.0
    %3218 = vmatmul.mubr.f32.gmra.mxu0 %v3146
    %v3219 = vpop.f32.mrf.mxu0
    %v3220 = vadd.f32 0.0, %v3219
    %v3221 = vpop.f32.mrf.mxu0
    %3222 = vdwg.mxu0
    %v3223 = vmul.f32 %v3215, %v462
    %v3224 = vmul.f32 %v3220, %v462
    %v3225 = vsel %vm178, %v3223, 0.0
    %3226 = vadd.xlane.f32.xlu0 %v3225
    %v3227 = vpop.xlane.xlu0 %3226
    %v3228 = vsel %vm178, %v3224, 0.0
    %3229 = vadd.xlane.f32.xlu0 %v3228
    %v3230 = vpop.xlane.xlu0 %3229
    %v3231 = vmul.f32 %v3227, %v437
    %v3232 = vmul.f32 %v3230, %v437
    %v3233 = vmul.f32 %v3223, %v2825
    %v3234 = vmul.f32 %v3224, %v2826
    %v3235 = vsel %vm178, %v3233, 0.0
    %3236 = vadd.xlane.f32.xlu0 %v3235
    %v3237 = vpop.xlane.xlu0 %3236
    %v3238 = vsel %vm178, %v3234, 0.0
    %3239 = vadd.xlane.f32.xlu0 %v3238
    %v3240 = vpop.xlane.xlu0 %3239
    %v3241 = vmul.f32 %v3237, %v437
    %v3242 = vmul.f32 %v3240, %v437
    %v3243 = vsub.f32 %v3223, %v3231
    %v3244 = vsub.f32 %v3224, %v3232
    %v3245 = vmul.f32 %v2825, %v3241
    %v3246 = vmul.f32 %v2826, %v3242
    %v3247 = vsub.f32 %v3243, %v3245
    %v3248 = vsub.f32 %v3244, %v3246
    %v3249 = vmul.f32 %v2823, %v3247
    %v3250 = vmul.f32 %v2824, %v3248
    %v3251 = vmul.f32 %v2799, %v2799
    %v3252 = vmul.f32 %v2800, %v2800
    %v3253 = vsub.f32 1.0, %v3251
    %v3254 = vsub.f32 1.0, %v3252
    %v3255 = vmul.f32 %v3249, %v3253
    %v3256 = vmul.f32 %v3250, %v3254
    %v3258 = vsel %vm178, %v3255, 0
    %v3261 = vsel %vm178, %v3256, 0
    %3263 = vmatprep.subr.mxu0 0.0
    %3264 = vmatpush1.msra.mxu0 0.0
    %3265 = vmatprep.subr.mxu0 0.0
    %3266 = vmatpush1.msra.mxu0 0.0
    %3267 = vmatprep.subr.mxu0 0.0
    %3268 = vmatpush1.msra.mxu0 0.0
    %3269 = vmatprep.subr.mxu0 0.0
    %3270 = vmatpush1.msra.mxu0 0.0
    %3271 = vmatprep.subr.mxu0 0.0
    %3272 = vmatpush1.msra.mxu0 0.0
    %3273 = vmatprep.subr.mxu0 0.0
    %3274 = vmatpush1.msra.mxu0 0.0
    %3275 = vmatprep.subr.mxu0 0.0
    %3276 = vmatpush1.msra.mxu0 0.0
    %3277 = vmatprep.subr.mxu0 0.0
    %3278 = vmatpush1.msra.mxu0 0.0
    %3279 = vmatprep.subr.mxu0 0.0
    %3280 = vmatpush1.msra.mxu0 0.0
    %3281 = vmatprep.subr.mxu0 0.0
    %3282 = vmatpush1.msra.mxu0 0.0
    %3283 = vmatprep.subr.mxu0 0.0
    %3284 = vmatpush1.msra.mxu0 0.0
    %3285 = vmatprep.subr.mxu0 0.0
    %3286 = vmatpush1.msra.mxu0 0.0
    %3287 = vmatprep.subr.mxu0 0.0
    %3288 = vmatpush1.msra.mxu0 %v150
    %3289 = vmatprep.subr.mxu0 0.0
    %3290 = vmatpush1.msra.mxu0 %v149
    %3291 = vmatprep.subr.mxu0 0.0
    %3292 = vmatpush1.msra.mxu0 %v148
    %3293 = vmatprep.subr.mxu0 0.0
    %3294 = vmatpush1.msra.mxu0 %v147
    %3295 = vmatprep.subr.mxu0 0.0
    %3296 = vmatpush2.msra.mxu0 0.0
    %3297 = vmatprep.subr.mxu0 0.0
    %3298 = vmatpush2.msra.mxu0 0.0
    %3299 = vmatprep.subr.mxu0 0.0
    %3300 = vmatpush2.msra.mxu0 0.0
    %3301 = vmatprep.subr.mxu0 0.0
    %3302 = vmatpush2.msra.mxu0 0.0
    %3303 = vmatprep.subr.mxu0 0.0
    %3304 = vmatpush2.msra.mxu0 0.0
    %3305 = vmatprep.subr.mxu0 0.0
    %3306 = vmatpush2.msra.mxu0 0.0
    %3307 = vmatprep.subr.mxu0 0.0
    %3308 = vmatpush2.msra.mxu0 0.0
    %3309 = vmatprep.subr.mxu0 0.0
    %3310 = vmatpush2.msra.mxu0 0.0
    %3311 = vmatprep.subr.mxu0 0.0
    %3312 = vmatpush2.msra.mxu0 0.0
    %3313 = vmatprep.subr.mxu0 0.0
    %3314 = vmatpush2.msra.mxu0 0.0
    %3315 = vmatprep.subr.mxu0 0.0
    %3316 = vmatpush2.msra.mxu0 0.0
    %3317 = vmatprep.subr.mxu0 0.0
    %3318 = vmatpush2.msra.mxu0 0.0
    %3319 = vmatprep.subr.mxu0 0.0
    %3320 = vmatpush2.msra.mxu0 0.0
    %3321 = vmatprep.subr.mxu0 0.0
    %3322 = vmatpush2.msra.mxu0 0.0
    %3323 = vmatprep.subr.mxu0 0.0
    %3324 = vmatpush2.msra.mxu0 0.0
    %3325 = vmatprep.subr.mxu0 0.0
    %3326 = vmatpush2.msra.mxu0 0.0
    %3327 = vmatprep.mubr.f32.mxu0 0.0
    %3328 = vmatmul.mubr.f32.gmra.mxu0 %v3258
    %v3329 = vpop.f32.mrf.mxu0
    %v3330 = vadd.f32 0.0, %v3329
    %v3331 = vpop.f32.mrf.mxu0
    %3332 = vmatprep.mubr.f32.mxu0 0.0
    %3333 = vmatmul.mubr.f32.gmra.mxu0 %v3261
    %v3334 = vpop.f32.mrf.mxu0
    %v3335 = vadd.f32 0.0, %v3334
    %v3336 = vpop.f32.mrf.mxu0
    %3337 = vdwg.mxu0
    %v3338 = vmul.f32 %v2637, 6.25e-05
    %3339 = vmatprep.subr.mxu0 0.0
    %3340 = vmatpush1.msra.mxu0 0.0
    %3341 = vmatprep.subr.mxu0 0.0
    %3342 = vmatpush1.msra.mxu0 0.0
    %3343 = vmatprep.subr.mxu0 0.0
    %3344 = vmatpush1.msra.mxu0 0.0
    %3345 = vmatprep.subr.mxu0 0.0
    %3346 = vmatpush1.msra.mxu0 0.0
    %3347 = vmatprep.subr.mxu0 0.0
    %3348 = vmatpush1.msra.mxu0 0.0
    %3349 = vmatprep.subr.mxu0 0.0
    %3350 = vmatpush1.msra.mxu0 0.0
    %3351 = vmatprep.subr.mxu0 0.0
    %3352 = vmatpush1.msra.mxu0 0.0
    %3353 = vmatprep.subr.mxu0 0.0
    %3354 = vmatpush1.msra.mxu0 0.0
    %3355 = vmatprep.subr.mxu0 0.0
    %3356 = vmatpush1.msra.mxu0 0.0
    %3357 = vmatprep.subr.mxu0 0.0
    %3358 = vmatpush1.msra.mxu0 0.0
    %3359 = vmatprep.subr.mxu0 0.0
    %3360 = vmatpush1.msra.mxu0 0.0
    %3361 = vmatprep.subr.mxu0 0.0
    %3362 = vmatpush1.msra.mxu0 0.0
    %3363 = vmatprep.subr.mxu0 0.0
    %3364 = vmatpush1.msra.mxu0 0.0
    %3365 = vmatprep.subr.mxu0 0.0
    %3366 = vmatpush1.msra.mxu0 0.0
    %3367 = vmatprep.subr.mxu0 0.0
    %3368 = vmatpush1.msra.mxu0 %v3335
    %3369 = vmatprep.subr.mxu0 0.0
    %3370 = vmatpush1.msra.mxu0 %v3330
    %3371 = vmatprep.subr.mxu0 0.0
    %3372 = vmatpush2.msra.mxu0 0.0
    %3373 = vmatprep.subr.mxu0 0.0
    %3374 = vmatpush2.msra.mxu0 0.0
    %3375 = vmatprep.subr.mxu0 0.0
    %3376 = vmatpush2.msra.mxu0 0.0
    %3377 = vmatprep.subr.mxu0 0.0
    %3378 = vmatpush2.msra.mxu0 0.0
    %3379 = vmatprep.subr.mxu0 0.0
    %3380 = vmatpush2.msra.mxu0 0.0
    %3381 = vmatprep.subr.mxu0 0.0
    %3382 = vmatpush2.msra.mxu0 0.0
    %3383 = vmatprep.subr.mxu0 0.0
    %3384 = vmatpush2.msra.mxu0 0.0
    %3385 = vmatprep.subr.mxu0 0.0
    %3386 = vmatpush2.msra.mxu0 0.0
    %3387 = vmatprep.subr.mxu0 0.0
    %3388 = vmatpush2.msra.mxu0 0.0
    %3389 = vmatprep.subr.mxu0 0.0
    %3390 = vmatpush2.msra.mxu0 0.0
    %3391 = vmatprep.subr.mxu0 0.0
    %3392 = vmatpush2.msra.mxu0 0.0
    %3393 = vmatprep.subr.mxu0 0.0
    %3394 = vmatpush2.msra.mxu0 0.0
    %3395 = vmatprep.subr.mxu0 0.0
    %3396 = vmatpush2.msra.mxu0 0.0
    %3397 = vmatprep.subr.mxu0 0.0
    %3398 = vmatpush2.msra.mxu0 0.0
    %3399 = vmatprep.subr.mxu0 0.0
    %3400 = vmatpush2.msra.mxu0 0.0
    %3401 = vmatprep.subr.mxu0 0.0
    %3402 = vmatpush2.msra.mxu0 0.0
    %3403 = vmatprep.mubr.f32.mxu0 0.0
    %3404 = vmatmul.mubr.f32.gmra.mxu0 %v1012
    %v3405 = vpop.f32.mrf.mxu0
    %v3406 = vadd.f32 %v3338, %v3405
    %v3407 = vpop.f32.mrf.mxu0
    %3408 = vdwg.mxu0
    %s3409 = scalar_lea.vmem [#allocation14], 6
    %3410 = vst.msk [vmem:[%s3409] sm:$0x3] %vm1084, %v3406
    %v3411 = vmul.f32 %v3406, 0.1
    %v3412 = vsub.f32 %v2637, %v3411
    %v3414 = vsel %vm267, %v3412, 0
    %3416 = vmatprep.subr.mxu0 0.0
    %3417 = vmatpush1.msra.mxu0 0.0
    %3418 = vmatprep.subr.mxu0 0.0
    %3419 = vmatpush1.msra.mxu0 0.0
    %3420 = vmatprep.subr.mxu0 0.0
    %3421 = vmatpush1.msra.mxu0 0.0
    %3422 = vmatprep.subr.mxu0 0.0
    %3423 = vmatpush1.msra.mxu0 0.0
    %3424 = vmatprep.subr.mxu0 0.0
    %3425 = vmatpush1.msra.mxu0 0.0
    %3426 = vmatprep.subr.mxu0 0.0
    %3427 = vmatpush1.msra.mxu0 0.0
    %3428 = vmatprep.subr.mxu0 0.0
    %3429 = vmatpush1.msra.mxu0 0.0
    %3430 = vmatprep.subr.mxu0 0.0
    %3431 = vmatpush1.msra.mxu0 0.0
    %3432 = vmatprep.subr.mxu0 0.0
    %3433 = vmatpush1.msra.mxu0 0.0
    %3434 = vmatprep.subr.mxu0 0.0
    %3435 = vmatpush1.msra.mxu0 0.0
    %3436 = vmatprep.subr.mxu0 0.0
    %3437 = vmatpush1.msra.mxu0 0.0
    %3438 = vmatprep.subr.mxu0 0.0
    %3439 = vmatpush1.msra.mxu0 0.0
    %3440 = vmatprep.subr.mxu0 0.0
    %3441 = vmatpush1.msra.mxu0 0.0
    %3442 = vmatprep.subr.mxu0 0.0
    %3443 = vmatpush1.msra.mxu0 0.0
    %3444 = vmatprep.subr.mxu0 0.0
    %3445 = vmatpush1.msra.mxu0 0.0
    %3446 = vmatprep.subr.mxu0 0.0
    %3447 = vmatpush1.msra.mxu0 %v3414
    %3448 = vmatprep.subr.mxu0 0.0
    %3449 = vmatpush2.msra.mxu0 0.0
    %3450 = vmatprep.subr.mxu0 0.0
    %3451 = vmatpush2.msra.mxu0 0.0
    %3452 = vmatprep.subr.mxu0 0.0
    %3453 = vmatpush2.msra.mxu0 0.0
    %3454 = vmatprep.subr.mxu0 0.0
    %3455 = vmatpush2.msra.mxu0 0.0
    %3456 = vmatprep.subr.mxu0 0.0
    %3457 = vmatpush2.msra.mxu0 0.0
    %3458 = vmatprep.subr.mxu0 0.0
    %3459 = vmatpush2.msra.mxu0 0.0
    %3460 = vmatprep.subr.mxu0 0.0
    %3461 = vmatpush2.msra.mxu0 0.0
    %3462 = vmatprep.subr.mxu0 0.0
    %3463 = vmatpush2.msra.mxu0 0.0
    %3464 = vmatprep.subr.mxu0 0.0
    %3465 = vmatpush2.msra.mxu0 0.0
    %3466 = vmatprep.subr.mxu0 0.0
    %3467 = vmatpush2.msra.mxu0 0.0
    %3468 = vmatprep.subr.mxu0 0.0
    %3469 = vmatpush2.msra.mxu0 0.0
    %3470 = vmatprep.subr.mxu0 0.0
    %3471 = vmatpush2.msra.mxu0 0.0
    %3472 = vmatprep.subr.mxu0 0.0
    %3473 = vmatpush2.msra.mxu0 0.0
    %3474 = vmatprep.subr.mxu0 0.0
    %3475 = vmatpush2.msra.mxu0 0.0
    %3476 = vmatprep.subr.mxu0 0.0
    %3477 = vmatpush2.msra.mxu0 0.0
    %3478 = vmatprep.subr.mxu0 0.0
    %3479 = vmatpush2.msra.mxu0 0.0
    %3480 = vmatprep.mubr.f32.mxu0 0.0
    %3481 = vmatmul.mubr.f32.gmra.mxu0 %v262
    %v3482 = vpop.f32.mrf.mxu0
    %v3483 = vadd.f32 0.0, %v3482
    %v3484 = vpop.f32.mrf.mxu0
    %3485 = vmatprep.mubr.f32.mxu0 0.0
    %3486 = vmatmul.mubr.f32.gmra.mxu0 %v265
    %v3487 = vpop.f32.mrf.mxu0
    %v3488 = vadd.f32 0.0, %v3487
    %v3489 = vpop.f32.mrf.mxu0
    %3490 = vdwg.mxu0
    %v3492 = vsel %vm178, %v3483, 0
    %v3495 = vsel %vm178, %v3488, 0
    %3497 = vmatprep.subr.mxu0 0.0
    %3498 = vmatpush1.msra.mxu0 0.0
    %3499 = vmatprep.subr.mxu0 0.0
    %3500 = vmatpush1.msra.mxu0 0.0
    %3501 = vmatprep.subr.mxu0 0.0
    %3502 = vmatpush1.msra.mxu0 0.0
    %3503 = vmatprep.subr.mxu0 0.0
    %3504 = vmatpush1.msra.mxu0 0.0
    %3505 = vmatprep.subr.mxu0 0.0
    %3506 = vmatpush1.msra.mxu0 0.0
    %3507 = vmatprep.subr.mxu0 0.0
    %3508 = vmatpush1.msra.mxu0 0.0
    %3509 = vmatprep.subr.mxu0 0.0
    %3510 = vmatpush1.msra.mxu0 0.0
    %3511 = vmatprep.subr.mxu0 0.0
    %3512 = vmatpush1.msra.mxu0 0.0
    %3513 = vmatprep.subr.mxu0 0.0
    %3514 = vmatpush1.msra.mxu0 0.0
    %3515 = vmatprep.subr.mxu0 0.0
    %3516 = vmatpush1.msra.mxu0 0.0
    %3517 = vmatprep.subr.mxu0 0.0
    %3518 = vmatpush1.msra.mxu0 0.0
    %3519 = vmatprep.subr.mxu0 0.0
    %3520 = vmatpush1.msra.mxu0 0.0
    %3521 = vmatprep.subr.mxu0 0.0
    %3522 = vmatpush1.msra.mxu0 %v146
    %3523 = vmatprep.subr.mxu0 0.0
    %3524 = vmatpush1.msra.mxu0 %v145
    %3525 = vmatprep.subr.mxu0 0.0
    %3526 = vmatpush1.msra.mxu0 %v144
    %3527 = vmatprep.subr.mxu0 0.0
    %3528 = vmatpush1.msra.mxu0 %v143
    %3529 = vmatprep.subr.mxu0 0.0
    %3530 = vmatpush2.msra.mxu0 0.0
    %3531 = vmatprep.subr.mxu0 0.0
    %3532 = vmatpush2.msra.mxu0 0.0
    %3533 = vmatprep.subr.mxu0 0.0
    %3534 = vmatpush2.msra.mxu0 0.0
    %3535 = vmatprep.subr.mxu0 0.0
    %3536 = vmatpush2.msra.mxu0 0.0
    %3537 = vmatprep.subr.mxu0 0.0
    %3538 = vmatpush2.msra.mxu0 0.0
    %3539 = vmatprep.subr.mxu0 0.0
    %3540 = vmatpush2.msra.mxu0 0.0
    %3541 = vmatprep.subr.mxu0 0.0
    %3542 = vmatpush2.msra.mxu0 0.0
    %3543 = vmatprep.subr.mxu0 0.0
    %3544 = vmatpush2.msra.mxu0 0.0
    %3545 = vmatprep.subr.mxu0 0.0
    %3546 = vmatpush2.msra.mxu0 0.0
    %3547 = vmatprep.subr.mxu0 0.0
    %3548 = vmatpush2.msra.mxu0 0.0
    %3549 = vmatprep.subr.mxu0 0.0
    %3550 = vmatpush2.msra.mxu0 0.0
    %3551 = vmatprep.subr.mxu0 0.0
    %3552 = vmatpush2.msra.mxu0 0.0
    %3553 = vmatprep.subr.mxu0 0.0
    %3554 = vmatpush2.msra.mxu0 0.0
    %3555 = vmatprep.subr.mxu0 0.0
    %3556 = vmatpush2.msra.mxu0 0.0
    %3557 = vmatprep.subr.mxu0 0.0
    %3558 = vmatpush2.msra.mxu0 0.0
    %3559 = vmatprep.subr.mxu0 0.0
    %3560 = vmatpush2.msra.mxu0 0.0
    %3561 = vmatprep.mubr.f32.mxu0 0.0
    %3562 = vmatmul.mubr.f32.gmra.mxu0 %v3492
    %v3563 = vpop.f32.mrf.mxu0
    %v3564 = vadd.f32 0.0, %v3563
    %v3565 = vpop.f32.mrf.mxu0
    %3566 = vmatprep.mubr.f32.mxu0 0.0
    %3567 = vmatmul.mubr.f32.gmra.mxu0 %v3495
    %v3568 = vpop.f32.mrf.mxu0
    %v3569 = vadd.f32 0.0, %v3568
    %v3570 = vpop.f32.mrf.mxu0
    %3571 = vdwg.mxu0
    %v3572 = vadd.f32 %v252, %v3564
    %v3573 = vadd.f32 %v257, %v3569
    %v3574 = vtanh.pop %v3572
    %v3575 = vtanh.pop %v3573
    %v3576 = vsel %vm178, %v3574, 0.0
    %3577 = vadd.xlane.f32.xlu0 %v3576
    %v3578 = vpop.xlane.xlu0 %3577
    %v3579 = vsel %vm178, %v3575, 0.0
    %3580 = vadd.xlane.f32.xlu0 %v3579
    %v3581 = vpop.xlane.xlu0 %3580
    %v3582 = vmul.f32 %v3578, %v437
    %v3583 = vmul.f32 %v3581, %v437
    %v3584 = vsub.f32 %v3574, %v3582
    %v3585 = vsub.f32 %v3575, %v3583
    %v3586 = vmul.f32 %v3584, %v3584
    %v3587 = vmul.f32 %v3585, %v3585
    %v3588 = vsel %vm178, %v3586, 0.0
    %3589 = vadd.xlane.f32.xlu0 %v3588
    %v3590 = vpop.xlane.xlu0 %3589
    %v3591 = vsel %vm178, %v3587, 0.0
    %3592 = vadd.xlane.f32.xlu0 %v3591
    %v3593 = vpop.xlane.xlu0 %3592
    %v3594 = vmul.f32 %v3590, %v437
    %v3595 = vmul.f32 %v3593, %v437
    %v3596 = vadd.f32 %v3594, 1e-05
    %v3597 = vadd.f32 %v3595, 1e-05
    %v3598 = vrsqrt.pop %v3596
    %v3599 = vrsqrt.pop %v3597
    %v3600 = vmul.f32 %v3584, %v3598
    %v3601 = vmul.f32 %v3585, %v3599
    %v3602 = vmul.f32 %v3600, %v462
    %v3603 = vmul.f32 %v3601, %v462
    %v3604 = vadd.f32 %v3602, %v470
    %v3605 = vadd.f32 %v3603, %v470
    %v3607 = vsel %vm178, %v3604, 0
    %v3610 = vsel %vm178, %v3605, 0
    %3612 = vmatprep.subr.mxu0 0.0
    %3613 = vmatpush1.msra.mxu0 0.0
    %3614 = vmatprep.subr.mxu0 0.0
    %3615 = vmatpush1.msra.mxu0 0.0
    %3616 = vmatprep.subr.mxu0 0.0
    %3617 = vmatpush1.msra.mxu0 0.0
    %3618 = vmatprep.subr.mxu0 0.0
    %3619 = vmatpush1.msra.mxu0 0.0
    %3620 = vmatprep.subr.mxu0 0.0
    %3621 = vmatpush1.msra.mxu0 0.0
    %3622 = vmatprep.subr.mxu0 0.0
    %3623 = vmatpush1.msra.mxu0 0.0
    %3624 = vmatprep.subr.mxu0 0.0
    %3625 = vmatpush1.msra.mxu0 0.0
    %3626 = vmatprep.subr.mxu0 0.0
    %3627 = vmatpush1.msra.mxu0 0.0
    %3628 = vmatprep.subr.mxu0 0.0
    %3629 = vmatpush1.msra.mxu0 0.0
    %3630 = vmatprep.subr.mxu0 0.0
    %3631 = vmatpush1.msra.mxu0 0.0
    %3632 = vmatprep.subr.mxu0 0.0
    %3633 = vmatpush1.msra.mxu0 0.0
    %3634 = vmatprep.subr.mxu0 0.0
    %3635 = vmatpush1.msra.mxu0 0.0
    %3636 = vmatprep.subr.mxu0 0.0
    %3637 = vmatpush1.msra.mxu0 %v154
    %3638 = vmatprep.subr.mxu0 0.0
    %3639 = vmatpush1.msra.mxu0 %v153
    %3640 = vmatprep.subr.mxu0 0.0
    %3641 = vmatpush1.msra.mxu0 %v152
    %3642 = vmatprep.subr.mxu0 0.0
    %3643 = vmatpush1.msra.mxu0 %v151
    %3644 = vmatprep.subr.mxu0 0.0
    %3645 = vmatpush2.msra.mxu0 0.0
    %3646 = vmatprep.subr.mxu0 0.0
    %3647 = vmatpush2.msra.mxu0 0.0
    %3648 = vmatprep.subr.mxu0 0.0
    %3649 = vmatpush2.msra.mxu0 0.0
    %3650 = vmatprep.subr.mxu0 0.0
    %3651 = vmatpush2.msra.mxu0 0.0
    %3652 = vmatprep.subr.mxu0 0.0
    %3653 = vmatpush2.msra.mxu0 0.0
    %3654 = vmatprep.subr.mxu0 0.0
    %3655 = vmatpush2.msra.mxu0 0.0
    %3656 = vmatprep.subr.mxu0 0.0
    %3657 = vmatpush2.msra.mxu0 0.0
    %3658 = vmatprep.subr.mxu0 0.0
    %3659 = vmatpush2.msra.mxu0 0.0
    %3660 = vmatprep.subr.mxu0 0.0
    %3661 = vmatpush2.msra.mxu0 0.0
    %3662 = vmatprep.subr.mxu0 0.0
    %3663 = vmatpush2.msra.mxu0 0.0
    %3664 = vmatprep.subr.mxu0 0.0
    %3665 = vmatpush2.msra.mxu0 0.0
    %3666 = vmatprep.subr.mxu0 0.0
    %3667 = vmatpush2.msra.mxu0 0.0
    %3668 = vmatprep.subr.mxu0 0.0
    %3669 = vmatpush2.msra.mxu0 0.0
    %3670 = vmatprep.subr.mxu0 0.0
    %3671 = vmatpush2.msra.mxu0 0.0
    %3672 = vmatprep.subr.mxu0 0.0
    %3673 = vmatpush2.msra.mxu0 0.0
    %3674 = vmatprep.subr.mxu0 0.0
    %3675 = vmatpush2.msra.mxu0 0.0
    %3676 = vmatprep.mubr.f32.mxu0 0.0
    %3677 = vmatmul.mubr.f32.gmra.mxu0 %v3607
    %v3678 = vpop.f32.mrf.mxu0
    %v3679 = vadd.f32 %v478, %v3678
    %v3680 = vpop.f32.mrf.mxu0
    %3681 = vmatprep.mubr.f32.mxu0 0.0
    %3682 = vmatmul.mubr.f32.gmra.mxu0 %v3610
    %v3683 = vpop.f32.mrf.mxu0
    %v3684 = vadd.f32 %v478, %v3683
    %v3685 = vpop.f32.mrf.mxu0
    %3686 = vdwg.mxu0
    %v3687 = vtanh.pop %v3679
    %v3688 = vtanh.pop %v3684
    %v3689 = vsel %vm563, %v3687, 0.0
    %3690 = vadd.xlane.f32.xlu0 %v3689
    %v3691 = vpop.xlane.xlu0 %3690
    %v3692 = vsel %vm563, %v3688, 0.0
    %3693 = vadd.xlane.f32.xlu0 %v3692
    %v3694 = vpop.xlane.xlu0 %3693
    %v3695 = vmul.f32 %v3691, %v570
    %v3696 = vmul.f32 %v3694, %v570
    %v3697 = vsub.f32 %v3687, %v3695
    %v3698 = vsub.f32 %v3688, %v3696
    %v3699 = vmul.f32 %v3697, %v3697
    %v3700 = vmul.f32 %v3698, %v3698
    %v3701 = vsel %vm563, %v3699, 0.0
    %3702 = vadd.xlane.f32.xlu0 %v3701
    %v3703 = vpop.xlane.xlu0 %3702
    %v3704 = vsel %vm563, %v3700, 0.0
    %3705 = vadd.xlane.f32.xlu0 %v3704
    %v3706 = vpop.xlane.xlu0 %3705
    %v3707 = vmul.f32 %v3703, %v570
    %v3708 = vmul.f32 %v3706, %v570
    %v3709 = vadd.f32 %v3707, 1e-05
    %v3710 = vadd.f32 %v3708, 1e-05
    %v3711 = vrsqrt.pop %v3709
    %v3712 = vrsqrt.pop %v3710
    %v3713 = vmul.f32 %v3697, %v3711
    %v3714 = vmul.f32 %v3698, %v3712
    %v3715 = vmul.f32 %v3713, %v595
    %v3716 = vmul.f32 %v3714, %v595
    %v3717 = vadd.f32 %v3715, %v603
    %v3718 = vadd.f32 %v3716, %v603
    %v3720 = vsel %vm563, %v3717, 0
    %v3723 = vsel %vm563, %v3718, 0
    %3725 = vmatprep.subr.mxu0 0.0
    %3726 = vmatpush1.msra.mxu0 0.0
    %3727 = vmatprep.subr.mxu0 0.0
    %3728 = vmatpush1.msra.mxu0 0.0
    %3729 = vmatprep.subr.mxu0 0.0
    %3730 = vmatpush1.msra.mxu0 0.0
    %3731 = vmatprep.subr.mxu0 0.0
    %3732 = vmatpush1.msra.mxu0 0.0
    %3733 = vmatprep.subr.mxu0 0.0
    %3734 = vmatpush1.msra.mxu0 0.0
    %3735 = vmatprep.subr.mxu0 0.0
    %3736 = vmatpush1.msra.mxu0 0.0
    %3737 = vmatprep.subr.mxu0 0.0
    %3738 = vmatpush1.msra.mxu0 0.0
    %3739 = vmatprep.subr.mxu0 0.0
    %3740 = vmatpush1.msra.mxu0 0.0
    %3741 = vmatprep.subr.mxu0 0.0
    %3742 = vmatpush1.msra.mxu0 0.0
    %3743 = vmatprep.subr.mxu0 0.0
    %3744 = vmatpush1.msra.mxu0 0.0
    %3745 = vmatprep.subr.mxu0 0.0
    %3746 = vmatpush1.msra.mxu0 0.0
    %3747 = vmatprep.subr.mxu0 0.0
    %3748 = vmatpush1.msra.mxu0 0.0
    %3749 = vmatprep.subr.mxu0 0.0
    %3750 = vmatpush1.msra.mxu0 0.0
    %3751 = vmatprep.subr.mxu0 0.0
    %3752 = vmatpush1.msra.mxu0 0.0
    %3753 = vmatprep.subr.mxu0 0.0
    %3754 = vmatpush1.msra.mxu0 %v158
    %3755 = vmatprep.subr.mxu0 0.0
    %3756 = vmatpush1.msra.mxu0 %v157
    %3757 = vmatprep.subr.mxu0 0.0
    %3758 = vmatpush2.msra.mxu0 0.0
    %3759 = vmatprep.subr.mxu0 0.0
    %3760 = vmatpush2.msra.mxu0 0.0
    %3761 = vmatprep.subr.mxu0 0.0
    %3762 = vmatpush2.msra.mxu0 0.0
    %3763 = vmatprep.subr.mxu0 0.0
    %3764 = vmatpush2.msra.mxu0 0.0
    %3765 = vmatprep.subr.mxu0 0.0
    %3766 = vmatpush2.msra.mxu0 0.0
    %3767 = vmatprep.subr.mxu0 0.0
    %3768 = vmatpush2.msra.mxu0 0.0
    %3769 = vmatprep.subr.mxu0 0.0
    %3770 = vmatpush2.msra.mxu0 0.0
    %3771 = vmatprep.subr.mxu0 0.0
    %3772 = vmatpush2.msra.mxu0 0.0
    %3773 = vmatprep.subr.mxu0 0.0
    %3774 = vmatpush2.msra.mxu0 0.0
    %3775 = vmatprep.subr.mxu0 0.0
    %3776 = vmatpush2.msra.mxu0 0.0
    %3777 = vmatprep.subr.mxu0 0.0
    %3778 = vmatpush2.msra.mxu0 0.0
    %3779 = vmatprep.subr.mxu0 0.0
    %3780 = vmatpush2.msra.mxu0 0.0
    %3781 = vmatprep.subr.mxu0 0.0
    %3782 = vmatpush2.msra.mxu0 0.0
    %3783 = vmatprep.subr.mxu0 0.0
    %3784 = vmatpush2.msra.mxu0 0.0
    %3785 = vmatprep.subr.mxu0 0.0
    %3786 = vmatpush2.msra.mxu0 0.0
    %3787 = vmatprep.subr.mxu0 0.0
    %3788 = vmatpush2.msra.mxu0 0.0
    %3789 = vmatprep.mubr.f32.mxu0 0.0
    %3790 = vmatmul.mubr.f32.gmra.mxu0 %v3720
    %v3791 = vpop.f32.mrf.mxu0
    %v3792 = vadd.f32 %v611, %v3791
    %v3793 = vpop.f32.mrf.mxu0
    %3794 = vmatprep.mubr.f32.mxu0 0.0
    %3795 = vmatmul.mubr.f32.gmra.mxu0 %v3723
    %v3796 = vpop.f32.mrf.mxu0
    %v3797 = vadd.f32 %v611, %v3796
    %v3798 = vpop.f32.mrf.mxu0
    %3799 = vdwg.mxu0
    %v3800 = vmul.f32 %v3792, 0.2
    %v3801 = vmul.f32 %v3797, 0.2
    %v3803 = vsel %vm696, %v3800, 0
    %v3806 = vsel %vm696, %v3801, 0
    %3808 = vmatprep.subr.mxu0 0.0
    %3809 = vmatpush1.msra.mxu0 0.0
    %3810 = vmatprep.subr.mxu0 0.0
    %3811 = vmatpush1.msra.mxu0 0.0
    %3812 = vmatprep.subr.mxu0 0.0
    %3813 = vmatpush1.msra.mxu0 0.0
    %3814 = vmatprep.subr.mxu0 0.0
    %3815 = vmatpush1.msra.mxu0 0.0
    %3816 = vmatprep.subr.mxu0 0.0
    %3817 = vmatpush1.msra.mxu0 0.0
    %3818 = vmatprep.subr.mxu0 0.0
    %3819 = vmatpush1.msra.mxu0 0.0
    %3820 = vmatprep.subr.mxu0 0.0
    %3821 = vmatpush1.msra.mxu0 0.0
    %3822 = vmatprep.subr.mxu0 0.0
    %3823 = vmatpush1.msra.mxu0 0.0
    %3824 = vmatprep.subr.mxu0 0.0
    %3825 = vmatpush1.msra.mxu0 0.0
    %3826 = vmatprep.subr.mxu0 0.0
    %3827 = vmatpush1.msra.mxu0 0.0
    %3828 = vmatprep.subr.mxu0 0.0
    %3829 = vmatpush1.msra.mxu0 0.0
    %3830 = vmatprep.subr.mxu0 0.0
    %3831 = vmatpush1.msra.mxu0 0.0
    %3832 = vmatprep.subr.mxu0 0.0
    %3833 = vmatpush1.msra.mxu0 0.0
    %3834 = vmatprep.subr.mxu0 0.0
    %3835 = vmatpush1.msra.mxu0 0.0
    %3836 = vmatprep.subr.mxu0 0.0
    %3837 = vmatpush1.msra.mxu0 %v704
    %3838 = vmatprep.subr.mxu0 0.0
    %3839 = vmatpush1.msra.mxu0 %v159
    %3840 = vmatprep.subr.mxu0 0.0
    %3841 = vmatpush2.msra.mxu0 0.0
    %3842 = vmatprep.subr.mxu0 0.0
    %3843 = vmatpush2.msra.mxu0 0.0
    %3844 = vmatprep.subr.mxu0 0.0
    %3845 = vmatpush2.msra.mxu0 0.0
    %3846 = vmatprep.subr.mxu0 0.0
    %3847 = vmatpush2.msra.mxu0 0.0
    %3848 = vmatprep.subr.mxu0 0.0
    %3849 = vmatpush2.msra.mxu0 0.0
    %3850 = vmatprep.subr.mxu0 0.0
    %3851 = vmatpush2.msra.mxu0 0.0
    %3852 = vmatprep.subr.mxu0 0.0
    %3853 = vmatpush2.msra.mxu0 0.0
    %3854 = vmatprep.subr.mxu0 0.0
    %3855 = vmatpush2.msra.mxu0 0.0
    %3856 = vmatprep.subr.mxu0 0.0
    %3857 = vmatpush2.msra.mxu0 0.0
    %3858 = vmatprep.subr.mxu0 0.0
    %3859 = vmatpush2.msra.mxu0 0.0
    %3860 = vmatprep.subr.mxu0 0.0
    %3861 = vmatpush2.msra.mxu0 0.0
    %3862 = vmatprep.subr.mxu0 0.0
    %3863 = vmatpush2.msra.mxu0 0.0
    %3864 = vmatprep.subr.mxu0 0.0
    %3865 = vmatpush2.msra.mxu0 0.0
    %3866 = vmatprep.subr.mxu0 0.0
    %3867 = vmatpush2.msra.mxu0 0.0
    %3868 = vmatprep.subr.mxu0 0.0
    %3869 = vmatpush2.msra.mxu0 0.0
    %3870 = vmatprep.subr.mxu0 0.0
    %3871 = vmatpush2.msra.mxu0 0.0
    %3872 = vmatprep.mubr.f32.mxu0 0.0
    %3873 = vmatmul.mubr.f32.gmra.mxu0 %v3803
    %v3874 = vpop.f32.mrf.mxu0
    %v3875 = vadd.f32 0.0, %v3874
    %v3876 = vpop.f32.mrf.mxu0
    %3877 = vmatprep.mubr.f32.mxu0 0.0
    %3878 = vmatmul.mubr.f32.gmra.mxu0 %v3806
    %v3879 = vpop.f32.mrf.mxu0
    %v3880 = vadd.f32 0.0, %v3879
    %v3881 = vpop.f32.mrf.mxu0
    %3882 = vdwg.mxu0
    %v3883 = vmul.f32 %v3875, %v595
    %v3884 = vmul.f32 %v3880, %v595
    %v3885 = vsel %vm563, %v3883, 0.0
    %3886 = vadd.xlane.f32.xlu0 %v3885
    %v3887 = vpop.xlane.xlu0 %3886
    %v3888 = vsel %vm563, %v3884, 0.0
    %3889 = vadd.xlane.f32.xlu0 %v3888
    %v3890 = vpop.xlane.xlu0 %3889
    %v3891 = vmul.f32 %v3887, %v570
    %v3892 = vmul.f32 %v3890, %v570
    %v3893 = vmul.f32 %v3883, %v3713
    %v3894 = vmul.f32 %v3884, %v3714
    %v3895 = vsel %vm563, %v3893, 0.0
    %3896 = vadd.xlane.f32.xlu0 %v3895
    %v3897 = vpop.xlane.xlu0 %3896
    %v3898 = vsel %vm563, %v3894, 0.0
    %3899 = vadd.xlane.f32.xlu0 %v3898
    %v3900 = vpop.xlane.xlu0 %3899
    %v3901 = vmul.f32 %v3897, %v570
    %v3902 = vmul.f32 %v3900, %v570
    %v3903 = vsub.f32 %v3883, %v3891
    %v3904 = vsub.f32 %v3884, %v3892
    %v3905 = vmul.f32 %v3713, %v3901
    %v3906 = vmul.f32 %v3714, %v3902
    %v3907 = vsub.f32 %v3903, %v3905
    %v3908 = vsub.f32 %v3904, %v3906
    %v3909 = vmul.f32 %v3711, %v3907
    %v3910 = vmul.f32 %v3712, %v3908
    %v3911 = vmul.f32 %v3687, %v3687
    %v3912 = vmul.f32 %v3688, %v3688
    %v3913 = vsub.f32 1.0, %v3911
    %v3914 = vsub.f32 1.0, %v3912
    %v3915 = vmul.f32 %v3909, %v3913
    %v3916 = vmul.f32 %v3910, %v3914
    %v3918 = vsel %vm563, %v3915, 0
    %v3921 = vsel %vm563, %v3916, 0
    %3923 = vmatprep.subr.mxu0 0.0
    %3924 = vmatpush1.msra.mxu0 0.0
    %3925 = vmatprep.subr.mxu0 0.0
    %3926 = vmatpush1.msra.mxu0 0.0
    %3927 = vmatprep.subr.mxu0 0.0
    %3928 = vmatpush1.msra.mxu0 0.0
    %3929 = vmatprep.subr.mxu0 0.0
    %3930 = vmatpush1.msra.mxu0 0.0
    %3931 = vmatprep.subr.mxu0 0.0
    %3932 = vmatpush1.msra.mxu0 0.0
    %3933 = vmatprep.subr.mxu0 0.0
    %3934 = vmatpush1.msra.mxu0 0.0
    %3935 = vmatprep.subr.mxu0 0.0
    %3936 = vmatpush1.msra.mxu0 0.0
    %3937 = vmatprep.subr.mxu0 0.0
    %3938 = vmatpush1.msra.mxu0 0.0
    %3939 = vmatprep.subr.mxu0 0.0
    %3940 = vmatpush1.msra.mxu0 0.0
    %3941 = vmatprep.subr.mxu0 0.0
    %3942 = vmatpush1.msra.mxu0 0.0
    %3943 = vmatprep.subr.mxu0 0.0
    %3944 = vmatpush1.msra.mxu0 0.0
    %3945 = vmatprep.subr.mxu0 0.0
    %3946 = vmatpush1.msra.mxu0 0.0
    %3947 = vmatprep.subr.mxu0 0.0
    %3948 = vmatpush1.msra.mxu0 0.0
    %3949 = vmatprep.subr.mxu0 0.0
    %3950 = vmatpush1.msra.mxu0 0.0
    %3951 = vmatprep.subr.mxu0 0.0
    %3952 = vmatpush1.msra.mxu0 %v156
    %3953 = vmatprep.subr.mxu0 0.0
    %3954 = vmatpush1.msra.mxu0 %v155
    %3955 = vmatprep.subr.mxu0 0.0
    %3956 = vmatpush2.msra.mxu0 0.0
    %3957 = vmatprep.subr.mxu0 0.0
    %3958 = vmatpush2.msra.mxu0 0.0
    %3959 = vmatprep.subr.mxu0 0.0
    %3960 = vmatpush2.msra.mxu0 0.0
    %3961 = vmatprep.subr.mxu0 0.0
    %3962 = vmatpush2.msra.mxu0 0.0
    %3963 = vmatprep.subr.mxu0 0.0
    %3964 = vmatpush2.msra.mxu0 0.0
    %3965 = vmatprep.subr.mxu0 0.0
    %3966 = vmatpush2.msra.mxu0 0.0
    %3967 = vmatprep.subr.mxu0 0.0
    %3968 = vmatpush2.msra.mxu0 0.0
    %3969 = vmatprep.subr.mxu0 0.0
    %3970 = vmatpush2.msra.mxu0 0.0
    %3971 = vmatprep.subr.mxu0 0.0
    %3972 = vmatpush2.msra.mxu0 0.0
    %3973 = vmatprep.subr.mxu0 0.0
    %3974 = vmatpush2.msra.mxu0 0.0
    %3975 = vmatprep.subr.mxu0 0.0
    %3976 = vmatpush2.msra.mxu0 0.0
    %3977 = vmatprep.subr.mxu0 0.0
    %3978 = vmatpush2.msra.mxu0 0.0
    %3979 = vmatprep.subr.mxu0 0.0
    %3980 = vmatpush2.msra.mxu0 0.0
    %3981 = vmatprep.subr.mxu0 0.0
    %3982 = vmatpush2.msra.mxu0 0.0
    %3983 = vmatprep.subr.mxu0 0.0
    %3984 = vmatpush2.msra.mxu0 0.0
    %3985 = vmatprep.subr.mxu0 0.0
    %3986 = vmatpush2.msra.mxu0 0.0
    %3987 = vmatprep.mubr.f32.mxu0 0.0
    %3988 = vmatmul.mubr.f32.gmra.mxu0 %v3918
    %v3989 = vpop.f32.mrf.mxu0
    %v3990 = vadd.f32 0.0, %v3989
    %v3991 = vpop.f32.mrf.mxu0
    %3992 = vmatprep.mubr.f32.mxu0 0.0
    %3993 = vmatmul.mubr.f32.gmra.mxu0 %v3921
    %v3994 = vpop.f32.mrf.mxu0
    %v3995 = vadd.f32 0.0, %v3994
    %v3996 = vpop.f32.mrf.mxu0
    %3997 = vdwg.mxu0
    %v3998 = vmul.f32 %v3990, %v462
    %v3999 = vmul.f32 %v3995, %v462
    %v4000 = vsel %vm178, %v3998, 0.0
    %4001 = vadd.xlane.f32.xlu0 %v4000
    %v4002 = vpop.xlane.xlu0 %4001
    %v4003 = vsel %vm178, %v3999, 0.0
    %4004 = vadd.xlane.f32.xlu0 %v4003
    %v4005 = vpop.xlane.xlu0 %4004
    %v4006 = vmul.f32 %v4002, %v437
    %v4007 = vmul.f32 %v4005, %v437
    %v4008 = vmul.f32 %v3998, %v3600
    %v4009 = vmul.f32 %v3999, %v3601
    %v4010 = vsel %vm178, %v4008, 0.0
    %4011 = vadd.xlane.f32.xlu0 %v4010
    %v4012 = vpop.xlane.xlu0 %4011
    %v4013 = vsel %vm178, %v4009, 0.0
    %4014 = vadd.xlane.f32.xlu0 %v4013
    %v4015 = vpop.xlane.xlu0 %4014
    %v4016 = vmul.f32 %v4012, %v437
    %v4017 = vmul.f32 %v4015, %v437
    %v4018 = vsub.f32 %v3998, %v4006
    %v4019 = vsub.f32 %v3999, %v4007
    %v4020 = vmul.f32 %v3600, %v4016
    %v4021 = vmul.f32 %v3601, %v4017
    %v4022 = vsub.f32 %v4018, %v4020
    %v4023 = vsub.f32 %v4019, %v4021
    %v4024 = vmul.f32 %v3598, %v4022
    %v4025 = vmul.f32 %v3599, %v4023
    %v4026 = vmul.f32 %v3574, %v3574
    %v4027 = vmul.f32 %v3575, %v3575
    %v4028 = vsub.f32 1.0, %v4026
    %v4029 = vsub.f32 1.0, %v4027
    %v4030 = vmul.f32 %v4024, %v4028
    %v4031 = vmul.f32 %v4025, %v4029
    %v4033 = vsel %vm178, %v4030, 0
    %v4036 = vsel %vm178, %v4031, 0
    %4038 = vmatprep.subr.mxu0 0.0
    %4039 = vmatpush1.msra.mxu0 0.0
    %4040 = vmatprep.subr.mxu0 0.0
    %4041 = vmatpush1.msra.mxu0 0.0
    %4042 = vmatprep.subr.mxu0 0.0
    %4043 = vmatpush1.msra.mxu0 0.0
    %4044 = vmatprep.subr.mxu0 0.0
    %4045 = vmatpush1.msra.mxu0 0.0
    %4046 = vmatprep.subr.mxu0 0.0
    %4047 = vmatpush1.msra.mxu0 0.0
    %4048 = vmatprep.subr.mxu0 0.0
    %4049 = vmatpush1.msra.mxu0 0.0
    %4050 = vmatprep.subr.mxu0 0.0
    %4051 = vmatpush1.msra.mxu0 0.0
    %4052 = vmatprep.subr.mxu0 0.0
    %4053 = vmatpush1.msra.mxu0 0.0
    %4054 = vmatprep.subr.mxu0 0.0
    %4055 = vmatpush1.msra.mxu0 0.0
    %4056 = vmatprep.subr.mxu0 0.0
    %4057 = vmatpush1.msra.mxu0 0.0
    %4058 = vmatprep.subr.mxu0 0.0
    %4059 = vmatpush1.msra.mxu0 0.0
    %4060 = vmatprep.subr.mxu0 0.0
    %4061 = vmatpush1.msra.mxu0 0.0
    %4062 = vmatprep.subr.mxu0 0.0
    %4063 = vmatpush1.msra.mxu0 %v150
    %4064 = vmatprep.subr.mxu0 0.0
    %4065 = vmatpush1.msra.mxu0 %v149
    %4066 = vmatprep.subr.mxu0 0.0
    %4067 = vmatpush1.msra.mxu0 %v148
    %4068 = vmatprep.subr.mxu0 0.0
    %4069 = vmatpush1.msra.mxu0 %v147
    %4070 = vmatprep.subr.mxu0 0.0
    %4071 = vmatpush2.msra.mxu0 0.0
    %4072 = vmatprep.subr.mxu0 0.0
    %4073 = vmatpush2.msra.mxu0 0.0
    %4074 = vmatprep.subr.mxu0 0.0
    %4075 = vmatpush2.msra.mxu0 0.0
    %4076 = vmatprep.subr.mxu0 0.0
    %4077 = vmatpush2.msra.mxu0 0.0
    %4078 = vmatprep.subr.mxu0 0.0
    %4079 = vmatpush2.msra.mxu0 0.0
    %4080 = vmatprep.subr.mxu0 0.0
    %4081 = vmatpush2.msra.mxu0 0.0
    %4082 = vmatprep.subr.mxu0 0.0
    %4083 = vmatpush2.msra.mxu0 0.0
    %4084 = vmatprep.subr.mxu0 0.0
    %4085 = vmatpush2.msra.mxu0 0.0
    %4086 = vmatprep.subr.mxu0 0.0
    %4087 = vmatpush2.msra.mxu0 0.0
    %4088 = vmatprep.subr.mxu0 0.0
    %4089 = vmatpush2.msra.mxu0 0.0
    %4090 = vmatprep.subr.mxu0 0.0
    %4091 = vmatpush2.msra.mxu0 0.0
    %4092 = vmatprep.subr.mxu0 0.0
    %4093 = vmatpush2.msra.mxu0 0.0
    %4094 = vmatprep.subr.mxu0 0.0
    %4095 = vmatpush2.msra.mxu0 0.0
    %4096 = vmatprep.subr.mxu0 0.0
    %4097 = vmatpush2.msra.mxu0 0.0
    %4098 = vmatprep.subr.mxu0 0.0
    %4099 = vmatpush2.msra.mxu0 0.0
    %4100 = vmatprep.subr.mxu0 0.0
    %4101 = vmatpush2.msra.mxu0 0.0
    %4102 = vmatprep.mubr.f32.mxu0 0.0
    %4103 = vmatmul.mubr.f32.gmra.mxu0 %v4033
    %v4104 = vpop.f32.mrf.mxu0
    %v4105 = vadd.f32 0.0, %v4104
    %v4106 = vpop.f32.mrf.mxu0
    %4107 = vmatprep.mubr.f32.mxu0 0.0
    %4108 = vmatmul.mubr.f32.gmra.mxu0 %v4036
    %v4109 = vpop.f32.mrf.mxu0
    %v4110 = vadd.f32 0.0, %v4109
    %v4111 = vpop.f32.mrf.mxu0
    %4112 = vdwg.mxu0
    %v4113 = vmul.f32 %v3412, 6.25e-05
    %4114 = vmatprep.subr.mxu0 0.0
    %4115 = vmatpush1.msra.mxu0 0.0
    %4116 = vmatprep.subr.mxu0 0.0
    %4117 = vmatpush1.msra.mxu0 0.0
    %4118 = vmatprep.subr.mxu0 0.0
    %4119 = vmatpush1.msra.mxu0 0.0
    %4120 = vmatprep.subr.mxu0 0.0
    %4121 = vmatpush1.msra.mxu0 0.0
    %4122 = vmatprep.subr.mxu0 0.0
    %4123 = vmatpush1.msra.mxu0 0.0
    %4124 = vmatprep.subr.mxu0 0.0
    %4125 = vmatpush1.msra.mxu0 0.0
    %4126 = vmatprep.subr.mxu0 0.0
    %4127 = vmatpush1.msra.mxu0 0.0
    %4128 = vmatprep.subr.mxu0 0.0
    %4129 = vmatpush1.msra.mxu0 0.0
    %4130 = vmatprep.subr.mxu0 0.0
    %4131 = vmatpush1.msra.mxu0 0.0
    %4132 = vmatprep.subr.mxu0 0.0
    %4133 = vmatpush1.msra.mxu0 0.0
    %4134 = vmatprep.subr.mxu0 0.0
    %4135 = vmatpush1.msra.mxu0 0.0
    %4136 = vmatprep.subr.mxu0 0.0
    %4137 = vmatpush1.msra.mxu0 0.0
    %4138 = vmatprep.subr.mxu0 0.0
    %4139 = vmatpush1.msra.mxu0 0.0
    %4140 = vmatprep.subr.mxu0 0.0
    %4141 = vmatpush1.msra.mxu0 0.0
    %4142 = vmatprep.subr.mxu0 0.0
    %4143 = vmatpush1.msra.mxu0 %v4110
    %4144 = vmatprep.subr.mxu0 0.0
    %4145 = vmatpush1.msra.mxu0 %v4105
    %4146 = vmatprep.subr.mxu0 0.0
    %4147 = vmatpush2.msra.mxu0 0.0
    %4148 = vmatprep.subr.mxu0 0.0
    %4149 = vmatpush2.msra.mxu0 0.0
    %4150 = vmatprep.subr.mxu0 0.0
    %4151 = vmatpush2.msra.mxu0 0.0
    %4152 = vmatprep.subr.mxu0 0.0
    %4153 = vmatpush2.msra.mxu0 0.0
    %4154 = vmatprep.subr.mxu0 0.0
    %4155 = vmatpush2.msra.mxu0 0.0
    %4156 = vmatprep.subr.mxu0 0.0
    %4157 = vmatpush2.msra.mxu0 0.0
    %4158 = vmatprep.subr.mxu0 0.0
    %4159 = vmatpush2.msra.mxu0 0.0
    %4160 = vmatprep.subr.mxu0 0.0
    %4161 = vmatpush2.msra.mxu0 0.0
    %4162 = vmatprep.subr.mxu0 0.0
    %4163 = vmatpush2.msra.mxu0 0.0
    %4164 = vmatprep.subr.mxu0 0.0
    %4165 = vmatpush2.msra.mxu0 0.0
    %4166 = vmatprep.subr.mxu0 0.0
    %4167 = vmatpush2.msra.mxu0 0.0
    %4168 = vmatprep.subr.mxu0 0.0
    %4169 = vmatpush2.msra.mxu0 0.0
    %4170 = vmatprep.subr.mxu0 0.0
    %4171 = vmatpush2.msra.mxu0 0.0
    %4172 = vmatprep.subr.mxu0 0.0
    %4173 = vmatpush2.msra.mxu0 0.0
    %4174 = vmatprep.subr.mxu0 0.0
    %4175 = vmatpush2.msra.mxu0 0.0
    %4176 = vmatprep.subr.mxu0 0.0
    %4177 = vmatpush2.msra.mxu0 0.0
    %4178 = vmatprep.mubr.f32.mxu0 0.0
    %4179 = vmatmul.mubr.f32.gmra.mxu0 %v1012
    %v4180 = vpop.f32.mrf.mxu0
    %v4181 = vadd.f32 %v4113, %v4180
    %v4182 = vpop.f32.mrf.mxu0
    %4183 = vdwg.mxu0
    %s4184 = scalar_lea.vmem [#allocation14], 8
    %4185 = vst.msk [vmem:[%s4184] sm:$0x3] %vm1084, %v4181
    %v4186 = vmul.f32 %v4181, 0.1
    %v4187 = vsub.f32 %v3412, %v4186
    %v4189 = vsel %vm267, %v4187, 0
    %4191 = vmatprep.subr.mxu0 0.0
    %4192 = vmatpush1.msra.mxu0 0.0
    %4193 = vmatprep.subr.mxu0 0.0
    %4194 = vmatpush1.msra.mxu0 0.0
    %4195 = vmatprep.subr.mxu0 0.0
    %4196 = vmatpush1.msra.mxu0 0.0
    %4197 = vmatprep.subr.mxu0 0.0
    %4198 = vmatpush1.msra.mxu0 0.0
    %4199 = vmatprep.subr.mxu0 0.0
    %4200 = vmatpush1.msra.mxu0 0.0
    %4201 = vmatprep.subr.mxu0 0.0
    %4202 = vmatpush1.msra.mxu0 0.0
    %4203 = vmatprep.subr.mxu0 0.0
    %4204 = vmatpush1.msra.mxu0 0.0
    %4205 = vmatprep.subr.mxu0 0.0
    %4206 = vmatpush1.msra.mxu0 0.0
    %4207 = vmatprep.subr.mxu0 0.0
    %4208 = vmatpush1.msra.mxu0 0.0
    %4209 = vmatprep.subr.mxu0 0.0
    %4210 = vmatpush1.msra.mxu0 0.0
    %4211 = vmatprep.subr.mxu0 0.0
    %4212 = vmatpush1.msra.mxu0 0.0
    %4213 = vmatprep.subr.mxu0 0.0
    %4214 = vmatpush1.msra.mxu0 0.0
    %4215 = vmatprep.subr.mxu0 0.0
    %4216 = vmatpush1.msra.mxu0 0.0
    %4217 = vmatprep.subr.mxu0 0.0
    %4218 = vmatpush1.msra.mxu0 0.0
    %4219 = vmatprep.subr.mxu0 0.0
    %4220 = vmatpush1.msra.mxu0 0.0
    %4221 = vmatprep.subr.mxu0 0.0
    %4222 = vmatpush1.msra.mxu0 %v4189
    %4223 = vmatprep.subr.mxu0 0.0
    %4224 = vmatpush2.msra.mxu0 0.0
    %4225 = vmatprep.subr.mxu0 0.0
    %4226 = vmatpush2.msra.mxu0 0.0
    %4227 = vmatprep.subr.mxu0 0.0
    %4228 = vmatpush2.msra.mxu0 0.0
    %4229 = vmatprep.subr.mxu0 0.0
    %4230 = vmatpush2.msra.mxu0 0.0
    %4231 = vmatprep.subr.mxu0 0.0
    %4232 = vmatpush2.msra.mxu0 0.0
    %4233 = vmatprep.subr.mxu0 0.0
    %4234 = vmatpush2.msra.mxu0 0.0
    %4235 = vmatprep.subr.mxu0 0.0
    %4236 = vmatpush2.msra.mxu0 0.0
    %4237 = vmatprep.subr.mxu0 0.0
    %4238 = vmatpush2.msra.mxu0 0.0
    %4239 = vmatprep.subr.mxu0 0.0
    %4240 = vmatpush2.msra.mxu0 0.0
    %4241 = vmatprep.subr.mxu0 0.0
    %4242 = vmatpush2.msra.mxu0 0.0
    %4243 = vmatprep.subr.mxu0 0.0
    %4244 = vmatpush2.msra.mxu0 0.0
    %4245 = vmatprep.subr.mxu0 0.0
    %4246 = vmatpush2.msra.mxu0 0.0
    %4247 = vmatprep.subr.mxu0 0.0
    %4248 = vmatpush2.msra.mxu0 0.0
    %4249 = vmatprep.subr.mxu0 0.0
    %4250 = vmatpush2.msra.mxu0 0.0
    %4251 = vmatprep.subr.mxu0 0.0
    %4252 = vmatpush2.msra.mxu0 0.0
    %4253 = vmatprep.subr.mxu0 0.0
    %4254 = vmatpush2.msra.mxu0 0.0
    %4255 = vmatprep.mubr.f32.mxu0 0.0
    %4256 = vmatmul.mubr.f32.gmra.mxu0 %v262
    %v4257 = vpop.f32.mrf.mxu0
    %v4258 = vadd.f32 0.0, %v4257
    %v4259 = vpop.f32.mrf.mxu0
    %4260 = vmatprep.mubr.f32.mxu0 0.0
    %4261 = vmatmul.mubr.f32.gmra.mxu0 %v265
    %v4262 = vpop.f32.mrf.mxu0
    %v4263 = vadd.f32 0.0, %v4262
    %v4264 = vpop.f32.mrf.mxu0
    %4265 = vdwg.mxu0
    %v4267 = vsel %vm178, %v4258, 0
    %v4270 = vsel %vm178, %v4263, 0
    %4272 = vmatprep.subr.mxu0 0.0
    %4273 = vmatpush1.msra.mxu0 0.0
    %4274 = vmatprep.subr.mxu0 0.0
    %4275 = vmatpush1.msra.mxu0 0.0
    %4276 = vmatprep.subr.mxu0 0.0
    %4277 = vmatpush1.msra.mxu0 0.0
    %4278 = vmatprep.subr.mxu0 0.0
    %4279 = vmatpush1.msra.mxu0 0.0
    %4280 = vmatprep.subr.mxu0 0.0
    %4281 = vmatpush1.msra.mxu0 0.0
    %4282 = vmatprep.subr.mxu0 0.0
    %4283 = vmatpush1.msra.mxu0 0.0
    %4284 = vmatprep.subr.mxu0 0.0
    %4285 = vmatpush1.msra.mxu0 0.0
    %4286 = vmatprep.subr.mxu0 0.0
    %4287 = vmatpush1.msra.mxu0 0.0
    %4288 = vmatprep.subr.mxu0 0.0
    %4289 = vmatpush1.msra.mxu0 0.0
    %4290 = vmatprep.subr.mxu0 0.0
    %4291 = vmatpush1.msra.mxu0 0.0
    %4292 = vmatprep.subr.mxu0 0.0
    %4293 = vmatpush1.msra.mxu0 0.0
    %4294 = vmatprep.subr.mxu0 0.0
    %4295 = vmatpush1.msra.mxu0 0.0
    %4296 = vmatprep.subr.mxu0 0.0
    %4297 = vmatpush1.msra.mxu0 %v146
    %4298 = vmatprep.subr.mxu0 0.0
    %4299 = vmatpush1.msra.mxu0 %v145
    %4300 = vmatprep.subr.mxu0 0.0
    %4301 = vmatpush1.msra.mxu0 %v144
    %4302 = vmatprep.subr.mxu0 0.0
    %4303 = vmatpush1.msra.mxu0 %v143
    %4304 = vmatprep.subr.mxu0 0.0
    %4305 = vmatpush2.msra.mxu0 0.0
    %4306 = vmatprep.subr.mxu0 0.0
    %4307 = vmatpush2.msra.mxu0 0.0
    %4308 = vmatprep.subr.mxu0 0.0
    %4309 = vmatpush2.msra.mxu0 0.0
    %4310 = vmatprep.subr.mxu0 0.0
    %4311 = vmatpush2.msra.mxu0 0.0
    %4312 = vmatprep.subr.mxu0 0.0
    %4313 = vmatpush2.msra.mxu0 0.0
    %4314 = vmatprep.subr.mxu0 0.0
    %4315 = vmatpush2.msra.mxu0 0.0
    %4316 = vmatprep.subr.mxu0 0.0
    %4317 = vmatpush2.msra.mxu0 0.0
    %4318 = vmatprep.subr.mxu0 0.0
    %4319 = vmatpush2.msra.mxu0 0.0
    %4320 = vmatprep.subr.mxu0 0.0
    %4321 = vmatpush2.msra.mxu0 0.0
    %4322 = vmatprep.subr.mxu0 0.0
    %4323 = vmatpush2.msra.mxu0 0.0
    %4324 = vmatprep.subr.mxu0 0.0
    %4325 = vmatpush2.msra.mxu0 0.0
    %4326 = vmatprep.subr.mxu0 0.0
    %4327 = vmatpush2.msra.mxu0 0.0
    %4328 = vmatprep.subr.mxu0 0.0
    %4329 = vmatpush2.msra.mxu0 0.0
    %4330 = vmatprep.subr.mxu0 0.0
    %4331 = vmatpush2.msra.mxu0 0.0
    %4332 = vmatprep.subr.mxu0 0.0
    %4333 = vmatpush2.msra.mxu0 0.0
    %4334 = vmatprep.subr.mxu0 0.0
    %4335 = vmatpush2.msra.mxu0 0.0
    %4336 = vmatprep.mubr.f32.mxu0 0.0
    %4337 = vmatmul.mubr.f32.gmra.mxu0 %v4267
    %v4338 = vpop.f32.mrf.mxu0
    %v4339 = vadd.f32 0.0, %v4338
    %v4340 = vpop.f32.mrf.mxu0
    %4341 = vmatprep.mubr.f32.mxu0 0.0
    %4342 = vmatmul.mubr.f32.gmra.mxu0 %v4270
    %v4343 = vpop.f32.mrf.mxu0
    %v4344 = vadd.f32 0.0, %v4343
    %v4345 = vpop.f32.mrf.mxu0
    %4346 = vdwg.mxu0
    %v4347 = vadd.f32 %v252, %v4339
    %v4348 = vadd.f32 %v257, %v4344
    %v4349 = vtanh.pop %v4347
    %v4350 = vtanh.pop %v4348
    %v4351 = vsel %vm178, %v4349, 0.0
    %4352 = vadd.xlane.f32.xlu0 %v4351
    %v4353 = vpop.xlane.xlu0 %4352
    %v4354 = vsel %vm178, %v4350, 0.0
    %4355 = vadd.xlane.f32.xlu0 %v4354
    %v4356 = vpop.xlane.xlu0 %4355
    %v4357 = vmul.f32 %v4353, %v437
    %v4358 = vmul.f32 %v4356, %v437
    %v4359 = vsub.f32 %v4349, %v4357
    %v4360 = vsub.f32 %v4350, %v4358
    %v4361 = vmul.f32 %v4359, %v4359
    %v4362 = vmul.f32 %v4360, %v4360
    %v4363 = vsel %vm178, %v4361, 0.0
    %4364 = vadd.xlane.f32.xlu0 %v4363
    %v4365 = vpop.xlane.xlu0 %4364
    %v4366 = vsel %vm178, %v4362, 0.0
    %4367 = vadd.xlane.f32.xlu0 %v4366
    %v4368 = vpop.xlane.xlu0 %4367
    %v4369 = vmul.f32 %v4365, %v437
    %v4370 = vmul.f32 %v4368, %v437
    %v4371 = vadd.f32 %v4369, 1e-05
    %v4372 = vadd.f32 %v4370, 1e-05
    %v4373 = vrsqrt.pop %v4371
    %v4374 = vrsqrt.pop %v4372
    %v4375 = vmul.f32 %v4359, %v4373
    %v4376 = vmul.f32 %v4360, %v4374
    %v4377 = vmul.f32 %v4375, %v462
    %v4378 = vmul.f32 %v4376, %v462
    %v4379 = vadd.f32 %v4377, %v470
    %v4380 = vadd.f32 %v4378, %v470
    %v4382 = vsel %vm178, %v4379, 0
    %v4385 = vsel %vm178, %v4380, 0
    %4387 = vmatprep.subr.mxu0 0.0
    %4388 = vmatpush1.msra.mxu0 0.0
    %4389 = vmatprep.subr.mxu0 0.0
    %4390 = vmatpush1.msra.mxu0 0.0
    %4391 = vmatprep.subr.mxu0 0.0
    %4392 = vmatpush1.msra.mxu0 0.0
    %4393 = vmatprep.subr.mxu0 0.0
    %4394 = vmatpush1.msra.mxu0 0.0
    %4395 = vmatprep.subr.mxu0 0.0
    %4396 = vmatpush1.msra.mxu0 0.0
    %4397 = vmatprep.subr.mxu0 0.0
    %4398 = vmatpush1.msra.mxu0 0.0
    %4399 = vmatprep.subr.mxu0 0.0
    %4400 = vmatpush1.msra.mxu0 0.0
    %4401 = vmatprep.subr.mxu0 0.0
    %4402 = vmatpush1.msra.mxu0 0.0
    %4403 = vmatprep.subr.mxu0 0.0
    %4404 = vmatpush1.msra.mxu0 0.0
    %4405 = vmatprep.subr.mxu0 0.0
    %4406 = vmatpush1.msra.mxu0 0.0
    %4407 = vmatprep.subr.mxu0 0.0
    %4408 = vmatpush1.msra.mxu0 0.0
    %4409 = vmatprep.subr.mxu0 0.0
    %4410 = vmatpush1.msra.mxu0 0.0
    %4411 = vmatprep.subr.mxu0 0.0
    %4412 = vmatpush1.msra.mxu0 %v154
    %4413 = vmatprep.subr.mxu0 0.0
    %4414 = vmatpush1.msra.mxu0 %v153
    %4415 = vmatprep.subr.mxu0 0.0
    %4416 = vmatpush1.msra.mxu0 %v152
    %4417 = vmatprep.subr.mxu0 0.0
    %4418 = vmatpush1.msra.mxu0 %v151
    %4419 = vmatprep.subr.mxu0 0.0
    %4420 = vmatpush2.msra.mxu0 0.0
    %4421 = vmatprep.subr.mxu0 0.0
    %4422 = vmatpush2.msra.mxu0 0.0
    %4423 = vmatprep.subr.mxu0 0.0
    %4424 = vmatpush2.msra.mxu0 0.0
    %4425 = vmatprep.subr.mxu0 0.0
    %4426 = vmatpush2.msra.mxu0 0.0
    %4427 = vmatprep.subr.mxu0 0.0
    %4428 = vmatpush2.msra.mxu0 0.0
    %4429 = vmatprep.subr.mxu0 0.0
    %4430 = vmatpush2.msra.mxu0 0.0
    %4431 = vmatprep.subr.mxu0 0.0
    %4432 = vmatpush2.msra.mxu0 0.0
    %4433 = vmatprep.subr.mxu0 0.0
    %4434 = vmatpush2.msra.mxu0 0.0
    %4435 = vmatprep.subr.mxu0 0.0
    %4436 = vmatpush2.msra.mxu0 0.0
    %4437 = vmatprep.subr.mxu0 0.0
    %4438 = vmatpush2.msra.mxu0 0.0
    %4439 = vmatprep.subr.mxu0 0.0
    %4440 = vmatpush2.msra.mxu0 0.0
    %4441 = vmatprep.subr.mxu0 0.0
    %4442 = vmatpush2.msra.mxu0 0.0
    %4443 = vmatprep.subr.mxu0 0.0
    %4444 = vmatpush2.msra.mxu0 0.0
    %4445 = vmatprep.subr.mxu0 0.0
    %4446 = vmatpush2.msra.mxu0 0.0
    %4447 = vmatprep.subr.mxu0 0.0
    %4448 = vmatpush2.msra.mxu0 0.0
    %4449 = vmatprep.subr.mxu0 0.0
    %4450 = vmatpush2.msra.mxu0 0.0
    %4451 = vmatprep.mubr.f32.mxu0 0.0
    %4452 = vmatmul.mubr.f32.gmra.mxu0 %v4382
    %v4453 = vpop.f32.mrf.mxu0
    %v4454 = vadd.f32 %v478, %v4453
    %v4455 = vpop.f32.mrf.mxu0
    %4456 = vmatprep.mubr.f32.mxu0 0.0
    %4457 = vmatmul.mubr.f32.gmra.mxu0 %v4385
    %v4458 = vpop.f32.mrf.mxu0
    %v4459 = vadd.f32 %v478, %v4458
    %v4460 = vpop.f32.mrf.mxu0
    %4461 = vdwg.mxu0
    %v4462 = vtanh.pop %v4454
    %v4463 = vtanh.pop %v4459
    %v4464 = vsel %vm563, %v4462, 0.0
    %4465 = vadd.xlane.f32.xlu0 %v4464
    %v4466 = vpop.xlane.xlu0 %4465
    %v4467 = vsel %vm563, %v4463, 0.0
    %4468 = vadd.xlane.f32.xlu0 %v4467
    %v4469 = vpop.xlane.xlu0 %4468
    %v4470 = vmul.f32 %v4466, %v570
    %v4471 = vmul.f32 %v4469, %v570
    %v4472 = vsub.f32 %v4462, %v4470
    %v4473 = vsub.f32 %v4463, %v4471
    %v4474 = vmul.f32 %v4472, %v4472
    %v4475 = vmul.f32 %v4473, %v4473
    %v4476 = vsel %vm563, %v4474, 0.0
    %4477 = vadd.xlane.f32.xlu0 %v4476
    %v4478 = vpop.xlane.xlu0 %4477
    %v4479 = vsel %vm563, %v4475, 0.0
    %4480 = vadd.xlane.f32.xlu0 %v4479
    %v4481 = vpop.xlane.xlu0 %4480
    %v4482 = vmul.f32 %v4478, %v570
    %v4483 = vmul.f32 %v4481, %v570
    %v4484 = vadd.f32 %v4482, 1e-05
    %v4485 = vadd.f32 %v4483, 1e-05
    %v4486 = vrsqrt.pop %v4484
    %v4487 = vrsqrt.pop %v4485
    %v4488 = vmul.f32 %v4472, %v4486
    %v4489 = vmul.f32 %v4473, %v4487
    %v4490 = vmul.f32 %v4488, %v595
    %v4491 = vmul.f32 %v4489, %v595
    %v4492 = vadd.f32 %v4490, %v603
    %v4493 = vadd.f32 %v4491, %v603
    %v4495 = vsel %vm563, %v4492, 0
    %v4498 = vsel %vm563, %v4493, 0
    %4500 = vmatprep.subr.mxu0 0.0
    %4501 = vmatpush1.msra.mxu0 0.0
    %4502 = vmatprep.subr.mxu0 0.0
    %4503 = vmatpush1.msra.mxu0 0.0
    %4504 = vmatprep.subr.mxu0 0.0
    %4505 = vmatpush1.msra.mxu0 0.0
    %4506 = vmatprep.subr.mxu0 0.0
    %4507 = vmatpush1.msra.mxu0 0.0
    %4508 = vmatprep.subr.mxu0 0.0
    %4509 = vmatpush1.msra.mxu0 0.0
    %4510 = vmatprep.subr.mxu0 0.0
    %4511 = vmatpush1.msra.mxu0 0.0
    %4512 = vmatprep.subr.mxu0 0.0
    %4513 = vmatpush1.msra.mxu0 0.0
    %4514 = vmatprep.subr.mxu0 0.0
    %4515 = vmatpush1.msra.mxu0 0.0
    %4516 = vmatprep.subr.mxu0 0.0
    %4517 = vmatpush1.msra.mxu0 0.0
    %4518 = vmatprep.subr.mxu0 0.0
    %4519 = vmatpush1.msra.mxu0 0.0
    %4520 = vmatprep.subr.mxu0 0.0
    %4521 = vmatpush1.msra.mxu0 0.0
    %4522 = vmatprep.subr.mxu0 0.0
    %4523 = vmatpush1.msra.mxu0 0.0
    %4524 = vmatprep.subr.mxu0 0.0
    %4525 = vmatpush1.msra.mxu0 0.0
    %4526 = vmatprep.subr.mxu0 0.0
    %4527 = vmatpush1.msra.mxu0 0.0
    %4528 = vmatprep.subr.mxu0 0.0
    %4529 = vmatpush1.msra.mxu0 %v158
    %4530 = vmatprep.subr.mxu0 0.0
    %4531 = vmatpush1.msra.mxu0 %v157
    %4532 = vmatprep.subr.mxu0 0.0
    %4533 = vmatpush2.msra.mxu0 0.0
    %4534 = vmatprep.subr.mxu0 0.0
    %4535 = vmatpush2.msra.mxu0 0.0
    %4536 = vmatprep.subr.mxu0 0.0
    %4537 = vmatpush2.msra.mxu0 0.0
    %4538 = vmatprep.subr.mxu0 0.0
    %4539 = vmatpush2.msra.mxu0 0.0
    %4540 = vmatprep.subr.mxu0 0.0
    %4541 = vmatpush2.msra.mxu0 0.0
    %4542 = vmatprep.subr.mxu0 0.0
    %4543 = vmatpush2.msra.mxu0 0.0
    %4544 = vmatprep.subr.mxu0 0.0
    %4545 = vmatpush2.msra.mxu0 0.0
    %4546 = vmatprep.subr.mxu0 0.0
    %4547 = vmatpush2.msra.mxu0 0.0
    %4548 = vmatprep.subr.mxu0 0.0
    %4549 = vmatpush2.msra.mxu0 0.0
    %4550 = vmatprep.subr.mxu0 0.0
    %4551 = vmatpush2.msra.mxu0 0.0
    %4552 = vmatprep.subr.mxu0 0.0
    %4553 = vmatpush2.msra.mxu0 0.0
    %4554 = vmatprep.subr.mxu0 0.0
    %4555 = vmatpush2.msra.mxu0 0.0
    %4556 = vmatprep.subr.mxu0 0.0
    %4557 = vmatpush2.msra.mxu0 0.0
    %4558 = vmatprep.subr.mxu0 0.0
    %4559 = vmatpush2.msra.mxu0 0.0
    %4560 = vmatprep.subr.mxu0 0.0
    %4561 = vmatpush2.msra.mxu0 0.0
    %4562 = vmatprep.subr.mxu0 0.0
    %4563 = vmatpush2.msra.mxu0 0.0
    %4564 = vmatprep.mubr.f32.mxu0 0.0
    %4565 = vmatmul.mubr.f32.gmra.mxu0 %v4495
    %v4566 = vpop.f32.mrf.mxu0
    %v4567 = vadd.f32 %v611, %v4566
    %v4568 = vpop.f32.mrf.mxu0
    %4569 = vmatprep.mubr.f32.mxu0 0.0
    %4570 = vmatmul.mubr.f32.gmra.mxu0 %v4498
    %v4571 = vpop.f32.mrf.mxu0
    %v4572 = vadd.f32 %v611, %v4571
    %v4573 = vpop.f32.mrf.mxu0
    %4574 = vdwg.mxu0
    %v4575 = vmul.f32 %v4567, 0.2
    %v4576 = vmul.f32 %v4572, 0.2
    %v4578 = vsel %vm696, %v4575, 0
    %v4581 = vsel %vm696, %v4576, 0
    %4583 = vmatprep.subr.mxu0 0.0
    %4584 = vmatpush1.msra.mxu0 0.0
    %4585 = vmatprep.subr.mxu0 0.0
    %4586 = vmatpush1.msra.mxu0 0.0
    %4587 = vmatprep.subr.mxu0 0.0
    %4588 = vmatpush1.msra.mxu0 0.0
    %4589 = vmatprep.subr.mxu0 0.0
    %4590 = vmatpush1.msra.mxu0 0.0
    %4591 = vmatprep.subr.mxu0 0.0
    %4592 = vmatpush1.msra.mxu0 0.0
    %4593 = vmatprep.subr.mxu0 0.0
    %4594 = vmatpush1.msra.mxu0 0.0
    %4595 = vmatprep.subr.mxu0 0.0
    %4596 = vmatpush1.msra.mxu0 0.0
    %4597 = vmatprep.subr.mxu0 0.0
    %4598 = vmatpush1.msra.mxu0 0.0
    %4599 = vmatprep.subr.mxu0 0.0
    %4600 = vmatpush1.msra.mxu0 0.0
    %4601 = vmatprep.subr.mxu0 0.0
    %4602 = vmatpush1.msra.mxu0 0.0
    %4603 = vmatprep.subr.mxu0 0.0
    %4604 = vmatpush1.msra.mxu0 0.0
    %4605 = vmatprep.subr.mxu0 0.0
    %4606 = vmatpush1.msra.mxu0 0.0
    %4607 = vmatprep.subr.mxu0 0.0
    %4608 = vmatpush1.msra.mxu0 0.0
    %4609 = vmatprep.subr.mxu0 0.0
    %4610 = vmatpush1.msra.mxu0 0.0
    %4611 = vmatprep.subr.mxu0 0.0
    %4612 = vmatpush1.msra.mxu0 %v704
    %4613 = vmatprep.subr.mxu0 0.0
    %4614 = vmatpush1.msra.mxu0 %v159
    %4615 = vmatprep.subr.mxu0 0.0
    %4616 = vmatpush2.msra.mxu0 0.0
    %4617 = vmatprep.subr.mxu0 0.0
    %4618 = vmatpush2.msra.mxu0 0.0
    %4619 = vmatprep.subr.mxu0 0.0
    %4620 = vmatpush2.msra.mxu0 0.0
    %4621 = vmatprep.subr.mxu0 0.0
    %4622 = vmatpush2.msra.mxu0 0.0
    %4623 = vmatprep.subr.mxu0 0.0
    %4624 = vmatpush2.msra.mxu0 0.0
    %4625 = vmatprep.subr.mxu0 0.0
    %4626 = vmatpush2.msra.mxu0 0.0
    %4627 = vmatprep.subr.mxu0 0.0
    %4628 = vmatpush2.msra.mxu0 0.0
    %4629 = vmatprep.subr.mxu0 0.0
    %4630 = vmatpush2.msra.mxu0 0.0
    %4631 = vmatprep.subr.mxu0 0.0
    %4632 = vmatpush2.msra.mxu0 0.0
    %4633 = vmatprep.subr.mxu0 0.0
    %4634 = vmatpush2.msra.mxu0 0.0
    %4635 = vmatprep.subr.mxu0 0.0
    %4636 = vmatpush2.msra.mxu0 0.0
    %4637 = vmatprep.subr.mxu0 0.0
    %4638 = vmatpush2.msra.mxu0 0.0
    %4639 = vmatprep.subr.mxu0 0.0
    %4640 = vmatpush2.msra.mxu0 0.0
    %4641 = vmatprep.subr.mxu0 0.0
    %4642 = vmatpush2.msra.mxu0 0.0
    %4643 = vmatprep.subr.mxu0 0.0
    %4644 = vmatpush2.msra.mxu0 0.0
    %4645 = vmatprep.subr.mxu0 0.0
    %4646 = vmatpush2.msra.mxu0 0.0
    %4647 = vmatprep.mubr.f32.mxu0 0.0
    %4648 = vmatmul.mubr.f32.gmra.mxu0 %v4578
    %v4649 = vpop.f32.mrf.mxu0
    %v4650 = vadd.f32 0.0, %v4649
    %v4651 = vpop.f32.mrf.mxu0
    %4652 = vmatprep.mubr.f32.mxu0 0.0
    %4653 = vmatmul.mubr.f32.gmra.mxu0 %v4581
    %v4654 = vpop.f32.mrf.mxu0
    %v4655 = vadd.f32 0.0, %v4654
    %v4656 = vpop.f32.mrf.mxu0
    %4657 = vdwg.mxu0
    %v4658 = vmul.f32 %v4650, %v595
    %v4659 = vmul.f32 %v4655, %v595
    %v4660 = vsel %vm563, %v4658, 0.0
    %4661 = vadd.xlane.f32.xlu0 %v4660
    %v4662 = vpop.xlane.xlu0 %4661
    %v4663 = vsel %vm563, %v4659, 0.0
    %4664 = vadd.xlane.f32.xlu0 %v4663
    %v4665 = vpop.xlane.xlu0 %4664
    %v4666 = vmul.f32 %v4662, %v570
    %v4667 = vmul.f32 %v4665, %v570
    %v4668 = vmul.f32 %v4658, %v4488
    %v4669 = vmul.f32 %v4659, %v4489
    %v4670 = vsel %vm563, %v4668, 0.0
    %4671 = vadd.xlane.f32.xlu0 %v4670
    %v4672 = vpop.xlane.xlu0 %4671
    %v4673 = vsel %vm563, %v4669, 0.0
    %4674 = vadd.xlane.f32.xlu0 %v4673
    %v4675 = vpop.xlane.xlu0 %4674
    %v4676 = vmul.f32 %v4672, %v570
    %v4677 = vmul.f32 %v4675, %v570
    %v4678 = vsub.f32 %v4658, %v4666
    %v4679 = vsub.f32 %v4659, %v4667
    %v4680 = vmul.f32 %v4488, %v4676
    %v4681 = vmul.f32 %v4489, %v4677
    %v4682 = vsub.f32 %v4678, %v4680
    %v4683 = vsub.f32 %v4679, %v4681
    %v4684 = vmul.f32 %v4486, %v4682
    %v4685 = vmul.f32 %v4487, %v4683
    %v4686 = vmul.f32 %v4462, %v4462
    %v4687 = vmul.f32 %v4463, %v4463
    %v4688 = vsub.f32 1.0, %v4686
    %v4689 = vsub.f32 1.0, %v4687
    %v4690 = vmul.f32 %v4684, %v4688
    %v4691 = vmul.f32 %v4685, %v4689
    %v4693 = vsel %vm563, %v4690, 0
    %v4696 = vsel %vm563, %v4691, 0
    %4698 = vmatprep.subr.mxu0 0.0
    %4699 = vmatpush1.msra.mxu0 0.0
    %4700 = vmatprep.subr.mxu0 0.0
    %4701 = vmatpush1.msra.mxu0 0.0
    %4702 = vmatprep.subr.mxu0 0.0
    %4703 = vmatpush1.msra.mxu0 0.0
    %4704 = vmatprep.subr.mxu0 0.0
    %4705 = vmatpush1.msra.mxu0 0.0
    %4706 = vmatprep.subr.mxu0 0.0
    %4707 = vmatpush1.msra.mxu0 0.0
    %4708 = vmatprep.subr.mxu0 0.0
    %4709 = vmatpush1.msra.mxu0 0.0
    %4710 = vmatprep.subr.mxu0 0.0
    %4711 = vmatpush1.msra.mxu0 0.0
    %4712 = vmatprep.subr.mxu0 0.0
    %4713 = vmatpush1.msra.mxu0 0.0
    %4714 = vmatprep.subr.mxu0 0.0
    %4715 = vmatpush1.msra.mxu0 0.0
    %4716 = vmatprep.subr.mxu0 0.0
    %4717 = vmatpush1.msra.mxu0 0.0
    %4718 = vmatprep.subr.mxu0 0.0
    %4719 = vmatpush1.msra.mxu0 0.0
    %4720 = vmatprep.subr.mxu0 0.0
    %4721 = vmatpush1.msra.mxu0 0.0
    %4722 = vmatprep.subr.mxu0 0.0
    %4723 = vmatpush1.msra.mxu0 0.0
    %4724 = vmatprep.subr.mxu0 0.0
    %4725 = vmatpush1.msra.mxu0 0.0
    %4726 = vmatprep.subr.mxu0 0.0
    %4727 = vmatpush1.msra.mxu0 %v156
    %4728 = vmatprep.subr.mxu0 0.0
    %4729 = vmatpush1.msra.mxu0 %v155
    %4730 = vmatprep.subr.mxu0 0.0
    %4731 = vmatpush2.msra.mxu0 0.0
    %4732 = vmatprep.subr.mxu0 0.0
    %4733 = vmatpush2.msra.mxu0 0.0
    %4734 = vmatprep.subr.mxu0 0.0
    %4735 = vmatpush2.msra.mxu0 0.0
    %4736 = vmatprep.subr.mxu0 0.0
    %4737 = vmatpush2.msra.mxu0 0.0
    %4738 = vmatprep.subr.mxu0 0.0
    %4739 = vmatpush2.msra.mxu0 0.0
    %4740 = vmatprep.subr.mxu0 0.0
    %4741 = vmatpush2.msra.mxu0 0.0
    %4742 = vmatprep.subr.mxu0 0.0
    %4743 = vmatpush2.msra.mxu0 0.0
    %4744 = vmatprep.subr.mxu0 0.0
    %4745 = vmatpush2.msra.mxu0 0.0
    %4746 = vmatprep.subr.mxu0 0.0
    %4747 = vmatpush2.msra.mxu0 0.0
    %4748 = vmatprep.subr.mxu0 0.0
    %4749 = vmatpush2.msra.mxu0 0.0
    %4750 = vmatprep.subr.mxu0 0.0
    %4751 = vmatpush2.msra.mxu0 0.0
    %4752 = vmatprep.subr.mxu0 0.0
    %4753 = vmatpush2.msra.mxu0 0.0
    %4754 = vmatprep.subr.mxu0 0.0
    %4755 = vmatpush2.msra.mxu0 0.0
    %4756 = vmatprep.subr.mxu0 0.0
    %4757 = vmatpush2.msra.mxu0 0.0
    %4758 = vmatprep.subr.mxu0 0.0
    %4759 = vmatpush2.msra.mxu0 0.0
    %4760 = vmatprep.subr.mxu0 0.0
    %4761 = vmatpush2.msra.mxu0 0.0
    %4762 = vmatprep.mubr.f32.mxu0 0.0
    %4763 = vmatmul.mubr.f32.gmra.mxu0 %v4693
    %v4764 = vpop.f32.mrf.mxu0
    %v4765 = vadd.f32 0.0, %v4764
    %v4766 = vpop.f32.mrf.mxu0
    %4767 = vmatprep.mubr.f32.mxu0 0.0
    %4768 = vmatmul.mubr.f32.gmra.mxu0 %v4696
    %v4769 = vpop.f32.mrf.mxu0
    %v4770 = vadd.f32 0.0, %v4769
    %v4771 = vpop.f32.mrf.mxu0
    %4772 = vdwg.mxu0
    %v4773 = vmul.f32 %v4765, %v462
    %v4774 = vmul.f32 %v4770, %v462
    %v4775 = vsel %vm178, %v4773, 0.0
    %4776 = vadd.xlane.f32.xlu0 %v4775
    %v4777 = vpop.xlane.xlu0 %4776
    %v4778 = vsel %vm178, %v4774, 0.0
    %4779 = vadd.xlane.f32.xlu0 %v4778
    %v4780 = vpop.xlane.xlu0 %4779
    %v4781 = vmul.f32 %v4777, %v437
    %v4782 = vmul.f32 %v4780, %v437
    %v4783 = vmul.f32 %v4773, %v4375
    %v4784 = vmul.f32 %v4774, %v4376
    %v4785 = vsel %vm178, %v4783, 0.0
    %4786 = vadd.xlane.f32.xlu0 %v4785
    %v4787 = vpop.xlane.xlu0 %4786
    %v4788 = vsel %vm178, %v4784, 0.0
    %4789 = vadd.xlane.f32.xlu0 %v4788
    %v4790 = vpop.xlane.xlu0 %4789
    %v4791 = vmul.f32 %v4787, %v437
    %v4792 = vmul.f32 %v4790, %v437
    %v4793 = vsub.f32 %v4773, %v4781
    %v4794 = vsub.f32 %v4774, %v4782
    %v4795 = vmul.f32 %v4375, %v4791
    %v4796 = vmul.f32 %v4376, %v4792
    %v4797 = vsub.f32 %v4793, %v4795
    %v4798 = vsub.f32 %v4794, %v4796
    %v4799 = vmul.f32 %v4373, %v4797
    %v4800 = vmul.f32 %v4374, %v4798
    %v4801 = vmul.f32 %v4349, %v4349
    %v4802 = vmul.f32 %v4350, %v4350
    %v4803 = vsub.f32 1.0, %v4801
    %v4804 = vsub.f32 1.0, %v4802
    %v4805 = vmul.f32 %v4799, %v4803
    %v4806 = vmul.f32 %v4800, %v4804
    %v4808 = vsel %vm178, %v4805, 0
    %v4811 = vsel %vm178, %v4806, 0
    %4813 = vmatprep.subr.mxu0 0.0
    %4814 = vmatpush1.msra.mxu0 0.0
    %4815 = vmatprep.subr.mxu0 0.0
    %4816 = vmatpush1.msra.mxu0 0.0
    %4817 = vmatprep.subr.mxu0 0.0
    %4818 = vmatpush1.msra.mxu0 0.0
    %4819 = vmatprep.subr.mxu0 0.0
    %4820 = vmatpush1.msra.mxu0 0.0
    %4821 = vmatprep.subr.mxu0 0.0
    %4822 = vmatpush1.msra.mxu0 0.0
    %4823 = vmatprep.subr.mxu0 0.0
    %4824 = vmatpush1.msra.mxu0 0.0
    %4825 = vmatprep.subr.mxu0 0.0
    %4826 = vmatpush1.msra.mxu0 0.0
    %4827 = vmatprep.subr.mxu0 0.0
    %4828 = vmatpush1.msra.mxu0 0.0
    %4829 = vmatprep.subr.mxu0 0.0
    %4830 = vmatpush1.msra.mxu0 0.0
    %4831 = vmatprep.subr.mxu0 0.0
    %4832 = vmatpush1.msra.mxu0 0.0
    %4833 = vmatprep.subr.mxu0 0.0
    %4834 = vmatpush1.msra.mxu0 0.0
    %4835 = vmatprep.subr.mxu0 0.0
    %4836 = vmatpush1.msra.mxu0 0.0
    %4837 = vmatprep.subr.mxu0 0.0
    %4838 = vmatpush1.msra.mxu0 %v150
    %4839 = vmatprep.subr.mxu0 0.0
    %4840 = vmatpush1.msra.mxu0 %v149
    %4841 = vmatprep.subr.mxu0 0.0
    %4842 = vmatpush1.msra.mxu0 %v148
    %4843 = vmatprep.subr.mxu0 0.0
    %4844 = vmatpush1.msra.mxu0 %v147
    %4845 = vmatprep.subr.mxu0 0.0
    %4846 = vmatpush2.msra.mxu0 0.0
    %4847 = vmatprep.subr.mxu0 0.0
    %4848 = vmatpush2.msra.mxu0 0.0
    %4849 = vmatprep.subr.mxu0 0.0
    %4850 = vmatpush2.msra.mxu0 0.0
    %4851 = vmatprep.subr.mxu0 0.0
    %4852 = vmatpush2.msra.mxu0 0.0
    %4853 = vmatprep.subr.mxu0 0.0
    %4854 = vmatpush2.msra.mxu0 0.0
    %4855 = vmatprep.subr.mxu0 0.0
    %4856 = vmatpush2.msra.mxu0 0.0
    %4857 = vmatprep.subr.mxu0 0.0
    %4858 = vmatpush2.msra.mxu0 0.0
    %4859 = vmatprep.subr.mxu0 0.0
    %4860 = vmatpush2.msra.mxu0 0.0
    %4861 = vmatprep.subr.mxu0 0.0
    %4862 = vmatpush2.msra.mxu0 0.0
    %4863 = vmatprep.subr.mxu0 0.0
    %4864 = vmatpush2.msra.mxu0 0.0
    %4865 = vmatprep.subr.mxu0 0.0
    %4866 = vmatpush2.msra.mxu0 0.0
    %4867 = vmatprep.subr.mxu0 0.0
    %4868 = vmatpush2.msra.mxu0 0.0
    %4869 = vmatprep.subr.mxu0 0.0
    %4870 = vmatpush2.msra.mxu0 0.0
    %4871 = vmatprep.subr.mxu0 0.0
    %4872 = vmatpush2.msra.mxu0 0.0
    %4873 = vmatprep.subr.mxu0 0.0
    %4874 = vmatpush2.msra.mxu0 0.0
    %4875 = vmatprep.subr.mxu0 0.0
    %4876 = vmatpush2.msra.mxu0 0.0
    %4877 = vmatprep.mubr.f32.mxu0 0.0
    %4878 = vmatmul.mubr.f32.gmra.mxu0 %v4808
    %v4879 = vpop.f32.mrf.mxu0
    %v4880 = vadd.f32 0.0, %v4879
    %v4881 = vpop.f32.mrf.mxu0
    %4882 = vmatprep.mubr.f32.mxu0 0.0
    %4883 = vmatmul.mubr.f32.gmra.mxu0 %v4811
    %v4884 = vpop.f32.mrf.mxu0
    %v4885 = vadd.f32 0.0, %v4884
    %v4886 = vpop.f32.mrf.mxu0
    %4887 = vdwg.mxu0
    %v4888 = vmul.f32 %v4187, 6.25e-05
    %4889 = vmatprep.subr.mxu0 0.0
    %4890 = vmatpush1.msra.mxu0 0.0
    %4891 = vmatprep.subr.mxu0 0.0
    %4892 = vmatpush1.msra.mxu0 0.0
    %4893 = vmatprep.subr.mxu0 0.0
    %4894 = vmatpush1.msra.mxu0 0.0
    %4895 = vmatprep.subr.mxu0 0.0
    %4896 = vmatpush1.msra.mxu0 0.0
    %4897 = vmatprep.subr.mxu0 0.0
    %4898 = vmatpush1.msra.mxu0 0.0
    %4899 = vmatprep.subr.mxu0 0.0
    %4900 = vmatpush1.msra.mxu0 0.0
    %4901 = vmatprep.subr.mxu0 0.0
    %4902 = vmatpush1.msra.mxu0 0.0
    %4903 = vmatprep.subr.mxu0 0.0
    %4904 = vmatpush1.msra.mxu0 0.0
    %4905 = vmatprep.subr.mxu0 0.0
    %4906 = vmatpush1.msra.mxu0 0.0
    %4907 = vmatprep.subr.mxu0 0.0
    %4908 = vmatpush1.msra.mxu0 0.0
    %4909 = vmatprep.subr.mxu0 0.0
    %4910 = vmatpush1.msra.mxu0 0.0
    %4911 = vmatprep.subr.mxu0 0.0
    %4912 = vmatpush1.msra.mxu0 0.0
    %4913 = vmatprep.subr.mxu0 0.0
    %4914 = vmatpush1.msra.mxu0 0.0
    %4915 = vmatprep.subr.mxu0 0.0
    %4916 = vmatpush1.msra.mxu0 0.0
    %4917 = vmatprep.subr.mxu0 0.0
    %4918 = vmatpush1.msra.mxu0 %v4885
    %4919 = vmatprep.subr.mxu0 0.0
    %4920 = vmatpush1.msra.mxu0 %v4880
    %4921 = vmatprep.subr.mxu0 0.0
    %4922 = vmatpush2.msra.mxu0 0.0
    %4923 = vmatprep.subr.mxu0 0.0
    %4924 = vmatpush2.msra.mxu0 0.0
    %4925 = vmatprep.subr.mxu0 0.0
    %4926 = vmatpush2.msra.mxu0 0.0
    %4927 = vmatprep.subr.mxu0 0.0
    %4928 = vmatpush2.msra.mxu0 0.0
    %4929 = vmatprep.subr.mxu0 0.0
    %4930 = vmatpush2.msra.mxu0 0.0
    %4931 = vmatprep.subr.mxu0 0.0
    %4932 = vmatpush2.msra.mxu0 0.0
    %4933 = vmatprep.subr.mxu0 0.0
    %4934 = vmatpush2.msra.mxu0 0.0
    %4935 = vmatprep.subr.mxu0 0.0
    %4936 = vmatpush2.msra.mxu0 0.0
    %4937 = vmatprep.subr.mxu0 0.0
    %4938 = vmatpush2.msra.mxu0 0.0
    %4939 = vmatprep.subr.mxu0 0.0
    %4940 = vmatpush2.msra.mxu0 0.0
    %4941 = vmatprep.subr.mxu0 0.0
    %4942 = vmatpush2.msra.mxu0 0.0
    %4943 = vmatprep.subr.mxu0 0.0
    %4944 = vmatpush2.msra.mxu0 0.0
    %4945 = vmatprep.subr.mxu0 0.0
    %4946 = vmatpush2.msra.mxu0 0.0
    %4947 = vmatprep.subr.mxu0 0.0
    %4948 = vmatpush2.msra.mxu0 0.0
    %4949 = vmatprep.subr.mxu0 0.0
    %4950 = vmatpush2.msra.mxu0 0.0
    %4951 = vmatprep.subr.mxu0 0.0
    %4952 = vmatpush2.msra.mxu0 0.0
    %4953 = vmatprep.mubr.f32.mxu0 0.0
    %4954 = vmatmul.mubr.f32.gmra.mxu0 %v1012
    %v4955 = vpop.f32.mrf.mxu0
    %v4956 = vadd.f32 %v4888, %v4955
    %v4957 = vpop.f32.mrf.mxu0
    %4958 = vdwg.mxu0
    %s4959 = scalar_lea.vmem [#allocation14], 10
    %4960 = vst.msk [vmem:[%s4959] sm:$0x3] %vm1084, %v4956
    %v4961 = vmul.f32 %v4956, 0.1
    %v4962 = vsub.f32 %v4187, %v4961
    %v4964 = vsel %vm267, %v4962, 0
    %4966 = vmatprep.subr.mxu0 0.0
    %4967 = vmatpush1.msra.mxu0 0.0
    %4968 = vmatprep.subr.mxu0 0.0
    %4969 = vmatpush1.msra.mxu0 0.0
    %4970 = vmatprep.subr.mxu0 0.0
    %4971 = vmatpush1.msra.mxu0 0.0
    %4972 = vmatprep.subr.mxu0 0.0
    %4973 = vmatpush1.msra.mxu0 0.0
    %4974 = vmatprep.subr.mxu0 0.0
    %4975 = vmatpush1.msra.mxu0 0.0
    %4976 = vmatprep.subr.mxu0 0.0
    %4977 = vmatpush1.msra.mxu0 0.0
    %4978 = vmatprep.subr.mxu0 0.0
    %4979 = vmatpush1.msra.mxu0 0.0
    %4980 = vmatprep.subr.mxu0 0.0
    %4981 = vmatpush1.msra.mxu0 0.0
    %4982 = vmatprep.subr.mxu0 0.0
    %4983 = vmatpush1.msra.mxu0 0.0
    %4984 = vmatprep.subr.mxu0 0.0
    %4985 = vmatpush1.msra.mxu0 0.0
    %4986 = vmatprep.subr.mxu0 0.0
    %4987 = vmatpush1.msra.mxu0 0.0
    %4988 = vmatprep.subr.mxu0 0.0
    %4989 = vmatpush1.msra.mxu0 0.0
    %4990 = vmatprep.subr.mxu0 0.0
    %4991 = vmatpush1.msra.mxu0 0.0
    %4992 = vmatprep.subr.mxu0 0.0
    %4993 = vmatpush1.msra.mxu0 0.0
    %4994 = vmatprep.subr.mxu0 0.0
    %4995 = vmatpush1.msra.mxu0 0.0
    %4996 = vmatprep.subr.mxu0 0.0
    %4997 = vmatpush1.msra.mxu0 %v4964
    %4998 = vmatprep.subr.mxu0 0.0
    %4999 = vmatpush2.msra.mxu0 0.0
    %5000 = vmatprep.subr.mxu0 0.0
    %5001 = vmatpush2.msra.mxu0 0.0
    %5002 = vmatprep.subr.mxu0 0.0
    %5003 = vmatpush2.msra.mxu0 0.0
    %5004 = vmatprep.subr.mxu0 0.0
    %5005 = vmatpush2.msra.mxu0 0.0
    %5006 = vmatprep.subr.mxu0 0.0
    %5007 = vmatpush2.msra.mxu0 0.0
    %5008 = vmatprep.subr.mxu0 0.0
    %5009 = vmatpush2.msra.mxu0 0.0
    %5010 = vmatprep.subr.mxu0 0.0
    %5011 = vmatpush2.msra.mxu0 0.0
    %5012 = vmatprep.subr.mxu0 0.0
    %5013 = vmatpush2.msra.mxu0 0.0
    %5014 = vmatprep.subr.mxu0 0.0
    %5015 = vmatpush2.msra.mxu0 0.0
    %5016 = vmatprep.subr.mxu0 0.0
    %5017 = vmatpush2.msra.mxu0 0.0
    %5018 = vmatprep.subr.mxu0 0.0
    %5019 = vmatpush2.msra.mxu0 0.0
    %5020 = vmatprep.subr.mxu0 0.0
    %5021 = vmatpush2.msra.mxu0 0.0
    %5022 = vmatprep.subr.mxu0 0.0
    %5023 = vmatpush2.msra.mxu0 0.0
    %5024 = vmatprep.subr.mxu0 0.0
    %5025 = vmatpush2.msra.mxu0 0.0
    %5026 = vmatprep.subr.mxu0 0.0
    %5027 = vmatpush2.msra.mxu0 0.0
    %5028 = vmatprep.subr.mxu0 0.0
    %5029 = vmatpush2.msra.mxu0 0.0
    %5030 = vmatprep.mubr.f32.mxu0 0.0
    %5031 = vmatmul.mubr.f32.gmra.mxu0 %v262
    %v5032 = vpop.f32.mrf.mxu0
    %v5033 = vadd.f32 0.0, %v5032
    %v5034 = vpop.f32.mrf.mxu0
    %5035 = vmatprep.mubr.f32.mxu0 0.0
    %5036 = vmatmul.mubr.f32.gmra.mxu0 %v265
    %v5037 = vpop.f32.mrf.mxu0
    %v5038 = vadd.f32 0.0, %v5037
    %v5039 = vpop.f32.mrf.mxu0
    %5040 = vdwg.mxu0
    %v5042 = vsel %vm178, %v5033, 0
    %v5045 = vsel %vm178, %v5038, 0
    %5047 = vmatprep.subr.mxu0 0.0
    %5048 = vmatpush1.msra.mxu0 0.0
    %5049 = vmatprep.subr.mxu0 0.0
    %5050 = vmatpush1.msra.mxu0 0.0
    %5051 = vmatprep.subr.mxu0 0.0
    %5052 = vmatpush1.msra.mxu0 0.0
    %5053 = vmatprep.subr.mxu0 0.0
    %5054 = vmatpush1.msra.mxu0 0.0
    %5055 = vmatprep.subr.mxu0 0.0
    %5056 = vmatpush1.msra.mxu0 0.0
    %5057 = vmatprep.subr.mxu0 0.0
    %5058 = vmatpush1.msra.mxu0 0.0
    %5059 = vmatprep.subr.mxu0 0.0
    %5060 = vmatpush1.msra.mxu0 0.0
    %5061 = vmatprep.subr.mxu0 0.0
    %5062 = vmatpush1.msra.mxu0 0.0
    %5063 = vmatprep.subr.mxu0 0.0
    %5064 = vmatpush1.msra.mxu0 0.0
    %5065 = vmatprep.subr.mxu0 0.0
    %5066 = vmatpush1.msra.mxu0 0.0
    %5067 = vmatprep.subr.mxu0 0.0
    %5068 = vmatpush1.msra.mxu0 0.0
    %5069 = vmatprep.subr.mxu0 0.0
    %5070 = vmatpush1.msra.mxu0 0.0
    %5071 = vmatprep.subr.mxu0 0.0
    %5072 = vmatpush1.msra.mxu0 %v146
    %5073 = vmatprep.subr.mxu0 0.0
    %5074 = vmatpush1.msra.mxu0 %v145
    %5075 = vmatprep.subr.mxu0 0.0
    %5076 = vmatpush1.msra.mxu0 %v144
    %5077 = vmatprep.subr.mxu0 0.0
    %5078 = vmatpush1.msra.mxu0 %v143
    %5079 = vmatprep.subr.mxu0 0.0
    %5080 = vmatpush2.msra.mxu0 0.0
    %5081 = vmatprep.subr.mxu0 0.0
    %5082 = vmatpush2.msra.mxu0 0.0
    %5083 = vmatprep.subr.mxu0 0.0
    %5084 = vmatpush2.msra.mxu0 0.0
    %5085 = vmatprep.subr.mxu0 0.0
    %5086 = vmatpush2.msra.mxu0 0.0
    %5087 = vmatprep.subr.mxu0 0.0
    %5088 = vmatpush2.msra.mxu0 0.0
    %5089 = vmatprep.subr.mxu0 0.0
    %5090 = vmatpush2.msra.mxu0 0.0
    %5091 = vmatprep.subr.mxu0 0.0
    %5092 = vmatpush2.msra.mxu0 0.0
    %5093 = vmatprep.subr.mxu0 0.0
    %5094 = vmatpush2.msra.mxu0 0.0
    %5095 = vmatprep.subr.mxu0 0.0
    %5096 = vmatpush2.msra.mxu0 0.0
    %5097 = vmatprep.subr.mxu0 0.0
    %5098 = vmatpush2.msra.mxu0 0.0
    %5099 = vmatprep.subr.mxu0 0.0
    %5100 = vmatpush2.msra.mxu0 0.0
    %5101 = vmatprep.subr.mxu0 0.0
    %5102 = vmatpush2.msra.mxu0 0.0
    %5103 = vmatprep.subr.mxu0 0.0
    %5104 = vmatpush2.msra.mxu0 0.0
    %5105 = vmatprep.subr.mxu0 0.0
    %5106 = vmatpush2.msra.mxu0 0.0
    %5107 = vmatprep.subr.mxu0 0.0
    %5108 = vmatpush2.msra.mxu0 0.0
    %5109 = vmatprep.subr.mxu0 0.0
    %5110 = vmatpush2.msra.mxu0 0.0
    %5111 = vmatprep.mubr.f32.mxu0 0.0
    %5112 = vmatmul.mubr.f32.gmra.mxu0 %v5042
    %v5113 = vpop.f32.mrf.mxu0
    %v5114 = vadd.f32 0.0, %v5113
    %v5115 = vpop.f32.mrf.mxu0
    %5116 = vmatprep.mubr.f32.mxu0 0.0
    %5117 = vmatmul.mubr.f32.gmra.mxu0 %v5045
    %v5118 = vpop.f32.mrf.mxu0
    %v5119 = vadd.f32 0.0, %v5118
    %v5120 = vpop.f32.mrf.mxu0
    %5121 = vdwg.mxu0
    %v5122 = vadd.f32 %v252, %v5114
    %v5123 = vadd.f32 %v257, %v5119
    %v5124 = vtanh.pop %v5122
    %v5125 = vtanh.pop %v5123
    %v5126 = vsel %vm178, %v5124, 0.0
    %5127 = vadd.xlane.f32.xlu0 %v5126
    %v5128 = vpop.xlane.xlu0 %5127
    %v5129 = vsel %vm178, %v5125, 0.0
    %5130 = vadd.xlane.f32.xlu0 %v5129
    %v5131 = vpop.xlane.xlu0 %5130
    %v5132 = vmul.f32 %v5128, %v437
    %v5133 = vmul.f32 %v5131, %v437
    %v5134 = vsub.f32 %v5124, %v5132
    %v5135 = vsub.f32 %v5125, %v5133
    %v5136 = vmul.f32 %v5134, %v5134
    %v5137 = vmul.f32 %v5135, %v5135
    %v5138 = vsel %vm178, %v5136, 0.0
    %5139 = vadd.xlane.f32.xlu0 %v5138
    %v5140 = vpop.xlane.xlu0 %5139
    %v5141 = vsel %vm178, %v5137, 0.0
    %5142 = vadd.xlane.f32.xlu0 %v5141
    %v5143 = vpop.xlane.xlu0 %5142
    %v5144 = vmul.f32 %v5140, %v437
    %v5145 = vmul.f32 %v5143, %v437
    %v5146 = vadd.f32 %v5144, 1e-05
    %v5147 = vadd.f32 %v5145, 1e-05
    %v5148 = vrsqrt.pop %v5146
    %v5149 = vrsqrt.pop %v5147
    %v5150 = vmul.f32 %v5134, %v5148
    %v5151 = vmul.f32 %v5135, %v5149
    %v5152 = vmul.f32 %v5150, %v462
    %v5153 = vmul.f32 %v5151, %v462
    %v5154 = vadd.f32 %v5152, %v470
    %v5155 = vadd.f32 %v5153, %v470
    %v5157 = vsel %vm178, %v5154, 0
    %v5160 = vsel %vm178, %v5155, 0
    %5162 = vmatprep.subr.mxu0 0.0
    %5163 = vmatpush1.msra.mxu0 0.0
    %5164 = vmatprep.subr.mxu0 0.0
    %5165 = vmatpush1.msra.mxu0 0.0
    %5166 = vmatprep.subr.mxu0 0.0
    %5167 = vmatpush1.msra.mxu0 0.0
    %5168 = vmatprep.subr.mxu0 0.0
    %5169 = vmatpush1.msra.mxu0 0.0
    %5170 = vmatprep.subr.mxu0 0.0
    %5171 = vmatpush1.msra.mxu0 0.0
    %5172 = vmatprep.subr.mxu0 0.0
    %5173 = vmatpush1.msra.mxu0 0.0
    %5174 = vmatprep.subr.mxu0 0.0
    %5175 = vmatpush1.msra.mxu0 0.0
    %5176 = vmatprep.subr.mxu0 0.0
    %5177 = vmatpush1.msra.mxu0 0.0
    %5178 = vmatprep.subr.mxu0 0.0
    %5179 = vmatpush1.msra.mxu0 0.0
    %5180 = vmatprep.subr.mxu0 0.0
    %5181 = vmatpush1.msra.mxu0 0.0
    %5182 = vmatprep.subr.mxu0 0.0
    %5183 = vmatpush1.msra.mxu0 0.0
    %5184 = vmatprep.subr.mxu0 0.0
    %5185 = vmatpush1.msra.mxu0 0.0
    %5186 = vmatprep.subr.mxu0 0.0
    %5187 = vmatpush1.msra.mxu0 %v154
    %5188 = vmatprep.subr.mxu0 0.0
    %5189 = vmatpush1.msra.mxu0 %v153
    %5190 = vmatprep.subr.mxu0 0.0
    %5191 = vmatpush1.msra.mxu0 %v152
    %5192 = vmatprep.subr.mxu0 0.0
    %5193 = vmatpush1.msra.mxu0 %v151
    %5194 = vmatprep.subr.mxu0 0.0
    %5195 = vmatpush2.msra.mxu0 0.0
    %5196 = vmatprep.subr.mxu0 0.0
    %5197 = vmatpush2.msra.mxu0 0.0
    %5198 = vmatprep.subr.mxu0 0.0
    %5199 = vmatpush2.msra.mxu0 0.0
    %5200 = vmatprep.subr.mxu0 0.0
    %5201 = vmatpush2.msra.mxu0 0.0
    %5202 = vmatprep.subr.mxu0 0.0
    %5203 = vmatpush2.msra.mxu0 0.0
    %5204 = vmatprep.subr.mxu0 0.0
    %5205 = vmatpush2.msra.mxu0 0.0
    %5206 = vmatprep.subr.mxu0 0.0
    %5207 = vmatpush2.msra.mxu0 0.0
    %5208 = vmatprep.subr.mxu0 0.0
    %5209 = vmatpush2.msra.mxu0 0.0
    %5210 = vmatprep.subr.mxu0 0.0
    %5211 = vmatpush2.msra.mxu0 0.0
    %5212 = vmatprep.subr.mxu0 0.0
    %5213 = vmatpush2.msra.mxu0 0.0
    %5214 = vmatprep.subr.mxu0 0.0
    %5215 = vmatpush2.msra.mxu0 0.0
    %5216 = vmatprep.subr.mxu0 0.0
    %5217 = vmatpush2.msra.mxu0 0.0
    %5218 = vmatprep.subr.mxu0 0.0
    %5219 = vmatpush2.msra.mxu0 0.0
    %5220 = vmatprep.subr.mxu0 0.0
    %5221 = vmatpush2.msra.mxu0 0.0
    %5222 = vmatprep.subr.mxu0 0.0
    %5223 = vmatpush2.msra.mxu0 0.0
    %5224 = vmatprep.subr.mxu0 0.0
    %5225 = vmatpush2.msra.mxu0 0.0
    %5226 = vmatprep.mubr.f32.mxu0 0.0
    %5227 = vmatmul.mubr.f32.gmra.mxu0 %v5157
    %v5228 = vpop.f32.mrf.mxu0
    %v5229 = vadd.f32 %v478, %v5228
    %v5230 = vpop.f32.mrf.mxu0
    %5231 = vmatprep.mubr.f32.mxu0 0.0
    %5232 = vmatmul.mubr.f32.gmra.mxu0 %v5160
    %v5233 = vpop.f32.mrf.mxu0
    %v5234 = vadd.f32 %v478, %v5233
    %v5235 = vpop.f32.mrf.mxu0
    %5236 = vdwg.mxu0
    %v5237 = vtanh.pop %v5229
    %v5238 = vtanh.pop %v5234
    %v5239 = vsel %vm563, %v5237, 0.0
    %5240 = vadd.xlane.f32.xlu0 %v5239
    %v5241 = vpop.xlane.xlu0 %5240
    %v5242 = vsel %vm563, %v5238, 0.0
    %5243 = vadd.xlane.f32.xlu0 %v5242
    %v5244 = vpop.xlane.xlu0 %5243
    %v5245 = vmul.f32 %v5241, %v570
    %v5246 = vmul.f32 %v5244, %v570
    %v5247 = vsub.f32 %v5237, %v5245
    %v5248 = vsub.f32 %v5238, %v5246
    %v5249 = vmul.f32 %v5247, %v5247
    %v5250 = vmul.f32 %v5248, %v5248
    %v5251 = vsel %vm563, %v5249, 0.0
    %5252 = vadd.xlane.f32.xlu0 %v5251
    %v5253 = vpop.xlane.xlu0 %5252
    %v5254 = vsel %vm563, %v5250, 0.0
    %5255 = vadd.xlane.f32.xlu0 %v5254
    %v5256 = vpop.xlane.xlu0 %5255
    %v5257 = vmul.f32 %v5253, %v570
    %v5258 = vmul.f32 %v5256, %v570
    %v5259 = vadd.f32 %v5257, 1e-05
    %v5260 = vadd.f32 %v5258, 1e-05
    %v5261 = vrsqrt.pop %v5259
    %v5262 = vrsqrt.pop %v5260
    %v5263 = vmul.f32 %v5247, %v5261
    %v5264 = vmul.f32 %v5248, %v5262
    %v5265 = vmul.f32 %v5263, %v595
    %v5266 = vmul.f32 %v5264, %v595
    %v5267 = vadd.f32 %v5265, %v603
    %v5268 = vadd.f32 %v5266, %v603
    %v5270 = vsel %vm563, %v5267, 0
    %v5273 = vsel %vm563, %v5268, 0
    %5275 = vmatprep.subr.mxu0 0.0
    %5276 = vmatpush1.msra.mxu0 0.0
    %5277 = vmatprep.subr.mxu0 0.0
    %5278 = vmatpush1.msra.mxu0 0.0
    %5279 = vmatprep.subr.mxu0 0.0
    %5280 = vmatpush1.msra.mxu0 0.0
    %5281 = vmatprep.subr.mxu0 0.0
    %5282 = vmatpush1.msra.mxu0 0.0
    %5283 = vmatprep.subr.mxu0 0.0
    %5284 = vmatpush1.msra.mxu0 0.0
    %5285 = vmatprep.subr.mxu0 0.0
    %5286 = vmatpush1.msra.mxu0 0.0
    %5287 = vmatprep.subr.mxu0 0.0
    %5288 = vmatpush1.msra.mxu0 0.0
    %5289 = vmatprep.subr.mxu0 0.0
    %5290 = vmatpush1.msra.mxu0 0.0
    %5291 = vmatprep.subr.mxu0 0.0
    %5292 = vmatpush1.msra.mxu0 0.0
    %5293 = vmatprep.subr.mxu0 0.0
    %5294 = vmatpush1.msra.mxu0 0.0
    %5295 = vmatprep.subr.mxu0 0.0
    %5296 = vmatpush1.msra.mxu0 0.0
    %5297 = vmatprep.subr.mxu0 0.0
    %5298 = vmatpush1.msra.mxu0 0.0
    %5299 = vmatprep.subr.mxu0 0.0
    %5300 = vmatpush1.msra.mxu0 0.0
    %5301 = vmatprep.subr.mxu0 0.0
    %5302 = vmatpush1.msra.mxu0 0.0
    %5303 = vmatprep.subr.mxu0 0.0
    %5304 = vmatpush1.msra.mxu0 %v158
    %5305 = vmatprep.subr.mxu0 0.0
    %5306 = vmatpush1.msra.mxu0 %v157
    %5307 = vmatprep.subr.mxu0 0.0
    %5308 = vmatpush2.msra.mxu0 0.0
    %5309 = vmatprep.subr.mxu0 0.0
    %5310 = vmatpush2.msra.mxu0 0.0
    %5311 = vmatprep.subr.mxu0 0.0
    %5312 = vmatpush2.msra.mxu0 0.0
    %5313 = vmatprep.subr.mxu0 0.0
    %5314 = vmatpush2.msra.mxu0 0.0
    %5315 = vmatprep.subr.mxu0 0.0
    %5316 = vmatpush2.msra.mxu0 0.0
    %5317 = vmatprep.subr.mxu0 0.0
    %5318 = vmatpush2.msra.mxu0 0.0
    %5319 = vmatprep.subr.mxu0 0.0
    %5320 = vmatpush2.msra.mxu0 0.0
    %5321 = vmatprep.subr.mxu0 0.0
    %5322 = vmatpush2.msra.mxu0 0.0
    %5323 = vmatprep.subr.mxu0 0.0
    %5324 = vmatpush2.msra.mxu0 0.0
    %5325 = vmatprep.subr.mxu0 0.0
    %5326 = vmatpush2.msra.mxu0 0.0
    %5327 = vmatprep.subr.mxu0 0.0
    %5328 = vmatpush2.msra.mxu0 0.0
    %5329 = vmatprep.subr.mxu0 0.0
    %5330 = vmatpush2.msra.mxu0 0.0
    %5331 = vmatprep.subr.mxu0 0.0
    %5332 = vmatpush2.msra.mxu0 0.0
    %5333 = vmatprep.subr.mxu0 0.0
    %5334 = vmatpush2.msra.mxu0 0.0
    %5335 = vmatprep.subr.mxu0 0.0
    %5336 = vmatpush2.msra.mxu0 0.0
    %5337 = vmatprep.subr.mxu0 0.0
    %5338 = vmatpush2.msra.mxu0 0.0
    %5339 = vmatprep.mubr.f32.mxu0 0.0
    %5340 = vmatmul.mubr.f32.gmra.mxu0 %v5270
    %v5341 = vpop.f32.mrf.mxu0
    %v5342 = vadd.f32 %v611, %v5341
    %v5343 = vpop.f32.mrf.mxu0
    %5344 = vmatprep.mubr.f32.mxu0 0.0
    %5345 = vmatmul.mubr.f32.gmra.mxu0 %v5273
    %v5346 = vpop.f32.mrf.mxu0
    %v5347 = vadd.f32 %v611, %v5346
    %v5348 = vpop.f32.mrf.mxu0
    %5349 = vdwg.mxu0
    %v5350 = vmul.f32 %v5342, 0.2
    %v5351 = vmul.f32 %v5347, 0.2
    %v5353 = vsel %vm696, %v5350, 0
    %v5356 = vsel %vm696, %v5351, 0
    %5358 = vmatprep.subr.mxu0 0.0
    %5359 = vmatpush1.msra.mxu0 0.0
    %5360 = vmatprep.subr.mxu0 0.0
    %5361 = vmatpush1.msra.mxu0 0.0
    %5362 = vmatprep.subr.mxu0 0.0
    %5363 = vmatpush1.msra.mxu0 0.0
    %5364 = vmatprep.subr.mxu0 0.0
    %5365 = vmatpush1.msra.mxu0 0.0
    %5366 = vmatprep.subr.mxu0 0.0
    %5367 = vmatpush1.msra.mxu0 0.0
    %5368 = vmatprep.subr.mxu0 0.0
    %5369 = vmatpush1.msra.mxu0 0.0
    %5370 = vmatprep.subr.mxu0 0.0
    %5371 = vmatpush1.msra.mxu0 0.0
    %5372 = vmatprep.subr.mxu0 0.0
    %5373 = vmatpush1.msra.mxu0 0.0
    %5374 = vmatprep.subr.mxu0 0.0
    %5375 = vmatpush1.msra.mxu0 0.0
    %5376 = vmatprep.subr.mxu0 0.0
    %5377 = vmatpush1.msra.mxu0 0.0
    %5378 = vmatprep.subr.mxu0 0.0
    %5379 = vmatpush1.msra.mxu0 0.0
    %5380 = vmatprep.subr.mxu0 0.0
    %5381 = vmatpush1.msra.mxu0 0.0
    %5382 = vmatprep.subr.mxu0 0.0
    %5383 = vmatpush1.msra.mxu0 0.0
    %5384 = vmatprep.subr.mxu0 0.0
    %5385 = vmatpush1.msra.mxu0 0.0
    %5386 = vmatprep.subr.mxu0 0.0
    %5387 = vmatpush1.msra.mxu0 %v704
    %5388 = vmatprep.subr.mxu0 0.0
    %5389 = vmatpush1.msra.mxu0 %v159
    %5390 = vmatprep.subr.mxu0 0.0
    %5391 = vmatpush2.msra.mxu0 0.0
    %5392 = vmatprep.subr.mxu0 0.0
    %5393 = vmatpush2.msra.mxu0 0.0
    %5394 = vmatprep.subr.mxu0 0.0
    %5395 = vmatpush2.msra.mxu0 0.0
    %5396 = vmatprep.subr.mxu0 0.0
    %5397 = vmatpush2.msra.mxu0 0.0
    %5398 = vmatprep.subr.mxu0 0.0
    %5399 = vmatpush2.msra.mxu0 0.0
    %5400 = vmatprep.subr.mxu0 0.0
    %5401 = vmatpush2.msra.mxu0 0.0
    %5402 = vmatprep.subr.mxu0 0.0
    %5403 = vmatpush2.msra.mxu0 0.0
    %5404 = vmatprep.subr.mxu0 0.0
    %5405 = vmatpush2.msra.mxu0 0.0
    %5406 = vmatprep.subr.mxu0 0.0
    %5407 = vmatpush2.msra.mxu0 0.0
    %5408 = vmatprep.subr.mxu0 0.0
    %5409 = vmatpush2.msra.mxu0 0.0
    %5410 = vmatprep.subr.mxu0 0.0
    %5411 = vmatpush2.msra.mxu0 0.0
    %5412 = vmatprep.subr.mxu0 0.0
    %5413 = vmatpush2.msra.mxu0 0.0
    %5414 = vmatprep.subr.mxu0 0.0
    %5415 = vmatpush2.msra.mxu0 0.0
    %5416 = vmatprep.subr.mxu0 0.0
    %5417 = vmatpush2.msra.mxu0 0.0
    %5418 = vmatprep.subr.mxu0 0.0
    %5419 = vmatpush2.msra.mxu0 0.0
    %5420 = vmatprep.subr.mxu0 0.0
    %5421 = vmatpush2.msra.mxu0 0.0
    %5422 = vmatprep.mubr.f32.mxu0 0.0
    %5423 = vmatmul.mubr.f32.gmra.mxu0 %v5353
    %v5424 = vpop.f32.mrf.mxu0
    %v5425 = vadd.f32 0.0, %v5424
    %v5426 = vpop.f32.mrf.mxu0
    %5427 = vmatprep.mubr.f32.mxu0 0.0
    %5428 = vmatmul.mubr.f32.gmra.mxu0 %v5356
    %v5429 = vpop.f32.mrf.mxu0
    %v5430 = vadd.f32 0.0, %v5429
    %v5431 = vpop.f32.mrf.mxu0
    %5432 = vdwg.mxu0
    %v5433 = vmul.f32 %v5425, %v595
    %v5434 = vmul.f32 %v5430, %v595
    %v5435 = vsel %vm563, %v5433, 0.0
    %5436 = vadd.xlane.f32.xlu0 %v5435
    %v5437 = vpop.xlane.xlu0 %5436
    %v5438 = vsel %vm563, %v5434, 0.0
    %5439 = vadd.xlane.f32.xlu0 %v5438
    %v5440 = vpop.xlane.xlu0 %5439
    %v5441 = vmul.f32 %v5437, %v570
    %v5442 = vmul.f32 %v5440, %v570
    %v5443 = vmul.f32 %v5433, %v5263
    %v5444 = vmul.f32 %v5434, %v5264
    %v5445 = vsel %vm563, %v5443, 0.0
    %5446 = vadd.xlane.f32.xlu0 %v5445
    %v5447 = vpop.xlane.xlu0 %5446
    %v5448 = vsel %vm563, %v5444, 0.0
    %5449 = vadd.xlane.f32.xlu0 %v5448
    %v5450 = vpop.xlane.xlu0 %5449
    %v5451 = vmul.f32 %v5447, %v570
    %v5452 = vmul.f32 %v5450, %v570
    %v5453 = vsub.f32 %v5433, %v5441
    %v5454 = vsub.f32 %v5434, %v5442
    %v5455 = vmul.f32 %v5263, %v5451
    %v5456 = vmul.f32 %v5264, %v5452
    %v5457 = vsub.f32 %v5453, %v5455
    %v5458 = vsub.f32 %v5454, %v5456
    %v5459 = vmul.f32 %v5261, %v5457
    %v5460 = vmul.f32 %v5262, %v5458
    %v5461 = vmul.f32 %v5237, %v5237
    %v5462 = vmul.f32 %v5238, %v5238
    %v5463 = vsub.f32 1.0, %v5461
    %v5464 = vsub.f32 1.0, %v5462
    %v5465 = vmul.f32 %v5459, %v5463
    %v5466 = vmul.f32 %v5460, %v5464
    %v5468 = vsel %vm563, %v5465, 0
    %v5471 = vsel %vm563, %v5466, 0
    %5473 = vmatprep.subr.mxu0 0.0
    %5474 = vmatpush1.msra.mxu0 0.0
    %5475 = vmatprep.subr.mxu0 0.0
    %5476 = vmatpush1.msra.mxu0 0.0
    %5477 = vmatprep.subr.mxu0 0.0
    %5478 = vmatpush1.msra.mxu0 0.0
    %5479 = vmatprep.subr.mxu0 0.0
    %5480 = vmatpush1.msra.mxu0 0.0
    %5481 = vmatprep.subr.mxu0 0.0
    %5482 = vmatpush1.msra.mxu0 0.0
    %5483 = vmatprep.subr.mxu0 0.0
    %5484 = vmatpush1.msra.mxu0 0.0
    %5485 = vmatprep.subr.mxu0 0.0
    %5486 = vmatpush1.msra.mxu0 0.0
    %5487 = vmatprep.subr.mxu0 0.0
    %5488 = vmatpush1.msra.mxu0 0.0
    %5489 = vmatprep.subr.mxu0 0.0
    %5490 = vmatpush1.msra.mxu0 0.0
    %5491 = vmatprep.subr.mxu0 0.0
    %5492 = vmatpush1.msra.mxu0 0.0
    %5493 = vmatprep.subr.mxu0 0.0
    %5494 = vmatpush1.msra.mxu0 0.0
    %5495 = vmatprep.subr.mxu0 0.0
    %5496 = vmatpush1.msra.mxu0 0.0
    %5497 = vmatprep.subr.mxu0 0.0
    %5498 = vmatpush1.msra.mxu0 0.0
    %5499 = vmatprep.subr.mxu0 0.0
    %5500 = vmatpush1.msra.mxu0 0.0
    %5501 = vmatprep.subr.mxu0 0.0
    %5502 = vmatpush1.msra.mxu0 %v156
    %5503 = vmatprep.subr.mxu0 0.0
    %5504 = vmatpush1.msra.mxu0 %v155
    %5505 = vmatprep.subr.mxu0 0.0
    %5506 = vmatpush2.msra.mxu0 0.0
    %5507 = vmatprep.subr.mxu0 0.0
    %5508 = vmatpush2.msra.mxu0 0.0
    %5509 = vmatprep.subr.mxu0 0.0
    %5510 = vmatpush2.msra.mxu0 0.0
    %5511 = vmatprep.subr.mxu0 0.0
    %5512 = vmatpush2.msra.mxu0 0.0
    %5513 = vmatprep.subr.mxu0 0.0
    %5514 = vmatpush2.msra.mxu0 0.0
    %5515 = vmatprep.subr.mxu0 0.0
    %5516 = vmatpush2.msra.mxu0 0.0
    %5517 = vmatprep.subr.mxu0 0.0
    %5518 = vmatpush2.msra.mxu0 0.0
    %5519 = vmatprep.subr.mxu0 0.0
    %5520 = vmatpush2.msra.mxu0 0.0
    %5521 = vmatprep.subr.mxu0 0.0
    %5522 = vmatpush2.msra.mxu0 0.0
    %5523 = vmatprep.subr.mxu0 0.0
    %5524 = vmatpush2.msra.mxu0 0.0
    %5525 = vmatprep.subr.mxu0 0.0
    %5526 = vmatpush2.msra.mxu0 0.0
    %5527 = vmatprep.subr.mxu0 0.0
    %5528 = vmatpush2.msra.mxu0 0.0
    %5529 = vmatprep.subr.mxu0 0.0
    %5530 = vmatpush2.msra.mxu0 0.0
    %5531 = vmatprep.subr.mxu0 0.0
    %5532 = vmatpush2.msra.mxu0 0.0
    %5533 = vmatprep.subr.mxu0 0.0
    %5534 = vmatpush2.msra.mxu0 0.0
    %5535 = vmatprep.subr.mxu0 0.0
    %5536 = vmatpush2.msra.mxu0 0.0
    %5537 = vmatprep.mubr.f32.mxu0 0.0
    %5538 = vmatmul.mubr.f32.gmra.mxu0 %v5468
    %v5539 = vpop.f32.mrf.mxu0
    %v5540 = vadd.f32 0.0, %v5539
    %v5541 = vpop.f32.mrf.mxu0
    %5542 = vmatprep.mubr.f32.mxu0 0.0
    %5543 = vmatmul.mubr.f32.gmra.mxu0 %v5471
    %v5544 = vpop.f32.mrf.mxu0
    %v5545 = vadd.f32 0.0, %v5544
    %v5546 = vpop.f32.mrf.mxu0
    %5547 = vdwg.mxu0
    %v5548 = vmul.f32 %v5540, %v462
    %v5549 = vmul.f32 %v5545, %v462
    %v5550 = vsel %vm178, %v5548, 0.0
    %5551 = vadd.xlane.f32.xlu0 %v5550
    %v5552 = vpop.xlane.xlu0 %5551
    %v5553 = vsel %vm178, %v5549, 0.0
    %5554 = vadd.xlane.f32.xlu0 %v5553
    %v5555 = vpop.xlane.xlu0 %5554
    %v5556 = vmul.f32 %v5552, %v437
    %v5557 = vmul.f32 %v5555, %v437
    %v5558 = vmul.f32 %v5548, %v5150
    %v5559 = vmul.f32 %v5549, %v5151
    %v5560 = vsel %vm178, %v5558, 0.0
    %5561 = vadd.xlane.f32.xlu0 %v5560
    %v5562 = vpop.xlane.xlu0 %5561
    %v5563 = vsel %vm178, %v5559, 0.0
    %5564 = vadd.xlane.f32.xlu0 %v5563
    %v5565 = vpop.xlane.xlu0 %5564
    %v5566 = vmul.f32 %v5562, %v437
    %v5567 = vmul.f32 %v5565, %v437
    %v5568 = vsub.f32 %v5548, %v5556
    %v5569 = vsub.f32 %v5549, %v5557
    %v5570 = vmul.f32 %v5150, %v5566
    %v5571 = vmul.f32 %v5151, %v5567
    %v5572 = vsub.f32 %v5568, %v5570
    %v5573 = vsub.f32 %v5569, %v5571
    %v5574 = vmul.f32 %v5148, %v5572
    %v5575 = vmul.f32 %v5149, %v5573
    %v5576 = vmul.f32 %v5124, %v5124
    %v5577 = vmul.f32 %v5125, %v5125
    %v5578 = vsub.f32 1.0, %v5576
    %v5579 = vsub.f32 1.0, %v5577
    %v5580 = vmul.f32 %v5574, %v5578
    %v5581 = vmul.f32 %v5575, %v5579
    %v5583 = vsel %vm178, %v5580, 0
    %v5586 = vsel %vm178, %v5581, 0
    %5588 = vmatprep.subr.mxu0 0.0
    %5589 = vmatpush1.msra.mxu0 0.0
    %5590 = vmatprep.subr.mxu0 0.0
    %5591 = vmatpush1.msra.mxu0 0.0
    %5592 = vmatprep.subr.mxu0 0.0
    %5593 = vmatpush1.msra.mxu0 0.0
    %5594 = vmatprep.subr.mxu0 0.0
    %5595 = vmatpush1.msra.mxu0 0.0
    %5596 = vmatprep.subr.mxu0 0.0
    %5597 = vmatpush1.msra.mxu0 0.0
    %5598 = vmatprep.subr.mxu0 0.0
    %5599 = vmatpush1.msra.mxu0 0.0
    %5600 = vmatprep.subr.mxu0 0.0
    %5601 = vmatpush1.msra.mxu0 0.0
    %5602 = vmatprep.subr.mxu0 0.0
    %5603 = vmatpush1.msra.mxu0 0.0
    %5604 = vmatprep.subr.mxu0 0.0
    %5605 = vmatpush1.msra.mxu0 0.0
    %5606 = vmatprep.subr.mxu0 0.0
    %5607 = vmatpush1.msra.mxu0 0.0
    %5608 = vmatprep.subr.mxu0 0.0
    %5609 = vmatpush1.msra.mxu0 0.0
    %5610 = vmatprep.subr.mxu0 0.0
    %5611 = vmatpush1.msra.mxu0 0.0
    %5612 = vmatprep.subr.mxu0 0.0
    %5613 = vmatpush1.msra.mxu0 %v150
    %5614 = vmatprep.subr.mxu0 0.0
    %5615 = vmatpush1.msra.mxu0 %v149
    %5616 = vmatprep.subr.mxu0 0.0
    %5617 = vmatpush1.msra.mxu0 %v148
    %5618 = vmatprep.subr.mxu0 0.0
    %5619 = vmatpush1.msra.mxu0 %v147
    %5620 = vmatprep.subr.mxu0 0.0
    %5621 = vmatpush2.msra.mxu0 0.0
    %5622 = vmatprep.subr.mxu0 0.0
    %5623 = vmatpush2.msra.mxu0 0.0
    %5624 = vmatprep.subr.mxu0 0.0
    %5625 = vmatpush2.msra.mxu0 0.0
    %5626 = vmatprep.subr.mxu0 0.0
    %5627 = vmatpush2.msra.mxu0 0.0
    %5628 = vmatprep.subr.mxu0 0.0
    %5629 = vmatpush2.msra.mxu0 0.0
    %5630 = vmatprep.subr.mxu0 0.0
    %5631 = vmatpush2.msra.mxu0 0.0
    %5632 = vmatprep.subr.mxu0 0.0
    %5633 = vmatpush2.msra.mxu0 0.0
    %5634 = vmatprep.subr.mxu0 0.0
    %5635 = vmatpush2.msra.mxu0 0.0
    %5636 = vmatprep.subr.mxu0 0.0
    %5637 = vmatpush2.msra.mxu0 0.0
    %5638 = vmatprep.subr.mxu0 0.0
    %5639 = vmatpush2.msra.mxu0 0.0
    %5640 = vmatprep.subr.mxu0 0.0
    %5641 = vmatpush2.msra.mxu0 0.0
    %5642 = vmatprep.subr.mxu0 0.0
    %5643 = vmatpush2.msra.mxu0 0.0
    %5644 = vmatprep.subr.mxu0 0.0
    %5645 = vmatpush2.msra.mxu0 0.0
    %5646 = vmatprep.subr.mxu0 0.0
    %5647 = vmatpush2.msra.mxu0 0.0
    %5648 = vmatprep.subr.mxu0 0.0
    %5649 = vmatpush2.msra.mxu0 0.0
    %5650 = vmatprep.subr.mxu0 0.0
    %5651 = vmatpush2.msra.mxu0 0.0
    %5652 = vmatprep.mubr.f32.mxu0 0.0
    %5653 = vmatmul.mubr.f32.gmra.mxu0 %v5583
    %v5654 = vpop.f32.mrf.mxu0
    %v5655 = vadd.f32 0.0, %v5654
    %v5656 = vpop.f32.mrf.mxu0
    %5657 = vmatprep.mubr.f32.mxu0 0.0
    %5658 = vmatmul.mubr.f32.gmra.mxu0 %v5586
    %v5659 = vpop.f32.mrf.mxu0
    %v5660 = vadd.f32 0.0, %v5659
    %v5661 = vpop.f32.mrf.mxu0
    %5662 = vdwg.mxu0
    %v5663 = vmul.f32 %v4962, 6.25e-05
    %5664 = vmatprep.subr.mxu0 0.0
    %5665 = vmatpush1.msra.mxu0 0.0
    %5666 = vmatprep.subr.mxu0 0.0
    %5667 = vmatpush1.msra.mxu0 0.0
    %5668 = vmatprep.subr.mxu0 0.0
    %5669 = vmatpush1.msra.mxu0 0.0
    %5670 = vmatprep.subr.mxu0 0.0
    %5671 = vmatpush1.msra.mxu0 0.0
    %5672 = vmatprep.subr.mxu0 0.0
    %5673 = vmatpush1.msra.mxu0 0.0
    %5674 = vmatprep.subr.mxu0 0.0
    %5675 = vmatpush1.msra.mxu0 0.0
    %5676 = vmatprep.subr.mxu0 0.0
    %5677 = vmatpush1.msra.mxu0 0.0
    %5678 = vmatprep.subr.mxu0 0.0
    %5679 = vmatpush1.msra.mxu0 0.0
    %5680 = vmatprep.subr.mxu0 0.0
    %5681 = vmatpush1.msra.mxu0 0.0
    %5682 = vmatprep.subr.mxu0 0.0
    %5683 = vmatpush1.msra.mxu0 0.0
    %5684 = vmatprep.subr.mxu0 0.0
    %5685 = vmatpush1.msra.mxu0 0.0
    %5686 = vmatprep.subr.mxu0 0.0
    %5687 = vmatpush1.msra.mxu0 0.0
    %5688 = vmatprep.subr.mxu0 0.0
    %5689 = vmatpush1.msra.mxu0 0.0
    %5690 = vmatprep.subr.mxu0 0.0
    %5691 = vmatpush1.msra.mxu0 0.0
    %5692 = vmatprep.subr.mxu0 0.0
    %5693 = vmatpush1.msra.mxu0 %v5660
    %5694 = vmatprep.subr.mxu0 0.0
    %5695 = vmatpush1.msra.mxu0 %v5655
    %5696 = vmatprep.subr.mxu0 0.0
    %5697 = vmatpush2.msra.mxu0 0.0
    %5698 = vmatprep.subr.mxu0 0.0
    %5699 = vmatpush2.msra.mxu0 0.0
    %5700 = vmatprep.subr.mxu0 0.0
    %5701 = vmatpush2.msra.mxu0 0.0
    %5702 = vmatprep.subr.mxu0 0.0
    %5703 = vmatpush2.msra.mxu0 0.0
    %5704 = vmatprep.subr.mxu0 0.0
    %5705 = vmatpush2.msra.mxu0 0.0
    %5706 = vmatprep.subr.mxu0 0.0
    %5707 = vmatpush2.msra.mxu0 0.0
    %5708 = vmatprep.subr.mxu0 0.0
    %5709 = vmatpush2.msra.mxu0 0.0
    %5710 = vmatprep.subr.mxu0 0.0
    %5711 = vmatpush2.msra.mxu0 0.0
    %5712 = vmatprep.subr.mxu0 0.0
    %5713 = vmatpush2.msra.mxu0 0.0
    %5714 = vmatprep.subr.mxu0 0.0
    %5715 = vmatpush2.msra.mxu0 0.0
    %5716 = vmatprep.subr.mxu0 0.0
    %5717 = vmatpush2.msra.mxu0 0.0
    %5718 = vmatprep.subr.mxu0 0.0
    %5719 = vmatpush2.msra.mxu0 0.0
    %5720 = vmatprep.subr.mxu0 0.0
    %5721 = vmatpush2.msra.mxu0 0.0
    %5722 = vmatprep.subr.mxu0 0.0
    %5723 = vmatpush2.msra.mxu0 0.0
    %5724 = vmatprep.subr.mxu0 0.0
    %5725 = vmatpush2.msra.mxu0 0.0
    %5726 = vmatprep.subr.mxu0 0.0
    %5727 = vmatpush2.msra.mxu0 0.0
    %5728 = vmatprep.mubr.f32.mxu0 0.0
    %5729 = vmatmul.mubr.f32.gmra.mxu0 %v1012
    %v5730 = vpop.f32.mrf.mxu0
    %v5731 = vadd.f32 %v5663, %v5730
    %v5732 = vpop.f32.mrf.mxu0
    %5733 = vdwg.mxu0
    %s5734 = scalar_lea.vmem [#allocation14], 12
    %5735 = vst.msk [vmem:[%s5734] sm:$0x3] %vm1084, %v5731
    %v5736 = vmul.f32 %v5731, 0.1
    %v5737 = vsub.f32 %v4962, %v5736
    %v5739 = vsel %vm267, %v5737, 0
    %5741 = vmatprep.subr.mxu0 0.0
    %5742 = vmatpush1.msra.mxu0 0.0
    %5743 = vmatprep.subr.mxu0 0.0
    %5744 = vmatpush1.msra.mxu0 0.0
    %5745 = vmatprep.subr.mxu0 0.0
    %5746 = vmatpush1.msra.mxu0 0.0
    %5747 = vmatprep.subr.mxu0 0.0
    %5748 = vmatpush1.msra.mxu0 0.0
    %5749 = vmatprep.subr.mxu0 0.0
    %5750 = vmatpush1.msra.mxu0 0.0
    %5751 = vmatprep.subr.mxu0 0.0
    %5752 = vmatpush1.msra.mxu0 0.0
    %5753 = vmatprep.subr.mxu0 0.0
    %5754 = vmatpush1.msra.mxu0 0.0
    %5755 = vmatprep.subr.mxu0 0.0
    %5756 = vmatpush1.msra.mxu0 0.0
    %5757 = vmatprep.subr.mxu0 0.0
    %5758 = vmatpush1.msra.mxu0 0.0
    %5759 = vmatprep.subr.mxu0 0.0
    %5760 = vmatpush1.msra.mxu0 0.0
    %5761 = vmatprep.subr.mxu0 0.0
    %5762 = vmatpush1.msra.mxu0 0.0
    %5763 = vmatprep.subr.mxu0 0.0
    %5764 = vmatpush1.msra.mxu0 0.0
    %5765 = vmatprep.subr.mxu0 0.0
    %5766 = vmatpush1.msra.mxu0 0.0
    %5767 = vmatprep.subr.mxu0 0.0
    %5768 = vmatpush1.msra.mxu0 0.0
    %5769 = vmatprep.subr.mxu0 0.0
    %5770 = vmatpush1.msra.mxu0 0.0
    %5771 = vmatprep.subr.mxu0 0.0
    %5772 = vmatpush1.msra.mxu0 %v5739
    %5773 = vmatprep.subr.mxu0 0.0
    %5774 = vmatpush2.msra.mxu0 0.0
    %5775 = vmatprep.subr.mxu0 0.0
    %5776 = vmatpush2.msra.mxu0 0.0
    %5777 = vmatprep.subr.mxu0 0.0
    %5778 = vmatpush2.msra.mxu0 0.0
    %5779 = vmatprep.subr.mxu0 0.0
    %5780 = vmatpush2.msra.mxu0 0.0
    %5781 = vmatprep.subr.mxu0 0.0
    %5782 = vmatpush2.msra.mxu0 0.0
    %5783 = vmatprep.subr.mxu0 0.0
    %5784 = vmatpush2.msra.mxu0 0.0
    %5785 = vmatprep.subr.mxu0 0.0
    %5786 = vmatpush2.msra.mxu0 0.0
    %5787 = vmatprep.subr.mxu0 0.0
    %5788 = vmatpush2.msra.mxu0 0.0
    %5789 = vmatprep.subr.mxu0 0.0
    %5790 = vmatpush2.msra.mxu0 0.0
    %5791 = vmatprep.subr.mxu0 0.0
    %5792 = vmatpush2.msra.mxu0 0.0
    %5793 = vmatprep.subr.mxu0 0.0
    %5794 = vmatpush2.msra.mxu0 0.0
    %5795 = vmatprep.subr.mxu0 0.0
    %5796 = vmatpush2.msra.mxu0 0.0
    %5797 = vmatprep.subr.mxu0 0.0
    %5798 = vmatpush2.msra.mxu0 0.0
    %5799 = vmatprep.subr.mxu0 0.0
    %5800 = vmatpush2.msra.mxu0 0.0
    %5801 = vmatprep.subr.mxu0 0.0
    %5802 = vmatpush2.msra.mxu0 0.0
    %5803 = vmatprep.subr.mxu0 0.0
    %5804 = vmatpush2.msra.mxu0 0.0
    %5805 = vmatprep.mubr.f32.mxu0 0.0
    %5806 = vmatmul.mubr.f32.gmra.mxu0 %v262
    %v5807 = vpop.f32.mrf.mxu0
    %v5808 = vadd.f32 0.0, %v5807
    %v5809 = vpop.f32.mrf.mxu0
    %5810 = vmatprep.mubr.f32.mxu0 0.0
    %5811 = vmatmul.mubr.f32.gmra.mxu0 %v265
    %v5812 = vpop.f32.mrf.mxu0
    %v5813 = vadd.f32 0.0, %v5812
    %v5814 = vpop.f32.mrf.mxu0
    %5815 = vdwg.mxu0
    %v5817 = vsel %vm178, %v5808, 0
    %v5820 = vsel %vm178, %v5813, 0
    %5822 = vmatprep.subr.mxu0 0.0
    %5823 = vmatpush1.msra.mxu0 0.0
    %5824 = vmatprep.subr.mxu0 0.0
    %5825 = vmatpush1.msra.mxu0 0.0
    %5826 = vmatprep.subr.mxu0 0.0
    %5827 = vmatpush1.msra.mxu0 0.0
    %5828 = vmatprep.subr.mxu0 0.0
    %5829 = vmatpush1.msra.mxu0 0.0
    %5830 = vmatprep.subr.mxu0 0.0
    %5831 = vmatpush1.msra.mxu0 0.0
    %5832 = vmatprep.subr.mxu0 0.0
    %5833 = vmatpush1.msra.mxu0 0.0
    %5834 = vmatprep.subr.mxu0 0.0
    %5835 = vmatpush1.msra.mxu0 0.0
    %5836 = vmatprep.subr.mxu0 0.0
    %5837 = vmatpush1.msra.mxu0 0.0
    %5838 = vmatprep.subr.mxu0 0.0
    %5839 = vmatpush1.msra.mxu0 0.0
    %5840 = vmatprep.subr.mxu0 0.0
    %5841 = vmatpush1.msra.mxu0 0.0
    %5842 = vmatprep.subr.mxu0 0.0
    %5843 = vmatpush1.msra.mxu0 0.0
    %5844 = vmatprep.subr.mxu0 0.0
    %5845 = vmatpush1.msra.mxu0 0.0
    %5846 = vmatprep.subr.mxu0 0.0
    %5847 = vmatpush1.msra.mxu0 %v146
    %5848 = vmatprep.subr.mxu0 0.0
    %5849 = vmatpush1.msra.mxu0 %v145
    %5850 = vmatprep.subr.mxu0 0.0
    %5851 = vmatpush1.msra.mxu0 %v144
    %5852 = vmatprep.subr.mxu0 0.0
    %5853 = vmatpush1.msra.mxu0 %v143
    %5854 = vmatprep.subr.mxu0 0.0
    %5855 = vmatpush2.msra.mxu0 0.0
    %5856 = vmatprep.subr.mxu0 0.0
    %5857 = vmatpush2.msra.mxu0 0.0
    %5858 = vmatprep.subr.mxu0 0.0
    %5859 = vmatpush2.msra.mxu0 0.0
    %5860 = vmatprep.subr.mxu0 0.0
    %5861 = vmatpush2.msra.mxu0 0.0
    %5862 = vmatprep.subr.mxu0 0.0
    %5863 = vmatpush2.msra.mxu0 0.0
    %5864 = vmatprep.subr.mxu0 0.0
    %5865 = vmatpush2.msra.mxu0 0.0
    %5866 = vmatprep.subr.mxu0 0.0
    %5867 = vmatpush2.msra.mxu0 0.0
    %5868 = vmatprep.subr.mxu0 0.0
    %5869 = vmatpush2.msra.mxu0 0.0
    %5870 = vmatprep.subr.mxu0 0.0
    %5871 = vmatpush2.msra.mxu0 0.0
    %5872 = vmatprep.subr.mxu0 0.0
    %5873 = vmatpush2.msra.mxu0 0.0
    %5874 = vmatprep.subr.mxu0 0.0
    %5875 = vmatpush2.msra.mxu0 0.0
    %5876 = vmatprep.subr.mxu0 0.0
    %5877 = vmatpush2.msra.mxu0 0.0
    %5878 = vmatprep.subr.mxu0 0.0
    %5879 = vmatpush2.msra.mxu0 0.0
    %5880 = vmatprep.subr.mxu0 0.0
    %5881 = vmatpush2.msra.mxu0 0.0
    %5882 = vmatprep.subr.mxu0 0.0
    %5883 = vmatpush2.msra.mxu0 0.0
    %5884 = vmatprep.subr.mxu0 0.0
    %5885 = vmatpush2.msra.mxu0 0.0
    %5886 = vmatprep.mubr.f32.mxu0 0.0
    %5887 = vmatmul.mubr.f32.gmra.mxu0 %v5817
    %v5888 = vpop.f32.mrf.mxu0
    %v5889 = vadd.f32 0.0, %v5888
    %v5890 = vpop.f32.mrf.mxu0
    %5891 = vmatprep.mubr.f32.mxu0 0.0
    %5892 = vmatmul.mubr.f32.gmra.mxu0 %v5820
    %v5893 = vpop.f32.mrf.mxu0
    %v5894 = vadd.f32 0.0, %v5893
    %v5895 = vpop.f32.mrf.mxu0
    %5896 = vdwg.mxu0
    %v5897 = vadd.f32 %v252, %v5889
    %v5898 = vadd.f32 %v257, %v5894
    %v5899 = vtanh.pop %v5897
    %v5900 = vtanh.pop %v5898
    %v5901 = vsel %vm178, %v5899, 0.0
    %5902 = vadd.xlane.f32.xlu0 %v5901
    %v5903 = vpop.xlane.xlu0 %5902
    %v5904 = vsel %vm178, %v5900, 0.0
    %5905 = vadd.xlane.f32.xlu0 %v5904
    %v5906 = vpop.xlane.xlu0 %5905
    %v5907 = vmul.f32 %v5903, %v437
    %v5908 = vmul.f32 %v5906, %v437
    %v5909 = vsub.f32 %v5899, %v5907
    %v5910 = vsub.f32 %v5900, %v5908
    %v5911 = vmul.f32 %v5909, %v5909
    %v5912 = vmul.f32 %v5910, %v5910
    %v5913 = vsel %vm178, %v5911, 0.0
    %5914 = vadd.xlane.f32.xlu0 %v5913
    %v5915 = vpop.xlane.xlu0 %5914
    %v5916 = vsel %vm178, %v5912, 0.0
    %5917 = vadd.xlane.f32.xlu0 %v5916
    %v5918 = vpop.xlane.xlu0 %5917
    %v5919 = vmul.f32 %v5915, %v437
    %v5920 = vmul.f32 %v5918, %v437
    %v5921 = vadd.f32 %v5919, 1e-05
    %v5922 = vadd.f32 %v5920, 1e-05
    %v5923 = vrsqrt.pop %v5921
    %v5924 = vrsqrt.pop %v5922
    %v5925 = vmul.f32 %v5909, %v5923
    %v5926 = vmul.f32 %v5910, %v5924
    %v5927 = vmul.f32 %v5925, %v462
    %v5928 = vmul.f32 %v5926, %v462
    %v5929 = vadd.f32 %v5927, %v470
    %v5930 = vadd.f32 %v5928, %v470
    %v5932 = vsel %vm178, %v5929, 0
    %v5935 = vsel %vm178, %v5930, 0
    %5937 = vmatprep.subr.mxu0 0.0
    %5938 = vmatpush1.msra.mxu0 0.0
    %5939 = vmatprep.subr.mxu0 0.0
    %5940 = vmatpush1.msra.mxu0 0.0
    %5941 = vmatprep.subr.mxu0 0.0
    %5942 = vmatpush1.msra.mxu0 0.0
    %5943 = vmatprep.subr.mxu0 0.0
    %5944 = vmatpush1.msra.mxu0 0.0
    %5945 = vmatprep.subr.mxu0 0.0
    %5946 = vmatpush1.msra.mxu0 0.0
    %5947 = vmatprep.subr.mxu0 0.0
    %5948 = vmatpush1.msra.mxu0 0.0
    %5949 = vmatprep.subr.mxu0 0.0
    %5950 = vmatpush1.msra.mxu0 0.0
    %5951 = vmatprep.subr.mxu0 0.0
    %5952 = vmatpush1.msra.mxu0 0.0
    %5953 = vmatprep.subr.mxu0 0.0
    %5954 = vmatpush1.msra.mxu0 0.0
    %5955 = vmatprep.subr.mxu0 0.0
    %5956 = vmatpush1.msra.mxu0 0.0
    %5957 = vmatprep.subr.mxu0 0.0
    %5958 = vmatpush1.msra.mxu0 0.0
    %5959 = vmatprep.subr.mxu0 0.0
    %5960 = vmatpush1.msra.mxu0 0.0
    %5961 = vmatprep.subr.mxu0 0.0
    %5962 = vmatpush1.msra.mxu0 %v154
    %5963 = vmatprep.subr.mxu0 0.0
    %5964 = vmatpush1.msra.mxu0 %v153
    %5965 = vmatprep.subr.mxu0 0.0
    %5966 = vmatpush1.msra.mxu0 %v152
    %5967 = vmatprep.subr.mxu0 0.0
    %5968 = vmatpush1.msra.mxu0 %v151
    %5969 = vmatprep.subr.mxu0 0.0
    %5970 = vmatpush2.msra.mxu0 0.0
    %5971 = vmatprep.subr.mxu0 0.0
    %5972 = vmatpush2.msra.mxu0 0.0
    %5973 = vmatprep.subr.mxu0 0.0
    %5974 = vmatpush2.msra.mxu0 0.0
    %5975 = vmatprep.subr.mxu0 0.0
    %5976 = vmatpush2.msra.mxu0 0.0
    %5977 = vmatprep.subr.mxu0 0.0
    %5978 = vmatpush2.msra.mxu0 0.0
    %5979 = vmatprep.subr.mxu0 0.0
    %5980 = vmatpush2.msra.mxu0 0.0
    %5981 = vmatprep.subr.mxu0 0.0
    %5982 = vmatpush2.msra.mxu0 0.0
    %5983 = vmatprep.subr.mxu0 0.0
    %5984 = vmatpush2.msra.mxu0 0.0
    %5985 = vmatprep.subr.mxu0 0.0
    %5986 = vmatpush2.msra.mxu0 0.0
    %5987 = vmatprep.subr.mxu0 0.0
    %5988 = vmatpush2.msra.mxu0 0.0
    %5989 = vmatprep.subr.mxu0 0.0
    %5990 = vmatpush2.msra.mxu0 0.0
    %5991 = vmatprep.subr.mxu0 0.0
    %5992 = vmatpush2.msra.mxu0 0.0
    %5993 = vmatprep.subr.mxu0 0.0
    %5994 = vmatpush2.msra.mxu0 0.0
    %5995 = vmatprep.subr.mxu0 0.0
    %5996 = vmatpush2.msra.mxu0 0.0
    %5997 = vmatprep.subr.mxu0 0.0
    %5998 = vmatpush2.msra.mxu0 0.0
    %5999 = vmatprep.subr.mxu0 0.0
    %6000 = vmatpush2.msra.mxu0 0.0
    %6001 = vmatprep.mubr.f32.mxu0 0.0
    %6002 = vmatmul.mubr.f32.gmra.mxu0 %v5932
    %v6003 = vpop.f32.mrf.mxu0
    %v6004 = vadd.f32 %v478, %v6003
    %v6005 = vpop.f32.mrf.mxu0
    %6006 = vmatprep.mubr.f32.mxu0 0.0
    %6007 = vmatmul.mubr.f32.gmra.mxu0 %v5935
    %v6008 = vpop.f32.mrf.mxu0
    %v6009 = vadd.f32 %v478, %v6008
    %v6010 = vpop.f32.mrf.mxu0
    %6011 = vdwg.mxu0
    %v6012 = vtanh.pop %v6004
    %v6013 = vtanh.pop %v6009
    %v6014 = vsel %vm563, %v6012, 0.0
    %6015 = vadd.xlane.f32.xlu0 %v6014
    %v6016 = vpop.xlane.xlu0 %6015
    %v6017 = vsel %vm563, %v6013, 0.0
    %6018 = vadd.xlane.f32.xlu0 %v6017
    %v6019 = vpop.xlane.xlu0 %6018
    %v6020 = vmul.f32 %v6016, %v570
    %v6021 = vmul.f32 %v6019, %v570
    %v6022 = vsub.f32 %v6012, %v6020
    %v6023 = vsub.f32 %v6013, %v6021
    %v6024 = vmul.f32 %v6022, %v6022
    %v6025 = vmul.f32 %v6023, %v6023
    %v6026 = vsel %vm563, %v6024, 0.0
    %6027 = vadd.xlane.f32.xlu0 %v6026
    %v6028 = vpop.xlane.xlu0 %6027
    %v6029 = vsel %vm563, %v6025, 0.0
    %6030 = vadd.xlane.f32.xlu0 %v6029
    %v6031 = vpop.xlane.xlu0 %6030
    %v6032 = vmul.f32 %v6028, %v570
    %v6033 = vmul.f32 %v6031, %v570
    %v6034 = vadd.f32 %v6032, 1e-05
    %v6035 = vadd.f32 %v6033, 1e-05
    %v6036 = vrsqrt.pop %v6034
    %v6037 = vrsqrt.pop %v6035
    %v6038 = vmul.f32 %v6022, %v6036
    %v6039 = vmul.f32 %v6023, %v6037
    %v6040 = vmul.f32 %v6038, %v595
    %v6041 = vmul.f32 %v6039, %v595
    %v6042 = vadd.f32 %v6040, %v603
    %v6043 = vadd.f32 %v6041, %v603
    %v6045 = vsel %vm563, %v6042, 0
    %v6048 = vsel %vm563, %v6043, 0
    %6050 = vmatprep.subr.mxu0 0.0
    %6051 = vmatpush1.msra.mxu0 0.0
    %6052 = vmatprep.subr.mxu0 0.0
    %6053 = vmatpush1.msra.mxu0 0.0
    %6054 = vmatprep.subr.mxu0 0.0
    %6055 = vmatpush1.msra.mxu0 0.0
    %6056 = vmatprep.subr.mxu0 0.0
    %6057 = vmatpush1.msra.mxu0 0.0
    %6058 = vmatprep.subr.mxu0 0.0
    %6059 = vmatpush1.msra.mxu0 0.0
    %6060 = vmatprep.subr.mxu0 0.0
    %6061 = vmatpush1.msra.mxu0 0.0
    %6062 = vmatprep.subr.mxu0 0.0
    %6063 = vmatpush1.msra.mxu0 0.0
    %6064 = vmatprep.subr.mxu0 0.0
    %6065 = vmatpush1.msra.mxu0 0.0
    %6066 = vmatprep.subr.mxu0 0.0
    %6067 = vmatpush1.msra.mxu0 0.0
    %6068 = vmatprep.subr.mxu0 0.0
    %6069 = vmatpush1.msra.mxu0 0.0
    %6070 = vmatprep.subr.mxu0 0.0
    %6071 = vmatpush1.msra.mxu0 0.0
    %6072 = vmatprep.subr.mxu0 0.0
    %6073 = vmatpush1.msra.mxu0 0.0
    %6074 = vmatprep.subr.mxu0 0.0
    %6075 = vmatpush1.msra.mxu0 0.0
    %6076 = vmatprep.subr.mxu0 0.0
    %6077 = vmatpush1.msra.mxu0 0.0
    %6078 = vmatprep.subr.mxu0 0.0
    %6079 = vmatpush1.msra.mxu0 %v158
    %6080 = vmatprep.subr.mxu0 0.0
    %6081 = vmatpush1.msra.mxu0 %v157
    %6082 = vmatprep.subr.mxu0 0.0
    %6083 = vmatpush2.msra.mxu0 0.0
    %6084 = vmatprep.subr.mxu0 0.0
    %6085 = vmatpush2.msra.mxu0 0.0
    %6086 = vmatprep.subr.mxu0 0.0
    %6087 = vmatpush2.msra.mxu0 0.0
    %6088 = vmatprep.subr.mxu0 0.0
    %6089 = vmatpush2.msra.mxu0 0.0
    %6090 = vmatprep.subr.mxu0 0.0
    %6091 = vmatpush2.msra.mxu0 0.0
    %6092 = vmatprep.subr.mxu0 0.0
    %6093 = vmatpush2.msra.mxu0 0.0
    %6094 = vmatprep.subr.mxu0 0.0
    %6095 = vmatpush2.msra.mxu0 0.0
    %6096 = vmatprep.subr.mxu0 0.0
    %6097 = vmatpush2.msra.mxu0 0.0
    %6098 = vmatprep.subr.mxu0 0.0
    %6099 = vmatpush2.msra.mxu0 0.0
    %6100 = vmatprep.subr.mxu0 0.0
    %6101 = vmatpush2.msra.mxu0 0.0
    %6102 = vmatprep.subr.mxu0 0.0
    %6103 = vmatpush2.msra.mxu0 0.0
    %6104 = vmatprep.subr.mxu0 0.0
    %6105 = vmatpush2.msra.mxu0 0.0
    %6106 = vmatprep.subr.mxu0 0.0
    %6107 = vmatpush2.msra.mxu0 0.0
    %6108 = vmatprep.subr.mxu0 0.0
    %6109 = vmatpush2.msra.mxu0 0.0
    %6110 = vmatprep.subr.mxu0 0.0
    %6111 = vmatpush2.msra.mxu0 0.0
    %6112 = vmatprep.subr.mxu0 0.0
    %6113 = vmatpush2.msra.mxu0 0.0
    %6114 = vmatprep.mubr.f32.mxu0 0.0
    %6115 = vmatmul.mubr.f32.gmra.mxu0 %v6045
    %v6116 = vpop.f32.mrf.mxu0
    %v6117 = vadd.f32 %v611, %v6116
    %v6118 = vpop.f32.mrf.mxu0
    %6119 = vmatprep.mubr.f32.mxu0 0.0
    %6120 = vmatmul.mubr.f32.gmra.mxu0 %v6048
    %v6121 = vpop.f32.mrf.mxu0
    %v6122 = vadd.f32 %v611, %v6121
    %v6123 = vpop.f32.mrf.mxu0
    %6124 = vdwg.mxu0
    %v6125 = vmul.f32 %v6117, 0.2
    %v6126 = vmul.f32 %v6122, 0.2
    %v6128 = vsel %vm696, %v6125, 0
    %v6131 = vsel %vm696, %v6126, 0
    %6133 = vmatprep.subr.mxu0 0.0
    %6134 = vmatpush1.msra.mxu0 0.0
    %6135 = vmatprep.subr.mxu0 0.0
    %6136 = vmatpush1.msra.mxu0 0.0
    %6137 = vmatprep.subr.mxu0 0.0
    %6138 = vmatpush1.msra.mxu0 0.0
    %6139 = vmatprep.subr.mxu0 0.0
    %6140 = vmatpush1.msra.mxu0 0.0
    %6141 = vmatprep.subr.mxu0 0.0
    %6142 = vmatpush1.msra.mxu0 0.0
    %6143 = vmatprep.subr.mxu0 0.0
    %6144 = vmatpush1.msra.mxu0 0.0
    %6145 = vmatprep.subr.mxu0 0.0
    %6146 = vmatpush1.msra.mxu0 0.0
    %6147 = vmatprep.subr.mxu0 0.0
    %6148 = vmatpush1.msra.mxu0 0.0
    %6149 = vmatprep.subr.mxu0 0.0
    %6150 = vmatpush1.msra.mxu0 0.0
    %6151 = vmatprep.subr.mxu0 0.0
    %6152 = vmatpush1.msra.mxu0 0.0
    %6153 = vmatprep.subr.mxu0 0.0
    %6154 = vmatpush1.msra.mxu0 0.0
    %6155 = vmatprep.subr.mxu0 0.0
    %6156 = vmatpush1.msra.mxu0 0.0
    %6157 = vmatprep.subr.mxu0 0.0
    %6158 = vmatpush1.msra.mxu0 0.0
    %6159 = vmatprep.subr.mxu0 0.0
    %6160 = vmatpush1.msra.mxu0 0.0
    %6161 = vmatprep.subr.mxu0 0.0
    %6162 = vmatpush1.msra.mxu0 %v704
    %6163 = vmatprep.subr.mxu0 0.0
    %6164 = vmatpush1.msra.mxu0 %v159
    %6165 = vmatprep.subr.mxu0 0.0
    %6166 = vmatpush2.msra.mxu0 0.0
    %6167 = vmatprep.subr.mxu0 0.0
    %6168 = vmatpush2.msra.mxu0 0.0
    %6169 = vmatprep.subr.mxu0 0.0
    %6170 = vmatpush2.msra.mxu0 0.0
    %6171 = vmatprep.subr.mxu0 0.0
    %6172 = vmatpush2.msra.mxu0 0.0
    %6173 = vmatprep.subr.mxu0 0.0
    %6174 = vmatpush2.msra.mxu0 0.0
    %6175 = vmatprep.subr.mxu0 0.0
    %6176 = vmatpush2.msra.mxu0 0.0
    %6177 = vmatprep.subr.mxu0 0.0
    %6178 = vmatpush2.msra.mxu0 0.0
    %6179 = vmatprep.subr.mxu0 0.0
    %6180 = vmatpush2.msra.mxu0 0.0
    %6181 = vmatprep.subr.mxu0 0.0
    %6182 = vmatpush2.msra.mxu0 0.0
    %6183 = vmatprep.subr.mxu0 0.0
    %6184 = vmatpush2.msra.mxu0 0.0
    %6185 = vmatprep.subr.mxu0 0.0
    %6186 = vmatpush2.msra.mxu0 0.0
    %6187 = vmatprep.subr.mxu0 0.0
    %6188 = vmatpush2.msra.mxu0 0.0
    %6189 = vmatprep.subr.mxu0 0.0
    %6190 = vmatpush2.msra.mxu0 0.0
    %6191 = vmatprep.subr.mxu0 0.0
    %6192 = vmatpush2.msra.mxu0 0.0
    %6193 = vmatprep.subr.mxu0 0.0
    %6194 = vmatpush2.msra.mxu0 0.0
    %6195 = vmatprep.subr.mxu0 0.0
    %6196 = vmatpush2.msra.mxu0 0.0
    %6197 = vmatprep.mubr.f32.mxu0 0.0
    %6198 = vmatmul.mubr.f32.gmra.mxu0 %v6128
    %v6199 = vpop.f32.mrf.mxu0
    %v6200 = vadd.f32 0.0, %v6199
    %v6201 = vpop.f32.mrf.mxu0
    %6202 = vmatprep.mubr.f32.mxu0 0.0
    %6203 = vmatmul.mubr.f32.gmra.mxu0 %v6131
    %v6204 = vpop.f32.mrf.mxu0
    %v6205 = vadd.f32 0.0, %v6204
    %v6206 = vpop.f32.mrf.mxu0
    %6207 = vdwg.mxu0
    %v6208 = vmul.f32 %v6200, %v595
    %v6209 = vmul.f32 %v6205, %v595
    %v6210 = vsel %vm563, %v6208, 0.0
    %6211 = vadd.xlane.f32.xlu0 %v6210
    %v6212 = vpop.xlane.xlu0 %6211
    %v6213 = vsel %vm563, %v6209, 0.0
    %6214 = vadd.xlane.f32.xlu0 %v6213
    %v6215 = vpop.xlane.xlu0 %6214
    %v6216 = vmul.f32 %v6212, %v570
    %v6217 = vmul.f32 %v6215, %v570
    %v6218 = vmul.f32 %v6208, %v6038
    %v6219 = vmul.f32 %v6209, %v6039
    %v6220 = vsel %vm563, %v6218, 0.0
    %6221 = vadd.xlane.f32.xlu0 %v6220
    %v6222 = vpop.xlane.xlu0 %6221
    %v6223 = vsel %vm563, %v6219, 0.0
    %6224 = vadd.xlane.f32.xlu0 %v6223
    %v6225 = vpop.xlane.xlu0 %6224
    %v6226 = vmul.f32 %v6222, %v570
    %v6227 = vmul.f32 %v6225, %v570
    %v6228 = vsub.f32 %v6208, %v6216
    %v6229 = vsub.f32 %v6209, %v6217
    %v6230 = vmul.f32 %v6038, %v6226
    %v6231 = vmul.f32 %v6039, %v6227
    %v6232 = vsub.f32 %v6228, %v6230
    %v6233 = vsub.f32 %v6229, %v6231
    %v6234 = vmul.f32 %v6036, %v6232
    %v6235 = vmul.f32 %v6037, %v6233
    %v6236 = vmul.f32 %v6012, %v6012
    %v6237 = vmul.f32 %v6013, %v6013
    %v6238 = vsub.f32 1.0, %v6236
    %v6239 = vsub.f32 1.0, %v6237
    %v6240 = vmul.f32 %v6234, %v6238
    %v6241 = vmul.f32 %v6235, %v6239
    %v6243 = vsel %vm563, %v6240, 0
    %v6246 = vsel %vm563, %v6241, 0
    %6248 = vmatprep.subr.mxu0 0.0
    %6249 = vmatpush1.msra.mxu0 0.0
    %6250 = vmatprep.subr.mxu0 0.0
    %6251 = vmatpush1.msra.mxu0 0.0
    %6252 = vmatprep.subr.mxu0 0.0
    %6253 = vmatpush1.msra.mxu0 0.0
    %6254 = vmatprep.subr.mxu0 0.0
    %6255 = vmatpush1.msra.mxu0 0.0
    %6256 = vmatprep.subr.mxu0 0.0
    %6257 = vmatpush1.msra.mxu0 0.0
    %6258 = vmatprep.subr.mxu0 0.0
    %6259 = vmatpush1.msra.mxu0 0.0
    %6260 = vmatprep.subr.mxu0 0.0
    %6261 = vmatpush1.msra.mxu0 0.0
    %6262 = vmatprep.subr.mxu0 0.0
    %6263 = vmatpush1.msra.mxu0 0.0
    %6264 = vmatprep.subr.mxu0 0.0
    %6265 = vmatpush1.msra.mxu0 0.0
    %6266 = vmatprep.subr.mxu0 0.0
    %6267 = vmatpush1.msra.mxu0 0.0
    %6268 = vmatprep.subr.mxu0 0.0
    %6269 = vmatpush1.msra.mxu0 0.0
    %6270 = vmatprep.subr.mxu0 0.0
    %6271 = vmatpush1.msra.mxu0 0.0
    %6272 = vmatprep.subr.mxu0 0.0
    %6273 = vmatpush1.msra.mxu0 0.0
    %6274 = vmatprep.subr.mxu0 0.0
    %6275 = vmatpush1.msra.mxu0 0.0
    %6276 = vmatprep.subr.mxu0 0.0
    %6277 = vmatpush1.msra.mxu0 %v156
    %6278 = vmatprep.subr.mxu0 0.0
    %6279 = vmatpush1.msra.mxu0 %v155
    %6280 = vmatprep.subr.mxu0 0.0
    %6281 = vmatpush2.msra.mxu0 0.0
    %6282 = vmatprep.subr.mxu0 0.0
    %6283 = vmatpush2.msra.mxu0 0.0
    %6284 = vmatprep.subr.mxu0 0.0
    %6285 = vmatpush2.msra.mxu0 0.0
    %6286 = vmatprep.subr.mxu0 0.0
    %6287 = vmatpush2.msra.mxu0 0.0
    %6288 = vmatprep.subr.mxu0 0.0
    %6289 = vmatpush2.msra.mxu0 0.0
    %6290 = vmatprep.subr.mxu0 0.0
    %6291 = vmatpush2.msra.mxu0 0.0
    %6292 = vmatprep.subr.mxu0 0.0
    %6293 = vmatpush2.msra.mxu0 0.0
    %6294 = vmatprep.subr.mxu0 0.0
    %6295 = vmatpush2.msra.mxu0 0.0
    %6296 = vmatprep.subr.mxu0 0.0
    %6297 = vmatpush2.msra.mxu0 0.0
    %6298 = vmatprep.subr.mxu0 0.0
    %6299 = vmatpush2.msra.mxu0 0.0
    %6300 = vmatprep.subr.mxu0 0.0
    %6301 = vmatpush2.msra.mxu0 0.0
    %6302 = vmatprep.subr.mxu0 0.0
    %6303 = vmatpush2.msra.mxu0 0.0
    %6304 = vmatprep.subr.mxu0 0.0
    %6305 = vmatpush2.msra.mxu0 0.0
    %6306 = vmatprep.subr.mxu0 0.0
    %6307 = vmatpush2.msra.mxu0 0.0
    %6308 = vmatprep.subr.mxu0 0.0
    %6309 = vmatpush2.msra.mxu0 0.0
    %6310 = vmatprep.subr.mxu0 0.0
    %6311 = vmatpush2.msra.mxu0 0.0
    %6312 = vmatprep.mubr.f32.mxu0 0.0
    %6313 = vmatmul.mubr.f32.gmra.mxu0 %v6243
    %v6314 = vpop.f32.mrf.mxu0
    %v6315 = vadd.f32 0.0, %v6314
    %v6316 = vpop.f32.mrf.mxu0
    %6317 = vmatprep.mubr.f32.mxu0 0.0
    %6318 = vmatmul.mubr.f32.gmra.mxu0 %v6246
    %v6319 = vpop.f32.mrf.mxu0
    %v6320 = vadd.f32 0.0, %v6319
    %v6321 = vpop.f32.mrf.mxu0
    %6322 = vdwg.mxu0
    %v6323 = vmul.f32 %v6315, %v462
    %v6324 = vmul.f32 %v6320, %v462
    %v6325 = vsel %vm178, %v6323, 0.0
    %6326 = vadd.xlane.f32.xlu0 %v6325
    %v6327 = vpop.xlane.xlu0 %6326
    %v6328 = vsel %vm178, %v6324, 0.0
    %6329 = vadd.xlane.f32.xlu0 %v6328
    %v6330 = vpop.xlane.xlu0 %6329
    %v6331 = vmul.f32 %v6327, %v437
    %v6332 = vmul.f32 %v6330, %v437
    %v6333 = vmul.f32 %v6323, %v5925
    %v6334 = vmul.f32 %v6324, %v5926
    %v6335 = vsel %vm178, %v6333, 0.0
    %6336 = vadd.xlane.f32.xlu0 %v6335
    %v6337 = vpop.xlane.xlu0 %6336
    %v6338 = vsel %vm178, %v6334, 0.0
    %6339 = vadd.xlane.f32.xlu0 %v6338
    %v6340 = vpop.xlane.xlu0 %6339
    %v6341 = vmul.f32 %v6337, %v437
    %v6342 = vmul.f32 %v6340, %v437
    %v6343 = vsub.f32 %v6323, %v6331
    %v6344 = vsub.f32 %v6324, %v6332
    %v6345 = vmul.f32 %v5925, %v6341
    %v6346 = vmul.f32 %v5926, %v6342
    %v6347 = vsub.f32 %v6343, %v6345
    %v6348 = vsub.f32 %v6344, %v6346
    %v6349 = vmul.f32 %v5923, %v6347
    %v6350 = vmul.f32 %v5924, %v6348
    %v6351 = vmul.f32 %v5899, %v5899
    %v6352 = vmul.f32 %v5900, %v5900
    %v6353 = vsub.f32 1.0, %v6351
    %v6354 = vsub.f32 1.0, %v6352
    %v6355 = vmul.f32 %v6349, %v6353
    %v6356 = vmul.f32 %v6350, %v6354
    %v6358 = vsel %vm178, %v6355, 0
    %v6361 = vsel %vm178, %v6356, 0
    %6363 = vmatprep.subr.mxu0 0.0
    %6364 = vmatpush1.msra.mxu0 0.0
    %6365 = vmatprep.subr.mxu0 0.0
    %6366 = vmatpush1.msra.mxu0 0.0
    %6367 = vmatprep.subr.mxu0 0.0
    %6368 = vmatpush1.msra.mxu0 0.0
    %6369 = vmatprep.subr.mxu0 0.0
    %6370 = vmatpush1.msra.mxu0 0.0
    %6371 = vmatprep.subr.mxu0 0.0
    %6372 = vmatpush1.msra.mxu0 0.0
    %6373 = vmatprep.subr.mxu0 0.0
    %6374 = vmatpush1.msra.mxu0 0.0
    %6375 = vmatprep.subr.mxu0 0.0
    %6376 = vmatpush1.msra.mxu0 0.0
    %6377 = vmatprep.subr.mxu0 0.0
    %6378 = vmatpush1.msra.mxu0 0.0
    %6379 = vmatprep.subr.mxu0 0.0
    %6380 = vmatpush1.msra.mxu0 0.0
    %6381 = vmatprep.subr.mxu0 0.0
    %6382 = vmatpush1.msra.mxu0 0.0
    %6383 = vmatprep.subr.mxu0 0.0
    %6384 = vmatpush1.msra.mxu0 0.0
    %6385 = vmatprep.subr.mxu0 0.0
    %6386 = vmatpush1.msra.mxu0 0.0
    %6387 = vmatprep.subr.mxu0 0.0
    %6388 = vmatpush1.msra.mxu0 %v150
    %6389 = vmatprep.subr.mxu0 0.0
    %6390 = vmatpush1.msra.mxu0 %v149
    %6391 = vmatprep.subr.mxu0 0.0
    %6392 = vmatpush1.msra.mxu0 %v148
    %6393 = vmatprep.subr.mxu0 0.0
    %6394 = vmatpush1.msra.mxu0 %v147
    %6395 = vmatprep.subr.mxu0 0.0
    %6396 = vmatpush2.msra.mxu0 0.0
    %6397 = vmatprep.subr.mxu0 0.0
    %6398 = vmatpush2.msra.mxu0 0.0
    %6399 = vmatprep.subr.mxu0 0.0
    %6400 = vmatpush2.msra.mxu0 0.0
    %6401 = vmatprep.subr.mxu0 0.0
    %6402 = vmatpush2.msra.mxu0 0.0
    %6403 = vmatprep.subr.mxu0 0.0
    %6404 = vmatpush2.msra.mxu0 0.0
    %6405 = vmatprep.subr.mxu0 0.0
    %6406 = vmatpush2.msra.mxu0 0.0
    %6407 = vmatprep.subr.mxu0 0.0
    %6408 = vmatpush2.msra.mxu0 0.0
    %6409 = vmatprep.subr.mxu0 0.0
    %6410 = vmatpush2.msra.mxu0 0.0
    %6411 = vmatprep.subr.mxu0 0.0
    %6412 = vmatpush2.msra.mxu0 0.0
    %6413 = vmatprep.subr.mxu0 0.0
    %6414 = vmatpush2.msra.mxu0 0.0
    %6415 = vmatprep.subr.mxu0 0.0
    %6416 = vmatpush2.msra.mxu0 0.0
    %6417 = vmatprep.subr.mxu0 0.0
    %6418 = vmatpush2.msra.mxu0 0.0
    %6419 = vmatprep.subr.mxu0 0.0
    %6420 = vmatpush2.msra.mxu0 0.0
    %6421 = vmatprep.subr.mxu0 0.0
    %6422 = vmatpush2.msra.mxu0 0.0
    %6423 = vmatprep.subr.mxu0 0.0
    %6424 = vmatpush2.msra.mxu0 0.0
    %6425 = vmatprep.subr.mxu0 0.0
    %6426 = vmatpush2.msra.mxu0 0.0
    %6427 = vmatprep.mubr.f32.mxu0 0.0
    %6428 = vmatmul.mubr.f32.gmra.mxu0 %v6358
    %v6429 = vpop.f32.mrf.mxu0
    %v6430 = vadd.f32 0.0, %v6429
    %v6431 = vpop.f32.mrf.mxu0
    %6432 = vmatprep.mubr.f32.mxu0 0.0
    %6433 = vmatmul.mubr.f32.gmra.mxu0 %v6361
    %v6434 = vpop.f32.mrf.mxu0
    %v6435 = vadd.f32 0.0, %v6434
    %v6436 = vpop.f32.mrf.mxu0
    %6437 = vdwg.mxu0
    %v6438 = vmul.f32 %v5737, 6.25e-05
    %6439 = vmatprep.subr.mxu0 0.0
    %6440 = vmatpush1.msra.mxu0 0.0
    %6441 = vmatprep.subr.mxu0 0.0
    %6442 = vmatpush1.msra.mxu0 0.0
    %6443 = vmatprep.subr.mxu0 0.0
    %6444 = vmatpush1.msra.mxu0 0.0
    %6445 = vmatprep.subr.mxu0 0.0
    %6446 = vmatpush1.msra.mxu0 0.0
    %6447 = vmatprep.subr.mxu0 0.0
    %6448 = vmatpush1.msra.mxu0 0.0
    %6449 = vmatprep.subr.mxu0 0.0
    %6450 = vmatpush1.msra.mxu0 0.0
    %6451 = vmatprep.subr.mxu0 0.0
    %6452 = vmatpush1.msra.mxu0 0.0
    %6453 = vmatprep.subr.mxu0 0.0
    %6454 = vmatpush1.msra.mxu0 0.0
    %6455 = vmatprep.subr.mxu0 0.0
    %6456 = vmatpush1.msra.mxu0 0.0
    %6457 = vmatprep.subr.mxu0 0.0
    %6458 = vmatpush1.msra.mxu0 0.0
    %6459 = vmatprep.subr.mxu0 0.0
    %6460 = vmatpush1.msra.mxu0 0.0
    %6461 = vmatprep.subr.mxu0 0.0
    %6462 = vmatpush1.msra.mxu0 0.0
    %6463 = vmatprep.subr.mxu0 0.0
    %6464 = vmatpush1.msra.mxu0 0.0
    %6465 = vmatprep.subr.mxu0 0.0
    %6466 = vmatpush1.msra.mxu0 0.0
    %6467 = vmatprep.subr.mxu0 0.0
    %6468 = vmatpush1.msra.mxu0 %v6435
    %6469 = vmatprep.subr.mxu0 0.0
    %6470 = vmatpush1.msra.mxu0 %v6430
    %6471 = vmatprep.subr.mxu0 0.0
    %6472 = vmatpush2.msra.mxu0 0.0
    %6473 = vmatprep.subr.mxu0 0.0
    %6474 = vmatpush2.msra.mxu0 0.0
    %6475 = vmatprep.subr.mxu0 0.0
    %6476 = vmatpush2.msra.mxu0 0.0
    %6477 = vmatprep.subr.mxu0 0.0
    %6478 = vmatpush2.msra.mxu0 0.0
    %6479 = vmatprep.subr.mxu0 0.0
    %6480 = vmatpush2.msra.mxu0 0.0
    %6481 = vmatprep.subr.mxu0 0.0
    %6482 = vmatpush2.msra.mxu0 0.0
    %6483 = vmatprep.subr.mxu0 0.0
    %6484 = vmatpush2.msra.mxu0 0.0
    %6485 = vmatprep.subr.mxu0 0.0
    %6486 = vmatpush2.msra.mxu0 0.0
    %6487 = vmatprep.subr.mxu0 0.0
    %6488 = vmatpush2.msra.mxu0 0.0
    %6489 = vmatprep.subr.mxu0 0.0
    %6490 = vmatpush2.msra.mxu0 0.0
    %6491 = vmatprep.subr.mxu0 0.0
    %6492 = vmatpush2.msra.mxu0 0.0
    %6493 = vmatprep.subr.mxu0 0.0
    %6494 = vmatpush2.msra.mxu0 0.0
    %6495 = vmatprep.subr.mxu0 0.0
    %6496 = vmatpush2.msra.mxu0 0.0
    %6497 = vmatprep.subr.mxu0 0.0
    %6498 = vmatpush2.msra.mxu0 0.0
    %6499 = vmatprep.subr.mxu0 0.0
    %6500 = vmatpush2.msra.mxu0 0.0
    %6501 = vmatprep.subr.mxu0 0.0
    %6502 = vmatpush2.msra.mxu0 0.0
    %6503 = vmatprep.mubr.f32.mxu0 0.0
    %6504 = vmatmul.mubr.f32.gmra.mxu0 %v1012
    %v6505 = vpop.f32.mrf.mxu0
    %v6506 = vadd.f32 %v6438, %v6505
    %v6507 = vpop.f32.mrf.mxu0
    %6508 = vdwg.mxu0
    %s6509 = scalar_lea.vmem [#allocation14], 14
    %6510 = vst.msk [vmem:[%s6509] sm:$0x3] %vm1084, %v6506
    %v6511 = vmul.f32 %v6506, 0.1
    %v6512 = vsub.f32 %v5737, %v6511
    %v6514 = vsel %vm267, %v6512, 0
    %6516 = vmatprep.subr.mxu0 0.0
    %6517 = vmatpush1.msra.mxu0 0.0
    %6518 = vmatprep.subr.mxu0 0.0
    %6519 = vmatpush1.msra.mxu0 0.0
    %6520 = vmatprep.subr.mxu0 0.0
    %6521 = vmatpush1.msra.mxu0 0.0
    %6522 = vmatprep.subr.mxu0 0.0
    %6523 = vmatpush1.msra.mxu0 0.0
    %6524 = vmatprep.subr.mxu0 0.0
    %6525 = vmatpush1.msra.mxu0 0.0
    %6526 = vmatprep.subr.mxu0 0.0
    %6527 = vmatpush1.msra.mxu0 0.0
    %6528 = vmatprep.subr.mxu0 0.0
    %6529 = vmatpush1.msra.mxu0 0.0
    %6530 = vmatprep.subr.mxu0 0.0
    %6531 = vmatpush1.msra.mxu0 0.0
    %6532 = vmatprep.subr.mxu0 0.0
    %6533 = vmatpush1.msra.mxu0 0.0
    %6534 = vmatprep.subr.mxu0 0.0
    %6535 = vmatpush1.msra.mxu0 0.0
    %6536 = vmatprep.subr.mxu0 0.0
    %6537 = vmatpush1.msra.mxu0 0.0
    %6538 = vmatprep.subr.mxu0 0.0
    %6539 = vmatpush1.msra.mxu0 0.0
    %6540 = vmatprep.subr.mxu0 0.0
    %6541 = vmatpush1.msra.mxu0 0.0
    %6542 = vmatprep.subr.mxu0 0.0
    %6543 = vmatpush1.msra.mxu0 0.0
    %6544 = vmatprep.subr.mxu0 0.0
    %6545 = vmatpush1.msra.mxu0 0.0
    %6546 = vmatprep.subr.mxu0 0.0
    %6547 = vmatpush1.msra.mxu0 %v6514
    %6548 = vmatprep.subr.mxu0 0.0
    %6549 = vmatpush2.msra.mxu0 0.0
    %6550 = vmatprep.subr.mxu0 0.0
    %6551 = vmatpush2.msra.mxu0 0.0
    %6552 = vmatprep.subr.mxu0 0.0
    %6553 = vmatpush2.msra.mxu0 0.0
    %6554 = vmatprep.subr.mxu0 0.0
    %6555 = vmatpush2.msra.mxu0 0.0
    %6556 = vmatprep.subr.mxu0 0.0
    %6557 = vmatpush2.msra.mxu0 0.0
    %6558 = vmatprep.subr.mxu0 0.0
    %6559 = vmatpush2.msra.mxu0 0.0
    %6560 = vmatprep.subr.mxu0 0.0
    %6561 = vmatpush2.msra.mxu0 0.0
    %6562 = vmatprep.subr.mxu0 0.0
    %6563 = vmatpush2.msra.mxu0 0.0
    %6564 = vmatprep.subr.mxu0 0.0
    %6565 = vmatpush2.msra.mxu0 0.0
    %6566 = vmatprep.subr.mxu0 0.0
    %6567 = vmatpush2.msra.mxu0 0.0
    %6568 = vmatprep.subr.mxu0 0.0
    %6569 = vmatpush2.msra.mxu0 0.0
    %6570 = vmatprep.subr.mxu0 0.0
    %6571 = vmatpush2.msra.mxu0 0.0
    %6572 = vmatprep.subr.mxu0 0.0
    %6573 = vmatpush2.msra.mxu0 0.0
    %6574 = vmatprep.subr.mxu0 0.0
    %6575 = vmatpush2.msra.mxu0 0.0
    %6576 = vmatprep.subr.mxu0 0.0
    %6577 = vmatpush2.msra.mxu0 0.0
    %6578 = vmatprep.subr.mxu0 0.0
    %6579 = vmatpush2.msra.mxu0 0.0
    %6580 = vmatprep.mubr.f32.mxu0 0.0
    %6581 = vmatmul.mubr.f32.gmra.mxu0 %v262
    %v6582 = vpop.f32.mrf.mxu0
    %v6583 = vadd.f32 0.0, %v6582
    %v6584 = vpop.f32.mrf.mxu0
    %6585 = vmatprep.mubr.f32.mxu0 0.0
    %6586 = vmatmul.mubr.f32.gmra.mxu0 %v265
    %v6587 = vpop.f32.mrf.mxu0
    %v6588 = vadd.f32 0.0, %v6587
    %v6589 = vpop.f32.mrf.mxu0
    %6590 = vdwg.mxu0
    %v6592 = vsel %vm178, %v6583, 0
    %v6595 = vsel %vm178, %v6588, 0
    %6597 = vmatprep.subr.mxu0 0.0
    %6598 = vmatpush1.msra.mxu0 0.0
    %6599 = vmatprep.subr.mxu0 0.0
    %6600 = vmatpush1.msra.mxu0 0.0
    %6601 = vmatprep.subr.mxu0 0.0
    %6602 = vmatpush1.msra.mxu0 0.0
    %6603 = vmatprep.subr.mxu0 0.0
    %6604 = vmatpush1.msra.mxu0 0.0
    %6605 = vmatprep.subr.mxu0 0.0
    %6606 = vmatpush1.msra.mxu0 0.0
    %6607 = vmatprep.subr.mxu0 0.0
    %6608 = vmatpush1.msra.mxu0 0.0
    %6609 = vmatprep.subr.mxu0 0.0
    %6610 = vmatpush1.msra.mxu0 0.0
    %6611 = vmatprep.subr.mxu0 0.0
    %6612 = vmatpush1.msra.mxu0 0.0
    %6613 = vmatprep.subr.mxu0 0.0
    %6614 = vmatpush1.msra.mxu0 0.0
    %6615 = vmatprep.subr.mxu0 0.0
    %6616 = vmatpush1.msra.mxu0 0.0
    %6617 = vmatprep.subr.mxu0 0.0
    %6618 = vmatpush1.msra.mxu0 0.0
    %6619 = vmatprep.subr.mxu0 0.0
    %6620 = vmatpush1.msra.mxu0 0.0
    %6621 = vmatprep.subr.mxu0 0.0
    %6622 = vmatpush1.msra.mxu0 %v146
    %6623 = vmatprep.subr.mxu0 0.0
    %6624 = vmatpush1.msra.mxu0 %v145
    %6625 = vmatprep.subr.mxu0 0.0
    %6626 = vmatpush1.msra.mxu0 %v144
    %6627 = vmatprep.subr.mxu0 0.0
    %6628 = vmatpush1.msra.mxu0 %v143
    %6629 = vmatprep.subr.mxu0 0.0
    %6630 = vmatpush2.msra.mxu0 0.0
    %6631 = vmatprep.subr.mxu0 0.0
    %6632 = vmatpush2.msra.mxu0 0.0
    %6633 = vmatprep.subr.mxu0 0.0
    %6634 = vmatpush2.msra.mxu0 0.0
    %6635 = vmatprep.subr.mxu0 0.0
    %6636 = vmatpush2.msra.mxu0 0.0
    %6637 = vmatprep.subr.mxu0 0.0
    %6638 = vmatpush2.msra.mxu0 0.0
    %6639 = vmatprep.subr.mxu0 0.0
    %6640 = vmatpush2.msra.mxu0 0.0
    %6641 = vmatprep.subr.mxu0 0.0
    %6642 = vmatpush2.msra.mxu0 0.0
    %6643 = vmatprep.subr.mxu0 0.0
    %6644 = vmatpush2.msra.mxu0 0.0
    %6645 = vmatprep.subr.mxu0 0.0
    %6646 = vmatpush2.msra.mxu0 0.0
    %6647 = vmatprep.subr.mxu0 0.0
    %6648 = vmatpush2.msra.mxu0 0.0
    %6649 = vmatprep.subr.mxu0 0.0
    %6650 = vmatpush2.msra.mxu0 0.0
    %6651 = vmatprep.subr.mxu0 0.0
    %6652 = vmatpush2.msra.mxu0 0.0
    %6653 = vmatprep.subr.mxu0 0.0
    %6654 = vmatpush2.msra.mxu0 0.0
    %6655 = vmatprep.subr.mxu0 0.0
    %6656 = vmatpush2.msra.mxu0 0.0
    %6657 = vmatprep.subr.mxu0 0.0
    %6658 = vmatpush2.msra.mxu0 0.0
    %6659 = vmatprep.subr.mxu0 0.0
    %6660 = vmatpush2.msra.mxu0 0.0
    %6661 = vmatprep.mubr.f32.mxu0 0.0
    %6662 = vmatmul.mubr.f32.gmra.mxu0 %v6592
    %v6663 = vpop.f32.mrf.mxu0
    %v6664 = vadd.f32 0.0, %v6663
    %v6665 = vpop.f32.mrf.mxu0
    %6666 = vmatprep.mubr.f32.mxu0 0.0
    %6667 = vmatmul.mubr.f32.gmra.mxu0 %v6595
    %v6668 = vpop.f32.mrf.mxu0
    %v6669 = vadd.f32 0.0, %v6668
    %v6670 = vpop.f32.mrf.mxu0
    %6671 = vdwg.mxu0
    %v6672 = vadd.f32 %v252, %v6664
    %v6673 = vadd.f32 %v257, %v6669
    %v6674 = vtanh.pop %v6672
    %v6675 = vtanh.pop %v6673
    %v6676 = vsel %vm178, %v6674, 0.0
    %6677 = vadd.xlane.f32.xlu0 %v6676
    %v6678 = vpop.xlane.xlu0 %6677
    %v6679 = vsel %vm178, %v6675, 0.0
    %6680 = vadd.xlane.f32.xlu0 %v6679
    %v6681 = vpop.xlane.xlu0 %6680
    %v6682 = vmul.f32 %v6678, %v437
    %v6683 = vmul.f32 %v6681, %v437
    %v6684 = vsub.f32 %v6674, %v6682
    %v6685 = vsub.f32 %v6675, %v6683
    %v6686 = vmul.f32 %v6684, %v6684
    %v6687 = vmul.f32 %v6685, %v6685
    %v6688 = vsel %vm178, %v6686, 0.0
    %6689 = vadd.xlane.f32.xlu0 %v6688
    %v6690 = vpop.xlane.xlu0 %6689
    %v6691 = vsel %vm178, %v6687, 0.0
    %6692 = vadd.xlane.f32.xlu0 %v6691
    %v6693 = vpop.xlane.xlu0 %6692
    %v6694 = vmul.f32 %v6690, %v437
    %v6695 = vmul.f32 %v6693, %v437
    %v6696 = vadd.f32 %v6694, 1e-05
    %v6697 = vadd.f32 %v6695, 1e-05
    %v6698 = vrsqrt.pop %v6696
    %v6699 = vrsqrt.pop %v6697
    %v6700 = vmul.f32 %v6684, %v6698
    %v6701 = vmul.f32 %v6685, %v6699
    %v6702 = vmul.f32 %v6700, %v462
    %v6703 = vmul.f32 %v6701, %v462
    %v6704 = vadd.f32 %v6702, %v470
    %v6705 = vadd.f32 %v6703, %v470
    %v6707 = vsel %vm178, %v6704, 0
    %v6710 = vsel %vm178, %v6705, 0
    %6712 = vmatprep.subr.mxu0 0.0
    %6713 = vmatpush1.msra.mxu0 0.0
    %6714 = vmatprep.subr.mxu0 0.0
    %6715 = vmatpush1.msra.mxu0 0.0
    %6716 = vmatprep.subr.mxu0 0.0
    %6717 = vmatpush1.msra.mxu0 0.0
    %6718 = vmatprep.subr.mxu0 0.0
    %6719 = vmatpush1.msra.mxu0 0.0
    %6720 = vmatprep.subr.mxu0 0.0
    %6721 = vmatpush1.msra.mxu0 0.0
    %6722 = vmatprep.subr.mxu0 0.0
    %6723 = vmatpush1.msra.mxu0 0.0
    %6724 = vmatprep.subr.mxu0 0.0
    %6725 = vmatpush1.msra.mxu0 0.0
    %6726 = vmatprep.subr.mxu0 0.0
    %6727 = vmatpush1.msra.mxu0 0.0
    %6728 = vmatprep.subr.mxu0 0.0
    %6729 = vmatpush1.msra.mxu0 0.0
    %6730 = vmatprep.subr.mxu0 0.0
    %6731 = vmatpush1.msra.mxu0 0.0
    %6732 = vmatprep.subr.mxu0 0.0
    %6733 = vmatpush1.msra.mxu0 0.0
    %6734 = vmatprep.subr.mxu0 0.0
    %6735 = vmatpush1.msra.mxu0 0.0
    %6736 = vmatprep.subr.mxu0 0.0
    %6737 = vmatpush1.msra.mxu0 %v154
    %6738 = vmatprep.subr.mxu0 0.0
    %6739 = vmatpush1.msra.mxu0 %v153
    %6740 = vmatprep.subr.mxu0 0.0
    %6741 = vmatpush1.msra.mxu0 %v152
    %6742 = vmatprep.subr.mxu0 0.0
    %6743 = vmatpush1.msra.mxu0 %v151
    %6744 = vmatprep.subr.mxu0 0.0
    %6745 = vmatpush2.msra.mxu0 0.0
    %6746 = vmatprep.subr.mxu0 0.0
    %6747 = vmatpush2.msra.mxu0 0.0
    %6748 = vmatprep.subr.mxu0 0.0
    %6749 = vmatpush2.msra.mxu0 0.0
    %6750 = vmatprep.subr.mxu0 0.0
    %6751 = vmatpush2.msra.mxu0 0.0
    %6752 = vmatprep.subr.mxu0 0.0
    %6753 = vmatpush2.msra.mxu0 0.0
    %6754 = vmatprep.subr.mxu0 0.0
    %6755 = vmatpush2.msra.mxu0 0.0
    %6756 = vmatprep.subr.mxu0 0.0
    %6757 = vmatpush2.msra.mxu0 0.0
    %6758 = vmatprep.subr.mxu0 0.0
    %6759 = vmatpush2.msra.mxu0 0.0
    %6760 = vmatprep.subr.mxu0 0.0
    %6761 = vmatpush2.msra.mxu0 0.0
    %6762 = vmatprep.subr.mxu0 0.0
    %6763 = vmatpush2.msra.mxu0 0.0
    %6764 = vmatprep.subr.mxu0 0.0
    %6765 = vmatpush2.msra.mxu0 0.0
    %6766 = vmatprep.subr.mxu0 0.0
    %6767 = vmatpush2.msra.mxu0 0.0
    %6768 = vmatprep.subr.mxu0 0.0
    %6769 = vmatpush2.msra.mxu0 0.0
    %6770 = vmatprep.subr.mxu0 0.0
    %6771 = vmatpush2.msra.mxu0 0.0
    %6772 = vmatprep.subr.mxu0 0.0
    %6773 = vmatpush2.msra.mxu0 0.0
    %6774 = vmatprep.subr.mxu0 0.0
    %6775 = vmatpush2.msra.mxu0 0.0
    %6776 = vmatprep.mubr.f32.mxu0 0.0
    %6777 = vmatmul.mubr.f32.gmra.mxu0 %v6707
    %v6778 = vpop.f32.mrf.mxu0
    %v6779 = vadd.f32 %v478, %v6778
    %v6780 = vpop.f32.mrf.mxu0
    %6781 = vmatprep.mubr.f32.mxu0 0.0
    %6782 = vmatmul.mubr.f32.gmra.mxu0 %v6710
    %v6783 = vpop.f32.mrf.mxu0
    %v6784 = vadd.f32 %v478, %v6783
    %v6785 = vpop.f32.mrf.mxu0
    %6786 = vdwg.mxu0
    %v6787 = vtanh.pop %v6779
    %v6788 = vtanh.pop %v6784
    %v6789 = vsel %vm563, %v6787, 0.0
    %6790 = vadd.xlane.f32.xlu0 %v6789
    %v6791 = vpop.xlane.xlu0 %6790
    %v6792 = vsel %vm563, %v6788, 0.0
    %6793 = vadd.xlane.f32.xlu0 %v6792
    %v6794 = vpop.xlane.xlu0 %6793
    %v6795 = vmul.f32 %v6791, %v570
    %v6796 = vmul.f32 %v6794, %v570
    %v6797 = vsub.f32 %v6787, %v6795
    %v6798 = vsub.f32 %v6788, %v6796
    %v6799 = vmul.f32 %v6797, %v6797
    %v6800 = vmul.f32 %v6798, %v6798
    %v6801 = vsel %vm563, %v6799, 0.0
    %6802 = vadd.xlane.f32.xlu0 %v6801
    %v6803 = vpop.xlane.xlu0 %6802
    %v6804 = vsel %vm563, %v6800, 0.0
    %6805 = vadd.xlane.f32.xlu0 %v6804
    %v6806 = vpop.xlane.xlu0 %6805
    %v6807 = vmul.f32 %v6803, %v570
    %v6808 = vmul.f32 %v6806, %v570
    %v6809 = vadd.f32 %v6807, 1e-05
    %v6810 = vadd.f32 %v6808, 1e-05
    %v6811 = vrsqrt.pop %v6809
    %v6812 = vrsqrt.pop %v6810
    %v6813 = vmul.f32 %v6797, %v6811
    %v6814 = vmul.f32 %v6798, %v6812
    %v6815 = vmul.f32 %v6813, %v595
    %v6816 = vmul.f32 %v6814, %v595
    %v6817 = vadd.f32 %v6815, %v603
    %v6818 = vadd.f32 %v6816, %v603
    %v6820 = vsel %vm563, %v6817, 0
    %v6823 = vsel %vm563, %v6818, 0
    %6825 = vmatprep.subr.mxu0 0.0
    %6826 = vmatpush1.msra.mxu0 0.0
    %6827 = vmatprep.subr.mxu0 0.0
    %6828 = vmatpush1.msra.mxu0 0.0
    %6829 = vmatprep.subr.mxu0 0.0
    %6830 = vmatpush1.msra.mxu0 0.0
    %6831 = vmatprep.subr.mxu0 0.0
    %6832 = vmatpush1.msra.mxu0 0.0
    %6833 = vmatprep.subr.mxu0 0.0
    %6834 = vmatpush1.msra.mxu0 0.0
    %6835 = vmatprep.subr.mxu0 0.0
    %6836 = vmatpush1.msra.mxu0 0.0
    %6837 = vmatprep.subr.mxu0 0.0
    %6838 = vmatpush1.msra.mxu0 0.0
    %6839 = vmatprep.subr.mxu0 0.0
    %6840 = vmatpush1.msra.mxu0 0.0
    %6841 = vmatprep.subr.mxu0 0.0
    %6842 = vmatpush1.msra.mxu0 0.0
    %6843 = vmatprep.subr.mxu0 0.0
    %6844 = vmatpush1.msra.mxu0 0.0
    %6845 = vmatprep.subr.mxu0 0.0
    %6846 = vmatpush1.msra.mxu0 0.0
    %6847 = vmatprep.subr.mxu0 0.0
    %6848 = vmatpush1.msra.mxu0 0.0
    %6849 = vmatprep.subr.mxu0 0.0
    %6850 = vmatpush1.msra.mxu0 0.0
    %6851 = vmatprep.subr.mxu0 0.0
    %6852 = vmatpush1.msra.mxu0 0.0
    %6853 = vmatprep.subr.mxu0 0.0
    %6854 = vmatpush1.msra.mxu0 %v158
    %6855 = vmatprep.subr.mxu0 0.0
    %6856 = vmatpush1.msra.mxu0 %v157
    %6857 = vmatprep.subr.mxu0 0.0
    %6858 = vmatpush2.msra.mxu0 0.0
    %6859 = vmatprep.subr.mxu0 0.0
    %6860 = vmatpush2.msra.mxu0 0.0
    %6861 = vmatprep.subr.mxu0 0.0
    %6862 = vmatpush2.msra.mxu0 0.0
    %6863 = vmatprep.subr.mxu0 0.0
    %6864 = vmatpush2.msra.mxu0 0.0
    %6865 = vmatprep.subr.mxu0 0.0
    %6866 = vmatpush2.msra.mxu0 0.0
    %6867 = vmatprep.subr.mxu0 0.0
    %6868 = vmatpush2.msra.mxu0 0.0
    %6869 = vmatprep.subr.mxu0 0.0
    %6870 = vmatpush2.msra.mxu0 0.0
    %6871 = vmatprep.subr.mxu0 0.0
    %6872 = vmatpush2.msra.mxu0 0.0
    %6873 = vmatprep.subr.mxu0 0.0
    %6874 = vmatpush2.msra.mxu0 0.0
    %6875 = vmatprep.subr.mxu0 0.0
    %6876 = vmatpush2.msra.mxu0 0.0
    %6877 = vmatprep.subr.mxu0 0.0
    %6878 = vmatpush2.msra.mxu0 0.0
    %6879 = vmatprep.subr.mxu0 0.0
    %6880 = vmatpush2.msra.mxu0 0.0
    %6881 = vmatprep.subr.mxu0 0.0
    %6882 = vmatpush2.msra.mxu0 0.0
    %6883 = vmatprep.subr.mxu0 0.0
    %6884 = vmatpush2.msra.mxu0 0.0
    %6885 = vmatprep.subr.mxu0 0.0
    %6886 = vmatpush2.msra.mxu0 0.0
    %6887 = vmatprep.subr.mxu0 0.0
    %6888 = vmatpush2.msra.mxu0 0.0
    %6889 = vmatprep.mubr.f32.mxu0 0.0
    %6890 = vmatmul.mubr.f32.gmra.mxu0 %v6820
    %v6891 = vpop.f32.mrf.mxu0
    %v6892 = vadd.f32 %v611, %v6891
    %v6893 = vpop.f32.mrf.mxu0
    %6894 = vmatprep.mubr.f32.mxu0 0.0
    %6895 = vmatmul.mubr.f32.gmra.mxu0 %v6823
    %v6896 = vpop.f32.mrf.mxu0
    %v6897 = vadd.f32 %v611, %v6896
    %v6898 = vpop.f32.mrf.mxu0
    %6899 = vdwg.mxu0
    %v6900 = vmul.f32 %v6892, 0.2
    %v6901 = vmul.f32 %v6897, 0.2
    %v6903 = vsel %vm696, %v6900, 0
    %v6906 = vsel %vm696, %v6901, 0
    %6908 = vmatprep.subr.mxu0 0.0
    %6909 = vmatpush1.msra.mxu0 0.0
    %6910 = vmatprep.subr.mxu0 0.0
    %6911 = vmatpush1.msra.mxu0 0.0
    %6912 = vmatprep.subr.mxu0 0.0
    %6913 = vmatpush1.msra.mxu0 0.0
    %6914 = vmatprep.subr.mxu0 0.0
    %6915 = vmatpush1.msra.mxu0 0.0
    %6916 = vmatprep.subr.mxu0 0.0
    %6917 = vmatpush1.msra.mxu0 0.0
    %6918 = vmatprep.subr.mxu0 0.0
    %6919 = vmatpush1.msra.mxu0 0.0
    %6920 = vmatprep.subr.mxu0 0.0
    %6921 = vmatpush1.msra.mxu0 0.0
    %6922 = vmatprep.subr.mxu0 0.0
    %6923 = vmatpush1.msra.mxu0 0.0
    %6924 = vmatprep.subr.mxu0 0.0
    %6925 = vmatpush1.msra.mxu0 0.0
    %6926 = vmatprep.subr.mxu0 0.0
    %6927 = vmatpush1.msra.mxu0 0.0
    %6928 = vmatprep.subr.mxu0 0.0
    %6929 = vmatpush1.msra.mxu0 0.0
    %6930 = vmatprep.subr.mxu0 0.0
    %6931 = vmatpush1.msra.mxu0 0.0
    %6932 = vmatprep.subr.mxu0 0.0
    %6933 = vmatpush1.msra.mxu0 0.0
    %6934 = vmatprep.subr.mxu0 0.0
    %6935 = vmatpush1.msra.mxu0 0.0
    %6936 = vmatprep.subr.mxu0 0.0
    %6937 = vmatpush1.msra.mxu0 %v704
    %6938 = vmatprep.subr.mxu0 0.0
    %6939 = vmatpush1.msra.mxu0 %v159
    %6940 = vmatprep.subr.mxu0 0.0
    %6941 = vmatpush2.msra.mxu0 0.0
    %6942 = vmatprep.subr.mxu0 0.0
    %6943 = vmatpush2.msra.mxu0 0.0
    %6944 = vmatprep.subr.mxu0 0.0
    %6945 = vmatpush2.msra.mxu0 0.0
    %6946 = vmatprep.subr.mxu0 0.0
    %6947 = vmatpush2.msra.mxu0 0.0
    %6948 = vmatprep.subr.mxu0 0.0
    %6949 = vmatpush2.msra.mxu0 0.0
    %6950 = vmatprep.subr.mxu0 0.0
    %6951 = vmatpush2.msra.mxu0 0.0
    %6952 = vmatprep.subr.mxu0 0.0
    %6953 = vmatpush2.msra.mxu0 0.0
    %6954 = vmatprep.subr.mxu0 0.0
    %6955 = vmatpush2.msra.mxu0 0.0
    %6956 = vmatprep.subr.mxu0 0.0
    %6957 = vmatpush2.msra.mxu0 0.0
    %6958 = vmatprep.subr.mxu0 0.0
    %6959 = vmatpush2.msra.mxu0 0.0
    %6960 = vmatprep.subr.mxu0 0.0
    %6961 = vmatpush2.msra.mxu0 0.0
    %6962 = vmatprep.subr.mxu0 0.0
    %6963 = vmatpush2.msra.mxu0 0.0
    %6964 = vmatprep.subr.mxu0 0.0
    %6965 = vmatpush2.msra.mxu0 0.0
    %6966 = vmatprep.subr.mxu0 0.0
    %6967 = vmatpush2.msra.mxu0 0.0
    %6968 = vmatprep.subr.mxu0 0.0
    %6969 = vmatpush2.msra.mxu0 0.0
    %6970 = vmatprep.subr.mxu0 0.0
    %6971 = vmatpush2.msra.mxu0 0.0
    %6972 = vmatprep.mubr.f32.mxu0 0.0
    %6973 = vmatmul.mubr.f32.gmra.mxu0 %v6903
    %v6974 = vpop.f32.mrf.mxu0
    %v6975 = vadd.f32 0.0, %v6974
    %v6976 = vpop.f32.mrf.mxu0
    %6977 = vmatprep.mubr.f32.mxu0 0.0
    %6978 = vmatmul.mubr.f32.gmra.mxu0 %v6906
    %v6979 = vpop.f32.mrf.mxu0
    %v6980 = vadd.f32 0.0, %v6979
    %v6981 = vpop.f32.mrf.mxu0
    %6982 = vdwg.mxu0
    %v6983 = vmul.f32 %v6975, %v595
    %v6984 = vmul.f32 %v6980, %v595
    %v6985 = vsel %vm563, %v6983, 0.0
    %6986 = vadd.xlane.f32.xlu0 %v6985
    %v6987 = vpop.xlane.xlu0 %6986
    %v6988 = vsel %vm563, %v6984, 0.0
    %6989 = vadd.xlane.f32.xlu0 %v6988
    %v6990 = vpop.xlane.xlu0 %6989
    %v6991 = vmul.f32 %v6987, %v570
    %v6992 = vmul.f32 %v6990, %v570
    %v6993 = vmul.f32 %v6983, %v6813
    %v6994 = vmul.f32 %v6984, %v6814
    %v6995 = vsel %vm563, %v6993, 0.0
    %6996 = vadd.xlane.f32.xlu0 %v6995
    %v6997 = vpop.xlane.xlu0 %6996
    %v6998 = vsel %vm563, %v6994, 0.0
    %6999 = vadd.xlane.f32.xlu0 %v6998
    %v7000 = vpop.xlane.xlu0 %6999
    %v7001 = vmul.f32 %v6997, %v570
    %v7002 = vmul.f32 %v7000, %v570
    %v7003 = vsub.f32 %v6983, %v6991
    %v7004 = vsub.f32 %v6984, %v6992
    %v7005 = vmul.f32 %v6813, %v7001
    %v7006 = vmul.f32 %v6814, %v7002
    %v7007 = vsub.f32 %v7003, %v7005
    %v7008 = vsub.f32 %v7004, %v7006
    %v7009 = vmul.f32 %v6811, %v7007
    %v7010 = vmul.f32 %v6812, %v7008
    %v7011 = vmul.f32 %v6787, %v6787
    %v7012 = vmul.f32 %v6788, %v6788
    %v7013 = vsub.f32 1.0, %v7011
    %v7014 = vsub.f32 1.0, %v7012
    %v7015 = vmul.f32 %v7009, %v7013
    %v7016 = vmul.f32 %v7010, %v7014
    %v7018 = vsel %vm563, %v7015, 0
    %v7021 = vsel %vm563, %v7016, 0
    %7023 = vmatprep.subr.mxu0 0.0
    %7024 = vmatpush1.msra.mxu0 0.0
    %7025 = vmatprep.subr.mxu0 0.0
    %7026 = vmatpush1.msra.mxu0 0.0
    %7027 = vmatprep.subr.mxu0 0.0
    %7028 = vmatpush1.msra.mxu0 0.0
    %7029 = vmatprep.subr.mxu0 0.0
    %7030 = vmatpush1.msra.mxu0 0.0
    %7031 = vmatprep.subr.mxu0 0.0
    %7032 = vmatpush1.msra.mxu0 0.0
    %7033 = vmatprep.subr.mxu0 0.0
    %7034 = vmatpush1.msra.mxu0 0.0
    %7035 = vmatprep.subr.mxu0 0.0
    %7036 = vmatpush1.msra.mxu0 0.0
    %7037 = vmatprep.subr.mxu0 0.0
    %7038 = vmatpush1.msra.mxu0 0.0
    %7039 = vmatprep.subr.mxu0 0.0
    %7040 = vmatpush1.msra.mxu0 0.0
    %7041 = vmatprep.subr.mxu0 0.0
    %7042 = vmatpush1.msra.mxu0 0.0
    %7043 = vmatprep.subr.mxu0 0.0
    %7044 = vmatpush1.msra.mxu0 0.0
    %7045 = vmatprep.subr.mxu0 0.0
    %7046 = vmatpush1.msra.mxu0 0.0
    %7047 = vmatprep.subr.mxu0 0.0
    %7048 = vmatpush1.msra.mxu0 0.0
    %7049 = vmatprep.subr.mxu0 0.0
    %7050 = vmatpush1.msra.mxu0 0.0
    %7051 = vmatprep.subr.mxu0 0.0
    %7052 = vmatpush1.msra.mxu0 %v156
    %7053 = vmatprep.subr.mxu0 0.0
    %7054 = vmatpush1.msra.mxu0 %v155
    %7055 = vmatprep.subr.mxu0 0.0
    %7056 = vmatpush2.msra.mxu0 0.0
    %7057 = vmatprep.subr.mxu0 0.0
    %7058 = vmatpush2.msra.mxu0 0.0
    %7059 = vmatprep.subr.mxu0 0.0
    %7060 = vmatpush2.msra.mxu0 0.0
    %7061 = vmatprep.subr.mxu0 0.0
    %7062 = vmatpush2.msra.mxu0 0.0
    %7063 = vmatprep.subr.mxu0 0.0
    %7064 = vmatpush2.msra.mxu0 0.0
    %7065 = vmatprep.subr.mxu0 0.0
    %7066 = vmatpush2.msra.mxu0 0.0
    %7067 = vmatprep.subr.mxu0 0.0
    %7068 = vmatpush2.msra.mxu0 0.0
    %7069 = vmatprep.subr.mxu0 0.0
    %7070 = vmatpush2.msra.mxu0 0.0
    %7071 = vmatprep.subr.mxu0 0.0
    %7072 = vmatpush2.msra.mxu0 0.0
    %7073 = vmatprep.subr.mxu0 0.0
    %7074 = vmatpush2.msra.mxu0 0.0
    %7075 = vmatprep.subr.mxu0 0.0
    %7076 = vmatpush2.msra.mxu0 0.0
    %7077 = vmatprep.subr.mxu0 0.0
    %7078 = vmatpush2.msra.mxu0 0.0
    %7079 = vmatprep.subr.mxu0 0.0
    %7080 = vmatpush2.msra.mxu0 0.0
    %7081 = vmatprep.subr.mxu0 0.0
    %7082 = vmatpush2.msra.mxu0 0.0
    %7083 = vmatprep.subr.mxu0 0.0
    %7084 = vmatpush2.msra.mxu0 0.0
    %7085 = vmatprep.subr.mxu0 0.0
    %7086 = vmatpush2.msra.mxu0 0.0
    %7087 = vmatprep.mubr.f32.mxu0 0.0
    %7088 = vmatmul.mubr.f32.gmra.mxu0 %v7018
    %v7089 = vpop.f32.mrf.mxu0
    %v7090 = vadd.f32 0.0, %v7089
    %v7091 = vpop.f32.mrf.mxu0
    %7092 = vmatprep.mubr.f32.mxu0 0.0
    %7093 = vmatmul.mubr.f32.gmra.mxu0 %v7021
    %v7094 = vpop.f32.mrf.mxu0
    %v7095 = vadd.f32 0.0, %v7094
    %v7096 = vpop.f32.mrf.mxu0
    %7097 = vdwg.mxu0
    %v7098 = vmul.f32 %v7090, %v462
    %v7099 = vmul.f32 %v7095, %v462
    %v7100 = vsel %vm178, %v7098, 0.0
    %7101 = vadd.xlane.f32.xlu0 %v7100
    %v7102 = vpop.xlane.xlu0 %7101
    %v7103 = vsel %vm178, %v7099, 0.0
    %7104 = vadd.xlane.f32.xlu0 %v7103
    %v7105 = vpop.xlane.xlu0 %7104
    %v7106 = vmul.f32 %v7102, %v437
    %v7107 = vmul.f32 %v7105, %v437
    %v7108 = vmul.f32 %v7098, %v6700
    %v7109 = vmul.f32 %v7099, %v6701
    %v7110 = vsel %vm178, %v7108, 0.0
    %7111 = vadd.xlane.f32.xlu0 %v7110
    %v7112 = vpop.xlane.xlu0 %7111
    %v7113 = vsel %vm178, %v7109, 0.0
    %7114 = vadd.xlane.f32.xlu0 %v7113
    %v7115 = vpop.xlane.xlu0 %7114
    %v7116 = vmul.f32 %v7112, %v437
    %v7117 = vmul.f32 %v7115, %v437
    %v7118 = vsub.f32 %v7098, %v7106
    %v7119 = vsub.f32 %v7099, %v7107
    %v7120 = vmul.f32 %v6700, %v7116
    %v7121 = vmul.f32 %v6701, %v7117
    %v7122 = vsub.f32 %v7118, %v7120
    %v7123 = vsub.f32 %v7119, %v7121
    %v7124 = vmul.f32 %v6698, %v7122
    %v7125 = vmul.f32 %v6699, %v7123
    %v7126 = vmul.f32 %v6674, %v6674
    %v7127 = vmul.f32 %v6675, %v6675
    %v7128 = vsub.f32 1.0, %v7126
    %v7129 = vsub.f32 1.0, %v7127
    %v7130 = vmul.f32 %v7124, %v7128
    %v7131 = vmul.f32 %v7125, %v7129
    %v7133 = vsel %vm178, %v7130, 0
    %v7136 = vsel %vm178, %v7131, 0
    %7138 = vmatprep.subr.mxu0 0.0
    %7139 = vmatpush1.msra.mxu0 0.0
    %7140 = vmatprep.subr.mxu0 0.0
    %7141 = vmatpush1.msra.mxu0 0.0
    %7142 = vmatprep.subr.mxu0 0.0
    %7143 = vmatpush1.msra.mxu0 0.0
    %7144 = vmatprep.subr.mxu0 0.0
    %7145 = vmatpush1.msra.mxu0 0.0
    %7146 = vmatprep.subr.mxu0 0.0
    %7147 = vmatpush1.msra.mxu0 0.0
    %7148 = vmatprep.subr.mxu0 0.0
    %7149 = vmatpush1.msra.mxu0 0.0
    %7150 = vmatprep.subr.mxu0 0.0
    %7151 = vmatpush1.msra.mxu0 0.0
    %7152 = vmatprep.subr.mxu0 0.0
    %7153 = vmatpush1.msra.mxu0 0.0
    %7154 = vmatprep.subr.mxu0 0.0
    %7155 = vmatpush1.msra.mxu0 0.0
    %7156 = vmatprep.subr.mxu0 0.0
    %7157 = vmatpush1.msra.mxu0 0.0
    %7158 = vmatprep.subr.mxu0 0.0
    %7159 = vmatpush1.msra.mxu0 0.0
    %7160 = vmatprep.subr.mxu0 0.0
    %7161 = vmatpush1.msra.mxu0 0.0
    %7162 = vmatprep.subr.mxu0 0.0
    %7163 = vmatpush1.msra.mxu0 %v150
    %7164 = vmatprep.subr.mxu0 0.0
    %7165 = vmatpush1.msra.mxu0 %v149
    %7166 = vmatprep.subr.mxu0 0.0
    %7167 = vmatpush1.msra.mxu0 %v148
    %7168 = vmatprep.subr.mxu0 0.0
    %7169 = vmatpush1.msra.mxu0 %v147
    %7170 = vmatprep.subr.mxu0 0.0
    %7171 = vmatpush2.msra.mxu0 0.0
    %7172 = vmatprep.subr.mxu0 0.0
    %7173 = vmatpush2.msra.mxu0 0.0
    %7174 = vmatprep.subr.mxu0 0.0
    %7175 = vmatpush2.msra.mxu0 0.0
    %7176 = vmatprep.subr.mxu0 0.0
    %7177 = vmatpush2.msra.mxu0 0.0
    %7178 = vmatprep.subr.mxu0 0.0
    %7179 = vmatpush2.msra.mxu0 0.0
    %7180 = vmatprep.subr.mxu0 0.0
    %7181 = vmatpush2.msra.mxu0 0.0
    %7182 = vmatprep.subr.mxu0 0.0
    %7183 = vmatpush2.msra.mxu0 0.0
    %7184 = vmatprep.subr.mxu0 0.0
    %7185 = vmatpush2.msra.mxu0 0.0
    %7186 = vmatprep.subr.mxu0 0.0
    %7187 = vmatpush2.msra.mxu0 0.0
    %7188 = vmatprep.subr.mxu0 0.0
    %7189 = vmatpush2.msra.mxu0 0.0
    %7190 = vmatprep.subr.mxu0 0.0
    %7191 = vmatpush2.msra.mxu0 0.0
    %7192 = vmatprep.subr.mxu0 0.0
    %7193 = vmatpush2.msra.mxu0 0.0
    %7194 = vmatprep.subr.mxu0 0.0
    %7195 = vmatpush2.msra.mxu0 0.0
    %7196 = vmatprep.subr.mxu0 0.0
    %7197 = vmatpush2.msra.mxu0 0.0
    %7198 = vmatprep.subr.mxu0 0.0
    %7199 = vmatpush2.msra.mxu0 0.0
    %7200 = vmatprep.subr.mxu0 0.0
    %7201 = vmatpush2.msra.mxu0 0.0
    %7202 = vmatprep.mubr.f32.mxu0 0.0
    %7203 = vmatmul.mubr.f32.gmra.mxu0 %v7133
    %v7204 = vpop.f32.mrf.mxu0
    %v7205 = vadd.f32 0.0, %v7204
    %v7206 = vpop.f32.mrf.mxu0
    %7207 = vmatprep.mubr.f32.mxu0 0.0
    %7208 = vmatmul.mubr.f32.gmra.mxu0 %v7136
    %v7209 = vpop.f32.mrf.mxu0
    %v7210 = vadd.f32 0.0, %v7209
    %v7211 = vpop.f32.mrf.mxu0
    %7212 = vdwg.mxu0
    %v7213 = vmul.f32 %v6512, 6.25e-05
    %7214 = vmatprep.subr.mxu0 0.0
    %7215 = vmatpush1.msra.mxu0 0.0
    %7216 = vmatprep.subr.mxu0 0.0
    %7217 = vmatpush1.msra.mxu0 0.0
    %7218 = vmatprep.subr.mxu0 0.0
    %7219 = vmatpush1.msra.mxu0 0.0
    %7220 = vmatprep.subr.mxu0 0.0
    %7221 = vmatpush1.msra.mxu0 0.0
    %7222 = vmatprep.subr.mxu0 0.0
    %7223 = vmatpush1.msra.mxu0 0.0
    %7224 = vmatprep.subr.mxu0 0.0
    %7225 = vmatpush1.msra.mxu0 0.0
    %7226 = vmatprep.subr.mxu0 0.0
    %7227 = vmatpush1.msra.mxu0 0.0
    %7228 = vmatprep.subr.mxu0 0.0
    %7229 = vmatpush1.msra.mxu0 0.0
    %7230 = vmatprep.subr.mxu0 0.0
    %7231 = vmatpush1.msra.mxu0 0.0
    %7232 = vmatprep.subr.mxu0 0.0
    %7233 = vmatpush1.msra.mxu0 0.0
    %7234 = vmatprep.subr.mxu0 0.0
    %7235 = vmatpush1.msra.mxu0 0.0
    %7236 = vmatprep.subr.mxu0 0.0
    %7237 = vmatpush1.msra.mxu0 0.0
    %7238 = vmatprep.subr.mxu0 0.0
    %7239 = vmatpush1.msra.mxu0 0.0
    %7240 = vmatprep.subr.mxu0 0.0
    %7241 = vmatpush1.msra.mxu0 0.0
    %7242 = vmatprep.subr.mxu0 0.0
    %7243 = vmatpush1.msra.mxu0 %v7210
    %7244 = vmatprep.subr.mxu0 0.0
    %7245 = vmatpush1.msra.mxu0 %v7205
    %7246 = vmatprep.subr.mxu0 0.0
    %7247 = vmatpush2.msra.mxu0 0.0
    %7248 = vmatprep.subr.mxu0 0.0
    %7249 = vmatpush2.msra.mxu0 0.0
    %7250 = vmatprep.subr.mxu0 0.0
    %7251 = vmatpush2.msra.mxu0 0.0
    %7252 = vmatprep.subr.mxu0 0.0
    %7253 = vmatpush2.msra.mxu0 0.0
    %7254 = vmatprep.subr.mxu0 0.0
    %7255 = vmatpush2.msra.mxu0 0.0
    %7256 = vmatprep.subr.mxu0 0.0
    %7257 = vmatpush2.msra.mxu0 0.0
    %7258 = vmatprep.subr.mxu0 0.0
    %7259 = vmatpush2.msra.mxu0 0.0
    %7260 = vmatprep.subr.mxu0 0.0
    %7261 = vmatpush2.msra.mxu0 0.0
    %7262 = vmatprep.subr.mxu0 0.0
    %7263 = vmatpush2.msra.mxu0 0.0
    %7264 = vmatprep.subr.mxu0 0.0
    %7265 = vmatpush2.msra.mxu0 0.0
    %7266 = vmatprep.subr.mxu0 0.0
    %7267 = vmatpush2.msra.mxu0 0.0
    %7268 = vmatprep.subr.mxu0 0.0
    %7269 = vmatpush2.msra.mxu0 0.0
    %7270 = vmatprep.subr.mxu0 0.0
    %7271 = vmatpush2.msra.mxu0 0.0
    %7272 = vmatprep.subr.mxu0 0.0
    %7273 = vmatpush2.msra.mxu0 0.0
    %7274 = vmatprep.subr.mxu0 0.0
    %7275 = vmatpush2.msra.mxu0 0.0
    %7276 = vmatprep.subr.mxu0 0.0
    %7277 = vmatpush2.msra.mxu0 0.0
    %7278 = vmatprep.mubr.f32.mxu0 0.0
    %7279 = vmatmul.mubr.f32.gmra.mxu0 %v1012
    %v7280 = vpop.f32.mrf.mxu0
    %v7281 = vadd.f32 %v7213, %v7280
    %v7282 = vpop.f32.mrf.mxu0
    %7283 = vdwg.mxu0
    %s7284 = scalar_lea.vmem [#allocation14], 16
    %7285 = vst.msk [vmem:[%s7284] sm:$0x3] %vm1084, %v7281
    %v7286 = vmul.f32 %v7281, 0.1
    %v7287 = vsub.f32 %v6512, %v7286
    %v7289 = vsel %vm267, %v7287, 0
    %7291 = vmatprep.subr.mxu0 0.0
    %7292 = vmatpush1.msra.mxu0 0.0
    %7293 = vmatprep.subr.mxu0 0.0
    %7294 = vmatpush1.msra.mxu0 0.0
    %7295 = vmatprep.subr.mxu0 0.0
    %7296 = vmatpush1.msra.mxu0 0.0
    %7297 = vmatprep.subr.mxu0 0.0
    %7298 = vmatpush1.msra.mxu0 0.0
    %7299 = vmatprep.subr.mxu0 0.0
    %7300 = vmatpush1.msra.mxu0 0.0
    %7301 = vmatprep.subr.mxu0 0.0
    %7302 = vmatpush1.msra.mxu0 0.0
    %7303 = vmatprep.subr.mxu0 0.0
    %7304 = vmatpush1.msra.mxu0 0.0
    %7305 = vmatprep.subr.mxu0 0.0
    %7306 = vmatpush1.msra.mxu0 0.0
    %7307 = vmatprep.subr.mxu0 0.0
    %7308 = vmatpush1.msra.mxu0 0.0
    %7309 = vmatprep.subr.mxu0 0.0
    %7310 = vmatpush1.msra.mxu0 0.0
    %7311 = vmatprep.subr.mxu0 0.0
    %7312 = vmatpush1.msra.mxu0 0.0
    %7313 = vmatprep.subr.mxu0 0.0
    %7314 = vmatpush1.msra.mxu0 0.0
    %7315 = vmatprep.subr.mxu0 0.0
    %7316 = vmatpush1.msra.mxu0 0.0
    %7317 = vmatprep.subr.mxu0 0.0
    %7318 = vmatpush1.msra.mxu0 0.0
    %7319 = vmatprep.subr.mxu0 0.0
    %7320 = vmatpush1.msra.mxu0 0.0
    %7321 = vmatprep.subr.mxu0 0.0
    %7322 = vmatpush1.msra.mxu0 %v7289
    %7323 = vmatprep.subr.mxu0 0.0
    %7324 = vmatpush2.msra.mxu0 0.0
    %7325 = vmatprep.subr.mxu0 0.0
    %7326 = vmatpush2.msra.mxu0 0.0
    %7327 = vmatprep.subr.mxu0 0.0
    %7328 = vmatpush2.msra.mxu0 0.0
    %7329 = vmatprep.subr.mxu0 0.0
    %7330 = vmatpush2.msra.mxu0 0.0
    %7331 = vmatprep.subr.mxu0 0.0
    %7332 = vmatpush2.msra.mxu0 0.0
    %7333 = vmatprep.subr.mxu0 0.0
    %7334 = vmatpush2.msra.mxu0 0.0
    %7335 = vmatprep.subr.mxu0 0.0
    %7336 = vmatpush2.msra.mxu0 0.0
    %7337 = vmatprep.subr.mxu0 0.0
    %7338 = vmatpush2.msra.mxu0 0.0
    %7339 = vmatprep.subr.mxu0 0.0
    %7340 = vmatpush2.msra.mxu0 0.0
    %7341 = vmatprep.subr.mxu0 0.0
    %7342 = vmatpush2.msra.mxu0 0.0
    %7343 = vmatprep.subr.mxu0 0.0
    %7344 = vmatpush2.msra.mxu0 0.0
    %7345 = vmatprep.subr.mxu0 0.0
    %7346 = vmatpush2.msra.mxu0 0.0
    %7347 = vmatprep.subr.mxu0 0.0
    %7348 = vmatpush2.msra.mxu0 0.0
    %7349 = vmatprep.subr.mxu0 0.0
    %7350 = vmatpush2.msra.mxu0 0.0
    %7351 = vmatprep.subr.mxu0 0.0
    %7352 = vmatpush2.msra.mxu0 0.0
    %7353 = vmatprep.subr.mxu0 0.0
    %7354 = vmatpush2.msra.mxu0 0.0
    %7355 = vmatprep.mubr.f32.mxu0 0.0
    %7356 = vmatmul.mubr.f32.gmra.mxu0 %v262
    %v7357 = vpop.f32.mrf.mxu0
    %v7358 = vadd.f32 0.0, %v7357
    %v7359 = vpop.f32.mrf.mxu0
    %7360 = vmatprep.mubr.f32.mxu0 0.0
    %7361 = vmatmul.mubr.f32.gmra.mxu0 %v265
    %v7362 = vpop.f32.mrf.mxu0
    %v7363 = vadd.f32 0.0, %v7362
    %v7364 = vpop.f32.mrf.mxu0
    %7365 = vdwg.mxu0
    %v7367 = vsel %vm178, %v7358, 0
    %v7370 = vsel %vm178, %v7363, 0
    %7372 = vmatprep.subr.mxu0 0.0
    %7373 = vmatpush1.msra.mxu0 0.0
    %7374 = vmatprep.subr.mxu0 0.0
    %7375 = vmatpush1.msra.mxu0 0.0
    %7376 = vmatprep.subr.mxu0 0.0
    %7377 = vmatpush1.msra.mxu0 0.0
    %7378 = vmatprep.subr.mxu0 0.0
    %7379 = vmatpush1.msra.mxu0 0.0
    %7380 = vmatprep.subr.mxu0 0.0
    %7381 = vmatpush1.msra.mxu0 0.0
    %7382 = vmatprep.subr.mxu0 0.0
    %7383 = vmatpush1.msra.mxu0 0.0
    %7384 = vmatprep.subr.mxu0 0.0
    %7385 = vmatpush1.msra.mxu0 0.0
    %7386 = vmatprep.subr.mxu0 0.0
    %7387 = vmatpush1.msra.mxu0 0.0
    %7388 = vmatprep.subr.mxu0 0.0
    %7389 = vmatpush1.msra.mxu0 0.0
    %7390 = vmatprep.subr.mxu0 0.0
    %7391 = vmatpush1.msra.mxu0 0.0
    %7392 = vmatprep.subr.mxu0 0.0
    %7393 = vmatpush1.msra.mxu0 0.0
    %7394 = vmatprep.subr.mxu0 0.0
    %7395 = vmatpush1.msra.mxu0 0.0
    %7396 = vmatprep.subr.mxu0 0.0
    %7397 = vmatpush1.msra.mxu0 %v146
    %7398 = vmatprep.subr.mxu0 0.0
    %7399 = vmatpush1.msra.mxu0 %v145
    %7400 = vmatprep.subr.mxu0 0.0
    %7401 = vmatpush1.msra.mxu0 %v144
    %7402 = vmatprep.subr.mxu0 0.0
    %7403 = vmatpush1.msra.mxu0 %v143
    %7404 = vmatprep.subr.mxu0 0.0
    %7405 = vmatpush2.msra.mxu0 0.0
    %7406 = vmatprep.subr.mxu0 0.0
    %7407 = vmatpush2.msra.mxu0 0.0
    %7408 = vmatprep.subr.mxu0 0.0
    %7409 = vmatpush2.msra.mxu0 0.0
    %7410 = vmatprep.subr.mxu0 0.0
    %7411 = vmatpush2.msra.mxu0 0.0
    %7412 = vmatprep.subr.mxu0 0.0
    %7413 = vmatpush2.msra.mxu0 0.0
    %7414 = vmatprep.subr.mxu0 0.0
    %7415 = vmatpush2.msra.mxu0 0.0
    %7416 = vmatprep.subr.mxu0 0.0
    %7417 = vmatpush2.msra.mxu0 0.0
    %7418 = vmatprep.subr.mxu0 0.0
    %7419 = vmatpush2.msra.mxu0 0.0
    %7420 = vmatprep.subr.mxu0 0.0
    %7421 = vmatpush2.msra.mxu0 0.0
    %7422 = vmatprep.subr.mxu0 0.0
    %7423 = vmatpush2.msra.mxu0 0.0
    %7424 = vmatprep.subr.mxu0 0.0
    %7425 = vmatpush2.msra.mxu0 0.0
    %7426 = vmatprep.subr.mxu0 0.0
    %7427 = vmatpush2.msra.mxu0 0.0
    %7428 = vmatprep.subr.mxu0 0.0
    %7429 = vmatpush2.msra.mxu0 0.0
    %7430 = vmatprep.subr.mxu0 0.0
    %7431 = vmatpush2.msra.mxu0 0.0
    %7432 = vmatprep.subr.mxu0 0.0
    %7433 = vmatpush2.msra.mxu0 0.0
    %7434 = vmatprep.subr.mxu0 0.0
    %7435 = vmatpush2.msra.mxu0 0.0
    %7436 = vmatprep.mubr.f32.mxu0 0.0
    %7437 = vmatmul.mubr.f32.gmra.mxu0 %v7367
    %v7438 = vpop.f32.mrf.mxu0
    %v7439 = vadd.f32 0.0, %v7438
    %v7440 = vpop.f32.mrf.mxu0
    %7441 = vmatprep.mubr.f32.mxu0 0.0
    %7442 = vmatmul.mubr.f32.gmra.mxu0 %v7370
    %v7443 = vpop.f32.mrf.mxu0
    %v7444 = vadd.f32 0.0, %v7443
    %v7445 = vpop.f32.mrf.mxu0
    %7446 = vdwg.mxu0
    %v7447 = vadd.f32 %v252, %v7439
    %v7448 = vadd.f32 %v257, %v7444
    %v7449 = vtanh.pop %v7447
    %v7450 = vtanh.pop %v7448
    %v7451 = vsel %vm178, %v7449, 0.0
    %7452 = vadd.xlane.f32.xlu0 %v7451
    %v7453 = vpop.xlane.xlu0 %7452
    %v7454 = vsel %vm178, %v7450, 0.0
    %7455 = vadd.xlane.f32.xlu0 %v7454
    %v7456 = vpop.xlane.xlu0 %7455
    %v7457 = vmul.f32 %v7453, %v437
    %v7458 = vmul.f32 %v7456, %v437
    %v7459 = vsub.f32 %v7449, %v7457
    %v7460 = vsub.f32 %v7450, %v7458
    %v7461 = vmul.f32 %v7459, %v7459
    %v7462 = vmul.f32 %v7460, %v7460
    %v7463 = vsel %vm178, %v7461, 0.0
    %7464 = vadd.xlane.f32.xlu0 %v7463
    %v7465 = vpop.xlane.xlu0 %7464
    %v7466 = vsel %vm178, %v7462, 0.0
    %7467 = vadd.xlane.f32.xlu0 %v7466
    %v7468 = vpop.xlane.xlu0 %7467
    %v7469 = vmul.f32 %v7465, %v437
    %v7470 = vmul.f32 %v7468, %v437
    %v7471 = vadd.f32 %v7469, 1e-05
    %v7472 = vadd.f32 %v7470, 1e-05
    %v7473 = vrsqrt.pop %v7471
    %v7474 = vrsqrt.pop %v7472
    %v7475 = vmul.f32 %v7459, %v7473
    %v7476 = vmul.f32 %v7460, %v7474
    %v7477 = vmul.f32 %v7475, %v462
    %v7478 = vmul.f32 %v7476, %v462
    %v7479 = vadd.f32 %v7477, %v470
    %v7480 = vadd.f32 %v7478, %v470
    %v7482 = vsel %vm178, %v7479, 0
    %v7485 = vsel %vm178, %v7480, 0
    %7487 = vmatprep.subr.mxu0 0.0
    %7488 = vmatpush1.msra.mxu0 0.0
    %7489 = vmatprep.subr.mxu0 0.0
    %7490 = vmatpush1.msra.mxu0 0.0
    %7491 = vmatprep.subr.mxu0 0.0
    %7492 = vmatpush1.msra.mxu0 0.0
    %7493 = vmatprep.subr.mxu0 0.0
    %7494 = vmatpush1.msra.mxu0 0.0
    %7495 = vmatprep.subr.mxu0 0.0
    %7496 = vmatpush1.msra.mxu0 0.0
    %7497 = vmatprep.subr.mxu0 0.0
    %7498 = vmatpush1.msra.mxu0 0.0
    %7499 = vmatprep.subr.mxu0 0.0
    %7500 = vmatpush1.msra.mxu0 0.0
    %7501 = vmatprep.subr.mxu0 0.0
    %7502 = vmatpush1.msra.mxu0 0.0
    %7503 = vmatprep.subr.mxu0 0.0
    %7504 = vmatpush1.msra.mxu0 0.0
    %7505 = vmatprep.subr.mxu0 0.0
    %7506 = vmatpush1.msra.mxu0 0.0
    %7507 = vmatprep.subr.mxu0 0.0
    %7508 = vmatpush1.msra.mxu0 0.0
    %7509 = vmatprep.subr.mxu0 0.0
    %7510 = vmatpush1.msra.mxu0 0.0
    %7511 = vmatprep.subr.mxu0 0.0
    %7512 = vmatpush1.msra.mxu0 %v154
    %7513 = vmatprep.subr.mxu0 0.0
    %7514 = vmatpush1.msra.mxu0 %v153
    %7515 = vmatprep.subr.mxu0 0.0
    %7516 = vmatpush1.msra.mxu0 %v152
    %7517 = vmatprep.subr.mxu0 0.0
    %7518 = vmatpush1.msra.mxu0 %v151
    %7519 = vmatprep.subr.mxu0 0.0
    %7520 = vmatpush2.msra.mxu0 0.0
    %7521 = vmatprep.subr.mxu0 0.0
    %7522 = vmatpush2.msra.mxu0 0.0
    %7523 = vmatprep.subr.mxu0 0.0
    %7524 = vmatpush2.msra.mxu0 0.0
    %7525 = vmatprep.subr.mxu0 0.0
    %7526 = vmatpush2.msra.mxu0 0.0
    %7527 = vmatprep.subr.mxu0 0.0
    %7528 = vmatpush2.msra.mxu0 0.0
    %7529 = vmatprep.subr.mxu0 0.0
    %7530 = vmatpush2.msra.mxu0 0.0
    %7531 = vmatprep.subr.mxu0 0.0
    %7532 = vmatpush2.msra.mxu0 0.0
    %7533 = vmatprep.subr.mxu0 0.0
    %7534 = vmatpush2.msra.mxu0 0.0
    %7535 = vmatprep.subr.mxu0 0.0
    %7536 = vmatpush2.msra.mxu0 0.0
    %7537 = vmatprep.subr.mxu0 0.0
    %7538 = vmatpush2.msra.mxu0 0.0
    %7539 = vmatprep.subr.mxu0 0.0
    %7540 = vmatpush2.msra.mxu0 0.0
    %7541 = vmatprep.subr.mxu0 0.0
    %7542 = vmatpush2.msra.mxu0 0.0
    %7543 = vmatprep.subr.mxu0 0.0
    %7544 = vmatpush2.msra.mxu0 0.0
    %7545 = vmatprep.subr.mxu0 0.0
    %7546 = vmatpush2.msra.mxu0 0.0
    %7547 = vmatprep.subr.mxu0 0.0
    %7548 = vmatpush2.msra.mxu0 0.0
    %7549 = vmatprep.subr.mxu0 0.0
    %7550 = vmatpush2.msra.mxu0 0.0
    %7551 = vmatprep.mubr.f32.mxu0 0.0
    %7552 = vmatmul.mubr.f32.gmra.mxu0 %v7482
    %v7553 = vpop.f32.mrf.mxu0
    %v7554 = vadd.f32 %v478, %v7553
    %v7555 = vpop.f32.mrf.mxu0
    %7556 = vmatprep.mubr.f32.mxu0 0.0
    %7557 = vmatmul.mubr.f32.gmra.mxu0 %v7485
    %v7558 = vpop.f32.mrf.mxu0
    %v7559 = vadd.f32 %v478, %v7558
    %v7560 = vpop.f32.mrf.mxu0
    %7561 = vdwg.mxu0
    %v7562 = vtanh.pop %v7554
    %v7563 = vtanh.pop %v7559
    %v7564 = vsel %vm563, %v7562, 0.0
    %7565 = vadd.xlane.f32.xlu0 %v7564
    %v7566 = vpop.xlane.xlu0 %7565
    %v7567 = vsel %vm563, %v7563, 0.0
    %7568 = vadd.xlane.f32.xlu0 %v7567
    %v7569 = vpop.xlane.xlu0 %7568
    %v7570 = vmul.f32 %v7566, %v570
    %v7571 = vmul.f32 %v7569, %v570
    %v7572 = vsub.f32 %v7562, %v7570
    %v7573 = vsub.f32 %v7563, %v7571
    %v7574 = vmul.f32 %v7572, %v7572
    %v7575 = vmul.f32 %v7573, %v7573
    %v7576 = vsel %vm563, %v7574, 0.0
    %7577 = vadd.xlane.f32.xlu0 %v7576
    %v7578 = vpop.xlane.xlu0 %7577
    %v7579 = vsel %vm563, %v7575, 0.0
    %7580 = vadd.xlane.f32.xlu0 %v7579
    %v7581 = vpop.xlane.xlu0 %7580
    %v7582 = vmul.f32 %v7578, %v570
    %v7583 = vmul.f32 %v7581, %v570
    %v7584 = vadd.f32 %v7582, 1e-05
    %v7585 = vadd.f32 %v7583, 1e-05
    %v7586 = vrsqrt.pop %v7584
    %v7587 = vrsqrt.pop %v7585
    %v7588 = vmul.f32 %v7572, %v7586
    %v7589 = vmul.f32 %v7573, %v7587
    %v7590 = vmul.f32 %v7588, %v595
    %v7591 = vmul.f32 %v7589, %v595
    %v7592 = vadd.f32 %v7590, %v603
    %v7593 = vadd.f32 %v7591, %v603
    %v7595 = vsel %vm563, %v7592, 0
    %v7598 = vsel %vm563, %v7593, 0
    %7600 = vmatprep.subr.mxu0 0.0
    %7601 = vmatpush1.msra.mxu0 0.0
    %7602 = vmatprep.subr.mxu0 0.0
    %7603 = vmatpush1.msra.mxu0 0.0
    %7604 = vmatprep.subr.mxu0 0.0
    %7605 = vmatpush1.msra.mxu0 0.0
    %7606 = vmatprep.subr.mxu0 0.0
    %7607 = vmatpush1.msra.mxu0 0.0
    %7608 = vmatprep.subr.mxu0 0.0
    %7609 = vmatpush1.msra.mxu0 0.0
    %7610 = vmatprep.subr.mxu0 0.0
    %7611 = vmatpush1.msra.mxu0 0.0
    %7612 = vmatprep.subr.mxu0 0.0
    %7613 = vmatpush1.msra.mxu0 0.0
    %7614 = vmatprep.subr.mxu0 0.0
    %7615 = vmatpush1.msra.mxu0 0.0
    %7616 = vmatprep.subr.mxu0 0.0
    %7617 = vmatpush1.msra.mxu0 0.0
    %7618 = vmatprep.subr.mxu0 0.0
    %7619 = vmatpush1.msra.mxu0 0.0
    %7620 = vmatprep.subr.mxu0 0.0
    %7621 = vmatpush1.msra.mxu0 0.0
    %7622 = vmatprep.subr.mxu0 0.0
    %7623 = vmatpush1.msra.mxu0 0.0
    %7624 = vmatprep.subr.mxu0 0.0
    %7625 = vmatpush1.msra.mxu0 0.0
    %7626 = vmatprep.subr.mxu0 0.0
    %7627 = vmatpush1.msra.mxu0 0.0
    %7628 = vmatprep.subr.mxu0 0.0
    %7629 = vmatpush1.msra.mxu0 %v158
    %7630 = vmatprep.subr.mxu0 0.0
    %7631 = vmatpush1.msra.mxu0 %v157
    %7632 = vmatprep.subr.mxu0 0.0
    %7633 = vmatpush2.msra.mxu0 0.0
    %7634 = vmatprep.subr.mxu0 0.0
    %7635 = vmatpush2.msra.mxu0 0.0
    %7636 = vmatprep.subr.mxu0 0.0
    %7637 = vmatpush2.msra.mxu0 0.0
    %7638 = vmatprep.subr.mxu0 0.0
    %7639 = vmatpush2.msra.mxu0 0.0
    %7640 = vmatprep.subr.mxu0 0.0
    %7641 = vmatpush2.msra.mxu0 0.0
    %7642 = vmatprep.subr.mxu0 0.0
    %7643 = vmatpush2.msra.mxu0 0.0
    %7644 = vmatprep.subr.mxu0 0.0
    %7645 = vmatpush2.msra.mxu0 0.0
    %7646 = vmatprep.subr.mxu0 0.0
    %7647 = vmatpush2.msra.mxu0 0.0
    %7648 = vmatprep.subr.mxu0 0.0
    %7649 = vmatpush2.msra.mxu0 0.0
    %7650 = vmatprep.subr.mxu0 0.0
    %7651 = vmatpush2.msra.mxu0 0.0
    %7652 = vmatprep.subr.mxu0 0.0
    %7653 = vmatpush2.msra.mxu0 0.0
    %7654 = vmatprep.subr.mxu0 0.0
    %7655 = vmatpush2.msra.mxu0 0.0
    %7656 = vmatprep.subr.mxu0 0.0
    %7657 = vmatpush2.msra.mxu0 0.0
    %7658 = vmatprep.subr.mxu0 0.0
    %7659 = vmatpush2.msra.mxu0 0.0
    %7660 = vmatprep.subr.mxu0 0.0
    %7661 = vmatpush2.msra.mxu0 0.0
    %7662 = vmatprep.subr.mxu0 0.0
    %7663 = vmatpush2.msra.mxu0 0.0
    %7664 = vmatprep.mubr.f32.mxu0 0.0
    %7665 = vmatmul.mubr.f32.gmra.mxu0 %v7595
    %v7666 = vpop.f32.mrf.mxu0
    %v7667 = vadd.f32 %v611, %v7666
    %v7668 = vpop.f32.mrf.mxu0
    %7669 = vmatprep.mubr.f32.mxu0 0.0
    %7670 = vmatmul.mubr.f32.gmra.mxu0 %v7598
    %v7671 = vpop.f32.mrf.mxu0
    %v7672 = vadd.f32 %v611, %v7671
    %v7673 = vpop.f32.mrf.mxu0
    %7674 = vdwg.mxu0
    %v7675 = vmul.f32 %v7667, 0.2
    %v7676 = vmul.f32 %v7672, 0.2
    %v7678 = vsel %vm696, %v7675, 0
    %v7681 = vsel %vm696, %v7676, 0
    %7683 = vmatprep.subr.mxu0 0.0
    %7684 = vmatpush1.msra.mxu0 0.0
    %7685 = vmatprep.subr.mxu0 0.0
    %7686 = vmatpush1.msra.mxu0 0.0
    %7687 = vmatprep.subr.mxu0 0.0
    %7688 = vmatpush1.msra.mxu0 0.0
    %7689 = vmatprep.subr.mxu0 0.0
    %7690 = vmatpush1.msra.mxu0 0.0
    %7691 = vmatprep.subr.mxu0 0.0
    %7692 = vmatpush1.msra.mxu0 0.0
    %7693 = vmatprep.subr.mxu0 0.0
    %7694 = vmatpush1.msra.mxu0 0.0
    %7695 = vmatprep.subr.mxu0 0.0
    %7696 = vmatpush1.msra.mxu0 0.0
    %7697 = vmatprep.subr.mxu0 0.0
    %7698 = vmatpush1.msra.mxu0 0.0
    %7699 = vmatprep.subr.mxu0 0.0
    %7700 = vmatpush1.msra.mxu0 0.0
    %7701 = vmatprep.subr.mxu0 0.0
    %7702 = vmatpush1.msra.mxu0 0.0
    %7703 = vmatprep.subr.mxu0 0.0
    %7704 = vmatpush1.msra.mxu0 0.0
    %7705 = vmatprep.subr.mxu0 0.0
    %7706 = vmatpush1.msra.mxu0 0.0
    %7707 = vmatprep.subr.mxu0 0.0
    %7708 = vmatpush1.msra.mxu0 0.0
    %7709 = vmatprep.subr.mxu0 0.0
    %7710 = vmatpush1.msra.mxu0 0.0
    %7711 = vmatprep.subr.mxu0 0.0
    %7712 = vmatpush1.msra.mxu0 %v704
    %7713 = vmatprep.subr.mxu0 0.0
    %7714 = vmatpush1.msra.mxu0 %v159
    %7715 = vmatprep.subr.mxu0 0.0
    %7716 = vmatpush2.msra.mxu0 0.0
    %7717 = vmatprep.subr.mxu0 0.0
    %7718 = vmatpush2.msra.mxu0 0.0
    %7719 = vmatprep.subr.mxu0 0.0
    %7720 = vmatpush2.msra.mxu0 0.0
    %7721 = vmatprep.subr.mxu0 0.0
    %7722 = vmatpush2.msra.mxu0 0.0
    %7723 = vmatprep.subr.mxu0 0.0
    %7724 = vmatpush2.msra.mxu0 0.0
    %7725 = vmatprep.subr.mxu0 0.0
    %7726 = vmatpush2.msra.mxu0 0.0
    %7727 = vmatprep.subr.mxu0 0.0
    %7728 = vmatpush2.msra.mxu0 0.0
    %7729 = vmatprep.subr.mxu0 0.0
    %7730 = vmatpush2.msra.mxu0 0.0
    %7731 = vmatprep.subr.mxu0 0.0
    %7732 = vmatpush2.msra.mxu0 0.0
    %7733 = vmatprep.subr.mxu0 0.0
    %7734 = vmatpush2.msra.mxu0 0.0
    %7735 = vmatprep.subr.mxu0 0.0
    %7736 = vmatpush2.msra.mxu0 0.0
    %7737 = vmatprep.subr.mxu0 0.0
    %7738 = vmatpush2.msra.mxu0 0.0
    %7739 = vmatprep.subr.mxu0 0.0
    %7740 = vmatpush2.msra.mxu0 0.0
    %7741 = vmatprep.subr.mxu0 0.0
    %7742 = vmatpush2.msra.mxu0 0.0
    %7743 = vmatprep.subr.mxu0 0.0
    %7744 = vmatpush2.msra.mxu0 0.0
    %7745 = vmatprep.subr.mxu0 0.0
    %7746 = vmatpush2.msra.mxu0 0.0
    %7747 = vmatprep.mubr.f32.mxu0 0.0
    %7748 = vmatmul.mubr.f32.gmra.mxu0 %v7678
    %v7749 = vpop.f32.mrf.mxu0
    %v7750 = vadd.f32 0.0, %v7749
    %v7751 = vpop.f32.mrf.mxu0
    %7752 = vmatprep.mubr.f32.mxu0 0.0
    %7753 = vmatmul.mubr.f32.gmra.mxu0 %v7681
    %v7754 = vpop.f32.mrf.mxu0
    %v7755 = vadd.f32 0.0, %v7754
    %v7756 = vpop.f32.mrf.mxu0
    %7757 = vdwg.mxu0
    %v7758 = vmul.f32 %v7750, %v595
    %v7759 = vmul.f32 %v7755, %v595
    %v7760 = vsel %vm563, %v7758, 0.0
    %7761 = vadd.xlane.f32.xlu0 %v7760
    %v7762 = vpop.xlane.xlu0 %7761
    %v7763 = vsel %vm563, %v7759, 0.0
    %7764 = vadd.xlane.f32.xlu0 %v7763
    %v7765 = vpop.xlane.xlu0 %7764
    %v7766 = vmul.f32 %v7762, %v570
    %v7767 = vmul.f32 %v7765, %v570
    %v7768 = vmul.f32 %v7758, %v7588
    %v7769 = vmul.f32 %v7759, %v7589
    %v7770 = vsel %vm563, %v7768, 0.0
    %7771 = vadd.xlane.f32.xlu0 %v7770
    %v7772 = vpop.xlane.xlu0 %7771
    %v7773 = vsel %vm563, %v7769, 0.0
    %7774 = vadd.xlane.f32.xlu0 %v7773
    %v7775 = vpop.xlane.xlu0 %7774
    %v7776 = vmul.f32 %v7772, %v570
    %v7777 = vmul.f32 %v7775, %v570
    %v7778 = vsub.f32 %v7758, %v7766
    %v7779 = vsub.f32 %v7759, %v7767
    %v7780 = vmul.f32 %v7588, %v7776
    %v7781 = vmul.f32 %v7589, %v7777
    %v7782 = vsub.f32 %v7778, %v7780
    %v7783 = vsub.f32 %v7779, %v7781
    %v7784 = vmul.f32 %v7586, %v7782
    %v7785 = vmul.f32 %v7587, %v7783
    %v7786 = vmul.f32 %v7562, %v7562
    %v7787 = vmul.f32 %v7563, %v7563
    %v7788 = vsub.f32 1.0, %v7786
    %v7789 = vsub.f32 1.0, %v7787
    %v7790 = vmul.f32 %v7784, %v7788
    %v7791 = vmul.f32 %v7785, %v7789
    %v7793 = vsel %vm563, %v7790, 0
    %v7796 = vsel %vm563, %v7791, 0
    %7798 = vmatprep.subr.mxu0 0.0
    %7799 = vmatpush1.msra.mxu0 0.0
    %7800 = vmatprep.subr.mxu0 0.0
    %7801 = vmatpush1.msra.mxu0 0.0
    %7802 = vmatprep.subr.mxu0 0.0
    %7803 = vmatpush1.msra.mxu0 0.0
    %7804 = vmatprep.subr.mxu0 0.0
    %7805 = vmatpush1.msra.mxu0 0.0
    %7806 = vmatprep.subr.mxu0 0.0
    %7807 = vmatpush1.msra.mxu0 0.0
    %7808 = vmatprep.subr.mxu0 0.0
    %7809 = vmatpush1.msra.mxu0 0.0
    %7810 = vmatprep.subr.mxu0 0.0
    %7811 = vmatpush1.msra.mxu0 0.0
    %7812 = vmatprep.subr.mxu0 0.0
    %7813 = vmatpush1.msra.mxu0 0.0
    %7814 = vmatprep.subr.mxu0 0.0
    %7815 = vmatpush1.msra.mxu0 0.0
    %7816 = vmatprep.subr.mxu0 0.0
    %7817 = vmatpush1.msra.mxu0 0.0
    %7818 = vmatprep.subr.mxu0 0.0
    %7819 = vmatpush1.msra.mxu0 0.0
    %7820 = vmatprep.subr.mxu0 0.0
    %7821 = vmatpush1.msra.mxu0 0.0
    %7822 = vmatprep.subr.mxu0 0.0
    %7823 = vmatpush1.msra.mxu0 0.0
    %7824 = vmatprep.subr.mxu0 0.0
    %7825 = vmatpush1.msra.mxu0 0.0
    %7826 = vmatprep.subr.mxu0 0.0
    %7827 = vmatpush1.msra.mxu0 %v156
    %7828 = vmatprep.subr.mxu0 0.0
    %7829 = vmatpush1.msra.mxu0 %v155
    %7830 = vmatprep.subr.mxu0 0.0
    %7831 = vmatpush2.msra.mxu0 0.0
    %7832 = vmatprep.subr.mxu0 0.0
    %7833 = vmatpush2.msra.mxu0 0.0
    %7834 = vmatprep.subr.mxu0 0.0
    %7835 = vmatpush2.msra.mxu0 0.0
    %7836 = vmatprep.subr.mxu0 0.0
    %7837 = vmatpush2.msra.mxu0 0.0
    %7838 = vmatprep.subr.mxu0 0.0
    %7839 = vmatpush2.msra.mxu0 0.0
    %7840 = vmatprep.subr.mxu0 0.0
    %7841 = vmatpush2.msra.mxu0 0.0
    %7842 = vmatprep.subr.mxu0 0.0
    %7843 = vmatpush2.msra.mxu0 0.0
    %7844 = vmatprep.subr.mxu0 0.0
    %7845 = vmatpush2.msra.mxu0 0.0
    %7846 = vmatprep.subr.mxu0 0.0
    %7847 = vmatpush2.msra.mxu0 0.0
    %7848 = vmatprep.subr.mxu0 0.0
    %7849 = vmatpush2.msra.mxu0 0.0
    %7850 = vmatprep.subr.mxu0 0.0
    %7851 = vmatpush2.msra.mxu0 0.0
    %7852 = vmatprep.subr.mxu0 0.0
    %7853 = vmatpush2.msra.mxu0 0.0
    %7854 = vmatprep.subr.mxu0 0.0
    %7855 = vmatpush2.msra.mxu0 0.0
    %7856 = vmatprep.subr.mxu0 0.0
    %7857 = vmatpush2.msra.mxu0 0.0
    %7858 = vmatprep.subr.mxu0 0.0
    %7859 = vmatpush2.msra.mxu0 0.0
    %7860 = vmatprep.subr.mxu0 0.0
    %7861 = vmatpush2.msra.mxu0 0.0
    %7862 = vmatprep.mubr.f32.mxu0 0.0
    %7863 = vmatmul.mubr.f32.gmra.mxu0 %v7793
    %v7864 = vpop.f32.mrf.mxu0
    %v7865 = vadd.f32 0.0, %v7864
    %v7866 = vpop.f32.mrf.mxu0
    %7867 = vmatprep.mubr.f32.mxu0 0.0
    %7868 = vmatmul.mubr.f32.gmra.mxu0 %v7796
    %v7869 = vpop.f32.mrf.mxu0
    %v7870 = vadd.f32 0.0, %v7869
    %v7871 = vpop.f32.mrf.mxu0
    %7872 = vdwg.mxu0
    %v7873 = vmul.f32 %v7865, %v462
    %v7874 = vmul.f32 %v7870, %v462
    %v7875 = vsel %vm178, %v7873, 0.0
    %7876 = vadd.xlane.f32.xlu0 %v7875
    %v7877 = vpop.xlane.xlu0 %7876
    %v7878 = vsel %vm178, %v7874, 0.0
    %7879 = vadd.xlane.f32.xlu0 %v7878
    %v7880 = vpop.xlane.xlu0 %7879
    %v7881 = vmul.f32 %v7877, %v437
    %v7882 = vmul.f32 %v7880, %v437
    %v7883 = vmul.f32 %v7873, %v7475
    %v7884 = vmul.f32 %v7874, %v7476
    %v7885 = vsel %vm178, %v7883, 0.0
    %7886 = vadd.xlane.f32.xlu0 %v7885
    %v7887 = vpop.xlane.xlu0 %7886
    %v7888 = vsel %vm178, %v7884, 0.0
    %7889 = vadd.xlane.f32.xlu0 %v7888
    %v7890 = vpop.xlane.xlu0 %7889
    %v7891 = vmul.f32 %v7887, %v437
    %v7892 = vmul.f32 %v7890, %v437
    %v7893 = vsub.f32 %v7873, %v7881
    %v7894 = vsub.f32 %v7874, %v7882
    %v7895 = vmul.f32 %v7475, %v7891
    %v7896 = vmul.f32 %v7476, %v7892
    %v7897 = vsub.f32 %v7893, %v7895
    %v7898 = vsub.f32 %v7894, %v7896
    %v7899 = vmul.f32 %v7473, %v7897
    %v7900 = vmul.f32 %v7474, %v7898
    %v7901 = vmul.f32 %v7449, %v7449
    %v7902 = vmul.f32 %v7450, %v7450
    %v7903 = vsub.f32 1.0, %v7901
    %v7904 = vsub.f32 1.0, %v7902
    %v7905 = vmul.f32 %v7899, %v7903
    %v7906 = vmul.f32 %v7900, %v7904
    %v7908 = vsel %vm178, %v7905, 0
    %v7911 = vsel %vm178, %v7906, 0
    %7913 = vmatprep.subr.mxu0 0.0
    %7914 = vmatpush1.msra.mxu0 0.0
    %7915 = vmatprep.subr.mxu0 0.0
    %7916 = vmatpush1.msra.mxu0 0.0
    %7917 = vmatprep.subr.mxu0 0.0
    %7918 = vmatpush1.msra.mxu0 0.0
    %7919 = vmatprep.subr.mxu0 0.0
    %7920 = vmatpush1.msra.mxu0 0.0
    %7921 = vmatprep.subr.mxu0 0.0
    %7922 = vmatpush1.msra.mxu0 0.0
    %7923 = vmatprep.subr.mxu0 0.0
    %7924 = vmatpush1.msra.mxu0 0.0
    %7925 = vmatprep.subr.mxu0 0.0
    %7926 = vmatpush1.msra.mxu0 0.0
    %7927 = vmatprep.subr.mxu0 0.0
    %7928 = vmatpush1.msra.mxu0 0.0
    %7929 = vmatprep.subr.mxu0 0.0
    %7930 = vmatpush1.msra.mxu0 0.0
    %7931 = vmatprep.subr.mxu0 0.0
    %7932 = vmatpush1.msra.mxu0 0.0
    %7933 = vmatprep.subr.mxu0 0.0
    %7934 = vmatpush1.msra.mxu0 0.0
    %7935 = vmatprep.subr.mxu0 0.0
    %7936 = vmatpush1.msra.mxu0 0.0
    %7937 = vmatprep.subr.mxu0 0.0
    %7938 = vmatpush1.msra.mxu0 %v150
    %7939 = vmatprep.subr.mxu0 0.0
    %7940 = vmatpush1.msra.mxu0 %v149
    %7941 = vmatprep.subr.mxu0 0.0
    %7942 = vmatpush1.msra.mxu0 %v148
    %7943 = vmatprep.subr.mxu0 0.0
    %7944 = vmatpush1.msra.mxu0 %v147
    %7945 = vmatprep.subr.mxu0 0.0
    %7946 = vmatpush2.msra.mxu0 0.0
    %7947 = vmatprep.subr.mxu0 0.0
    %7948 = vmatpush2.msra.mxu0 0.0
    %7949 = vmatprep.subr.mxu0 0.0
    %7950 = vmatpush2.msra.mxu0 0.0
    %7951 = vmatprep.subr.mxu0 0.0
    %7952 = vmatpush2.msra.mxu0 0.0
    %7953 = vmatprep.subr.mxu0 0.0
    %7954 = vmatpush2.msra.mxu0 0.0
    %7955 = vmatprep.subr.mxu0 0.0
    %7956 = vmatpush2.msra.mxu0 0.0
    %7957 = vmatprep.subr.mxu0 0.0
    %7958 = vmatpush2.msra.mxu0 0.0
    %7959 = vmatprep.subr.mxu0 0.0
    %7960 = vmatpush2.msra.mxu0 0.0
    %7961 = vmatprep.subr.mxu0 0.0
    %7962 = vmatpush2.msra.mxu0 0.0
    %7963 = vmatprep.subr.mxu0 0.0
    %7964 = vmatpush2.msra.mxu0 0.0
    %7965 = vmatprep.subr.mxu0 0.0
    %7966 = vmatpush2.msra.mxu0 0.0
    %7967 = vmatprep.subr.mxu0 0.0
    %7968 = vmatpush2.msra.mxu0 0.0
    %7969 = vmatprep.subr.mxu0 0.0
    %7970 = vmatpush2.msra.mxu0 0.0
    %7971 = vmatprep.subr.mxu0 0.0
    %7972 = vmatpush2.msra.mxu0 0.0
    %7973 = vmatprep.subr.mxu0 0.0
    %7974 = vmatpush2.msra.mxu0 0.0
    %7975 = vmatprep.subr.mxu0 0.0
    %7976 = vmatpush2.msra.mxu0 0.0
    %7977 = vmatprep.mubr.f32.mxu0 0.0
    %7978 = vmatmul.mubr.f32.gmra.mxu0 %v7908
    %v7979 = vpop.f32.mrf.mxu0
    %v7980 = vadd.f32 0.0, %v7979
    %v7981 = vpop.f32.mrf.mxu0
    %7982 = vmatprep.mubr.f32.mxu0 0.0
    %7983 = vmatmul.mubr.f32.gmra.mxu0 %v7911
    %v7984 = vpop.f32.mrf.mxu0
    %v7985 = vadd.f32 0.0, %v7984
    %v7986 = vpop.f32.mrf.mxu0
    %7987 = vdwg.mxu0
    %v7988 = vmul.f32 %v7287, 6.25e-05
    %7989 = vmatprep.subr.mxu0 0.0
    %7990 = vmatpush1.msra.mxu0 0.0
    %7991 = vmatprep.subr.mxu0 0.0
    %7992 = vmatpush1.msra.mxu0 0.0
    %7993 = vmatprep.subr.mxu0 0.0
    %7994 = vmatpush1.msra.mxu0 0.0
    %7995 = vmatprep.subr.mxu0 0.0
    %7996 = vmatpush1.msra.mxu0 0.0
    %7997 = vmatprep.subr.mxu0 0.0
    %7998 = vmatpush1.msra.mxu0 0.0
    %7999 = vmatprep.subr.mxu0 0.0
    %8000 = vmatpush1.msra.mxu0 0.0
    %8001 = vmatprep.subr.mxu0 0.0
    %8002 = vmatpush1.msra.mxu0 0.0
    %8003 = vmatprep.subr.mxu0 0.0
    %8004 = vmatpush1.msra.mxu0 0.0
    %8005 = vmatprep.subr.mxu0 0.0
    %8006 = vmatpush1.msra.mxu0 0.0
    %8007 = vmatprep.subr.mxu0 0.0
    %8008 = vmatpush1.msra.mxu0 0.0
    %8009 = vmatprep.subr.mxu0 0.0
    %8010 = vmatpush1.msra.mxu0 0.0
    %8011 = vmatprep.subr.mxu0 0.0
    %8012 = vmatpush1.msra.mxu0 0.0
    %8013 = vmatprep.subr.mxu0 0.0
    %8014 = vmatpush1.msra.mxu0 0.0
    %8015 = vmatprep.subr.mxu0 0.0
    %8016 = vmatpush1.msra.mxu0 0.0
    %8017 = vmatprep.subr.mxu0 0.0
    %8018 = vmatpush1.msra.mxu0 %v7985
    %8019 = vmatprep.subr.mxu0 0.0
    %8020 = vmatpush1.msra.mxu0 %v7980
    %8021 = vmatprep.subr.mxu0 0.0
    %8022 = vmatpush2.msra.mxu0 0.0
    %8023 = vmatprep.subr.mxu0 0.0
    %8024 = vmatpush2.msra.mxu0 0.0
    %8025 = vmatprep.subr.mxu0 0.0
    %8026 = vmatpush2.msra.mxu0 0.0
    %8027 = vmatprep.subr.mxu0 0.0
    %8028 = vmatpush2.msra.mxu0 0.0
    %8029 = vmatprep.subr.mxu0 0.0
    %8030 = vmatpush2.msra.mxu0 0.0
    %8031 = vmatprep.subr.mxu0 0.0
    %8032 = vmatpush2.msra.mxu0 0.0
    %8033 = vmatprep.subr.mxu0 0.0
    %8034 = vmatpush2.msra.mxu0 0.0
    %8035 = vmatprep.subr.mxu0 0.0
    %8036 = vmatpush2.msra.mxu0 0.0
    %8037 = vmatprep.subr.mxu0 0.0
    %8038 = vmatpush2.msra.mxu0 0.0
    %8039 = vmatprep.subr.mxu0 0.0
    %8040 = vmatpush2.msra.mxu0 0.0
    %8041 = vmatprep.subr.mxu0 0.0
    %8042 = vmatpush2.msra.mxu0 0.0
    %8043 = vmatprep.subr.mxu0 0.0
    %8044 = vmatpush2.msra.mxu0 0.0
    %8045 = vmatprep.subr.mxu0 0.0
    %8046 = vmatpush2.msra.mxu0 0.0
    %8047 = vmatprep.subr.mxu0 0.0
    %8048 = vmatpush2.msra.mxu0 0.0
    %8049 = vmatprep.subr.mxu0 0.0
    %8050 = vmatpush2.msra.mxu0 0.0
    %8051 = vmatprep.subr.mxu0 0.0
    %8052 = vmatpush2.msra.mxu0 0.0
    %8053 = vmatprep.mubr.f32.mxu0 0.0
    %8054 = vmatmul.mubr.f32.gmra.mxu0 %v1012
    %v8055 = vpop.f32.mrf.mxu0
    %v8056 = vadd.f32 %v7988, %v8055
    %v8057 = vpop.f32.mrf.mxu0
    %8058 = vdwg.mxu0
    %s8059 = scalar_lea.vmem [#allocation14], 18
    %8060 = vst.msk [vmem:[%s8059] sm:$0x3] %vm1084, %v8056
    %v8061 = vmul.f32 %v8056, 0.1
    %v8062 = vsub.f32 %v7287, %v8061
    %8063 = vst.msk [vmem:[#allocation13] sm:$0x3] %vm1084, %v8062
    // Predicated region
    $region94: #{tpu_custom_call.1} parent=1 // pred_check
      _
    $region95: #{tpu_custom_call.1} parent=1 // pred_check_branch
      %8065 = sbr.rel (0) target = $region97
    $region96: #{tpu_custom_call.1} parent=1 // pred_region
      %s8067 = ssub.s32 32, 32
      %8068 = vsyncadd [#allocation4], %s8067
      %s8070 = sshll.u32 [#allocation13], 4
      %s8071 = int_to_ptr.vmem [resolvable:$true] %s8070
      %8073 = dma.vmem_to_hbm [thread:$0]  %s8071, 32, %s17, [#allocation4]
    $region97: #{tpu_custom_call.1} parent=1 // pred_fallthru
      _
    // Predicated region
    $region98: #{tpu_custom_call.1} parent=1 // pred_check
      _
    $region99: #{tpu_custom_call.1} parent=1 // pred_check_branch
      %8075 = sbr.rel (0) target = $region101
    $region100: #{tpu_custom_call.1} parent=1 // pred_region
      %s8077 = ssub.s32 320, 320
      %8078 = vsyncadd [#allocation15], %s8077
      %s8079 = sshll.u32 [#allocation14], 4
      %s8080 = int_to_ptr.vmem [resolvable:$true] %s8079
      %8085 = dma.vmem_to_hbm [thread:$0]  %s8080, 320, %s18, [#allocation15], 32, 32, 2
    $region101: #{tpu_custom_call.1} parent=1 // pred_fallthru
      _
    // Predicated region
    $region102: #{tpu_custom_call.1} parent=1 // pred_check
      _
    $region103: #{tpu_custom_call.1} parent=1 // pred_check_branch
      %8087 = sbr.rel (0) target = $region105
    $region104: #{tpu_custom_call.1} parent=1 // pred_region
      %8088 = dma.done [#allocation4], 32
    $region105: #{tpu_custom_call.1} parent=1 // pred_fallthru
      _
    // Predicated region
    $region106: #{tpu_custom_call.1} parent=1 // pred_check
      _
    $region107: #{tpu_custom_call.1} parent=1 // pred_check_branch
      %8090 = sbr.rel (0) target = $region109
    $region108: #{tpu_custom_call.1} parent=1 // pred_region
      %8091 = dma.done [#allocation15], 320
    $region109: #{tpu_custom_call.1} parent=1 // pred_fallthru
      _
    %8092 = vsyncpa [#allocation3], 1
    %8093 = vsyncpa [#allocation6], 1
    %8094 = vsyncpa [#allocation9], 1
    %8095 = vsyncpa [#allocation12], 1
    %8096 = vsyncpa [#allocation4], 1
    %8097 = vsyncpa [#allocation15], 1

</llo_original>
